<compile_context>
chip_gen: v7x
topology: tpu7x:2x2x1
jax: 0.10.0
libtpu: 0.0.40
codegen_flags: <defaults>
</compile_context>

<pallas_src>
import functools

import jax
import jax.numpy as jnp
from jax.experimental import pallas as pl
from jax.experimental.pallas import tpu as pltpu


# ----------------------------------------------------------------------------
# in-kernel math helpers (inputs are always f32 here; exp/sigmoid kept in f32)
# ----------------------------------------------------------------------------
def _sigmoid(v):
    return pl.reciprocal(1.0 + jnp.exp(-v), approx=True)


def _swish(v):
    return v * _sigmoid(v)


# ----------------------------------------------------------------------------
# Pallas kernels
# ----------------------------------------------------------------------------
def _gemm_bn_swish_kernel(x_ref, w_ref, s_ref, b_ref, o_ref):
    """(TR, Cin) @ (Cin, Cout) -> BN affine -> swish. Rows = flattened B*HW."""
    acc = jnp.dot(x_ref[...], w_ref[...], preferred_element_type=jnp.float32)
    y = acc * s_ref[...] + b_ref[...]
    o_ref[...] = _swish(y).astype(o_ref.dtype)


def _dw_core(xp_ref, w_ref, s_ref, b_ref, o_ref, *, kh, kw, stride, strip):
    """Depthwise kxk conv over one padded image, BN affine + swish.

    Works on output-row strips: per strip only a small f32 accumulator lives
    in vregs and the strip is written once (no k*k read-modify-write of a
    full-image VMEM accumulator). Returns the spatial mean of the activated
    output (the SE squeeze) as a (1, C) f32 value.
    """
    _, ho, wo, c = o_ref.shape
    w = w_ref[...].astype(jnp.float32)          # (kh*kw, C), tiny
    scale = s_ref[0]                            # (C,)
    shift = b_ref[0]
    pooled = jnp.zeros((1, c), jnp.float32)
    r0 = 0
    while r0 < ho:                              # static strip loop
        sh = min(strip, ho - r0)
        band_h = (sh - 1) * stride + kh
        band = xp_ref[0, r0 * stride:r0 * stride + band_h, :, :]   # bf16 band
        acc = jnp.zeros((sh, wo, c), jnp.float32)
        for t in range(kh * kw):                # static tap loop (k*k small)
            i, j = t // kw, t % kw
            sl = band[i:i + (sh - 1) * stride + 1:stride,
                      j:j + (wo - 1) * stride + 1:stride, :]
            acc = acc + sl.astype(jnp.float32) * w[t]   # per-slice promote
        y = _swish(acc * scale + shift)
        o_ref[0, r0:r0 + sh] = y.astype(o_ref.dtype)
        pooled = pooled + jnp.sum(y, axis=(0, 1)).reshape(1, c)
        r0 += sh
    return pooled * (1.0 / float(ho * wo))


def _dw_bn_swish_se_kernel(xp_ref, w_ref, s_ref, b_ref,
                           w1_ref, b1_ref, w2_ref, b2_ref,
                           o_ref, g_ref, *, kh, kw, stride, strip):
    """Depthwise conv + BN + swish, with the full SE gate fused in the tail."""
    pooled = _dw_core(xp_ref, w_ref, s_ref, b_ref, o_ref,
                      kh=kh, kw=kw, stride=stride, strip=strip)
    s = jnp.dot(pooled, w1_ref[...],
                preferred_element_type=jnp.float32) + b1_ref[...]
    s = _swish(s)
    e = jnp.dot(s, w2_ref[...],
                preferred_element_type=jnp.float32) + b2_ref[...]
    g_ref[0] = _sigmoid(e).astype(g_ref.dtype)


def _dw_bn_swish_kernel(xp_ref, w_ref, s_ref, b_ref, o_ref,
                        *, kh, kw, stride, strip):
    """Depthwise conv + BN + swish (no SE)."""
    _dw_core(xp_ref, w_ref, s_ref, b_ref, o_ref,
             kh=kh, kw=kw, stride=stride, strip=strip)


def _project_res_kernel(x_ref, g_ref, w_ref, s_ref, b_ref, r_ref, o_ref):
    """(SE gate * x) @ W_project -> BN affine -> + residual. Gate in bf16."""
    xg = x_ref[0] * g_ref[0]                    # (TR,Cexp) bf16 * (1,Cexp) bf16
    acc = jnp.dot(xg, w_ref[...], preferred_element_type=jnp.float32)
    y = acc * s_ref[...] + b_ref[...]
    o_ref[0] = (y + r_ref[0]).astype(o_ref.dtype)


def _project_kernel(x_ref, g_ref, w_ref, s_ref, b_ref, o_ref):
    """(SE gate * x) @ W_project -> BN affine (no skip connection)."""
    xg = x_ref[0] * g_ref[0]
    acc = jnp.dot(xg, w_ref[...], preferred_element_type=jnp.float32)
    o_ref[0] = (acc * s_ref[...] + b_ref[...]).astype(o_ref.dtype)


# ----------------------------------------------------------------------------
# kernel wrappers
# ----------------------------------------------------------------------------
def _row_tile(rows, cap=512):
    """Row tile capped at `cap` (keeps double-buffered blocks well under the
    32 MiB scoped VMEM on v6e/v7x); round small row counts up to 8."""
    if rows >= cap:
        tr = cap
    else:
        tr = max(8, -(-rows // 8) * 8)
    rows_p = -(-rows // tr) * tr
    return tr, rows_p


def expand_conv_bn_swish(x2d, w, scale, shift):
    """1x1 conv (bias=False) + BN + swish on (B*HW, Cin) -> (B*HW, Cexp)."""
    rows, cin = x2d.shape
    cout = w.shape[1]
    tr, rows_p = _row_tile(rows)
    if rows_p != rows:
        x2d = jnp.pad(x2d, ((0, rows_p - rows), (0, 0)))
    out = pl.pallas_call(
        _gemm_bn_swish_kernel,
        out_shape=jax.ShapeDtypeStruct((rows_p, cout), jnp.bfloat16),
        grid=(rows_p // tr,),
        in_specs=[
            pl.BlockSpec((tr, cin), lambda i: (i, 0)),
            pl.BlockSpec((cin, cout), lambda i: (0, 0)),
            pl.BlockSpec((1, cout), lambda i: (0, 0)),
            pl.BlockSpec((1, cout), lambda i: (0, 0)),
        ],
        out_specs=pl.BlockSpec((tr, cout), lambda i: (i, 0)),
        compiler_params=pltpu.CompilerParams(
            dimension_semantics=("parallel",)),
    )(x2d.astype(jnp.bfloat16), w.astype(jnp.bfloat16), scale, shift)
    return out[:rows] if rows_p != rows else out


def depthwise_bn_swish_se(x, w, scale, shift, se_params, stride):
    """Depthwise conv (TF SAME padding) + BN + swish, SE gate fused.

    x: (B,H,W,C) NHWC bf16.  Returns (y, gate) with gate (B,1,C) bf16, or
    (y, None) when se_params is None.
    """
    b, h, wd, c = x.shape
    kh, kw = w.shape[0], w.shape[1]
    ho = -(-h // stride)
    wo = -(-wd // stride)
    pad_h = max((ho - 1) * stride + kh - h, 0)
    pad_w = max((wo - 1) * stride + kw - wd, 0)
    # TODO(synk): the SAME-pad halo is built with one XLA pad pass; folding it
    # into the kernel (zero-filled VMEM scratch) would save one HBM round trip.
    xp = jnp.pad(x, ((0, 0),
                     (pad_h // 2, pad_h - pad_h // 2),
                     (pad_w // 2, pad_w - pad_w // 2),
                     (0, 0)))
    hp, wp = xp.shape[1], xp.shape[2]
    w2 = w.reshape(kh * kw, c).astype(jnp.bfloat16)
    strip = 8 if ho >= 8 else ho
    # TODO(synk): for very large spatial maps the per-image block should be
    # H-tiled with (k-1)-row halos; at DSFD/EfficientNet head sizes one padded
    # image per grid step fits comfortably in VMEM.
    common_in = [
        pl.BlockSpec((1, hp, wp, c), lambda i: (i, 0, 0, 0)),
        pl.BlockSpec((kh * kw, c), lambda i: (0, 0)),
        pl.BlockSpec((1, c), lambda i: (0, 0)),
        pl.BlockSpec((1, c), lambda i: (0, 0)),
    ]
    cp = pltpu.CompilerParams(dimension_semantics=("parallel",))
    if se_params is not None:
        w1, b1, w2se, b2 = se_params
        csq = w1.shape[1]
        kernel = functools.partial(_dw_bn_swish_se_kernel,
                                   kh=kh, kw=kw, stride=stride, strip=strip)
        y, gate = pl.pallas_call(
            kernel,
            out_shape=(jax.ShapeDtypeStruct((b, ho, wo, c), jnp.bfloat16),
                       jax.ShapeDtypeStruct((b, 1, c), jnp.bfloat16)),
            grid=(b,),
            in_specs=common_in + [
                pl.BlockSpec((c, csq), lambda i: (0, 0)),
                pl.BlockSpec((1, csq), lambda i: (0, 0)),
                pl.BlockSpec((csq, c), lambda i: (0, 0)),
                pl.BlockSpec((1, c), lambda i: (0, 0)),
            ],
            out_specs=(pl.BlockSpec((1, ho, wo, c), lambda i: (i, 0, 0, 0)),
                       pl.BlockSpec((1, 1, c), lambda i: (i, 0, 0))),
            compiler_params=cp,
        )(xp, w2, scale, shift, w1, b1, w2se, b2)
        return y, gate
    kernel = functools.partial(_dw_bn_swish_kernel,
                               kh=kh, kw=kw, stride=stride, strip=strip)
    y = pl.pallas_call(
        kernel,
        out_shape=jax.ShapeDtypeStruct((b, ho, wo, c), jnp.bfloat16),
        grid=(b,),
        in_specs=common_in,
        out_specs=pl.BlockSpec((1, ho, wo, c), lambda i: (i, 0, 0, 0)),
        compiler_params=cp,
    )(xp, w2, scale, shift)
    return y, None


def project_conv_bn(x3d, gate3, w, scale, shift, residual):
    """SE-gated project 1x1 conv + BN (+ optional identity skip), fused.

    x3d: (B, HW, Cexp) bf16 ; gate3: (B, 1, Cexp) ; w: (Cexp, Cout) ;
    residual: (B, HW, Cout) f32 or None.
    """
    b, hw, cexp = x3d.shape
    cout = w.shape[1]
    tr, hwp = _row_tile(hw)
    if hwp != hw:
        x3d = jnp.pad(x3d, ((0, 0), (0, hwp - hw), (0, 0)))
        if residual is not None:
            residual = jnp.pad(residual, ((0, 0), (0, hwp - hw), (0, 0)))
    grid = (b, hwp // tr)
    x_spec = pl.BlockSpec((1, tr, cexp), lambda i, j: (i, j, 0))
    g_spec = pl.BlockSpec((1, 1, cexp), lambda i, j: (i, 0, 0))
    w_spec = pl.BlockSpec((cexp, cout), lambda i, j: (0, 0))
    v_spec = pl.BlockSpec((1, cout), lambda i, j: (0, 0))
    o_spec = pl.BlockSpec((1, tr, cout), lambda i, j: (i, j, 0))
    cp = pltpu.CompilerParams(dimension_semantics=("parallel", "parallel"))
    xb = x3d.astype(jnp.bfloat16)
    gb = gate3.astype(jnp.bfloat16)
    wb = w.astype(jnp.bfloat16)
    # TODO(synk): project output stays (B,HW,Cout) + XLA NHWC->NCHW transpose;
    # an in-kernel (Cout,TR) lane-dense transposed store would avoid the
    # masked Cout=32 stores but depends on Mosaic 2-D transpose support.
    if residual is not None:
        r_spec = pl.BlockSpec((1, tr, cout), lambda i, j: (i, j, 0))
        out = pl.pallas_call(
            _project_res_kernel,
            out_shape=jax.ShapeDtypeStruct((b, hwp, cout), jnp.float32),
            grid=grid,
            in_specs=[x_spec, g_spec, w_spec, v_spec, v_spec, r_spec],
            out_specs=o_spec,
            compiler_params=cp,
        )(xb, gb, wb, scale, shift, residual.astype(jnp.float32))
    else:
        out = pl.pallas_call(
            _project_kernel,
            out_shape=jax.ShapeDtypeStruct((b, hwp, cout), jnp.float32),
            grid=grid,
            in_specs=[x_spec, g_spec, w_spec, v_spec, v_spec],
            out_specs=o_spec,
            compiler_params=cp,
        )(xb, gb, wb, scale, shift)
    return out[:, :hw] if hwp != hw else out


# ----------------------------------------------------------------------------
# parameters (deterministic synthetic), eval-mode BN folded to affine
# ----------------------------------------------------------------------------
BN_EPS = 1e-3  # EfficientNet global_params.batch_norm_epsilon


def _fold_bn(key, c):
    gamma = jnp.ones((c,), jnp.float32)
    beta = jnp.zeros((c,), jnp.float32)
    mean = 0.1 * jax.random.normal(key, (c,), jnp.float32)
    var = jnp.ones((c,), jnp.float32)
    scale = gamma / jnp.sqrt(var + BN_EPS)
    shift = beta - mean * scale
    return scale.reshape(1, c), shift.reshape(1, c)


def init_params(key, args):
    cin = args["input_filters"]
    cexp = cin * args["expand_ratio"]
    cout = args["output_filters"]
    k = args["kernel_size"]
    csq = max(1, int(cin * args["se_ratio"]))
    ks = jax.random.split(key, 10)

    def rnd(kk, shape, fan_in):
        return jax.random.normal(kk, shape, jnp.float32) / float(fan_in) ** 0.5

    p = {}
    if args["expand_ratio"] != 1:
        p["expand_w"] = rnd(ks[0], (cin, cexp), cin)
        p["bn0_scale"], p["bn0_shift"] = _fold_bn(ks[1], cexp)
    p["dw_w"] = rnd(ks[2], (k, k, cexp), k * k)
    p["bn1_scale"], p["bn1_shift"] = _fold_bn(ks[3], cexp)
    p["se_r_w"] = rnd(ks[4], (cexp, csq), cexp)
    p["se_r_b"] = jnp.zeros((1, csq), jnp.float32)
    p["se_e_w"] = rnd(ks[5], (csq, cexp), csq)
    p["se_e_b"] = jnp.zeros((1, cexp), jnp.float32)
    p["proj_w"] = rnd(ks[6], (cexp, cout), cexp)
    p["bn2_scale"], p["bn2_shift"] = _fold_bn(ks[7], cout)
    return p


# ----------------------------------------------------------------------------
# MBConvBlock forward
# ----------------------------------------------------------------------------
def mbconv_forward(params, x_nchw, args):
    # TODO(synk): BatchNorm uses folded eval-mode running statistics;
    # training-mode batch statistics are not computed.
    x = jnp.transpose(x_nchw, (0, 2, 3, 1))          # NCHW -> NHWC
    b, h, w, cin = x.shape
    hw = h * w

    # expand conv (only when expand_ratio != 1) + BN0 + swish
    if args["expand_ratio"] != 1:
        h1 = expand_conv_bn_swish(x.reshape(b * hw, cin),
                                  params["expand_w"],
                                  params["bn0_scale"], params["bn0_shift"])
        h1 = h1.reshape(b, h, w, -1)
    else:
        h1 = x.astype(jnp.bfloat16)

    # depthwise conv + BN1 + swish + fused SE gate
    se_params = None
    if args["has_se"]:
        se_params = (params["se_r_w"], params["se_r_b"],
                     params["se_e_w"], params["se_e_b"])
    y, gate = depthwise_bn_swish_se(h1, params["dw_w"],
                                    params["bn1_scale"], params["bn1_shift"],
                                    se_params, stride=args["stride"])
    bo, ho, wo, cexp = y.shape
    if gate is None:
        gate = jnp.ones((bo, 1, cexp), jnp.bfloat16)

    # project conv + BN2 (+ identity skip), SE multiply fused into the GEMM
    id_skip = (args["id_skip"] and args["stride"] == 1
               and args["input_filters"] == args["output_filters"])
    residual = x.reshape(b, hw, cin) if id_skip else None
    # TODO(synk): drop_connect (training-only stochastic depth) is not applied
    # (drop_connect_rate=None path of the PyTorch forward).
    out = project_conv_bn(y.reshape(bo, ho * wo, cexp), gate,
                          params["proj_w"],
                          params["bn2_scale"], params["bn2_shift"],
                          residual)
    out = out.reshape(bo, ho, wo, args["output_filters"])
    return jnp.transpose(out, (0, 3, 1, 2))          # NHWC -> NCHW


# ----------------------------------------------------------------------------
if __name__ == "__main__":
    BLOCK_ARGS = dict(
        input_filters=32, output_filters=32, expand_ratio=6,
        kernel_size=3, stride=1, se_ratio=0.25, id_skip=True, has_se=True,
    )

    key = jax.random.PRNGKey(0)
    pkey, xkey = jax.random.split(key)
    params = init_params(pkey, BLOCK_ARGS)
    x = jax.random.normal(xkey, (2, 32, 16, 16), jnp.float32)  # NCHW like torch

    fwd = jax.jit(lambda p, inp: mbconv_forward(p, inp, BLOCK_ARGS))
    out = jax.block_until_ready(fwd(params, x))

    assert out.shape == (2, 32, 16, 16), out.shape
    assert bool(jnp.all(jnp.isfinite(out)))
    print("KERNEL_OK")
</pallas_src>

<mosaic_0001>
module attributes {stable_mosaic.version = 11 : i64} {
  func.func @_gemm_bn_swish_kernel(%arg0: i32, %arg1: memref<512x32xbf16, #tpu.memory_space<vmem>>, %arg2: memref<32x192xbf16, #tpu.memory_space<vmem>>, %arg3: memref<1x192xf32, #tpu.memory_space<vmem>>, %arg4: memref<1x192xf32, #tpu.memory_space<vmem>>, %arg5: memref<512x192xbf16, #tpu.memory_space<vmem>>) attributes {dimension_semantics = [#tpu.dimension_semantics<parallel>], iteration_bounds = array<i64: 1>, scalar_prefetch = 0 : i64, scratch_operands = 0 : i64, tpu.core_type = #tpu.core_type<tc>, window_params = [{transform_indices = @transform_0, window_bounds = array<i64: 512, 32>}, {pipeline_mode = #tpu.pipeline_mode<synchronous>, transform_indices = @transform_1, window_bounds = array<i64: 32, 192>}, {pipeline_mode = #tpu.pipeline_mode<synchronous>, transform_indices = @transform_2, window_bounds = array<i64: 1, 192>}, {pipeline_mode = #tpu.pipeline_mode<synchronous>, transform_indices = @transform_3, window_bounds = array<i64: 1, 192>}, {transform_indices = @transform_4, window_bounds = array<i64: 512, 192>}]} {
    %c0 = arith.constant 0 : index
    %c0_0 = arith.constant 0 : index
    %0 = vector.load %arg1[%c0, %c0_0] : memref<512x32xbf16, #tpu.memory_space<vmem>>, vector<512x32xbf16>
    %c0_1 = arith.constant 0 : index
    %c0_2 = arith.constant 0 : index
    %1 = vector.load %arg2[%c0_1, %c0_2] : memref<32x192xbf16, #tpu.memory_space<vmem>>, vector<32x192xbf16>
    %cst = arith.constant dense<0.000000e+00> : vector<512x192xf32>
    %2 = tpu.matmul %0, %1, %cst {dimension_numbers = #tpu.dot_dimension_numbers<[1], [0], [0], [1], [0, 0, 1, 1], [], []>} : vector<512x32xbf16>, vector<32x192xbf16>, vector<512x192xf32> -> vector<512x192xf32>
    %c0_3 = arith.constant 0 : index
    %c0_4 = arith.constant 0 : index
    %3 = vector.load %arg3[%c0_3, %c0_4] : memref<1x192xf32, #tpu.memory_space<vmem>>, vector<1x192xf32>
    %4 = vector.broadcast %3 : vector<1x192xf32> to vector<512x192xf32>
    %5 = arith.mulf %2, %4 : vector<512x192xf32>
    %c0_5 = arith.constant 0 : index
    %c0_6 = arith.constant 0 : index
    %6 = vector.load %arg4[%c0_5, %c0_6] : memref<1x192xf32, #tpu.memory_space<vmem>>, vector<1x192xf32>
    %7 = vector.broadcast %6 : vector<1x192xf32> to vector<512x192xf32>
    %8 = arith.addf %5, %7 : vector<512x192xf32>
    %cst_7 = arith.constant 0.000000e+00 : f32
    %9 = vector.broadcast %cst_7 : f32 to vector<512x192xf32>
    %10 = arith.subf %9, %8 : vector<512x192xf32>
    %11 = math.exp %10 : vector<512x192xf32>
    %cst_8 = arith.constant 1.000000e+00 : f32
    %12 = vector.broadcast %cst_8 : f32 to vector<512x192xf32>
    %13 = arith.addf %12, %11 : vector<512x192xf32>
    %14 = tpu.reciprocal %13 {approx = true} : vector<512x192xf32> -> vector<512x192xf32>
    %15 = arith.mulf %8, %14 : vector<512x192xf32>
    %16 = arith.truncf %15 : vector<512x192xf32> to vector<512x192xbf16>
    %c0_9 = arith.constant 0 : index
    %c0_10 = arith.constant 0 : index
    %17 = vector.load %arg5[%c0_9, %c0_10] : memref<512x192xbf16, #tpu.memory_space<vmem>>, vector<512x192xbf16>
    tpu.vector_store %arg5[%c0_9, %c0_10], %16 {strides = array<i32>} : memref<512x192xbf16, #tpu.memory_space<vmem>>, vector<512x192xbf16>,
    return
  }
  func.func @transform_0(%arg0: i32) -> (i32, i32) {
    %c0_i32 = arith.constant 0 : i32
    %c0_i32_0 = arith.constant 0 : i32
    return %arg0, %c0_i32 : i32, i32
  }
  func.func @transform_1(%arg0: i32) -> (i32, i32) {
    %c0_i32 = arith.constant 0 : i32
    %c0_i32_0 = arith.constant 0 : i32
    %c0_i32_1 = arith.constant 0 : i32
    return %c0_i32, %c0_i32_0 : i32, i32
  }
  func.func @transform_2(%arg0: i32) -> (i32, i32) {
    %c0_i32 = arith.constant 0 : i32
    %c0_i32_0 = arith.constant 0 : i32
    %c0_i32_1 = arith.constant 0 : i32
    return %c0_i32, %c0_i32_0 : i32, i32
  }
  func.func @transform_3(%arg0: i32) -> (i32, i32) {
    %c0_i32 = arith.constant 0 : i32
    %c0_i32_0 = arith.constant 0 : i32
    %c0_i32_1 = arith.constant 0 : i32
    return %c0_i32, %c0_i32_0 : i32, i32
  }
  func.func @transform_4(%arg0: i32) -> (i32, i32) {
    %c0_i32 = arith.constant 0 : i32
    %c0_i32_0 = arith.constant 0 : i32
    return %arg0, %c0_i32 : i32, i32
  }
}

module attributes {stable_mosaic.version = 11 : i64} {
  func.func @_project_res_kernel(%arg0: i32, %arg1: i32, %arg2: memref<1x256x192xbf16, #tpu.memory_space<vmem>>, %arg3: memref<1x1x192xbf16, #tpu.memory_space<vmem>>, %arg4: memref<192x32xbf16, #tpu.memory_space<vmem>>, %arg5: memref<1x32xf32, #tpu.memory_space<vmem>>, %arg6: memref<1x32xf32, #tpu.memory_space<vmem>>, %arg7: memref<1x256x32xf32, #tpu.memory_space<vmem>>, %arg8: memref<1x256x32xf32, #tpu.memory_space<vmem>>) attributes {dimension_semantics = [#tpu.dimension_semantics<parallel>, #tpu.dimension_semantics<parallel>], iteration_bounds = array<i64: 2, 1>, scalar_prefetch = 0 : i64, scratch_operands = 0 : i64, tpu.core_type = #tpu.core_type<tc>, window_params = [{transform_indices = @transform_0, window_bounds = array<i64: 1, 256, 192>}, {transform_indices = @transform_1, window_bounds = array<i64: 1, 1, 192>}, {pipeline_mode = #tpu.pipeline_mode<synchronous>, transform_indices = @transform_2, window_bounds = array<i64: 192, 32>}, {pipeline_mode = #tpu.pipeline_mode<synchronous>, transform_indices = @transform_3, window_bounds = array<i64: 1, 32>}, {pipeline_mode = #tpu.pipeline_mode<synchronous>, transform_indices = @transform_4, window_bounds = array<i64: 1, 32>}, {transform_indices = @transform_5, window_bounds = array<i64: 1, 256, 32>}, {transform_indices = @transform_6, window_bounds = array<i64: 1, 256, 32>}]} {
    %c0 = arith.constant 0 : index
    %c0_0 = arith.constant 0 : index
    %c0_1 = arith.constant 0 : index
    %0 = vector.load %arg2[%c0, %c0_0, %c0_1] : memref<1x256x192xbf16, #tpu.memory_space<vmem>>, vector<1x256x192xbf16>
    %1 = vector.shape_cast %0 : vector<1x256x192xbf16> to vector<256x192xbf16>
    %c0_2 = arith.constant 0 : index
    %c0_3 = arith.constant 0 : index
    %c0_4 = arith.constant 0 : index
    %2 = vector.load %arg3[%c0_2, %c0_3, %c0_4] : memref<1x1x192xbf16, #tpu.memory_space<vmem>>, vector<1x1x192xbf16>
    %3 = vector.shape_cast %2 : vector<1x1x192xbf16> to vector<1x192xbf16>
    %4 = vector.broadcast %3 : vector<1x192xbf16> to vector<256x192xbf16>
    %5 = arith.mulf %1, %4 : vector<256x192xbf16>
    %c0_5 = arith.constant 0 : index
    %c0_6 = arith.constant 0 : index
    %6 = vector.load %arg4[%c0_5, %c0_6] : memref<192x32xbf16, #tpu.memory_space<vmem>>, vector<192x32xbf16>
    %cst = arith.constant dense<0.000000e+00> : vector<256x32xf32>
    %7 = tpu.matmul %5, %6, %cst {dimension_numbers = #tpu.dot_dimension_numbers<[1], [0], [0], [1], [0, 0, 1, 1], [], []>} : vector<256x192xbf16>, vector<192x32xbf16>, vector<256x32xf32> -> vector<256x32xf32>
    %c0_7 = arith.constant 0 : index
    %c0_8 = arith.constant 0 : index
    %8 = vector.load %arg5[%c0_7, %c0_8] : memref<1x32xf32, #tpu.memory_space<vmem>>, vector<1x32xf32>
    %9 = vector.broadcast %8 : vector<1x32xf32> to vector<256x32xf32>
    %10 = arith.mulf %7, %9 : vector<256x32xf32>
    %c0_9 = arith.constant 0 : index
    %c0_10 = arith.constant 0 : index
    %11 = vector.load %arg6[%c0_9, %c0_10] : memref<1x32xf32, #tpu.memory_space<vmem>>, vector<1x32xf32>
    %12 = vector.broadcast %11 : vector<1x32xf32> to vector<256x32xf32>
    %13 = arith.addf %10, %12 : vector<256x32xf32>
    %c0_11 = arith.constant 0 : index
    %c0_12 = arith.constant 0 : index
    %c0_13 = arith.constant 0 : index
    %14 = vector.load %arg7[%c0_11, %c0_12, %c0_13] : memref<1x256x32xf32, #tpu.memory_space<vmem>>, vector<1x256x32xf32>
    %15 = vector.shape_cast %14 : vector<1x256x32xf32> to vector<256x32xf32>
    %16 = arith.addf %13, %15 : vector<256x32xf32>
    %c0_14 = arith.constant 0 : index
    %c0_15 = arith.constant 0 : index
    %c0_16 = arith.constant 0 : index
    %17 = vector.load %arg8[%c0_14, %c0_15, %c0_16] : memref<1x256x32xf32, #tpu.memory_space<vmem>>, vector<1x256x32xf32>
    %18 = vector.shape_cast %17 : vector<1x256x32xf32> to vector<256x32xf32>
    %19 = vector.shape_cast %16 : vector<256x32xf32> to vector<1x256x32xf32>
    tpu.vector_store %arg8[%c0_14, %c0_15, %c0_16], %19 {strides = array<i32>} : memref<1x256x32xf32, #tpu.memory_space<vmem>>, vector<1x256x32xf32>,
    return
  }
  func.func @transform_0(%arg0: i32, %arg1: i32) -> (i32, i32, i32) {
    %c0_i32 = arith.constant 0 : i32
    %c0_i32_0 = arith.constant 0 : i32
    return %arg0, %arg1, %c0_i32 : i32, i32, i32
  }
  func.func @transform_1(%arg0: i32, %arg1: i32) -> (i32, i32, i32) {
    %c0_i32 = arith.constant 0 : i32
    %c0_i32_0 = arith.constant 0 : i32
    %c0_i32_1 = arith.constant 0 : i32
    return %arg0, %c0_i32, %c0_i32_0 : i32, i32, i32
  }
  func.func @transform_2(%arg0: i32, %arg1: i32) -> (i32, i32) {
    %c0_i32 = arith.constant 0 : i32
    %c0_i32_0 = arith.constant 0 : i32
    %c0_i32_1 = arith.constant 0 : i32
    return %c0_i32, %c0_i32_0 : i32, i32
  }
  func.func @transform_3(%arg0: i32, %arg1: i32) -> (i32, i32) {
    %c0_i32 = arith.constant 0 : i32
    %c0_i32_0 = arith.constant 0 : i32
    %c0_i32_1 = arith.constant 0 : i32
    return %c0_i32, %c0_i32_0 : i32, i32
  }
  func.func @transform_4(%arg0: i32, %arg1: i32) -> (i32, i32) {
    %c0_i32 = arith.constant 0 : i32
    %c0_i32_0 = arith.constant 0 : i32
    %c0_i32_1 = arith.constant 0 : i32
    return %c0_i32, %c0_i32_0 : i32, i32
  }
  func.func @transform_5(%arg0: i32, %arg1: i32) -> (i32, i32, i32) {
    %c0_i32 = arith.constant 0 : i32
    %c0_i32_0 = arith.constant 0 : i32
    return %arg0, %arg1, %c0_i32 : i32, i32, i32
  }
  func.func @transform_6(%arg0: i32, %arg1: i32) -> (i32, i32, i32) {
    %c0_i32 = arith.constant 0 : i32
    %c0_i32_0 = arith.constant 0 : i32
    return %arg0, %arg1, %c0_i32 : i32, i32, i32
  }
}

module attributes {stable_mosaic.version = 11 : i64} {
  func.func @_dw_bn_swish_se_kernel(%arg0: i32, %arg1: memref<1x18x18x192xbf16, #tpu.memory_space<vmem>>, %arg2: memref<9x192xbf16, #tpu.memory_space<vmem>>, %arg3: memref<1x192xf32, #tpu.memory_space<vmem>>, %arg4: memref<1x192xf32, #tpu.memory_space<vmem>>, %arg5: memref<192x8xf32, #tpu.memory_space<vmem>>, %arg6: memref<1x8xf32, #tpu.memory_space<vmem>>, %arg7: memref<8x192xf32, #tpu.memory_space<vmem>>, %arg8: memref<1x192xf32, #tpu.memory_space<vmem>>, %arg9: memref<1x16x16x192xbf16, #tpu.memory_space<vmem>>, %arg10: memref<1x1x192xbf16, #tpu.memory_space<vmem>>) attributes {dimension_semantics = [#tpu.dimension_semantics<parallel>], iteration_bounds = array<i64: 2>, scalar_prefetch = 0 : i64, scratch_operands = 0 : i64, tpu.core_type = #tpu.core_type<tc>, window_params = [{transform_indices = @transform_0, window_bounds = array<i64: 1, 18, 18, 192>}, {pipeline_mode = #tpu.pipeline_mode<synchronous>, transform_indices = @transform_1, window_bounds = array<i64: 9, 192>}, {pipeline_mode = #tpu.pipeline_mode<synchronous>, transform_indices = @transform_2, window_bounds = array<i64: 1, 192>}, {pipeline_mode = #tpu.pipeline_mode<synchronous>, transform_indices = @transform_3, window_bounds = array<i64: 1, 192>}, {pipeline_mode = #tpu.pipeline_mode<synchronous>, transform_indices = @transform_4, window_bounds = array<i64: 192, 8>}, {pipeline_mode = #tpu.pipeline_mode<synchronous>, transform_indices = @transform_5, window_bounds = array<i64: 1, 8>}, {pipeline_mode = #tpu.pipeline_mode<synchronous>, transform_indices = @transform_6, window_bounds = array<i64: 8, 192>}, {pipeline_mode = #tpu.pipeline_mode<synchronous>, transform_indices = @transform_7, window_bounds = array<i64: 1, 192>}, {transform_indices = @transform_8, window_bounds = array<i64: 1, 16, 16, 192>}, {transform_indices = @transform_9, window_bounds = array<i64: 1, 1, 192>}]} {
    %c0 = arith.constant 0 : index
    %c0_0 = arith.constant 0 : index
    %0 = vector.load %arg2[%c0, %c0_0] : memref<9x192xbf16, #tpu.memory_space<vmem>>, vector<9x192xbf16>
    %1 = arith.extf %0 : vector<9x192xbf16> to vector<9x192xf32>
    %c0_1 = arith.constant 0 : index
    %c0_2 = arith.constant 0 : index
    %2 = vector.load %arg3[%c0_1, %c0_2] : memref<1x192xf32, #tpu.memory_space<vmem>>, vector<1x192xf32>
    %3 = vector.shape_cast %2 : vector<1x192xf32> to vector<192xf32>
    %c0_3 = arith.constant 0 : index
    %c0_4 = arith.constant 0 : index
    %4 = vector.load %arg4[%c0_3, %c0_4] : memref<1x192xf32, #tpu.memory_space<vmem>>, vector<1x192xf32>
    %5 = vector.shape_cast %4 : vector<1x192xf32> to vector<192xf32>
    %cst = arith.constant 0.000000e+00 : f32
    %6 = vector.broadcast %cst : f32 to vector<1x192xf32>
    %c0_5 = arith.constant 0 : index
    %c0_6 = arith.constant 0 : index
    %c0_7 = arith.constant 0 : index
    %c0_8 = arith.constant 0 : index
    %7 = vector.load %arg1[%c0_5, %c0_6, %c0_7, %c0_8] : memref<1x18x18x192xbf16, #tpu.memory_space<vmem>>, vector<1x10x18x192xbf16>
    %8 = vector.shape_cast %7 : vector<1x10x18x192xbf16> to vector<10x18x192xbf16>
    %cst_9 = arith.constant 0.000000e+00 : f32
    %9 = vector.broadcast %cst_9 : f32 to vector<8x16x192xf32>
    %10 = vector.extract_strided_slice %8 {offsets = [0, 0, 0], sizes = [8, 16, 192], strides = [1, 1, 1]} : vector<10x18x192xbf16> to vector<8x16x192xbf16>
    %11 = arith.extf %10 : vector<8x16x192xbf16> to vector<8x16x192xf32>
    %12 = vector.extract_strided_slice %1 {offsets = [0, 0], sizes = [1, 192], strides = [1, 1]} : vector<9x192xf32> to vector<1x192xf32>
    %13 = vector.shape_cast %12 : vector<1x192xf32> to vector<192xf32>
    %14 = vector.shape_cast %13 : vector<192xf32> to vector<1x1x192xf32>
    %15 = vector.broadcast %14 : vector<1x1x192xf32> to vector<8x16x192xf32>
    %16 = arith.mulf %11, %15 : vector<8x16x192xf32>
    %17 = arith.addf %9, %16 : vector<8x16x192xf32>
    %18 = vector.extract_strided_slice %8 {offsets = [0, 1, 0], sizes = [8, 16, 192], strides = [1, 1, 1]} : vector<10x18x192xbf16> to vector<8x16x192xbf16>
    %19 = arith.extf %18 : vector<8x16x192xbf16> to vector<8x16x192xf32>
    %20 = vector.extract_strided_slice %1 {offsets = [1, 0], sizes = [1, 192], strides = [1, 1]} : vector<9x192xf32> to vector<1x192xf32>
    %21 = vector.shape_cast %20 : vector<1x192xf32> to vector<192xf32>
    %22 = vector.shape_cast %21 : vector<192xf32> to vector<1x1x192xf32>
    %23 = vector.broadcast %22 : vector<1x1x192xf32> to vector<8x16x192xf32>
    %24 = arith.mulf %19, %23 : vector<8x16x192xf32>
    %25 = arith.addf %17, %24 : vector<8x16x192xf32>
    %26 = vector.extract_strided_slice %8 {offsets = [0, 2, 0], sizes = [8, 16, 192], strides = [1, 1, 1]} : vector<10x18x192xbf16> to vector<8x16x192xbf16>
    %27 = arith.extf %26 : vector<8x16x192xbf16> to vector<8x16x192xf32>
    %28 = vector.extract_strided_slice %1 {offsets = [2, 0], sizes = [1, 192], strides = [1, 1]} : vector<9x192xf32> to vector<1x192xf32>
    %29 = vector.shape_cast %28 : vector<1x192xf32> to vector<192xf32>
    %30 = vector.shape_cast %29 : vector<192xf32> to vector<1x1x192xf32>
    %31 = vector.broadcast %30 : vector<1x1x192xf32> to vector<8x16x192xf32>
    %32 = arith.mulf %27, %31 : vector<8x16x192xf32>
    %33 = arith.addf %25, %32 : vector<8x16x192xf32>
    %34 = vector.extract_strided_slice %8 {offsets = [1, 0, 0], sizes = [8, 16, 192], strides = [1, 1, 1]} : vector<10x18x192xbf16> to vector<8x16x192xbf16>
    %35 = arith.extf %34 : vector<8x16x192xbf16> to vector<8x16x192xf32>
    %36 = vector.extract_strided_slice %1 {offsets = [3, 0], sizes = [1, 192], strides = [1, 1]} : vector<9x192xf32> to vector<1x192xf32>
    %37 = vector.shape_cast %36 : vector<1x192xf32> to vector<192xf32>
    %38 = vector.shape_cast %37 : vector<192xf32> to vector<1x1x192xf32>
    %39 = vector.broadcast %38 : vector<1x1x192xf32> to vector<8x16x192xf32>
    %40 = arith.mulf %35, %39 : vector<8x16x192xf32>
    %41 = arith.addf %33, %40 : vector<8x16x192xf32>
    %42 = vector.extract_strided_slice %8 {offsets = [1, 1, 0], sizes = [8, 16, 192], strides = [1, 1, 1]} : vector<10x18x192xbf16> to vector<8x16x192xbf16>
    %43 = arith.extf %42 : vector<8x16x192xbf16> to vector<8x16x192xf32>
    %44 = vector.extract_strided_slice %1 {offsets = [4, 0], sizes = [1, 192], strides = [1, 1]} : vector<9x192xf32> to vector<1x192xf32>
    %45 = vector.shape_cast %44 : vector<1x192xf32> to vector<192xf32>
    %46 = vector.shape_cast %45 : vector<192xf32> to vector<1x1x192xf32>
    %47 = vector.broadcast %46 : vector<1x1x192xf32> to vector<8x16x192xf32>
    %48 = arith.mulf %43, %47 : vector<8x16x192xf32>
    %49 = arith.addf %41, %48 : vector<8x16x192xf32>
    %50 = vector.extract_strided_slice %8 {offsets = [1, 2, 0], sizes = [8, 16, 192], strides = [1, 1, 1]} : vector<10x18x192xbf16> to vector<8x16x192xbf16>
    %51 = arith.extf %50 : vector<8x16x192xbf16> to vector<8x16x192xf32>
    %52 = vector.extract_strided_slice %1 {offsets = [5, 0], sizes = [1, 192], strides = [1, 1]} : vector<9x192xf32> to vector<1x192xf32>
    %53 = vector.shape_cast %52 : vector<1x192xf32> to vector<192xf32>
    %54 = vector.shape_cast %53 : vector<192xf32> to vector<1x1x192xf32>
    %55 = vector.broadcast %54 : vector<1x1x192xf32> to vector<8x16x192xf32>
    %56 = arith.mulf %51, %55 : vector<8x16x192xf32>
    %57 = arith.addf %49, %56 : vector<8x16x192xf32>
    %58 = vector.extract_strided_slice %8 {offsets = [2, 0, 0], sizes = [8, 16, 192], strides = [1, 1, 1]} : vector<10x18x192xbf16> to vector<8x16x192xbf16>
    %59 = arith.extf %58 : vector<8x16x192xbf16> to vector<8x16x192xf32>
    %60 = vector.extract_strided_slice %1 {offsets = [6, 0], sizes = [1, 192], strides = [1, 1]} : vector<9x192xf32> to vector<1x192xf32>
    %61 = vector.shape_cast %60 : vector<1x192xf32> to vector<192xf32>
    %62 = vector.shape_cast %61 : vector<192xf32> to vector<1x1x192xf32>
    %63 = vector.broadcast %62 : vector<1x1x192xf32> to vector<8x16x192xf32>
    %64 = arith.mulf %59, %63 : vector<8x16x192xf32>
    %65 = arith.addf %57, %64 : vector<8x16x192xf32>
    %66 = vector.extract_strided_slice %8 {offsets = [2, 1, 0], sizes = [8, 16, 192], strides = [1, 1, 1]} : vector<10x18x192xbf16> to vector<8x16x192xbf16>
    %67 = arith.extf %66 : vector<8x16x192xbf16> to vector<8x16x192xf32>
    %68 = vector.extract_strided_slice %1 {offsets = [7, 0], sizes = [1, 192], strides = [1, 1]} : vector<9x192xf32> to vector<1x192xf32>
    %69 = vector.shape_cast %68 : vector<1x192xf32> to vector<192xf32>
    %70 = vector.shape_cast %69 : vector<192xf32> to vector<1x1x192xf32>
    %71 = vector.broadcast %70 : vector<1x1x192xf32> to vector<8x16x192xf32>
    %72 = arith.mulf %67, %71 : vector<8x16x192xf32>
    %73 = arith.addf %65, %72 : vector<8x16x192xf32>
    %74 = vector.extract_strided_slice %8 {offsets = [2, 2, 0], sizes = [8, 16, 192], strides = [1, 1, 1]} : vector<10x18x192xbf16> to vector<8x16x192xbf16>
    %75 = arith.extf %74 : vector<8x16x192xbf16> to vector<8x16x192xf32>
    %76 = vector.extract_strided_slice %1 {offsets = [8, 0], sizes = [1, 192], strides = [1, 1]} : vector<9x192xf32> to vector<1x192xf32>
    %77 = vector.shape_cast %76 : vector<1x192xf32> to vector<192xf32>
    %78 = vector.shape_cast %77 : vector<192xf32> to vector<1x1x192xf32>
    %79 = vector.broadcast %78 : vector<1x1x192xf32> to vector<8x16x192xf32>
    %80 = arith.mulf %75, %79 : vector<8x16x192xf32>
    %81 = arith.addf %73, %80 : vector<8x16x192xf32>
    %82 = vector.shape_cast %3 : vector<192xf32> to vector<1x1x192xf32>
    %83 = vector.broadcast %82 : vector<1x1x192xf32> to vector<8x16x192xf32>
    %84 = arith.mulf %81, %83 : vector<8x16x192xf32>
    %85 = vector.shape_cast %5 : vector<192xf32> to vector<1x1x192xf32>
    %86 = vector.broadcast %85 : vector<1x1x192xf32> to vector<8x16x192xf32>
    %87 = arith.addf %84, %86 : vector<8x16x192xf32>
    %cst_10 = arith.constant 0.000000e+00 : f32
    %88 = vector.broadcast %cst_10 : f32 to vector<8x16x192xf32>
    %89 = arith.subf %88, %87 : vector<8x16x192xf32>
    %90 = math.exp %89 : vector<8x16x192xf32>
    %cst_11 = arith.constant 1.000000e+00 : f32
    %91 = vector.broadcast %cst_11 : f32 to vector<8x16x192xf32>
    %92 = arith.addf %91, %90 : vector<8x16x192xf32>
    %93 = tpu.reciprocal %92 {approx = true} : vector<8x16x192xf32> -> vector<8x16x192xf32>
    %94 = arith.mulf %87, %93 : vector<8x16x192xf32>
    %95 = arith.truncf %94 : vector<8x16x192xf32> to vector<8x16x192xbf16>
    %c0_12 = arith.constant 0 : index
    %c0_13 = arith.constant 0 : index
    %c0_14 = arith.constant 0 : index
    %c0_15 = arith.constant 0 : index
    %96 = vector.load %arg9[%c0_12, %c0_13, %c0_14, %c0_15] : memref<1x16x16x192xbf16, #tpu.memory_space<vmem>>, vector<1x8x16x192xbf16>
    %97 = vector.shape_cast %96 : vector<1x8x16x192xbf16> to vector<8x16x192xbf16>
    %98 = vector.shape_cast %95 : vector<8x16x192xbf16> to vector<1x8x16x192xbf16>
    tpu.vector_store %arg9[%c0_12, %c0_13, %c0_14, %c0_15], %98 {strides = array<i32>} : memref<1x16x16x192xbf16, #tpu.memory_space<vmem>>, vector<1x8x16x192xbf16>,
    %cst_16 = arith.constant dense<0.000000e+00> : vector<192xf32>
    %99 = vector.multi_reduction <add>, %94, %cst_16 [0, 1] : vector<8x16x192xf32> to vector<192xf32>
    %100 = vector.shape_cast %99 : vector<192xf32> to vector<1x192xf32>
    %101 = arith.addf %6, %100 : vector<1x192xf32>
    %c0_17 = arith.constant 0 : index
    %c8 = arith.constant 8 : index
    %c0_18 = arith.constant 0 : index
    %c0_19 = arith.constant 0 : index
    %102 = vector.load %arg1[%c0_17, %c8, %c0_18, %c0_19] : memref<1x18x18x192xbf16, #tpu.memory_space<vmem>>, vector<1x10x18x192xbf16>
    %103 = vector.shape_cast %102 : vector<1x10x18x192xbf16> to vector<10x18x192xbf16>
    %cst_20 = arith.constant 0.000000e+00 : f32
    %104 = vector.broadcast %cst_20 : f32 to vector<8x16x192xf32>
    %105 = vector.extract_strided_slice %103 {offsets = [0, 0, 0], sizes = [8, 16, 192], strides = [1, 1, 1]} : vector<10x18x192xbf16> to vector<8x16x192xbf16>
    %106 = arith.extf %105 : vector<8x16x192xbf16> to vector<8x16x192xf32>
    %107 = vector.extract_strided_slice %1 {offsets = [0, 0], sizes = [1, 192], strides = [1, 1]} : vector<9x192xf32> to vector<1x192xf32>
    %108 = vector.shape_cast %107 : vector<1x192xf32> to vector<192xf32>
    %109 = vector.shape_cast %108 : vector<192xf32> to vector<1x1x192xf32>
    %110 = vector.broadcast %109 : vector<1x1x192xf32> to vector<8x16x192xf32>
    %111 = arith.mulf %106, %110 : vector<8x16x192xf32>
    %112 = arith.addf %104, %111 : vector<8x16x192xf32>
    %113 = vector.extract_strided_slice %103 {offsets = [0, 1, 0], sizes = [8, 16, 192], strides = [1, 1, 1]} : vector<10x18x192xbf16> to vector<8x16x192xbf16>
    %114 = arith.extf %113 : vector<8x16x192xbf16> to vector<8x16x192xf32>
    %115 = vector.extract_strided_slice %1 {offsets = [1, 0], sizes = [1, 192], strides = [1, 1]} : vector<9x192xf32> to vector<1x192xf32>
    %116 = vector.shape_cast %115 : vector<1x192xf32> to vector<192xf32>
    %117 = vector.shape_cast %116 : vector<192xf32> to vector<1x1x192xf32>
    %118 = vector.broadcast %117 : vector<1x1x192xf32> to vector<8x16x192xf32>
    %119 = arith.mulf %114, %118 : vector<8x16x192xf32>
    %120 = arith.addf %112, %119 : vector<8x16x192xf32>
    %121 = vector.extract_strided_slice %103 {offsets = [0, 2, 0], sizes = [8, 16, 192], strides = [1, 1, 1]} : vector<10x18x192xbf16> to vector<8x16x192xbf16>
    %122 = arith.extf %121 : vector<8x16x192xbf16> to vector<8x16x192xf32>
    %123 = vector.extract_strided_slice %1 {offsets = [2, 0], sizes = [1, 192], strides = [1, 1]} : vector<9x192xf32> to vector<1x192xf32>
    %124 = vector.shape_cast %123 : vector<1x192xf32> to vector<192xf32>
    %125 = vector.shape_cast %124 : vector<192xf32> to vector<1x1x192xf32>
    %126 = vector.broadcast %125 : vector<1x1x192xf32> to vector<8x16x192xf32>
    %127 = arith.mulf %122, %126 : vector<8x16x192xf32>
    %128 = arith.addf %120, %127 : vector<8x16x192xf32>
    %129 = vector.extract_strided_slice %103 {offsets = [1, 0, 0], sizes = [8, 16, 192], strides = [1, 1, 1]} : vector<10x18x192xbf16> to vector<8x16x192xbf16>
    %130 = arith.extf %129 : vector<8x16x192xbf16> to vector<8x16x192xf32>
    %131 = vector.extract_strided_slice %1 {offsets = [3, 0], sizes = [1, 192], strides = [1, 1]} : vector<9x192xf32> to vector<1x192xf32>
    %132 = vector.shape_cast %131 : vector<1x192xf32> to vector<192xf32>
    %133 = vector.shape_cast %132 : vector<192xf32> to vector<1x1x192xf32>
    %134 = vector.broadcast %133 : vector<1x1x192xf32> to vector<8x16x192xf32>
    %135 = arith.mulf %130, %134 : vector<8x16x192xf32>
    %136 = arith.addf %128, %135 : vector<8x16x192xf32>
    %137 = vector.extract_strided_slice %103 {offsets = [1, 1, 0], sizes = [8, 16, 192], strides = [1, 1, 1]} : vector<10x18x192xbf16> to vector<8x16x192xbf16>
    %138 = arith.extf %137 : vector<8x16x192xbf16> to vector<8x16x192xf32>
    %139 = vector.extract_strided_slice %1 {offsets = [4, 0], sizes = [1, 192], strides = [1, 1]} : vector<9x192xf32> to vector<1x192xf32>
    %140 = vector.shape_cast %139 : vector<1x192xf32> to vector<192xf32>
    %141 = vector.shape_cast %140 : vector<192xf32> to vector<1x1x192xf32>
    %142 = vector.broadcast %141 : vector<1x1x192xf32> to vector<8x16x192xf32>
    %143 = arith.mulf %138, %142 : vector<8x16x192xf32>
    %144 = arith.addf %136, %143 : vector<8x16x192xf32>
    %145 = vector.extract_strided_slice %103 {offsets = [1, 2, 0], sizes = [8, 16, 192], strides = [1, 1, 1]} : vector<10x18x192xbf16> to vector<8x16x192xbf16>
    %146 = arith.extf %145 : vector<8x16x192xbf16> to vector<8x16x192xf32>
    %147 = vector.extract_strided_slice %1 {offsets = [5, 0], sizes = [1, 192], strides = [1, 1]} : vector<9x192xf32> to vector<1x192xf32>
    %148 = vector.shape_cast %147 : vector<1x192xf32> to vector<192xf32>
    %149 = vector.shape_cast %148 : vector<192xf32> to vector<1x1x192xf32>
    %150 = vector.broadcast %149 : vector<1x1x192xf32> to vector<8x16x192xf32>
    %151 = arith.mulf %146, %150 : vector<8x16x192xf32>
    %152 = arith.addf %144, %151 : vector<8x16x192xf32>
    %153 = vector.extract_strided_slice %103 {offsets = [2, 0, 0], sizes = [8, 16, 192], strides = [1, 1, 1]} : vector<10x18x192xbf16> to vector<8x16x192xbf16>
    %154 = arith.extf %153 : vector<8x16x192xbf16> to vector<8x16x192xf32>
    %155 = vector.extract_strided_slice %1 {offsets = [6, 0], sizes = [1, 192], strides = [1, 1]} : vector<9x192xf32> to vector<1x192xf32>
    %156 = vector.shape_cast %155 : vector<1x192xf32> to vector<192xf32>
    %157 = vector.shape_cast %156 : vector<192xf32> to vector<1x1x192xf32>
    %158 = vector.broadcast %157 : vector<1x1x192xf32> to vector<8x16x192xf32>
    %159 = arith.mulf %154, %158 : vector<8x16x192xf32>
    %160 = arith.addf %152, %159 : vector<8x16x192xf32>
    %161 = vector.extract_strided_slice %103 {offsets = [2, 1, 0], sizes = [8, 16, 192], strides = [1, 1, 1]} : vector<10x18x192xbf16> to vector<8x16x192xbf16>
    %162 = arith.extf %161 : vector<8x16x192xbf16> to vector<8x16x192xf32>
    %163 = vector.extract_strided_slice %1 {offsets = [7, 0], sizes = [1, 192], strides = [1, 1]} : vector<9x192xf32> to vector<1x192xf32>
    %164 = vector.shape_cast %163 : vector<1x192xf32> to vector<192xf32>
    %165 = vector.shape_cast %164 : vector<192xf32> to vector<1x1x192xf32>
    %166 = vector.broadcast %165 : vector<1x1x192xf32> to vector<8x16x192xf32>
    %167 = arith.mulf %162, %166 : vector<8x16x192xf32>
    %168 = arith.addf %160, %167 : vector<8x16x192xf32>
    %169 = vector.extract_strided_slice %103 {offsets = [2, 2, 0], sizes = [8, 16, 192], strides = [1, 1, 1]} : vector<10x18x192xbf16> to vector<8x16x192xbf16>
    %170 = arith.extf %169 : vector<8x16x192xbf16> to vector<8x16x192xf32>
    %171 = vector.extract_strided_slice %1 {offsets = [8, 0], sizes = [1, 192], strides = [1, 1]} : vector<9x192xf32> to vector<1x192xf32>
    %172 = vector.shape_cast %171 : vector<1x192xf32> to vector<192xf32>
    %173 = vector.shape_cast %172 : vector<192xf32> to vector<1x1x192xf32>
    %174 = vector.broadcast %173 : vector<1x1x192xf32> to vector<8x16x192xf32>
    %175 = arith.mulf %170, %174 : vector<8x16x192xf32>
    %176 = arith.addf %168, %175 : vector<8x16x192xf32>
    %177 = vector.shape_cast %3 : vector<192xf32> to vector<1x1x192xf32>
    %178 = vector.broadcast %177 : vector<1x1x192xf32> to vector<8x16x192xf32>
    %179 = arith.mulf %176, %178 : vector<8x16x192xf32>
    %180 = vector.shape_cast %5 : vector<192xf32> to vector<1x1x192xf32>
    %181 = vector.broadcast %180 : vector<1x1x192xf32> to vector<8x16x192xf32>
    %182 = arith.addf %179, %181 : vector<8x16x192xf32>
    %cst_21 = arith.constant 0.000000e+00 : f32
    %183 = vector.broadcast %cst_21 : f32 to vector<8x16x192xf32>
    %184 = arith.subf %183, %182 : vector<8x16x192xf32>
    %185 = math.exp %184 : vector<8x16x192xf32>
    %cst_22 = arith.constant 1.000000e+00 : f32
    %186 = vector.broadcast %cst_22 : f32 to vector<8x16x192xf32>
    %187 = arith.addf %186, %185 : vector<8x16x192xf32>
    %188 = tpu.reciprocal %187 {approx = true} : vector<8x16x192xf32> -> vector<8x16x192xf32>
    %189 = arith.mulf %182, %188 : vector<8x16x192xf32>
    %190 = arith.truncf %189 : vector<8x16x192xf32> to vector<8x16x192xbf16>
    %c0_23 = arith.constant 0 : index
    %c8_24 = arith.constant 8 : index
    %c0_25 = arith.constant 0 : index
    %c0_26 = arith.constant 0 : index
    %191 = vector.load %arg9[%c0_23, %c8_24, %c0_25, %c0_26] : memref<1x16x16x192xbf16, #tpu.memory_space<vmem>>, vector<1x8x16x192xbf16>
    %192 = vector.shape_cast %191 : vector<1x8x16x192xbf16> to vector<8x16x192xbf16>
    %193 = vector.shape_cast %190 : vector<8x16x192xbf16> to vector<1x8x16x192xbf16>
    tpu.vector_store %arg9[%c0_23, %c8_24, %c0_25, %c0_26], %193 {strides = array<i32>} : memref<1x16x16x192xbf16, #tpu.memory_space<vmem>>, vector<1x8x16x192xbf16>,
    %cst_27 = arith.constant dense<0.000000e+00> : vector<192xf32>
    %194 = vector.multi_reduction <add>, %189, %cst_27 [0, 1] : vector<8x16x192xf32> to vector<192xf32>
    %195 = vector.shape_cast %194 : vector<192xf32> to vector<1x192xf32>
    %196 = arith.addf %101, %195 : vector<1x192xf32>
    %cst_28 = arith.constant 3.906250e-03 : f32
    %197 = vector.broadcast %cst_28 : f32 to vector<1x192xf32>
    %198 = arith.mulf %196, %197 : vector<1x192xf32>
    %c0_29 = arith.constant 0 : index
    %c0_30 = arith.constant 0 : index
    %199 = vector.load %arg5[%c0_29, %c0_30] : memref<192x8xf32, #tpu.memory_space<vmem>>, vector<192x8xf32>
    %cst_31 = arith.constant dense<0.000000e+00> : vector<1x8xf32>
    %200 = tpu.matmul %198, %199, %cst_31 {dimension_numbers = #tpu.dot_dimension_numbers<[1], [0], [0], [1], [0, 0, 1, 1], [], []>} : vector<1x192xf32>, vector<192x8xf32>, vector<1x8xf32> -> vector<1x8xf32>
    %c0_32 = arith.constant 0 : index
    %c0_33 = arith.constant 0 : index
    %201 = vector.load %arg6[%c0_32, %c0_33] : memref<1x8xf32, #tpu.memory_space<vmem>>, vector<1x8xf32>
    %202 = arith.addf %200, %201 : vector<1x8xf32>
    %cst_34 = arith.constant 0.000000e+00 : f32
    %203 = vector.broadcast %cst_34 : f32 to vector<1x8xf32>
    %204 = arith.subf %203, %202 : vector<1x8xf32>
    %205 = math.exp %204 : vector<1x8xf32>
    %cst_35 = arith.constant 1.000000e+00 : f32
    %206 = vector.broadcast %cst_35 : f32 to vector<1x8xf32>
    %207 = arith.addf %206, %205 : vector<1x8xf32>
    %208 = tpu.reciprocal %207 {approx = true} : vector<1x8xf32> -> vector<1x8xf32>
    %209 = arith.mulf %202, %208 : vector<1x8xf32>
    %c0_36 = arith.constant 0 : index
    %c0_37 = arith.constant 0 : index
    %210 = vector.load %arg7[%c0_36, %c0_37] : memref<8x192xf32, #tpu.memory_space<vmem>>, vector<8x192xf32>
    %cst_38 = arith.constant dense<0.000000e+00> : vector<1x192xf32>
    %211 = tpu.matmul %209, %210, %cst_38 {dimension_numbers = #tpu.dot_dimension_numbers<[1], [0], [0], [1], [0, 0, 1, 1], [], []>} : vector<1x8xf32>, vector<8x192xf32>, vector<1x192xf32> -> vector<1x192xf32>
    %c0_39 = arith.constant 0 : index
    %c0_40 = arith.constant 0 : index
    %212 = vector.load %arg8[%c0_39, %c0_40] : memref<1x192xf32, #tpu.memory_space<vmem>>, vector<1x192xf32>
    %213 = arith.addf %211, %212 : vector<1x192xf32>
    %cst_41 = arith.constant 0.000000e+00 : f32
    %214 = vector.broadcast %cst_41 : f32 to vector<1x192xf32>
    %215 = arith.subf %214, %213 : vector<1x192xf32>
    %216 = math.exp %215 : vector<1x192xf32>
    %cst_42 = arith.constant 1.000000e+00 : f32
    %217 = vector.broadcast %cst_42 : f32 to vector<1x192xf32>
    %218 = arith.addf %217, %216 : vector<1x192xf32>
    %219 = tpu.reciprocal %218 {approx = true} : vector<1x192xf32> -> vector<1x192xf32>
    %220 = arith.truncf %219 : vector<1x192xf32> to vector<1x192xbf16>
    %c0_43 = arith.constant 0 : index
    %c0_44 = arith.constant 0 : index
    %c0_45 = arith.constant 0 : index
    %221 = vector.load %arg10[%c0_43, %c0_44, %c0_45] : memref<1x1x192xbf16, #tpu.memory_space<vmem>>, vector<1x1x192xbf16>
    %222 = vector.shape_cast %221 : vector<1x1x192xbf16> to vector<1x192xbf16>
    %223 = vector.shape_cast %220 : vector<1x192xbf16> to vector<1x1x192xbf16>
    tpu.vector_store %arg10[%c0_43, %c0_44, %c0_45], %223 {strides = array<i32>} : memref<1x1x192xbf16, #tpu.memory_space<vmem>>, vector<1x1x192xbf16>,
    return
  }
  func.func @transform_0(%arg0: i32) -> (i32, i32, i32, i32) {
    %c0_i32 = arith.constant 0 : i32
    %c0_i32_0 = arith.constant 0 : i32
    %c0_i32_1 = arith.constant 0 : i32
    %c0_i32_2 = arith.constant 0 : i32
    return %arg0, %c0_i32, %c0_i32_0, %c0_i32_1 : i32, i32, i32, i32
  }
  func.func @transform_1(%arg0: i32) -> (i32, i32) {
    %c0_i32 = arith.constant 0 : i32
    %c0_i32_0 = arith.constant 0 : i32
    %c0_i32_1 = arith.constant 0 : i32
    return %c0_i32, %c0_i32_0 : i32, i32
  }
  func.func @transform_2(%arg0: i32) -> (i32, i32) {
    %c0_i32 = arith.constant 0 : i32
    %c0_i32_0 = arith.constant 0 : i32
    %c0_i32_1 = arith.constant 0 : i32
    return %c0_i32, %c0_i32_0 : i32, i32
  }
  func.func @transform_3(%arg0: i32) -> (i32, i32) {
    %c0_i32 = arith.constant 0 : i32
    %c0_i32_0 = arith.constant 0 : i32
    %c0_i32_1 = arith.constant 0 : i32
    return %c0_i32, %c0_i32_0 : i32, i32
  }
  func.func @transform_4(%arg0: i32) -> (i32, i32) {
    %c0_i32 = arith.constant 0 : i32
    %c0_i32_0 = arith.constant 0 : i32
    %c0_i32_1 = arith.constant 0 : i32
    return %c0_i32, %c0_i32_0 : i32, i32
  }
  func.func @transform_5(%arg0: i32) -> (i32, i32) {
    %c0_i32 = arith.constant 0 : i32
    %c0_i32_0 = arith.constant 0 : i32
    %c0_i32_1 = arith.constant 0 : i32
    return %c0_i32, %c0_i32_0 : i32, i32
  }
  func.func @transform_6(%arg0: i32) -> (i32, i32) {
    %c0_i32 = arith.constant 0 : i32
    %c0_i32_0 = arith.constant 0 : i32
    %c0_i32_1 = arith.constant 0 : i32
    return %c0_i32, %c0_i32_0 : i32, i32
  }
  func.func @transform_7(%arg0: i32) -> (i32, i32) {
    %c0_i32 = arith.constant 0 : i32
    %c0_i32_0 = arith.constant 0 : i32
    %c0_i32_1 = arith.constant 0 : i32
    return %c0_i32, %c0_i32_0 : i32, i32
  }
  func.func @transform_8(%arg0: i32) -> (i32, i32, i32, i32) {
    %c0_i32 = arith.constant 0 : i32
    %c0_i32_0 = arith.constant 0 : i32
    %c0_i32_1 = arith.constant 0 : i32
    %c0_i32_2 = arith.constant 0 : i32
    return %arg0, %c0_i32, %c0_i32_0, %c0_i32_1 : i32, i32, i32, i32
  }
  func.func @transform_9(%arg0: i32) -> (i32, i32, i32) {
    %c0_i32 = arith.constant 0 : i32
    %c0_i32_0 = arith.constant 0 : i32
    %c0_i32_1 = arith.constant 0 : i32
    return %arg0, %c0_i32, %c0_i32_0 : i32, i32, i32
  }
}

</mosaic_0001>

<llo_original>
// kernel: _lambda_.5
$region0: #{_lambda_.5}
  #allocation0 [shape = 'u32[]', space=smem, size = 0x4, offset = 0x4, fixed_abs, tag = 'smem constant byte address 0x4 - core index']
  #allocation1 [shape = 'u32[144,128]{1,0:T(1,128)}', space=vmem, size = 0x12000, scoped, tag = 'internal scratch']
  %s0 = inlined_call_operand.vmem [shape: bf16[2,256,192], index: 0, kind: input, shape index: {}]
  %s1 = inlined_call_operand.vmem [shape: bf16[2,1,192], index: 1, kind: input, shape index: {}]
  %s2 = inlined_call_operand.vmem [shape: bf16[192,32], index: 2, kind: input, shape index: {}]
  %s3 = inlined_call_operand.vmem [shape: f32[1,32], index: 3, kind: input, shape index: {}]
  %s4 = inlined_call_operand.vmem [shape: f32[1,32], index: 4, kind: input, shape index: {}]
  %s5 = inlined_call_operand.vmem [shape: f32[2,256,32], index: 5, kind: input, shape index: {}]
  %s6 = inlined_call_operand.hbm [shape: f32[2,256,32], index: 6, kind: output, shape index: {}]
  %s7 = sld [smem:[#allocation0]]
  $region57: #{_lambda_.5} parent=0
    _
  %s9 = ssub.s32 1, %s7
  %s10 = scalar_select 0, %s9, %s7
  $region1: #{_lambda_.5} parent=0
    #allocation2 [shape = 'u8[262144]{0}', space=vmem, size = 0x40000, scoped, tag = 'output window, operand 0']
    #allocation3 [shape = 's32[2]{0}', space=sflag, size = 0x8, scoped, tag = 'scoped memory for _lambda_.5']
    %11 = vsyncpa [#allocation3], 0
    %s12 = scalar_lea.sflag [#allocation3], 1
    %13 = vsyncpa %s12, 0
    loop: start=0, step=1, limit=4
    $region2: #{_lambda_.5} parent=1 // loop_pre_header
      _
    $region3: #{_lambda_.5} parent=1 // loop_header
      %s15 = sphi 0, %s19
      %p16 = scmp.ge.s32.totalorder %s15, 4
      %s22 = sphi 0, %s34
      %s23 = sphi 0, %s30
      %s24 = sphi 0, %s22
      %s25 = sphi 0, %s23
      %s26 = sphi 0, %s24
      %s27 = sphi 0, %s25
      %s39 = sphi 0, %s41
      %s42 = sphi 0, %s39
      %s43 = sphi 0, %s42
      %s59 = sphi 0, %s43
      %s65 = sphi 0, %s67
      %s68 = sphi 0, %s65
      %s69 = sphi 0, %s68
      %s85 = sphi 0, %s69
      %s89 = sphi 0, %s89
      %s91 = sphi 0, %s89
      %s92 = sphi 0, %s91
      %s106 = sphi 0, %s92
      %s110 = sphi 0, %s110
      %s112 = sphi 0, %s110
      %s113 = sphi 0, %s112
      %s127 = sphi 0, %s113
      %s131 = sphi 0, %s131
      %s133 = sphi 0, %s131
      %s134 = sphi 0, %s133
      %s148 = sphi 0, %s134
      %s156 = sphi 0, %s158
      %s159 = sphi 0, %s156
      %s160 = sphi 0, %s159
      %s176 = sphi 0, %s160
      %s184 = sphi 0, %s186
      %s187 = sphi 0, %s184
      %s188 = sphi 0, %s187
      %s204 = sphi 0, %s188
    $region4: #{_lambda_.5} parent=1 // loop_header_branch
      %18 = sbr.rel (%p16) target = $region8
    $region5: #{_lambda_.5} parent=1 // loop_body
      %s20 = ssub.s32 %s15, 1
      %s21 = ssub.s32 %s15, 2
      %s28 = sadd.s32 1, %s23
      %p29 = scmp.ge.s32.totalorder %s28, 1
      %s30 = scalar_select %p29, 0, %s28
      %s31 = sadd.s32 1, %s22
      %s32 = scalar_select %p29, %s31, %s22
      %p33 = scmp.ge.s32.totalorder %s32, 2
      %s34 = scalar_select %p33, 0, %s32
      %s35 = ssub.s32 %s22, %s34
      %s36 = ssub.s32 %s23, %s30
      %s37 = sor.u32 %s35, %s36
      %p38 = scmp.eq.s32.totalorder %s37, 0
      %s40 = sadd.s32 %s39, 1
      %s41 = scalar_select %p38, %s39, %s40
      %p44 = pneg %p38
      %p45 = scmp.eq.s32.totalorder %s15, 1
      %p46 = por %p44, %p45
      %p47 = scmp.ne.s32.totalorder %s39, %s42
      %p48 = scmp.eq.s32.totalorder %s15, 0
      %p49 = por %p47, %p48
      %p50 = scmp.ne.s32.totalorder %s39, %s42
      %p51 = scmp.eq.s32.totalorder %s20, 1
      %p52 = por %p50, %p51
      %p53 = scmp.ne.s32.totalorder %s42, %s43
      %p54 = scmp.eq.s32.totalorder %s20, 0
      %p55 = por %p53, %p54
      %p56 = scmp.ne.s32.totalorder %s42, %s43
      %p57 = scmp.eq.s32.totalorder %s21, 1
      %p58 = por %p56, %p57
      %p60 = scmp.ne.s32.totalorder %s43, %s59
      %p61 = scmp.eq.s32.totalorder %s21, 0
      %p62 = por %p60, %p61
      %s63 = ssub.s32 %s22, %s34
      %p64 = scmp.eq.s32.totalorder %s63, 0
      %s66 = sadd.s32 %s65, 1
      %s67 = scalar_select %p64, %s65, %s66
      %p70 = pneg %p64
      %p71 = scmp.eq.s32.totalorder %s15, 1
      %p72 = por %p70, %p71
      %p73 = scmp.ne.s32.totalorder %s65, %s68
      %p74 = scmp.eq.s32.totalorder %s15, 0
      %p75 = por %p73, %p74
      %p76 = scmp.ne.s32.totalorder %s65, %s68
      %p77 = scmp.eq.s32.totalorder %s20, 1
      %p78 = por %p76, %p77
      %p79 = scmp.ne.s32.totalorder %s68, %s69
      %p80 = scmp.eq.s32.totalorder %s20, 0
      %p81 = por %p79, %p80
      %p82 = scmp.ne.s32.totalorder %s68, %s69
      %p83 = scmp.eq.s32.totalorder %s21, 1
      %p84 = por %p82, %p83
      %p86 = scmp.ne.s32.totalorder %s69, %s85
      %p87 = scmp.eq.s32.totalorder %s21, 0
      %p88 = por %p86, %p87
      %s90 = sadd.s32 %s89, 1
      %p93 = scmp.eq.s32.totalorder %s15, 1
      %p94 = scmp.ne.s32.totalorder %s89, %s91
      %p95 = scmp.eq.s32.totalorder %s15, 0
      %p96 = por %p94, %p95
      %p97 = scmp.ne.s32.totalorder %s89, %s91
      %p98 = scmp.eq.s32.totalorder %s20, 1
      %p99 = por %p97, %p98
      %p100 = scmp.ne.s32.totalorder %s91, %s92
      %p101 = scmp.eq.s32.totalorder %s20, 0
      %p102 = por %p100, %p101
      %p103 = scmp.ne.s32.totalorder %s91, %s92
      %p104 = scmp.eq.s32.totalorder %s21, 1
      %p105 = por %p103, %p104
      %p107 = scmp.ne.s32.totalorder %s92, %s106
      %p108 = scmp.eq.s32.totalorder %s21, 0
      %p109 = por %p107, %p108
      %s111 = sadd.s32 %s110, 1
      %p114 = scmp.eq.s32.totalorder %s15, 1
      %p115 = scmp.ne.s32.totalorder %s110, %s112
      %p116 = scmp.eq.s32.totalorder %s15, 0
      %p117 = por %p115, %p116
      %p118 = scmp.ne.s32.totalorder %s110, %s112
      %p119 = scmp.eq.s32.totalorder %s20, 1
      %p120 = por %p118, %p119
      %p121 = scmp.ne.s32.totalorder %s112, %s113
      %p122 = scmp.eq.s32.totalorder %s20, 0
      %p123 = por %p121, %p122
      %p124 = scmp.ne.s32.totalorder %s112, %s113
      %p125 = scmp.eq.s32.totalorder %s21, 1
      %p126 = por %p124, %p125
      %p128 = scmp.ne.s32.totalorder %s113, %s127
      %p129 = scmp.eq.s32.totalorder %s21, 0
      %p130 = por %p128, %p129
      %s132 = sadd.s32 %s131, 1
      %p135 = scmp.eq.s32.totalorder %s15, 1
      %p136 = scmp.ne.s32.totalorder %s131, %s133
      %p137 = scmp.eq.s32.totalorder %s15, 0
      %p138 = por %p136, %p137
      %p139 = scmp.ne.s32.totalorder %s131, %s133
      %p140 = scmp.eq.s32.totalorder %s20, 1
      %p141 = por %p139, %p140
      %p142 = scmp.ne.s32.totalorder %s133, %s134
      %p143 = scmp.eq.s32.totalorder %s20, 0
      %p144 = por %p142, %p143
      %p145 = scmp.ne.s32.totalorder %s133, %s134
      %p146 = scmp.eq.s32.totalorder %s21, 1
      %p147 = por %p145, %p146
      %p149 = scmp.ne.s32.totalorder %s134, %s148
      %p150 = scmp.eq.s32.totalorder %s21, 0
      %p151 = por %p149, %p150
      %s152 = ssub.s32 %s22, %s34
      %s153 = ssub.s32 %s23, %s30
      %s154 = sor.u32 %s152, %s153
      %p155 = scmp.eq.s32.totalorder %s154, 0
      %s157 = sadd.s32 %s156, 1
      %s158 = scalar_select %p155, %s156, %s157
      %p161 = pneg %p155
      %p162 = scmp.eq.s32.totalorder %s15, 1
      %p163 = por %p161, %p162
      %p164 = scmp.ne.s32.totalorder %s156, %s159
      %p165 = scmp.eq.s32.totalorder %s15, 0
      %p166 = por %p164, %p165
      %p167 = scmp.ne.s32.totalorder %s156, %s159
      %p168 = scmp.eq.s32.totalorder %s20, 1
      %p169 = por %p167, %p168
      %p170 = scmp.ne.s32.totalorder %s159, %s160
      %p171 = scmp.eq.s32.totalorder %s20, 0
      %p172 = por %p170, %p171
      %p173 = scmp.ne.s32.totalorder %s159, %s160
      %p174 = scmp.eq.s32.totalorder %s21, 1
      %p175 = por %p173, %p174
      %p177 = scmp.ne.s32.totalorder %s160, %s176
      %p178 = scmp.eq.s32.totalorder %s21, 0
      %p179 = por %p177, %p178
      %s180 = ssub.s32 %s22, %s34
      %s181 = ssub.s32 %s23, %s30
      %s182 = sor.u32 %s180, %s181
      %p183 = scmp.eq.s32.totalorder %s182, 0
      %s185 = sadd.s32 %s184, 1
      %s186 = scalar_select %p183, %s184, %s185
      %p189 = pneg %p183
      %p190 = scmp.eq.s32.totalorder %s15, 1
      %p191 = por %p189, %p190
      %p192 = scmp.ne.s32.totalorder %s184, %s187
      %p193 = scmp.eq.s32.totalorder %s15, 0
      %p194 = por %p192, %p193
      %p195 = scmp.ne.s32.totalorder %s184, %s187
      %p196 = scmp.eq.s32.totalorder %s20, 1
      %p197 = por %p195, %p196
      %p198 = scmp.ne.s32.totalorder %s187, %s188
      %p199 = scmp.eq.s32.totalorder %s20, 0
      %p200 = por %p198, %p199
      %p201 = scmp.ne.s32.totalorder %s187, %s188
      %p202 = scmp.eq.s32.totalorder %s21, 1
      %p203 = por %p201, %p202
      %p205 = scmp.ne.s32.totalorder %s188, %s204
      %p206 = scmp.eq.s32.totalorder %s21, 0
      %p207 = por %p205, %p206
      %p208 = scmp.le.s32.totalorder 1, %s15
      %p209 = scmp.lt.s32.totalorder %s15, 3
      %p210 = pnand %p208, %p209
      %p211 = pneg %p210
      // Predicated region
      $region9: #{_lambda_.5} parent=5 // pred_check
        _
      $region10: #{_lambda_.5} parent=5 // pred_check_branch
        %213 = sbr.rel (%p210) target = $region12
      $region11: #{_lambda_.5} parent=5 // pred_region
        %s214 = ssub.s32 %s15, 1
        // Predicated region
        $region13: #{_lambda_.5} parent=11 // pred_check
          %p215 = pneg %p102
        $region14: #{_lambda_.5} parent=11 // pred_check_branch
          %217 = sbr.rel (%p215) target = $region16
        $region15: #{_lambda_.5} parent=11 // pred_region
          _
        $region16: #{_lambda_.5} parent=11 // pred_fallthru
          _
        // Predicated region
        $region17: #{_lambda_.5} parent=11 // pred_check
          %p218 = pneg %p123
        $region18: #{_lambda_.5} parent=11 // pred_check_branch
          %220 = sbr.rel (%p218) target = $region20
        $region19: #{_lambda_.5} parent=11 // pred_region
          _
        $region20: #{_lambda_.5} parent=11 // pred_fallthru
          _
        // Predicated region
        $region21: #{_lambda_.5} parent=11 // pred_check
          %p221 = pneg %p144
        $region22: #{_lambda_.5} parent=11 // pred_check_branch
          %223 = sbr.rel (%p221) target = $region24
        $region23: #{_lambda_.5} parent=11 // pred_region
          _
        $region24: #{_lambda_.5} parent=11 // pred_fallthru
          _
      $region12: #{_lambda_.5} parent=5 // pred_fallthru
        _
      %p224 = scmp.lt.s32.totalorder %s15, 2
      // Predicated region
      $region25: #{_lambda_.5} parent=5 // pred_check
        %p225 = pneg %p224
      $region26: #{_lambda_.5} parent=5 // pred_check_branch
        %227 = sbr.rel (%p225) target = $region28
      $region27: #{_lambda_.5} parent=5 // pred_region
        // Predicated region
        $region29: #{_lambda_.5} parent=27 // pred_check
          %p228 = pneg %p49
        $region30: #{_lambda_.5} parent=27 // pred_check_branch
          %230 = sbr.rel (%p228) target = $region32
        $region31: #{_lambda_.5} parent=27 // pred_region
          %s231 = smul.u32 32, %s23
          %p232 = scmp.lt.s32.totalorder %s22, 1
          %s233 = scalar_select %p232, %s22, 1
          %p234 = scmp.lt.s32.totalorder %s231, 31
          %s235 = scalar_select %p234, %s231, 31
          %s236 = smul.addr %s235, 2
          %s237 = smul.addr %s233, 64
          %s238 = sadd.s32 %s236, %s237
          %s239 = smul.addr %s238, 4
          %s240 = scalar_lea.vmem %s0, %s239
          %s241 = smul.u32 32, %s23
        $region32: #{_lambda_.5} parent=27 // pred_fallthru
          _
        // Predicated region
        $region33: #{_lambda_.5} parent=27 // pred_check
          %p242 = pneg %p75
        $region34: #{_lambda_.5} parent=27 // pred_check_branch
          %244 = sbr.rel (%p242) target = $region36
        $region35: #{_lambda_.5} parent=27 // pred_region
          %p245 = scmp.lt.s32.totalorder %s22, 1
          %s246 = scalar_select %p245, %s22, 1
          %s247 = smul.addr %s246, 2
          %s248 = scalar_lea.vmem %s1, %s247
        $region36: #{_lambda_.5} parent=27 // pred_fallthru
          _
        // Predicated region
        $region37: #{_lambda_.5} parent=27 // pred_check
          %p249 = pneg %p166
        $region38: #{_lambda_.5} parent=27 // pred_check_branch
          %251 = sbr.rel (%p249) target = $region40
        $region39: #{_lambda_.5} parent=27 // pred_region
          %s252 = smul.u32 32, %s23
          %p253 = scmp.lt.s32.totalorder %s22, 1
          %s254 = scalar_select %p253, %s22, 1
          %p255 = scmp.lt.s32.totalorder %s252, 31
          %s256 = scalar_select %p255, %s252, 31
          %s257 = smul.addr %s254, 32
          %s258 = sadd.s32 %s256, %s257
          %s259 = smul.addr %s258, 8
          %s260 = scalar_lea.vmem %s5, %s259
          %s261 = smul.u32 32, %s23
        $region40: #{_lambda_.5} parent=27 // pred_fallthru
          _
      $region28: #{_lambda_.5} parent=5 // pred_fallthru
        _
      %p262 = scmp.le.s32.totalorder 1, %s15
      %p263 = scmp.lt.s32.totalorder %s15, 3
      %p264 = pnand %p262, %p263
      %p265 = pneg %p264
      // Predicated region
      $region41: #{_lambda_.5} parent=5 // pred_check
        _
      $region42: #{_lambda_.5} parent=5 // pred_check_branch
        %267 = sbr.rel (%p264) target = $region44
      $region43: #{_lambda_.5} parent=5 // pred_region
        %s268 = ssub.s32 %s15, 1
        %s269 = smul.u32 32, %s25
        %p270 = scmp.lt.s32.totalorder %s24, 1
        %s271 = scalar_select %p270, %s24, 1
        %p272 = scmp.lt.s32.totalorder %s269, 31
        %s273 = scalar_select %p272, %s269, 31
        %s274 = smul.addr %s273, 2
        %s275 = smul.addr %s271, 64
        %s276 = sadd.s32 %s274, %s275
        %s277 = smul.addr %s276, 4
        %s278 = scalar_lea.vmem %s0, %s277
        %p279 = pneg %p55
        %p280 = pneg %p52
        %p281 = scmp.lt.s32.totalorder %s24, 1
        %s282 = scalar_select %p281, %s24, 1
        %s283 = smul.addr %s282, 2
        %s284 = scalar_lea.vmem %s1, %s283
        %p285 = pneg %p81
        %p286 = pneg %p78
        %p287 = pneg %p102
        %p288 = pneg %p99
        %p289 = pneg %p123
        %p290 = pneg %p120
        %p291 = pneg %p144
        %p292 = pneg %p141
        %s293 = smul.u32 32, %s25
        %p294 = scmp.lt.s32.totalorder %s24, 1
        %s295 = scalar_select %p294, %s24, 1
        %p296 = scmp.lt.s32.totalorder %s293, 31
        %s297 = scalar_select %p296, %s293, 31
        %s298 = smul.addr %s295, 32
        %s299 = sadd.s32 %s297, %s298
        %s300 = smul.addr %s299, 8
        %s301 = scalar_lea.vmem %s5, %s300
        %p302 = pneg %p172
        %p303 = pneg %p169
        %p304 = pneg %p200
        %p305 = pneg %p197
        %s306 = sand.u32 %s187, 1
        %s307 = scalar_lea.sflag [#allocation3], %s306
        %s308 = sand.u32 %s187, 1
        %s309 = smul.addr %s308, 256
        %s310 = scalar_lea.vmem [#allocation2], %s309
        %s311 = smul.u32 32, %s25
        %p312 = scmp.lt.s32.totalorder %s24, 1
        %s313 = scalar_select %p312, %s24, 1
        %p314 = scmp.lt.s32.totalorder %s311, 31
        %s315 = scalar_select %p314, %s311, 31
        %s316 = smul.addr %s315, 2
        %s317 = smul.addr %s313, 64
        %s318 = sadd.s32 %s316, %s317
        %s319 = smul.addr %s318, 4
        %s320 = scalar_lea.vmem %s0, %s319
        %s321 = smul.u32 32, %s25
        %p322 = scmp.lt.s32.totalorder %s24, 1
        %s323 = scalar_select %p322, %s24, 1
        %s324 = smul.addr %s323, 2
        %s325 = scalar_lea.vmem %s1, %s324
        %s326 = smul.u32 32, %s25
        %p327 = scmp.lt.s32.totalorder %s24, 1
        %s328 = scalar_select %p327, %s24, 1
        %p329 = scmp.lt.s32.totalorder %s326, 31
        %s330 = scalar_select %p329, %s326, 31
        %s331 = smul.addr %s328, 32
        %s332 = sadd.s32 %s330, %s331
        %s333 = smul.addr %s332, 8
        %s334 = scalar_lea.vmem %s5, %s333
        %s335 = smul.u32 32, %s25
        %s336 = smul.u32 32, %s25
        %v338 = vld [vmem:[%s320] sm:$0xff]
        %v339 = vld [vmem:[%s320 + $0x8] sm:$0xff]
        %v340 = vld [vmem:[%s320 + $0x10] sm:$0xff]
        %v341 = vld [vmem:[%s320 + $0x18] sm:$0xff]
        %v342 = vld [vmem:[%s320 + $0x20] sm:$0xff]
        %v343 = vld [vmem:[%s320 + $0x28] sm:$0xff]
        %v344 = vld [vmem:[%s320 + $0x30] sm:$0xff]
        %v345 = vld [vmem:[%s320 + $0x38] sm:$0xff]
        %v346 = vld [vmem:[%s320 + $0x40] sm:$0xff]
        %v347 = vld [vmem:[%s320 + $0x48] sm:$0xff]
        %v348 = vld [vmem:[%s320 + $0x50] sm:$0xff]
        %v349 = vld [vmem:[%s320 + $0x58] sm:$0xff]
        %v350 = vld [vmem:[%s320 + $0x60] sm:$0xff]
        %v351 = vld [vmem:[%s320 + $0x68] sm:$0xff]
        %v352 = vld [vmem:[%s320 + $0x70] sm:$0xff]
        %v353 = vld [vmem:[%s320 + $0x78] sm:$0xff]
        %v354 = vld [vmem:[%s320 + $0x80] sm:$0xff]
        %v355 = vld [vmem:[%s320 + $0x88] sm:$0xff]
        %v356 = vld [vmem:[%s320 + $0x90] sm:$0xff]
        %v357 = vld [vmem:[%s320 + $0x98] sm:$0xff]
        %v358 = vld [vmem:[%s320 + $0xa0] sm:$0xff]
        %v359 = vld [vmem:[%s320 + $0xa8] sm:$0xff]
        %v360 = vld [vmem:[%s320 + $0xb0] sm:$0xff]
        %v361 = vld [vmem:[%s320 + $0xb8] sm:$0xff]
        %v362 = vld [vmem:[%s320 + $0xc0] sm:$0xff]
        %v363 = vld [vmem:[%s320 + $0xc8] sm:$0xff]
        %v364 = vld [vmem:[%s320 + $0xd0] sm:$0xff]
        %v365 = vld [vmem:[%s320 + $0xd8] sm:$0xff]
        %v366 = vld [vmem:[%s320 + $0xe0] sm:$0xff]
        %v367 = vld [vmem:[%s320 + $0xe8] sm:$0xff]
        %v368 = vld [vmem:[%s320 + $0xf0] sm:$0xff]
        %v369 = vld [vmem:[%s320 + $0xf8] sm:$0xff]
        %v370 = vld [vmem:[%s325] sm:$0x3]
        %v373 = vunpack.c.l.s4 1966171168
        %v374 = vunpack.c.0.s8 %v373
        %v375 = vlaneseq
        %v376 = vshrl.u32 %v375, 7
        %v377 = vsub.s32 %v374, %v376
        %v378 = vrot.slane %v370, %v377
        %v379 = vcombine.high %v378, %v378
        %v381 = vunpack.c.l.s4 1966171168
        %v382 = vunpack.c.0.s8 %v381
        %v383 = vlaneseq
        %v384 = vshrl.u32 %v383, 7
        %v385 = vsub.s32 %v382, %v384
        %v386 = vrot.slane %v378, %v385
        %v388 = vunpack.c.l.s4 1966171168
        %v389 = vunpack.c.0.s8 %v388
        %v390 = vlaneseq
        %v391 = vshrl.u32 %v390, 7
        %v392 = vsub.s32 %v389, %v391
        %v393 = vrot.slane %v379, %v392
        %v395 = vpack.i.b16 %v386, %v386
        %v397 = vlaneseq
        %v398 = vshrl.u32 %v397, 7
        %v399 = vsub.s32 0, %v398
        %v400 = vrot.slane %v395, %v399
        %v402 = vpack.i.b16 %v393, %v393
        %v404 = vlaneseq
        %v405 = vshrl.u32 %v404, 7
        %v406 = vsub.s32 0, %v405
        %v407 = vrot.slane %v402, %v406
        %v410 = vunpack.c.l.b16 %v400
        %v411 = vunpack.c.l.b16 %v407
        %v412 = vpack.c.b16 %v411, %v410
        %v414 = vmul.bf16 %v338, %v412
        %v415 = vmul.bf16 %v339, %v412
        %v416 = vmul.bf16 %v340, %v412
        %v417 = vmul.bf16 %v341, %v412
        %v418 = vmul.bf16 %v342, %v412
        %v419 = vmul.bf16 %v343, %v412
        %v420 = vmul.bf16 %v344, %v412
        %v421 = vmul.bf16 %v345, %v412
        %v422 = vmul.bf16 %v346, %v412
        %v423 = vmul.bf16 %v347, %v412
        %v424 = vmul.bf16 %v348, %v412
        %v425 = vmul.bf16 %v349, %v412
        %v426 = vmul.bf16 %v350, %v412
        %v427 = vmul.bf16 %v351, %v412
        %v428 = vmul.bf16 %v352, %v412
        %v429 = vmul.bf16 %v353, %v412
        %v430 = vmul.bf16 %v354, %v412
        %v431 = vmul.bf16 %v355, %v412
        %v432 = vmul.bf16 %v356, %v412
        %v433 = vmul.bf16 %v357, %v412
        %v434 = vmul.bf16 %v358, %v412
        %v435 = vmul.bf16 %v359, %v412
        %v436 = vmul.bf16 %v360, %v412
        %v437 = vmul.bf16 %v361, %v412
        %v438 = vmul.bf16 %v362, %v412
        %v439 = vmul.bf16 %v363, %v412
        %v440 = vmul.bf16 %v364, %v412
        %v441 = vmul.bf16 %v365, %v412
        %v442 = vmul.bf16 %v366, %v412
        %v443 = vmul.bf16 %v367, %v412
        %v444 = vmul.bf16 %v368, %v412
        %v445 = vmul.bf16 %v369, %v412
        %v446 = vld [vmem:[%s2] sm:$0xf]
        %v447 = vld [vmem:[%s2 + $0x4] sm:$0xf]
        %v448 = vld [vmem:[%s2 + $0x8] sm:$0xf]
        %v449 = vld [vmem:[%s2 + $0xc] sm:$0xf]
        %v450 = vld [vmem:[%s2 + $0x10] sm:$0xf]
        %v451 = vld [vmem:[%s2 + $0x14] sm:$0xf]
        %v452 = vld [vmem:[%s2 + $0x18] sm:$0xf]
        %v453 = vld [vmem:[%s2 + $0x1c] sm:$0xf]
        %v454 = vld [vmem:[%s2 + $0x20] sm:$0xf]
        %v455 = vld [vmem:[%s2 + $0x24] sm:$0xf]
        %v456 = vld [vmem:[%s2 + $0x28] sm:$0xf]
        %v457 = vld [vmem:[%s2 + $0x2c] sm:$0xf]
        %v458 = vld [vmem:[%s2 + $0x30] sm:$0xf]
        %v459 = vld [vmem:[%s2 + $0x34] sm:$0xf]
        %v460 = vld [vmem:[%s2 + $0x38] sm:$0xf]
        %v461 = vld [vmem:[%s2 + $0x3c] sm:$0xf]
        %v462 = vld [vmem:[%s2 + $0x40] sm:$0xf]
        %v463 = vld [vmem:[%s2 + $0x44] sm:$0xf]
        %v464 = vld [vmem:[%s2 + $0x48] sm:$0xf]
        %v465 = vld [vmem:[%s2 + $0x4c] sm:$0xf]
        %v466 = vld [vmem:[%s2 + $0x50] sm:$0xf]
        %v467 = vld [vmem:[%s2 + $0x54] sm:$0xf]
        %v468 = vld [vmem:[%s2 + $0x58] sm:$0xf]
        %v469 = vld [vmem:[%s2 + $0x5c] sm:$0xf]
        %v502 = vunpack.c.l.b16 %v414
        %v503 = vunpack.c.h.b16 %v414
        %v504 = vunpack.c.l.b16 %v415
        %v505 = vunpack.c.h.b16 %v415
        %v506 = vunpack.c.l.b16 %v416
        %v507 = vunpack.c.h.b16 %v416
        %v508 = vunpack.c.l.b16 %v417
        %v509 = vunpack.c.h.b16 %v417
        %v510 = vunpack.c.l.b16 %v418
        %v511 = vunpack.c.h.b16 %v418
        %v512 = vunpack.c.l.b16 %v419
        %v513 = vunpack.c.h.b16 %v419
        %v514 = vunpack.c.l.b16 %v420
        %v515 = vunpack.c.h.b16 %v420
        %v516 = vunpack.c.l.b16 %v421
        %v517 = vunpack.c.h.b16 %v421
        %v518 = vunpack.c.l.b16 %v422
        %v519 = vunpack.c.h.b16 %v422
        %v520 = vunpack.c.l.b16 %v423
        %v521 = vunpack.c.h.b16 %v423
        %v522 = vunpack.c.l.b16 %v424
        %v523 = vunpack.c.h.b16 %v424
        %v524 = vunpack.c.l.b16 %v425
        %v525 = vunpack.c.h.b16 %v425
        %v526 = vunpack.c.l.b16 %v426
        %v527 = vunpack.c.h.b16 %v426
        %v528 = vunpack.c.l.b16 %v427
        %v529 = vunpack.c.h.b16 %v427
        %v530 = vunpack.c.l.b16 %v428
        %v531 = vunpack.c.h.b16 %v428
        %v532 = vunpack.c.l.b16 %v429
        %v533 = vunpack.c.h.b16 %v429
        %v534 = vunpack.c.l.b16 %v430
        %v535 = vunpack.c.h.b16 %v430
        %v536 = vunpack.c.l.b16 %v431
        %v537 = vunpack.c.h.b16 %v431
        %v538 = vunpack.c.l.b16 %v432
        %v539 = vunpack.c.h.b16 %v432
        %v540 = vunpack.c.l.b16 %v433
        %v541 = vunpack.c.h.b16 %v433
        %v542 = vunpack.c.l.b16 %v434
        %v543 = vunpack.c.h.b16 %v434
        %v544 = vunpack.c.l.b16 %v435
        %v545 = vunpack.c.h.b16 %v435
        %v546 = vunpack.c.l.b16 %v436
        %v547 = vunpack.c.h.b16 %v436
        %v548 = vunpack.c.l.b16 %v437
        %v549 = vunpack.c.h.b16 %v437
        %v550 = vunpack.c.l.b16 %v438
        %v551 = vunpack.c.h.b16 %v438
        %v552 = vunpack.c.l.b16 %v439
        %v553 = vunpack.c.h.b16 %v439
        %v554 = vunpack.c.l.b16 %v440
        %v555 = vunpack.c.h.b16 %v440
        %v556 = vunpack.c.l.b16 %v441
        %v557 = vunpack.c.h.b16 %v441
        %v558 = vunpack.c.l.b16 %v442
        %v559 = vunpack.c.h.b16 %v442
        %v560 = vunpack.c.l.b16 %v443
        %v561 = vunpack.c.h.b16 %v443
        %v562 = vunpack.c.l.b16 %v444
        %v563 = vunpack.c.h.b16 %v444
        %v564 = vunpack.c.l.b16 %v445
        %v565 = vunpack.c.h.b16 %v445
        %v566 = vpack.c.b16 %v504, %v502
        %v567 = vpack.c.b16 %v505, %v503
        %v568 = vpack.c.b16 %v508, %v506
        %v569 = vpack.c.b16 %v509, %v507
        %v570 = vpack.c.b16 %v512, %v510
        %v571 = vpack.c.b16 %v513, %v511
        %v572 = vpack.c.b16 %v516, %v514
        %v573 = vpack.c.b16 %v517, %v515
        %v574 = vpack.c.b16 %v520, %v518
        %v575 = vpack.c.b16 %v521, %v519
        %v576 = vpack.c.b16 %v524, %v522
        %v577 = vpack.c.b16 %v525, %v523
        %v578 = vpack.c.b16 %v528, %v526
        %v579 = vpack.c.b16 %v529, %v527
        %v580 = vpack.c.b16 %v532, %v530
        %v581 = vpack.c.b16 %v533, %v531
        %v582 = vpack.c.b16 %v536, %v534
        %v583 = vpack.c.b16 %v537, %v535
        %v584 = vpack.c.b16 %v540, %v538
        %v585 = vpack.c.b16 %v541, %v539
        %v586 = vpack.c.b16 %v544, %v542
        %v587 = vpack.c.b16 %v545, %v543
        %v588 = vpack.c.b16 %v548, %v546
        %v589 = vpack.c.b16 %v549, %v547
        %v590 = vpack.c.b16 %v552, %v550
        %v591 = vpack.c.b16 %v553, %v551
        %v592 = vpack.c.b16 %v556, %v554
        %v593 = vpack.c.b16 %v557, %v555
        %v594 = vpack.c.b16 %v560, %v558
        %v595 = vpack.c.b16 %v561, %v559
        %v596 = vpack.c.b16 %v564, %v562
        %v597 = vpack.c.b16 %v565, %v563
        %v638 = vunpack.c.l.b16 %v446
        %v639 = vunpack.c.l.b16 %v447
        %v640 = vunpack.c.l.b16 %v448
        %v641 = vunpack.c.l.b16 %v449
        %v642 = vunpack.c.l.b16 %v450
        %v643 = vunpack.c.l.b16 %v451
        %v644 = vunpack.c.l.b16 %v452
        %v645 = vunpack.c.l.b16 %v453
        %v646 = vunpack.c.l.b16 %v454
        %v647 = vunpack.c.l.b16 %v455
        %v648 = vunpack.c.l.b16 %v456
        %v649 = vunpack.c.l.b16 %v457
        %v650 = vunpack.c.l.b16 %v458
        %v651 = vunpack.c.l.b16 %v459
        %v652 = vunpack.c.l.b16 %v460
        %v653 = vunpack.c.l.b16 %v461
        %v654 = vunpack.c.l.b16 %v462
        %v655 = vunpack.c.l.b16 %v463
        %v656 = vunpack.c.l.b16 %v464
        %v657 = vunpack.c.l.b16 %v465
        %v658 = vunpack.c.l.b16 %v466
        %v659 = vunpack.c.l.b16 %v467
        %v660 = vunpack.c.l.b16 %v468
        %v661 = vunpack.c.l.b16 %v469
        %v662 = vpack.c.b16 %v639, %v638
        %v663 = vpack.c.b16 %v641, %v640
        %v664 = vpack.c.b16 %v643, %v642
        %v665 = vpack.c.b16 %v645, %v644
        %v666 = vpack.c.b16 %v647, %v646
        %v667 = vpack.c.b16 %v649, %v648
        %v668 = vpack.c.b16 %v651, %v650
        %v669 = vpack.c.b16 %v653, %v652
        %v670 = vpack.c.b16 %v655, %v654
        %v671 = vpack.c.b16 %v657, %v656
        %v672 = vpack.c.b16 %v659, %v658
        %v673 = vpack.c.b16 %v661, %v660
        %vm686 = vcmask 523264
        %v688 = vsel %vm686, %v567, 0
        %v691 = vsel %vm686, %v569, 0
        %v694 = vsel %vm686, %v571, 0
        %v697 = vsel %vm686, %v573, 0
        %v700 = vsel %vm686, %v575, 0
        %v703 = vsel %vm686, %v577, 0
        %v706 = vsel %vm686, %v579, 0
        %v709 = vsel %vm686, %v581, 0
        %v712 = vsel %vm686, %v583, 0
        %v715 = vsel %vm686, %v585, 0
        %v718 = vsel %vm686, %v587, 0
        %v721 = vsel %vm686, %v589, 0
        %v724 = vsel %vm686, %v591, 0
        %v727 = vsel %vm686, %v593, 0
        %v730 = vsel %vm686, %v595, 0
        %v733 = vsel %vm686, %v597, 0
        %735 = vmatprep.subr.bf16.mxu0 0
        %736 = vmatpush1.bf16.msra.mxu0 %v662
        %737 = vmatprep.subr.bf16.mxu0 0
        %738 = vmatpush1.bf16.msra.mxu0 %v663
        %739 = vmatprep.subr.bf16.mxu0 0
        %740 = vmatpush1.bf16.msra.mxu0 %v664
        %741 = vmatprep.subr.bf16.mxu0 0
        %742 = vmatpush1.bf16.msra.mxu0 %v665
        %743 = vmatprep.subr.bf16.mxu0 0
        %744 = vmatpush1.bf16.msra.mxu0 %v666
        %745 = vmatprep.subr.bf16.mxu0 0
        %746 = vmatpush1.bf16.msra.mxu0 %v667
        %747 = vmatprep.subr.bf16.mxu0 0
        %748 = vmatpush1.bf16.msra.mxu0 %v668
        %749 = vmatprep.subr.bf16.mxu0 0
        %750 = vmatpush1.bf16.msra.mxu0 %v669
        %751 = vmatprep.subr.bf16.mxu0 0
        %752 = vmatpush1.bf16.msra.mxu0 %v670
        %753 = vmatprep.subr.bf16.mxu0 0
        %754 = vmatpush1.bf16.msra.mxu0 %v671
        %755 = vmatprep.subr.bf16.mxu0 0
        %756 = vmatpush1.bf16.msra.mxu0 %v672
        %757 = vmatprep.subr.bf16.mxu0 0
        %758 = vmatpush1.bf16.msra.mxu0 %v673
        %759 = vmatprep.subr.bf16.mxu0 0
        %760 = vmatpush1.bf16.msra.mxu0 0
        %761 = vmatprep.subr.bf16.mxu0 0
        %762 = vmatpush1.bf16.msra.mxu0 0
        %763 = vmatprep.subr.bf16.mxu0 0
        %764 = vmatpush1.bf16.msra.mxu0 0
        %765 = vmatprep.subr.bf16.mxu0 0
        %766 = vmatpush1.bf16.msra.mxu0 0
        %767 = vmatprep.mubr.bf16.mxu0 %v688
        %768 = vmatmul.mubr.bf16.gmra.mrb[0].mxu0 %v566
        %v769 = vpop.f32.mrb[0].mxu0
        %v770 = vadd.f32 0.0, %v769
        %v771 = vpop.f32.mrb[0].mxu0
        %v772 = vpop.f32.mrb[0].mxu0
        %v773 = vadd.f32 0.0, %v772
        %v774 = vpop.f32.mrb[0].mxu0
        %775 = vmatprep.mubr.bf16.mxu0 %v691
        %776 = vmatmul.mubr.bf16.gmra.mrb[0].mxu0 %v568
        %v777 = vpop.f32.mrb[0].mxu0
        %v778 = vadd.f32 0.0, %v777
        %v779 = vpop.f32.mrb[0].mxu0
        %v780 = vpop.f32.mrb[0].mxu0
        %v781 = vadd.f32 0.0, %v780
        %v782 = vpop.f32.mrb[0].mxu0
        %783 = vmatprep.mubr.bf16.mxu0 %v694
        %784 = vmatmul.mubr.bf16.gmra.mrb[0].mxu0 %v570
        %v785 = vpop.f32.mrb[0].mxu0
        %v786 = vadd.f32 0.0, %v785
        %v787 = vpop.f32.mrb[0].mxu0
        %v788 = vpop.f32.mrb[0].mxu0
        %v789 = vadd.f32 0.0, %v788
        %v790 = vpop.f32.mrb[0].mxu0
        %791 = vmatprep.mubr.bf16.mxu0 %v697
        %792 = vmatmul.mubr.bf16.gmra.mrb[0].mxu0 %v572
        %v793 = vpop.f32.mrb[0].mxu0
        %v794 = vadd.f32 0.0, %v793
        %v795 = vpop.f32.mrb[0].mxu0
        %v796 = vpop.f32.mrb[0].mxu0
        %v797 = vadd.f32 0.0, %v796
        %v798 = vpop.f32.mrb[0].mxu0
        %799 = vmatprep.mubr.bf16.mxu0 %v700
        %800 = vmatmul.mubr.bf16.gmra.mrb[0].mxu0 %v574
        %v801 = vpop.f32.mrb[0].mxu0
        %v802 = vadd.f32 0.0, %v801
        %v803 = vpop.f32.mrb[0].mxu0
        %v804 = vpop.f32.mrb[0].mxu0
        %v805 = vadd.f32 0.0, %v804
        %v806 = vpop.f32.mrb[0].mxu0
        %807 = vmatprep.mubr.bf16.mxu0 %v703
        %808 = vmatmul.mubr.bf16.gmra.mrb[0].mxu0 %v576
        %v809 = vpop.f32.mrb[0].mxu0
        %v810 = vadd.f32 0.0, %v809
        %v811 = vpop.f32.mrb[0].mxu0
        %v812 = vpop.f32.mrb[0].mxu0
        %v813 = vadd.f32 0.0, %v812
        %v814 = vpop.f32.mrb[0].mxu0
        %815 = vmatprep.mubr.bf16.mxu0 %v706
        %816 = vmatmul.mubr.bf16.gmra.mrb[0].mxu0 %v578
        %v817 = vpop.f32.mrb[0].mxu0
        %v818 = vadd.f32 0.0, %v817
        %v819 = vpop.f32.mrb[0].mxu0
        %v820 = vpop.f32.mrb[0].mxu0
        %v821 = vadd.f32 0.0, %v820
        %v822 = vpop.f32.mrb[0].mxu0
        %823 = vmatprep.mubr.bf16.mxu0 %v709
        %824 = vmatmul.mubr.bf16.gmra.mrb[0].mxu0 %v580
        %v825 = vpop.f32.mrb[0].mxu0
        %v826 = vadd.f32 0.0, %v825
        %v827 = vpop.f32.mrb[0].mxu0
        %v828 = vpop.f32.mrb[0].mxu0
        %v829 = vadd.f32 0.0, %v828
        %v830 = vpop.f32.mrb[0].mxu0
        %831 = vmatprep.mubr.bf16.mxu0 %v712
        %832 = vmatmul.mubr.bf16.gmra.mrb[0].mxu0 %v582
        %v833 = vpop.f32.mrb[0].mxu0
        %v834 = vadd.f32 0.0, %v833
        %v835 = vpop.f32.mrb[0].mxu0
        %v836 = vpop.f32.mrb[0].mxu0
        %v837 = vadd.f32 0.0, %v836
        %v838 = vpop.f32.mrb[0].mxu0
        %839 = vmatprep.mubr.bf16.mxu0 %v715
        %840 = vmatmul.mubr.bf16.gmra.mrb[0].mxu0 %v584
        %v841 = vpop.f32.mrb[0].mxu0
        %v842 = vadd.f32 0.0, %v841
        %v843 = vpop.f32.mrb[0].mxu0
        %v844 = vpop.f32.mrb[0].mxu0
        %v845 = vadd.f32 0.0, %v844
        %v846 = vpop.f32.mrb[0].mxu0
        %847 = vmatprep.mubr.bf16.mxu0 %v718
        %848 = vmatmul.mubr.bf16.gmra.mrb[0].mxu0 %v586
        %v849 = vpop.f32.mrb[0].mxu0
        %v850 = vadd.f32 0.0, %v849
        %v851 = vpop.f32.mrb[0].mxu0
        %v852 = vpop.f32.mrb[0].mxu0
        %v853 = vadd.f32 0.0, %v852
        %v854 = vpop.f32.mrb[0].mxu0
        %855 = vmatprep.mubr.bf16.mxu0 %v721
        %856 = vmatmul.mubr.bf16.gmra.mrb[0].mxu0 %v588
        %v857 = vpop.f32.mrb[0].mxu0
        %v858 = vadd.f32 0.0, %v857
        %v859 = vpop.f32.mrb[0].mxu0
        %v860 = vpop.f32.mrb[0].mxu0
        %v861 = vadd.f32 0.0, %v860
        %v862 = vpop.f32.mrb[0].mxu0
        %863 = vmatprep.mubr.bf16.mxu0 %v724
        %864 = vmatmul.mubr.bf16.gmra.mrb[0].mxu0 %v590
        %v865 = vpop.f32.mrb[0].mxu0
        %v866 = vadd.f32 0.0, %v865
        %v867 = vpop.f32.mrb[0].mxu0
        %v868 = vpop.f32.mrb[0].mxu0
        %v869 = vadd.f32 0.0, %v868
        %v870 = vpop.f32.mrb[0].mxu0
        %871 = vmatprep.mubr.bf16.mxu0 %v727
        %872 = vmatmul.mubr.bf16.gmra.mrb[0].mxu0 %v592
        %v873 = vpop.f32.mrb[0].mxu0
        %v874 = vadd.f32 0.0, %v873
        %v875 = vpop.f32.mrb[0].mxu0
        %v876 = vpop.f32.mrb[0].mxu0
        %v877 = vadd.f32 0.0, %v876
        %v878 = vpop.f32.mrb[0].mxu0
        %879 = vmatprep.mubr.bf16.mxu0 %v730
        %880 = vmatmul.mubr.bf16.gmra.mrb[0].mxu0 %v594
        %v881 = vpop.f32.mrb[0].mxu0
        %v882 = vadd.f32 0.0, %v881
        %v883 = vpop.f32.mrb[0].mxu0
        %v884 = vpop.f32.mrb[0].mxu0
        %v885 = vadd.f32 0.0, %v884
        %v886 = vpop.f32.mrb[0].mxu0
        %887 = vmatprep.mubr.bf16.mxu0 %v733
        %888 = vmatmul.mubr.bf16.gmra.mrb[0].mxu0 %v596
        %v889 = vpop.f32.mrb[0].mxu0
        %v890 = vadd.f32 0.0, %v889
        %v891 = vpop.f32.mrb[0].mxu0
        %v892 = vpop.f32.mrb[0].mxu0
        %v893 = vadd.f32 0.0, %v892
        %v894 = vpop.f32.mrb[0].mxu0
        %895 = vdwg.mxu0
        %v896 = vld [vmem:[%s3] sm:$0x1]
        %v898 = vlaneseq
        %v899 = vshrl.u32 %v898, 7
        %v900 = vsub.s32 0, %v899
        %v901 = vrot.slane %v896, %v900
        %v903 = vmul.f32 %v770, %v901
        %v904 = vmul.f32 %v773, %v901
        %v905 = vmul.f32 %v778, %v901
        %v906 = vmul.f32 %v781, %v901
        %v907 = vmul.f32 %v786, %v901
        %v908 = vmul.f32 %v789, %v901
        %v909 = vmul.f32 %v794, %v901
        %v910 = vmul.f32 %v797, %v901
        %v911 = vmul.f32 %v802, %v901
        %v912 = vmul.f32 %v805, %v901
        %v913 = vmul.f32 %v810, %v901
        %v914 = vmul.f32 %v813, %v901
        %v915 = vmul.f32 %v818, %v901
        %v916 = vmul.f32 %v821, %v901
        %v917 = vmul.f32 %v826, %v901
        %v918 = vmul.f32 %v829, %v901
        %v919 = vmul.f32 %v834, %v901
        %v920 = vmul.f32 %v837, %v901
        %v921 = vmul.f32 %v842, %v901
        %v922 = vmul.f32 %v845, %v901
        %v923 = vmul.f32 %v850, %v901
        %v924 = vmul.f32 %v853, %v901
        %v925 = vmul.f32 %v858, %v901
        %v926 = vmul.f32 %v861, %v901
        %v927 = vmul.f32 %v866, %v901
        %v928 = vmul.f32 %v869, %v901
        %v929 = vmul.f32 %v874, %v901
        %v930 = vmul.f32 %v877, %v901
        %v931 = vmul.f32 %v882, %v901
        %v932 = vmul.f32 %v885, %v901
        %v933 = vmul.f32 %v890, %v901
        %v934 = vmul.f32 %v893, %v901
        %v935 = vld [vmem:[%s4] sm:$0x1]
        %v937 = vlaneseq
        %v938 = vshrl.u32 %v937, 7
        %v939 = vsub.s32 0, %v938
        %v940 = vrot.slane %v935, %v939
        %v942 = vadd.f32 %v903, %v940
        %v943 = vadd.f32 %v904, %v940
        %v944 = vadd.f32 %v905, %v940
        %v945 = vadd.f32 %v906, %v940
        %v946 = vadd.f32 %v907, %v940
        %v947 = vadd.f32 %v908, %v940
        %v948 = vadd.f32 %v909, %v940
        %v949 = vadd.f32 %v910, %v940
        %v950 = vadd.f32 %v911, %v940
        %v951 = vadd.f32 %v912, %v940
        %v952 = vadd.f32 %v913, %v940
        %v953 = vadd.f32 %v914, %v940
        %v954 = vadd.f32 %v915, %v940
        %v955 = vadd.f32 %v916, %v940
        %v956 = vadd.f32 %v917, %v940
        %v957 = vadd.f32 %v918, %v940
        %v958 = vadd.f32 %v919, %v940
        %v959 = vadd.f32 %v920, %v940
        %v960 = vadd.f32 %v921, %v940
        %v961 = vadd.f32 %v922, %v940
        %v962 = vadd.f32 %v923, %v940
        %v963 = vadd.f32 %v924, %v940
        %v964 = vadd.f32 %v925, %v940
        %v965 = vadd.f32 %v926, %v940
        %v966 = vadd.f32 %v927, %v940
        %v967 = vadd.f32 %v928, %v940
        %v968 = vadd.f32 %v929, %v940
        %v969 = vadd.f32 %v930, %v940
        %v970 = vadd.f32 %v931, %v940
        %v971 = vadd.f32 %v932, %v940
        %v972 = vadd.f32 %v933, %v940
        %v973 = vadd.f32 %v934, %v940
        %v974 = vld [vmem:[%s334] sm:$0xff]
        %v975 = vld [vmem:[%s334 + $0x8] sm:$0xff]
        %v976 = vld [vmem:[%s334 + $0x10] sm:$0xff]
        %v977 = vld [vmem:[%s334 + $0x18] sm:$0xff]
        %v978 = vld [vmem:[%s334 + $0x20] sm:$0xff]
        %v979 = vld [vmem:[%s334 + $0x28] sm:$0xff]
        %v980 = vld [vmem:[%s334 + $0x30] sm:$0xff]
        %v981 = vld [vmem:[%s334 + $0x38] sm:$0xff]
        %v982 = vld [vmem:[%s334 + $0x40] sm:$0xff]
        %v983 = vld [vmem:[%s334 + $0x48] sm:$0xff]
        %v984 = vld [vmem:[%s334 + $0x50] sm:$0xff]
        %v985 = vld [vmem:[%s334 + $0x58] sm:$0xff]
        %v986 = vld [vmem:[%s334 + $0x60] sm:$0xff]
        %v987 = vld [vmem:[%s334 + $0x68] sm:$0xff]
        %v988 = vld [vmem:[%s334 + $0x70] sm:$0xff]
        %v989 = vld [vmem:[%s334 + $0x78] sm:$0xff]
        %v990 = vld [vmem:[%s334 + $0x80] sm:$0xff]
        %v991 = vld [vmem:[%s334 + $0x88] sm:$0xff]
        %v992 = vld [vmem:[%s334 + $0x90] sm:$0xff]
        %v993 = vld [vmem:[%s334 + $0x98] sm:$0xff]
        %v994 = vld [vmem:[%s334 + $0xa0] sm:$0xff]
        %v995 = vld [vmem:[%s334 + $0xa8] sm:$0xff]
        %v996 = vld [vmem:[%s334 + $0xb0] sm:$0xff]
        %v997 = vld [vmem:[%s334 + $0xb8] sm:$0xff]
        %v998 = vld [vmem:[%s334 + $0xc0] sm:$0xff]
        %v999 = vld [vmem:[%s334 + $0xc8] sm:$0xff]
        %v1000 = vld [vmem:[%s334 + $0xd0] sm:$0xff]
        %v1001 = vld [vmem:[%s334 + $0xd8] sm:$0xff]
        %v1002 = vld [vmem:[%s334 + $0xe0] sm:$0xff]
        %v1003 = vld [vmem:[%s334 + $0xe8] sm:$0xff]
        %v1004 = vld [vmem:[%s334 + $0xf0] sm:$0xff]
        %v1005 = vld [vmem:[%s334 + $0xf8] sm:$0xff]
        %v1006 = vadd.f32 %v942, %v974
        %v1007 = vadd.f32 %v943, %v975
        %v1008 = vadd.f32 %v944, %v976
        %v1009 = vadd.f32 %v945, %v977
        %v1010 = vadd.f32 %v946, %v978
        %v1011 = vadd.f32 %v947, %v979
        %v1012 = vadd.f32 %v948, %v980
        %v1013 = vadd.f32 %v949, %v981
        %v1014 = vadd.f32 %v950, %v982
        %v1015 = vadd.f32 %v951, %v983
        %v1016 = vadd.f32 %v952, %v984
        %v1017 = vadd.f32 %v953, %v985
        %v1018 = vadd.f32 %v954, %v986
        %v1019 = vadd.f32 %v955, %v987
        %v1020 = vadd.f32 %v956, %v988
        %v1021 = vadd.f32 %v957, %v989
        %v1022 = vadd.f32 %v958, %v990
        %v1023 = vadd.f32 %v959, %v991
        %v1024 = vadd.f32 %v960, %v992
        %v1025 = vadd.f32 %v961, %v993
        %v1026 = vadd.f32 %v962, %v994
        %v1027 = vadd.f32 %v963, %v995
        %v1028 = vadd.f32 %v964, %v996
        %v1029 = vadd.f32 %v965, %v997
        %v1030 = vadd.f32 %v966, %v998
        %v1031 = vadd.f32 %v967, %v999
        %v1032 = vadd.f32 %v968, %v1000
        %v1033 = vadd.f32 %v969, %v1001
        %v1034 = vadd.f32 %v970, %v1002
        %v1035 = vadd.f32 %v971, %v1003
        %v1036 = vadd.f32 %v972, %v1004
        %v1037 = vadd.f32 %v973, %v1005
        %vm1038 = vcmask 261120
        %1039 = vst.msk [vmem:[%s310] sm:$0xff] %vm1038, %v1006
        %1040 = vst.msk [vmem:[%s310 + $0x8] sm:$0xff] %vm1038, %v1007
        %1041 = vst.msk [vmem:[%s310 + $0x10] sm:$0xff] %vm1038, %v1008
        %1042 = vst.msk [vmem:[%s310 + $0x18] sm:$0xff] %vm1038, %v1009
        %1043 = vst.msk [vmem:[%s310 + $0x20] sm:$0xff] %vm1038, %v1010
        %1044 = vst.msk [vmem:[%s310 + $0x28] sm:$0xff] %vm1038, %v1011
        %1045 = vst.msk [vmem:[%s310 + $0x30] sm:$0xff] %vm1038, %v1012
        %1046 = vst.msk [vmem:[%s310 + $0x38] sm:$0xff] %vm1038, %v1013
        %1047 = vst.msk [vmem:[%s310 + $0x40] sm:$0xff] %vm1038, %v1014
        %1048 = vst.msk [vmem:[%s310 + $0x48] sm:$0xff] %vm1038, %v1015
        %1049 = vst.msk [vmem:[%s310 + $0x50] sm:$0xff] %vm1038, %v1016
        %1050 = vst.msk [vmem:[%s310 + $0x58] sm:$0xff] %vm1038, %v1017
        %1051 = vst.msk [vmem:[%s310 + $0x60] sm:$0xff] %vm1038, %v1018
        %1052 = vst.msk [vmem:[%s310 + $0x68] sm:$0xff] %vm1038, %v1019
        %1053 = vst.msk [vmem:[%s310 + $0x70] sm:$0xff] %vm1038, %v1020
        %1054 = vst.msk [vmem:[%s310 + $0x78] sm:$0xff] %vm1038, %v1021
        %1055 = vst.msk [vmem:[%s310 + $0x80] sm:$0xff] %vm1038, %v1022
        %1056 = vst.msk [vmem:[%s310 + $0x88] sm:$0xff] %vm1038, %v1023
        %1057 = vst.msk [vmem:[%s310 + $0x90] sm:$0xff] %vm1038, %v1024
        %1058 = vst.msk [vmem:[%s310 + $0x98] sm:$0xff] %vm1038, %v1025
        %1059 = vst.msk [vmem:[%s310 + $0xa0] sm:$0xff] %vm1038, %v1026
        %1060 = vst.msk [vmem:[%s310 + $0xa8] sm:$0xff] %vm1038, %v1027
        %1061 = vst.msk [vmem:[%s310 + $0xb0] sm:$0xff] %vm1038, %v1028
        %1062 = vst.msk [vmem:[%s310 + $0xb8] sm:$0xff] %vm1038, %v1029
        %1063 = vst.msk [vmem:[%s310 + $0xc0] sm:$0xff] %vm1038, %v1030
        %1064 = vst.msk [vmem:[%s310 + $0xc8] sm:$0xff] %vm1038, %v1031
        %1065 = vst.msk [vmem:[%s310 + $0xd0] sm:$0xff] %vm1038, %v1032
        %1066 = vst.msk [vmem:[%s310 + $0xd8] sm:$0xff] %vm1038, %v1033
        %1067 = vst.msk [vmem:[%s310 + $0xe0] sm:$0xff] %vm1038, %v1034
        %1068 = vst.msk [vmem:[%s310 + $0xe8] sm:$0xff] %vm1038, %v1035
        %1069 = vst.msk [vmem:[%s310 + $0xf0] sm:$0xff] %vm1038, %v1036
        %1070 = vst.msk [vmem:[%s310 + $0xf8] sm:$0xff] %vm1038, %v1037
        %s1071 = sand.u32 %s187, 1
        %s1072 = scalar_lea.sflag [#allocation3], %s1071
        %s1073 = sand.u32 %s187, 1
        %s1074 = smul.addr %s1073, 256
        %s1075 = scalar_lea.vmem [#allocation2], %s1074
        // Predicated region
        $region45: #{_lambda_.5} parent=43 // pred_check
          %p1076 = pneg %p197
        $region46: #{_lambda_.5} parent=43 // pred_check_branch
          %1078 = sbr.rel (%p1076) target = $region48
        $region47: #{_lambda_.5} parent=43 // pred_region
          %s1079 = smul.u32 32, %s25
          %s1081 = ssub.s32 4096, 4096
          %1082 = vsyncadd %s1072, %s1081
          %s1083 = smul.addr %s24, 32
          %s1084 = sadd.s32 %s1079, %s1083
          %s1085 = smul.addr %s1084, 128
          %s1086 = scalar_lea.hbm %s6, %s1085
          %s1087 = sshll.u32 %s1075, 4
          %s1088 = int_to_ptr.vmem [resolvable:$true] %s1087
          %1093 = dma.vmem_to_hbm [thread:$0]  %s1088, 4096, %s1086, %s1072, 128, 128, 8
        $region48: #{_lambda_.5} parent=43 // pred_fallthru
          _
      $region44: #{_lambda_.5} parent=5 // pred_fallthru
        _
      %p1094 = scmp.le.s32.totalorder 2, %s15
      // Predicated region
      $region49: #{_lambda_.5} parent=5 // pred_check
        %p1095 = pneg %p1094
      $region50: #{_lambda_.5} parent=5 // pred_check_branch
        %1097 = sbr.rel (%p1095) target = $region52
      $region51: #{_lambda_.5} parent=5 // pred_region
        %s1098 = ssub.s32 %s15, 2
        // Predicated region
        $region53: #{_lambda_.5} parent=51 // pred_check
          %p1099 = pneg %p203
        $region54: #{_lambda_.5} parent=51 // pred_check_branch
          %1101 = sbr.rel (%p1099) target = $region56
        $region55: #{_lambda_.5} parent=51 // pred_region
          %s1102 = sand.u32 %s188, 1
          %s1103 = scalar_lea.sflag [#allocation3], %s1102
          %s1104 = sand.u32 %s188, 1
          %s1105 = smul.addr %s1104, 256
          %s1106 = scalar_lea.vmem [#allocation2], %s1105
          %1107 = dma.done %s1103, 4096
        $region56: #{_lambda_.5} parent=51 // pred_fallthru
          _
      $region52: #{_lambda_.5} parent=5 // pred_fallthru
        _
    $region6: #{_lambda_.5} parent=1 // loop_footer
      %s19 = sadd.s32 1, %s15
    $region7: #{_lambda_.5} parent=1 // loop_footer_branch
      %14 = sbr.rel target = $region3
    $region8: #{_lambda_.5} parent=1 // loop_exit
      _
    %1108 = vsyncpa [#allocation3], 1
    %s1109 = scalar_lea.sflag [#allocation3], 1
    %1110 = vsyncpa %s1109, 1

// kernel: _lambda_.3
$region0: #{_lambda_.3}
  #allocation0 [shape = 'u32[]', space=smem, size = 0x4, offset = 0x4, fixed_abs, tag = 'smem constant byte address 0x4 - core index']
  #allocation1 [shape = 'u32[144,128]{1,0:T(1,128)}', space=vmem, size = 0x12000, scoped, tag = 'internal scratch']
  %s0 = inlined_call_operand.vmem [shape: bf16[512,32], index: 0, kind: input, shape index: {}]
  %s1 = inlined_call_operand.vmem [shape: bf16[32,192], index: 1, kind: input, shape index: {}]
  %s2 = inlined_call_operand.vmem [shape: f32[1,192], index: 2, kind: input, shape index: {}]
  %s3 = inlined_call_operand.vmem [shape: f32[1,192], index: 3, kind: input, shape index: {}]
  %s4 = inlined_call_operand.vmem [shape: bf16[512,192], index: 4, kind: output, shape index: {}]
  %s5 = sld [smem:[#allocation0]]
  $region26: #{_lambda_.3} parent=0
    _
  %s7 = ssub.s32 1, %s5
  %s8 = scalar_select 0, %s7, %s5
  // Predicated region
  $region2: #{_lambda_.3} parent=0 // pred_check
    _
  $region3: #{_lambda_.3} parent=0 // pred_check_branch
    %10 = sbr.rel (0) target = $region5
  $region4: #{_lambda_.3} parent=0 // pred_region
    _
  $region5: #{_lambda_.3} parent=0 // pred_fallthru
    _
  // Predicated region
  $region6: #{_lambda_.3} parent=0 // pred_check
    _
  $region7: #{_lambda_.3} parent=0 // pred_check_branch
    %12 = sbr.rel (0) target = $region9
  $region8: #{_lambda_.3} parent=0 // pred_region
    _
  $region9: #{_lambda_.3} parent=0 // pred_fallthru
    _
  // Predicated region
  $region10: #{_lambda_.3} parent=0 // pred_check
    _
  $region11: #{_lambda_.3} parent=0 // pred_check_branch
    %14 = sbr.rel (0) target = $region13
  $region12: #{_lambda_.3} parent=0 // pred_region
    _
  $region13: #{_lambda_.3} parent=0 // pred_fallthru
    _
  // Predicated region
  $region14: #{_lambda_.3} parent=0 // pred_check
    _
  $region15: #{_lambda_.3} parent=0 // pred_check_branch
    %16 = sbr.rel (0) target = $region17
  $region16: #{_lambda_.3} parent=0 // pred_region
    _
  $region17: #{_lambda_.3} parent=0 // pred_fallthru
    _
  %v18 = vld [vmem:[%s0] sm:$0xf]
  %v19 = vld [vmem:[%s0 + $0x4] sm:$0xf]
  %v20 = vld [vmem:[%s0 + $0x8] sm:$0xf]
  %v21 = vld [vmem:[%s0 + $0xc] sm:$0xf]
  %v22 = vld [vmem:[%s0 + $0x10] sm:$0xf]
  %v23 = vld [vmem:[%s0 + $0x14] sm:$0xf]
  %v24 = vld [vmem:[%s0 + $0x18] sm:$0xf]
  %v25 = vld [vmem:[%s0 + $0x1c] sm:$0xf]
  %v26 = vld [vmem:[%s0 + $0x20] sm:$0xf]
  %v27 = vld [vmem:[%s0 + $0x24] sm:$0xf]
  %v28 = vld [vmem:[%s0 + $0x28] sm:$0xf]
  %v29 = vld [vmem:[%s0 + $0x2c] sm:$0xf]
  %v30 = vld [vmem:[%s0 + $0x30] sm:$0xf]
  %v31 = vld [vmem:[%s0 + $0x34] sm:$0xf]
  %v32 = vld [vmem:[%s0 + $0x38] sm:$0xf]
  %v33 = vld [vmem:[%s0 + $0x3c] sm:$0xf]
  %v34 = vld [vmem:[%s0 + $0x40] sm:$0xf]
  %v35 = vld [vmem:[%s0 + $0x44] sm:$0xf]
  %v36 = vld [vmem:[%s0 + $0x48] sm:$0xf]
  %v37 = vld [vmem:[%s0 + $0x4c] sm:$0xf]
  %v38 = vld [vmem:[%s0 + $0x50] sm:$0xf]
  %v39 = vld [vmem:[%s0 + $0x54] sm:$0xf]
  %v40 = vld [vmem:[%s0 + $0x58] sm:$0xf]
  %v41 = vld [vmem:[%s0 + $0x5c] sm:$0xf]
  %v42 = vld [vmem:[%s0 + $0x60] sm:$0xf]
  %v43 = vld [vmem:[%s0 + $0x64] sm:$0xf]
  %v44 = vld [vmem:[%s0 + $0x68] sm:$0xf]
  %v45 = vld [vmem:[%s0 + $0x6c] sm:$0xf]
  %v46 = vld [vmem:[%s0 + $0x70] sm:$0xf]
  %v47 = vld [vmem:[%s0 + $0x74] sm:$0xf]
  %v48 = vld [vmem:[%s0 + $0x78] sm:$0xf]
  %v49 = vld [vmem:[%s0 + $0x7c] sm:$0xf]
  %v50 = vld [vmem:[%s0 + $0x80] sm:$0xf]
  %v51 = vld [vmem:[%s0 + $0x84] sm:$0xf]
  %v52 = vld [vmem:[%s0 + $0x88] sm:$0xf]
  %v53 = vld [vmem:[%s0 + $0x8c] sm:$0xf]
  %v54 = vld [vmem:[%s0 + $0x90] sm:$0xf]
  %v55 = vld [vmem:[%s0 + $0x94] sm:$0xf]
  %v56 = vld [vmem:[%s0 + $0x98] sm:$0xf]
  %v57 = vld [vmem:[%s0 + $0x9c] sm:$0xf]
  %v58 = vld [vmem:[%s0 + $0xa0] sm:$0xf]
  %v59 = vld [vmem:[%s0 + $0xa4] sm:$0xf]
  %v60 = vld [vmem:[%s0 + $0xa8] sm:$0xf]
  %v61 = vld [vmem:[%s0 + $0xac] sm:$0xf]
  %v62 = vld [vmem:[%s0 + $0xb0] sm:$0xf]
  %v63 = vld [vmem:[%s0 + $0xb4] sm:$0xf]
  %v64 = vld [vmem:[%s0 + $0xb8] sm:$0xf]
  %v65 = vld [vmem:[%s0 + $0xbc] sm:$0xf]
  %v66 = vld [vmem:[%s0 + $0xc0] sm:$0xf]
  %v67 = vld [vmem:[%s0 + $0xc4] sm:$0xf]
  %v68 = vld [vmem:[%s0 + $0xc8] sm:$0xf]
  %v69 = vld [vmem:[%s0 + $0xcc] sm:$0xf]
  %v70 = vld [vmem:[%s0 + $0xd0] sm:$0xf]
  %v71 = vld [vmem:[%s0 + $0xd4] sm:$0xf]
  %v72 = vld [vmem:[%s0 + $0xd8] sm:$0xf]
  %v73 = vld [vmem:[%s0 + $0xdc] sm:$0xf]
  %v74 = vld [vmem:[%s0 + $0xe0] sm:$0xf]
  %v75 = vld [vmem:[%s0 + $0xe4] sm:$0xf]
  %v76 = vld [vmem:[%s0 + $0xe8] sm:$0xf]
  %v77 = vld [vmem:[%s0 + $0xec] sm:$0xf]
  %v78 = vld [vmem:[%s0 + $0xf0] sm:$0xf]
  %v79 = vld [vmem:[%s0 + $0xf4] sm:$0xf]
  %v80 = vld [vmem:[%s0 + $0xf8] sm:$0xf]
  %v81 = vld [vmem:[%s0 + $0xfc] sm:$0xf]
  %v82 = vld [vmem:[%s1] sm:$0xff]
  %v83 = vld [vmem:[%s1 + $0x8] sm:$0xff]
  %v84 = vld [vmem:[%s1 + $0x10] sm:$0xff]
  %v85 = vld [vmem:[%s1 + $0x18] sm:$0xff]
  %v150 = vunpack.c.l.b16 %v18
  %v151 = vunpack.c.l.b16 %v19
  %v152 = vunpack.c.l.b16 %v20
  %v153 = vunpack.c.l.b16 %v21
  %v154 = vunpack.c.l.b16 %v22
  %v155 = vunpack.c.l.b16 %v23
  %v156 = vunpack.c.l.b16 %v24
  %v157 = vunpack.c.l.b16 %v25
  %v158 = vunpack.c.l.b16 %v26
  %v159 = vunpack.c.l.b16 %v27
  %v160 = vunpack.c.l.b16 %v28
  %v161 = vunpack.c.l.b16 %v29
  %v162 = vunpack.c.l.b16 %v30
  %v163 = vunpack.c.l.b16 %v31
  %v164 = vunpack.c.l.b16 %v32
  %v165 = vunpack.c.l.b16 %v33
  %v166 = vunpack.c.l.b16 %v34
  %v167 = vunpack.c.l.b16 %v35
  %v168 = vunpack.c.l.b16 %v36
  %v169 = vunpack.c.l.b16 %v37
  %v170 = vunpack.c.l.b16 %v38
  %v171 = vunpack.c.l.b16 %v39
  %v172 = vunpack.c.l.b16 %v40
  %v173 = vunpack.c.l.b16 %v41
  %v174 = vunpack.c.l.b16 %v42
  %v175 = vunpack.c.l.b16 %v43
  %v176 = vunpack.c.l.b16 %v44
  %v177 = vunpack.c.l.b16 %v45
  %v178 = vunpack.c.l.b16 %v46
  %v179 = vunpack.c.l.b16 %v47
  %v180 = vunpack.c.l.b16 %v48
  %v181 = vunpack.c.l.b16 %v49
  %v182 = vunpack.c.l.b16 %v50
  %v183 = vunpack.c.l.b16 %v51
  %v184 = vunpack.c.l.b16 %v52
  %v185 = vunpack.c.l.b16 %v53
  %v186 = vunpack.c.l.b16 %v54
  %v187 = vunpack.c.l.b16 %v55
  %v188 = vunpack.c.l.b16 %v56
  %v189 = vunpack.c.l.b16 %v57
  %v190 = vunpack.c.l.b16 %v58
  %v191 = vunpack.c.l.b16 %v59
  %v192 = vunpack.c.l.b16 %v60
  %v193 = vunpack.c.l.b16 %v61
  %v194 = vunpack.c.l.b16 %v62
  %v195 = vunpack.c.l.b16 %v63
  %v196 = vunpack.c.l.b16 %v64
  %v197 = vunpack.c.l.b16 %v65
  %v198 = vunpack.c.l.b16 %v66
  %v199 = vunpack.c.l.b16 %v67
  %v200 = vunpack.c.l.b16 %v68
  %v201 = vunpack.c.l.b16 %v69
  %v202 = vunpack.c.l.b16 %v70
  %v203 = vunpack.c.l.b16 %v71
  %v204 = vunpack.c.l.b16 %v72
  %v205 = vunpack.c.l.b16 %v73
  %v206 = vunpack.c.l.b16 %v74
  %v207 = vunpack.c.l.b16 %v75
  %v208 = vunpack.c.l.b16 %v76
  %v209 = vunpack.c.l.b16 %v77
  %v210 = vunpack.c.l.b16 %v78
  %v211 = vunpack.c.l.b16 %v79
  %v212 = vunpack.c.l.b16 %v80
  %v213 = vunpack.c.l.b16 %v81
  %v214 = vpack.c.b16 %v151, %v150
  %v215 = vpack.c.b16 %v153, %v152
  %v216 = vpack.c.b16 %v155, %v154
  %v217 = vpack.c.b16 %v157, %v156
  %v218 = vpack.c.b16 %v159, %v158
  %v219 = vpack.c.b16 %v161, %v160
  %v220 = vpack.c.b16 %v163, %v162
  %v221 = vpack.c.b16 %v165, %v164
  %v222 = vpack.c.b16 %v167, %v166
  %v223 = vpack.c.b16 %v169, %v168
  %v224 = vpack.c.b16 %v171, %v170
  %v225 = vpack.c.b16 %v173, %v172
  %v226 = vpack.c.b16 %v175, %v174
  %v227 = vpack.c.b16 %v177, %v176
  %v228 = vpack.c.b16 %v179, %v178
  %v229 = vpack.c.b16 %v181, %v180
  %v230 = vpack.c.b16 %v183, %v182
  %v231 = vpack.c.b16 %v185, %v184
  %v232 = vpack.c.b16 %v187, %v186
  %v233 = vpack.c.b16 %v189, %v188
  %v234 = vpack.c.b16 %v191, %v190
  %v235 = vpack.c.b16 %v193, %v192
  %v236 = vpack.c.b16 %v195, %v194
  %v237 = vpack.c.b16 %v197, %v196
  %v238 = vpack.c.b16 %v199, %v198
  %v239 = vpack.c.b16 %v201, %v200
  %v240 = vpack.c.b16 %v203, %v202
  %v241 = vpack.c.b16 %v205, %v204
  %v242 = vpack.c.b16 %v207, %v206
  %v243 = vpack.c.b16 %v209, %v208
  %v244 = vpack.c.b16 %v211, %v210
  %v245 = vpack.c.b16 %v213, %v212
  %v250 = vunpack.c.l.b16 %v82
  %v251 = vunpack.c.h.b16 %v82
  %v252 = vunpack.c.l.b16 %v83
  %v253 = vunpack.c.h.b16 %v83
  %v254 = vunpack.c.l.b16 %v84
  %v255 = vunpack.c.h.b16 %v84
  %v256 = vunpack.c.l.b16 %v85
  %v257 = vunpack.c.h.b16 %v85
  %v258 = vpack.c.b16 %v252, %v250
  %v259 = vpack.c.b16 %v253, %v251
  %v260 = vpack.c.b16 %v256, %v254
  %v261 = vpack.c.b16 %v257, %v255
  %vm266 = vcmask 261120
  %v268 = vsel %vm266, %v214, 0
  %v271 = vsel %vm266, %v215, 0
  %v274 = vsel %vm266, %v216, 0
  %v277 = vsel %vm266, %v217, 0
  %v280 = vsel %vm266, %v218, 0
  %v283 = vsel %vm266, %v219, 0
  %v286 = vsel %vm266, %v220, 0
  %v289 = vsel %vm266, %v221, 0
  %v292 = vsel %vm266, %v222, 0
  %v295 = vsel %vm266, %v223, 0
  %v298 = vsel %vm266, %v224, 0
  %v301 = vsel %vm266, %v225, 0
  %v304 = vsel %vm266, %v226, 0
  %v307 = vsel %vm266, %v227, 0
  %v310 = vsel %vm266, %v228, 0
  %v313 = vsel %vm266, %v229, 0
  %v316 = vsel %vm266, %v230, 0
  %v319 = vsel %vm266, %v231, 0
  %v322 = vsel %vm266, %v232, 0
  %v325 = vsel %vm266, %v233, 0
  %v328 = vsel %vm266, %v234, 0
  %v331 = vsel %vm266, %v235, 0
  %v334 = vsel %vm266, %v236, 0
  %v337 = vsel %vm266, %v237, 0
  %v340 = vsel %vm266, %v238, 0
  %v343 = vsel %vm266, %v239, 0
  %v346 = vsel %vm266, %v240, 0
  %v349 = vsel %vm266, %v241, 0
  %v352 = vsel %vm266, %v242, 0
  %v355 = vsel %vm266, %v243, 0
  %v358 = vsel %vm266, %v244, 0
  %v361 = vsel %vm266, %v245, 0
  %363 = vmatprep.subr.bf16.mxu0 %v259
  %364 = vmatpush1.bf16.msra.mxu0 %v258
  %365 = vmatprep.subr.bf16.mxu0 %v261
  %366 = vmatpush1.bf16.msra.mxu0 %v260
  %367 = vmatprep.subr.bf16.mxu0 0
  %368 = vmatpush1.bf16.msra.mxu0 0
  %369 = vmatprep.subr.bf16.mxu0 0
  %370 = vmatpush1.bf16.msra.mxu0 0
  %371 = vmatprep.subr.bf16.mxu0 0
  %372 = vmatpush1.bf16.msra.mxu0 0
  %373 = vmatprep.subr.bf16.mxu0 0
  %374 = vmatpush1.bf16.msra.mxu0 0
  %375 = vmatprep.subr.bf16.mxu0 0
  %376 = vmatpush1.bf16.msra.mxu0 0
  %377 = vmatprep.subr.bf16.mxu0 0
  %378 = vmatpush1.bf16.msra.mxu0 0
  %379 = vmatprep.subr.bf16.mxu0 0
  %380 = vmatpush1.bf16.msra.mxu0 0
  %381 = vmatprep.subr.bf16.mxu0 0
  %382 = vmatpush1.bf16.msra.mxu0 0
  %383 = vmatprep.subr.bf16.mxu0 0
  %384 = vmatpush1.bf16.msra.mxu0 0
  %385 = vmatprep.subr.bf16.mxu0 0
  %386 = vmatpush1.bf16.msra.mxu0 0
  %387 = vmatprep.subr.bf16.mxu0 0
  %388 = vmatpush1.bf16.msra.mxu0 0
  %389 = vmatprep.subr.bf16.mxu0 0
  %390 = vmatpush1.bf16.msra.mxu0 0
  %391 = vmatprep.subr.bf16.mxu0 0
  %392 = vmatpush1.bf16.msra.mxu0 0
  %393 = vmatprep.subr.bf16.mxu0 0
  %394 = vmatpush1.bf16.msra.mxu0 0
  %395 = vmatprep.mubr.bf16.mxu0 0
  %396 = vmatmul.mubr.bf16.gmra.mrb[0].mxu0 %v268
  %v397 = vpop.f32.mrb[0].mxu0
  %v398 = vadd.f32 0.0, %v397
  %v399 = vpop.f32.mrb[0].mxu0
  %v400 = vadd.f32 0.0, %v399
  %v401 = vpop.f32.mrb[0].mxu0
  %v402 = vadd.f32 0.0, %v401
  %v403 = vpop.f32.mrb[0].mxu0
  %v404 = vadd.f32 0.0, %v403
  %405 = vmatprep.mubr.bf16.mxu0 0
  %406 = vmatmul.mubr.bf16.gmra.mrb[0].mxu0 %v271
  %v407 = vpop.f32.mrb[0].mxu0
  %v408 = vadd.f32 0.0, %v407
  %v409 = vpop.f32.mrb[0].mxu0
  %v410 = vadd.f32 0.0, %v409
  %v411 = vpop.f32.mrb[0].mxu0
  %v412 = vadd.f32 0.0, %v411
  %v413 = vpop.f32.mrb[0].mxu0
  %v414 = vadd.f32 0.0, %v413
  %415 = vmatprep.mubr.bf16.mxu0 0
  %416 = vmatmul.mubr.bf16.gmra.mrb[0].mxu0 %v274
  %v417 = vpop.f32.mrb[0].mxu0
  %v418 = vadd.f32 0.0, %v417
  %v419 = vpop.f32.mrb[0].mxu0
  %v420 = vadd.f32 0.0, %v419
  %v421 = vpop.f32.mrb[0].mxu0
  %v422 = vadd.f32 0.0, %v421
  %v423 = vpop.f32.mrb[0].mxu0
  %v424 = vadd.f32 0.0, %v423
  %425 = vmatprep.mubr.bf16.mxu0 0
  %426 = vmatmul.mubr.bf16.gmra.mrb[0].mxu0 %v277
  %v427 = vpop.f32.mrb[0].mxu0
  %v428 = vadd.f32 0.0, %v427
  %v429 = vpop.f32.mrb[0].mxu0
  %v430 = vadd.f32 0.0, %v429
  %v431 = vpop.f32.mrb[0].mxu0
  %v432 = vadd.f32 0.0, %v431
  %v433 = vpop.f32.mrb[0].mxu0
  %v434 = vadd.f32 0.0, %v433
  %435 = vmatprep.mubr.bf16.mxu0 0
  %436 = vmatmul.mubr.bf16.gmra.mrb[0].mxu0 %v280
  %v437 = vpop.f32.mrb[0].mxu0
  %v438 = vadd.f32 0.0, %v437
  %v439 = vpop.f32.mrb[0].mxu0
  %v440 = vadd.f32 0.0, %v439
  %v441 = vpop.f32.mrb[0].mxu0
  %v442 = vadd.f32 0.0, %v441
  %v443 = vpop.f32.mrb[0].mxu0
  %v444 = vadd.f32 0.0, %v443
  %445 = vmatprep.mubr.bf16.mxu0 0
  %446 = vmatmul.mubr.bf16.gmra.mrb[0].mxu0 %v283
  %v447 = vpop.f32.mrb[0].mxu0
  %v448 = vadd.f32 0.0, %v447
  %v449 = vpop.f32.mrb[0].mxu0
  %v450 = vadd.f32 0.0, %v449
  %v451 = vpop.f32.mrb[0].mxu0
  %v452 = vadd.f32 0.0, %v451
  %v453 = vpop.f32.mrb[0].mxu0
  %v454 = vadd.f32 0.0, %v453
  %455 = vmatprep.mubr.bf16.mxu0 0
  %456 = vmatmul.mubr.bf16.gmra.mrb[0].mxu0 %v286
  %v457 = vpop.f32.mrb[0].mxu0
  %v458 = vadd.f32 0.0, %v457
  %v459 = vpop.f32.mrb[0].mxu0
  %v460 = vadd.f32 0.0, %v459
  %v461 = vpop.f32.mrb[0].mxu0
  %v462 = vadd.f32 0.0, %v461
  %v463 = vpop.f32.mrb[0].mxu0
  %v464 = vadd.f32 0.0, %v463
  %465 = vmatprep.mubr.bf16.mxu0 0
  %466 = vmatmul.mubr.bf16.gmra.mrb[0].mxu0 %v289
  %v467 = vpop.f32.mrb[0].mxu0
  %v468 = vadd.f32 0.0, %v467
  %v469 = vpop.f32.mrb[0].mxu0
  %v470 = vadd.f32 0.0, %v469
  %v471 = vpop.f32.mrb[0].mxu0
  %v472 = vadd.f32 0.0, %v471
  %v473 = vpop.f32.mrb[0].mxu0
  %v474 = vadd.f32 0.0, %v473
  %475 = vmatprep.mubr.bf16.mxu0 0
  %476 = vmatmul.mubr.bf16.gmra.mrb[0].mxu0 %v292
  %v477 = vpop.f32.mrb[0].mxu0
  %v478 = vadd.f32 0.0, %v477
  %v479 = vpop.f32.mrb[0].mxu0
  %v480 = vadd.f32 0.0, %v479
  %v481 = vpop.f32.mrb[0].mxu0
  %v482 = vadd.f32 0.0, %v481
  %v483 = vpop.f32.mrb[0].mxu0
  %v484 = vadd.f32 0.0, %v483
  %485 = vmatprep.mubr.bf16.mxu0 0
  %486 = vmatmul.mubr.bf16.gmra.mrb[0].mxu0 %v295
  %v487 = vpop.f32.mrb[0].mxu0
  %v488 = vadd.f32 0.0, %v487
  %v489 = vpop.f32.mrb[0].mxu0
  %v490 = vadd.f32 0.0, %v489
  %v491 = vpop.f32.mrb[0].mxu0
  %v492 = vadd.f32 0.0, %v491
  %v493 = vpop.f32.mrb[0].mxu0
  %v494 = vadd.f32 0.0, %v493
  %495 = vmatprep.mubr.bf16.mxu0 0
  %496 = vmatmul.mubr.bf16.gmra.mrb[0].mxu0 %v298
  %v497 = vpop.f32.mrb[0].mxu0
  %v498 = vadd.f32 0.0, %v497
  %v499 = vpop.f32.mrb[0].mxu0
  %v500 = vadd.f32 0.0, %v499
  %v501 = vpop.f32.mrb[0].mxu0
  %v502 = vadd.f32 0.0, %v501
  %v503 = vpop.f32.mrb[0].mxu0
  %v504 = vadd.f32 0.0, %v503
  %505 = vmatprep.mubr.bf16.mxu0 0
  %506 = vmatmul.mubr.bf16.gmra.mrb[0].mxu0 %v301
  %v507 = vpop.f32.mrb[0].mxu0
  %v508 = vadd.f32 0.0, %v507
  %v509 = vpop.f32.mrb[0].mxu0
  %v510 = vadd.f32 0.0, %v509
  %v511 = vpop.f32.mrb[0].mxu0
  %v512 = vadd.f32 0.0, %v511
  %v513 = vpop.f32.mrb[0].mxu0
  %v514 = vadd.f32 0.0, %v513
  %515 = vmatprep.mubr.bf16.mxu0 0
  %516 = vmatmul.mubr.bf16.gmra.mrb[0].mxu0 %v304
  %v517 = vpop.f32.mrb[0].mxu0
  %v518 = vadd.f32 0.0, %v517
  %v519 = vpop.f32.mrb[0].mxu0
  %v520 = vadd.f32 0.0, %v519
  %v521 = vpop.f32.mrb[0].mxu0
  %v522 = vadd.f32 0.0, %v521
  %v523 = vpop.f32.mrb[0].mxu0
  %v524 = vadd.f32 0.0, %v523
  %525 = vmatprep.mubr.bf16.mxu0 0
  %526 = vmatmul.mubr.bf16.gmra.mrb[0].mxu0 %v307
  %v527 = vpop.f32.mrb[0].mxu0
  %v528 = vadd.f32 0.0, %v527
  %v529 = vpop.f32.mrb[0].mxu0
  %v530 = vadd.f32 0.0, %v529
  %v531 = vpop.f32.mrb[0].mxu0
  %v532 = vadd.f32 0.0, %v531
  %v533 = vpop.f32.mrb[0].mxu0
  %v534 = vadd.f32 0.0, %v533
  %535 = vmatprep.mubr.bf16.mxu0 0
  %536 = vmatmul.mubr.bf16.gmra.mrb[0].mxu0 %v310
  %v537 = vpop.f32.mrb[0].mxu0
  %v538 = vadd.f32 0.0, %v537
  %v539 = vpop.f32.mrb[0].mxu0
  %v540 = vadd.f32 0.0, %v539
  %v541 = vpop.f32.mrb[0].mxu0
  %v542 = vadd.f32 0.0, %v541
  %v543 = vpop.f32.mrb[0].mxu0
  %v544 = vadd.f32 0.0, %v543
  %545 = vmatprep.mubr.bf16.mxu0 0
  %546 = vmatmul.mubr.bf16.gmra.mrb[0].mxu0 %v313
  %v547 = vpop.f32.mrb[0].mxu0
  %v548 = vadd.f32 0.0, %v547
  %v549 = vpop.f32.mrb[0].mxu0
  %v550 = vadd.f32 0.0, %v549
  %v551 = vpop.f32.mrb[0].mxu0
  %v552 = vadd.f32 0.0, %v551
  %v553 = vpop.f32.mrb[0].mxu0
  %v554 = vadd.f32 0.0, %v553
  %555 = vmatprep.mubr.bf16.mxu0 0
  %556 = vmatmul.mubr.bf16.gmra.mrb[0].mxu0 %v316
  %v557 = vpop.f32.mrb[0].mxu0
  %v558 = vadd.f32 0.0, %v557
  %v559 = vpop.f32.mrb[0].mxu0
  %v560 = vadd.f32 0.0, %v559
  %v561 = vpop.f32.mrb[0].mxu0
  %v562 = vadd.f32 0.0, %v561
  %v563 = vpop.f32.mrb[0].mxu0
  %v564 = vadd.f32 0.0, %v563
  %565 = vmatprep.mubr.bf16.mxu0 0
  %566 = vmatmul.mubr.bf16.gmra.mrb[0].mxu0 %v319
  %v567 = vpop.f32.mrb[0].mxu0
  %v568 = vadd.f32 0.0, %v567
  %v569 = vpop.f32.mrb[0].mxu0
  %v570 = vadd.f32 0.0, %v569
  %v571 = vpop.f32.mrb[0].mxu0
  %v572 = vadd.f32 0.0, %v571
  %v573 = vpop.f32.mrb[0].mxu0
  %v574 = vadd.f32 0.0, %v573
  %575 = vmatprep.mubr.bf16.mxu0 0
  %576 = vmatmul.mubr.bf16.gmra.mrb[0].mxu0 %v322
  %v577 = vpop.f32.mrb[0].mxu0
  %v578 = vadd.f32 0.0, %v577
  %v579 = vpop.f32.mrb[0].mxu0
  %v580 = vadd.f32 0.0, %v579
  %v581 = vpop.f32.mrb[0].mxu0
  %v582 = vadd.f32 0.0, %v581
  %v583 = vpop.f32.mrb[0].mxu0
  %v584 = vadd.f32 0.0, %v583
  %585 = vmatprep.mubr.bf16.mxu0 0
  %586 = vmatmul.mubr.bf16.gmra.mrb[0].mxu0 %v325
  %v587 = vpop.f32.mrb[0].mxu0
  %v588 = vadd.f32 0.0, %v587
  %v589 = vpop.f32.mrb[0].mxu0
  %v590 = vadd.f32 0.0, %v589
  %v591 = vpop.f32.mrb[0].mxu0
  %v592 = vadd.f32 0.0, %v591
  %v593 = vpop.f32.mrb[0].mxu0
  %v594 = vadd.f32 0.0, %v593
  %595 = vmatprep.mubr.bf16.mxu0 0
  %596 = vmatmul.mubr.bf16.gmra.mrb[0].mxu0 %v328
  %v597 = vpop.f32.mrb[0].mxu0
  %v598 = vadd.f32 0.0, %v597
  %v599 = vpop.f32.mrb[0].mxu0
  %v600 = vadd.f32 0.0, %v599
  %v601 = vpop.f32.mrb[0].mxu0
  %v602 = vadd.f32 0.0, %v601
  %v603 = vpop.f32.mrb[0].mxu0
  %v604 = vadd.f32 0.0, %v603
  %605 = vmatprep.mubr.bf16.mxu0 0
  %606 = vmatmul.mubr.bf16.gmra.mrb[0].mxu0 %v331
  %v607 = vpop.f32.mrb[0].mxu0
  %v608 = vadd.f32 0.0, %v607
  %v609 = vpop.f32.mrb[0].mxu0
  %v610 = vadd.f32 0.0, %v609
  %v611 = vpop.f32.mrb[0].mxu0
  %v612 = vadd.f32 0.0, %v611
  %v613 = vpop.f32.mrb[0].mxu0
  %v614 = vadd.f32 0.0, %v613
  %615 = vmatprep.mubr.bf16.mxu0 0
  %616 = vmatmul.mubr.bf16.gmra.mrb[0].mxu0 %v334
  %v617 = vpop.f32.mrb[0].mxu0
  %v618 = vadd.f32 0.0, %v617
  %v619 = vpop.f32.mrb[0].mxu0
  %v620 = vadd.f32 0.0, %v619
  %v621 = vpop.f32.mrb[0].mxu0
  %v622 = vadd.f32 0.0, %v621
  %v623 = vpop.f32.mrb[0].mxu0
  %v624 = vadd.f32 0.0, %v623
  %625 = vmatprep.mubr.bf16.mxu0 0
  %626 = vmatmul.mubr.bf16.gmra.mrb[0].mxu0 %v337
  %v627 = vpop.f32.mrb[0].mxu0
  %v628 = vadd.f32 0.0, %v627
  %v629 = vpop.f32.mrb[0].mxu0
  %v630 = vadd.f32 0.0, %v629
  %v631 = vpop.f32.mrb[0].mxu0
  %v632 = vadd.f32 0.0, %v631
  %v633 = vpop.f32.mrb[0].mxu0
  %v634 = vadd.f32 0.0, %v633
  %635 = vmatprep.mubr.bf16.mxu0 0
  %636 = vmatmul.mubr.bf16.gmra.mrb[0].mxu0 %v340
  %v637 = vpop.f32.mrb[0].mxu0
  %v638 = vadd.f32 0.0, %v637
  %v639 = vpop.f32.mrb[0].mxu0
  %v640 = vadd.f32 0.0, %v639
  %v641 = vpop.f32.mrb[0].mxu0
  %v642 = vadd.f32 0.0, %v641
  %v643 = vpop.f32.mrb[0].mxu0
  %v644 = vadd.f32 0.0, %v643
  %645 = vmatprep.mubr.bf16.mxu0 0
  %646 = vmatmul.mubr.bf16.gmra.mrb[0].mxu0 %v343
  %v647 = vpop.f32.mrb[0].mxu0
  %v648 = vadd.f32 0.0, %v647
  %v649 = vpop.f32.mrb[0].mxu0
  %v650 = vadd.f32 0.0, %v649
  %v651 = vpop.f32.mrb[0].mxu0
  %v652 = vadd.f32 0.0, %v651
  %v653 = vpop.f32.mrb[0].mxu0
  %v654 = vadd.f32 0.0, %v653
  %655 = vmatprep.mubr.bf16.mxu0 0
  %656 = vmatmul.mubr.bf16.gmra.mrb[0].mxu0 %v346
  %v657 = vpop.f32.mrb[0].mxu0
  %v658 = vadd.f32 0.0, %v657
  %v659 = vpop.f32.mrb[0].mxu0
  %v660 = vadd.f32 0.0, %v659
  %v661 = vpop.f32.mrb[0].mxu0
  %v662 = vadd.f32 0.0, %v661
  %v663 = vpop.f32.mrb[0].mxu0
  %v664 = vadd.f32 0.0, %v663
  %665 = vmatprep.mubr.bf16.mxu0 0
  %666 = vmatmul.mubr.bf16.gmra.mrb[0].mxu0 %v349
  %v667 = vpop.f32.mrb[0].mxu0
  %v668 = vadd.f32 0.0, %v667
  %v669 = vpop.f32.mrb[0].mxu0
  %v670 = vadd.f32 0.0, %v669
  %v671 = vpop.f32.mrb[0].mxu0
  %v672 = vadd.f32 0.0, %v671
  %v673 = vpop.f32.mrb[0].mxu0
  %v674 = vadd.f32 0.0, %v673
  %675 = vmatprep.mubr.bf16.mxu0 0
  %676 = vmatmul.mubr.bf16.gmra.mrb[0].mxu0 %v352
  %v677 = vpop.f32.mrb[0].mxu0
  %v678 = vadd.f32 0.0, %v677
  %v679 = vpop.f32.mrb[0].mxu0
  %v680 = vadd.f32 0.0, %v679
  %v681 = vpop.f32.mrb[0].mxu0
  %v682 = vadd.f32 0.0, %v681
  %v683 = vpop.f32.mrb[0].mxu0
  %v684 = vadd.f32 0.0, %v683
  %685 = vmatprep.mubr.bf16.mxu0 0
  %686 = vmatmul.mubr.bf16.gmra.mrb[0].mxu0 %v355
  %v687 = vpop.f32.mrb[0].mxu0
  %v688 = vadd.f32 0.0, %v687
  %v689 = vpop.f32.mrb[0].mxu0
  %v690 = vadd.f32 0.0, %v689
  %v691 = vpop.f32.mrb[0].mxu0
  %v692 = vadd.f32 0.0, %v691
  %v693 = vpop.f32.mrb[0].mxu0
  %v694 = vadd.f32 0.0, %v693
  %695 = vmatprep.mubr.bf16.mxu0 0
  %696 = vmatmul.mubr.bf16.gmra.mrb[0].mxu0 %v358
  %v697 = vpop.f32.mrb[0].mxu0
  %v698 = vadd.f32 0.0, %v697
  %v699 = vpop.f32.mrb[0].mxu0
  %v700 = vadd.f32 0.0, %v699
  %v701 = vpop.f32.mrb[0].mxu0
  %v702 = vadd.f32 0.0, %v701
  %v703 = vpop.f32.mrb[0].mxu0
  %v704 = vadd.f32 0.0, %v703
  %705 = vmatprep.mubr.bf16.mxu0 0
  %706 = vmatmul.mubr.bf16.gmra.mrb[0].mxu0 %v361
  %v707 = vpop.f32.mrb[0].mxu0
  %v708 = vadd.f32 0.0, %v707
  %v709 = vpop.f32.mrb[0].mxu0
  %v710 = vadd.f32 0.0, %v709
  %v711 = vpop.f32.mrb[0].mxu0
  %v712 = vadd.f32 0.0, %v711
  %v713 = vpop.f32.mrb[0].mxu0
  %v714 = vadd.f32 0.0, %v713
  %715 = vdwg.mxu0
  %v716 = vld [vmem:[%s2] sm:$0x3]
  %v718 = vlaneseq
  %v719 = vshrl.u32 %v718, 7
  %v720 = vsub.s32 0, %v719
  %v721 = vrot.slane %v716, %v720
  %v722 = vlaneseq
  %v723 = vshrl.u32 %v722, 7
  %v724 = vsub.s32 1, %v723
  %v725 = vrot.slane %v716, %v724
  %v728 = vmul.f32 %v398, %v721
  %v729 = vmul.f32 %v400, %v725
  %v730 = vmul.f32 %v402, %v721
  %v731 = vmul.f32 %v404, %v725
  %v732 = vmul.f32 %v408, %v721
  %v733 = vmul.f32 %v410, %v725
  %v734 = vmul.f32 %v412, %v721
  %v735 = vmul.f32 %v414, %v725
  %v736 = vmul.f32 %v418, %v721
  %v737 = vmul.f32 %v420, %v725
  %v738 = vmul.f32 %v422, %v721
  %v739 = vmul.f32 %v424, %v725
  %v740 = vmul.f32 %v428, %v721
  %v741 = vmul.f32 %v430, %v725
  %v742 = vmul.f32 %v432, %v721
  %v743 = vmul.f32 %v434, %v725
  %v744 = vmul.f32 %v438, %v721
  %v745 = vmul.f32 %v440, %v725
  %v746 = vmul.f32 %v442, %v721
  %v747 = vmul.f32 %v444, %v725
  %v748 = vmul.f32 %v448, %v721
  %v749 = vmul.f32 %v450, %v725
  %v750 = vmul.f32 %v452, %v721
  %v751 = vmul.f32 %v454, %v725
  %v752 = vmul.f32 %v458, %v721
  %v753 = vmul.f32 %v460, %v725
  %v754 = vmul.f32 %v462, %v721
  %v755 = vmul.f32 %v464, %v725
  %v756 = vmul.f32 %v468, %v721
  %v757 = vmul.f32 %v470, %v725
  %v758 = vmul.f32 %v472, %v721
  %v759 = vmul.f32 %v474, %v725
  %v760 = vmul.f32 %v478, %v721
  %v761 = vmul.f32 %v480, %v725
  %v762 = vmul.f32 %v482, %v721
  %v763 = vmul.f32 %v484, %v725
  %v764 = vmul.f32 %v488, %v721
  %v765 = vmul.f32 %v490, %v725
  %v766 = vmul.f32 %v492, %v721
  %v767 = vmul.f32 %v494, %v725
  %v768 = vmul.f32 %v498, %v721
  %v769 = vmul.f32 %v500, %v725
  %v770 = vmul.f32 %v502, %v721
  %v771 = vmul.f32 %v504, %v725
  %v772 = vmul.f32 %v508, %v721
  %v773 = vmul.f32 %v510, %v725
  %v774 = vmul.f32 %v512, %v721
  %v775 = vmul.f32 %v514, %v725
  %v776 = vmul.f32 %v518, %v721
  %v777 = vmul.f32 %v520, %v725
  %v778 = vmul.f32 %v522, %v721
  %v779 = vmul.f32 %v524, %v725
  %v780 = vmul.f32 %v528, %v721
  %v781 = vmul.f32 %v530, %v725
  %v782 = vmul.f32 %v532, %v721
  %v783 = vmul.f32 %v534, %v725
  %v784 = vmul.f32 %v538, %v721
  %v785 = vmul.f32 %v540, %v725
  %v786 = vmul.f32 %v542, %v721
  %v787 = vmul.f32 %v544, %v725
  %v788 = vmul.f32 %v548, %v721
  %v789 = vmul.f32 %v550, %v725
  %v790 = vmul.f32 %v552, %v721
  %v791 = vmul.f32 %v554, %v725
  %v792 = vmul.f32 %v558, %v721
  %v793 = vmul.f32 %v560, %v725
  %v794 = vmul.f32 %v562, %v721
  %v795 = vmul.f32 %v564, %v725
  %v796 = vmul.f32 %v568, %v721
  %v797 = vmul.f32 %v570, %v725
  %v798 = vmul.f32 %v572, %v721
  %v799 = vmul.f32 %v574, %v725
  %v800 = vmul.f32 %v578, %v721
  %v801 = vmul.f32 %v580, %v725
  %v802 = vmul.f32 %v582, %v721
  %v803 = vmul.f32 %v584, %v725
  %v804 = vmul.f32 %v588, %v721
  %v805 = vmul.f32 %v590, %v725
  %v806 = vmul.f32 %v592, %v721
  %v807 = vmul.f32 %v594, %v725
  %v808 = vmul.f32 %v598, %v721
  %v809 = vmul.f32 %v600, %v725
  %v810 = vmul.f32 %v602, %v721
  %v811 = vmul.f32 %v604, %v725
  %v812 = vmul.f32 %v608, %v721
  %v813 = vmul.f32 %v610, %v725
  %v814 = vmul.f32 %v612, %v721
  %v815 = vmul.f32 %v614, %v725
  %v816 = vmul.f32 %v618, %v721
  %v817 = vmul.f32 %v620, %v725
  %v818 = vmul.f32 %v622, %v721
  %v819 = vmul.f32 %v624, %v725
  %v820 = vmul.f32 %v628, %v721
  %v821 = vmul.f32 %v630, %v725
  %v822 = vmul.f32 %v632, %v721
  %v823 = vmul.f32 %v634, %v725
  %v824 = vmul.f32 %v638, %v721
  %v825 = vmul.f32 %v640, %v725
  %v826 = vmul.f32 %v642, %v721
  %v827 = vmul.f32 %v644, %v725
  %v828 = vmul.f32 %v648, %v721
  %v829 = vmul.f32 %v650, %v725
  %v830 = vmul.f32 %v652, %v721
  %v831 = vmul.f32 %v654, %v725
  %v832 = vmul.f32 %v658, %v721
  %v833 = vmul.f32 %v660, %v725
  %v834 = vmul.f32 %v662, %v721
  %v835 = vmul.f32 %v664, %v725
  %v836 = vmul.f32 %v668, %v721
  %v837 = vmul.f32 %v670, %v725
  %v838 = vmul.f32 %v672, %v721
  %v839 = vmul.f32 %v674, %v725
  %v840 = vmul.f32 %v678, %v721
  %v841 = vmul.f32 %v680, %v725
  %v842 = vmul.f32 %v682, %v721
  %v843 = vmul.f32 %v684, %v725
  %v844 = vmul.f32 %v688, %v721
  %v845 = vmul.f32 %v690, %v725
  %v846 = vmul.f32 %v692, %v721
  %v847 = vmul.f32 %v694, %v725
  %v848 = vmul.f32 %v698, %v721
  %v849 = vmul.f32 %v700, %v725
  %v850 = vmul.f32 %v702, %v721
  %v851 = vmul.f32 %v704, %v725
  %v852 = vmul.f32 %v708, %v721
  %v853 = vmul.f32 %v710, %v725
  %v854 = vmul.f32 %v712, %v721
  %v855 = vmul.f32 %v714, %v725
  %v856 = vld [vmem:[%s3] sm:$0x3]
  %v858 = vlaneseq
  %v859 = vshrl.u32 %v858, 7
  %v860 = vsub.s32 0, %v859
  %v861 = vrot.slane %v856, %v860
  %v862 = vlaneseq
  %v863 = vshrl.u32 %v862, 7
  %v864 = vsub.s32 1, %v863
  %v865 = vrot.slane %v856, %v864
  %v868 = vadd.f32 %v728, %v861
  %v869 = vadd.f32 %v729, %v865
  %v870 = vadd.f32 %v730, %v861
  %v871 = vadd.f32 %v731, %v865
  %v872 = vadd.f32 %v732, %v861
  %v873 = vadd.f32 %v733, %v865
  %v874 = vadd.f32 %v734, %v861
  %v875 = vadd.f32 %v735, %v865
  %v876 = vadd.f32 %v736, %v861
  %v877 = vadd.f32 %v737, %v865
  %v878 = vadd.f32 %v738, %v861
  %v879 = vadd.f32 %v739, %v865
  %v880 = vadd.f32 %v740, %v861
  %v881 = vadd.f32 %v741, %v865
  %v882 = vadd.f32 %v742, %v861
  %v883 = vadd.f32 %v743, %v865
  %v884 = vadd.f32 %v744, %v861
  %v885 = vadd.f32 %v745, %v865
  %v886 = vadd.f32 %v746, %v861
  %v887 = vadd.f32 %v747, %v865
  %v888 = vadd.f32 %v748, %v861
  %v889 = vadd.f32 %v749, %v865
  %v890 = vadd.f32 %v750, %v861
  %v891 = vadd.f32 %v751, %v865
  %v892 = vadd.f32 %v752, %v861
  %v893 = vadd.f32 %v753, %v865
  %v894 = vadd.f32 %v754, %v861
  %v895 = vadd.f32 %v755, %v865
  %v896 = vadd.f32 %v756, %v861
  %v897 = vadd.f32 %v757, %v865
  %v898 = vadd.f32 %v758, %v861
  %v899 = vadd.f32 %v759, %v865
  %v900 = vadd.f32 %v760, %v861
  %v901 = vadd.f32 %v761, %v865
  %v902 = vadd.f32 %v762, %v861
  %v903 = vadd.f32 %v763, %v865
  %v904 = vadd.f32 %v764, %v861
  %v905 = vadd.f32 %v765, %v865
  %v906 = vadd.f32 %v766, %v861
  %v907 = vadd.f32 %v767, %v865
  %v908 = vadd.f32 %v768, %v861
  %v909 = vadd.f32 %v769, %v865
  %v910 = vadd.f32 %v770, %v861
  %v911 = vadd.f32 %v771, %v865
  %v912 = vadd.f32 %v772, %v861
  %v913 = vadd.f32 %v773, %v865
  %v914 = vadd.f32 %v774, %v861
  %v915 = vadd.f32 %v775, %v865
  %v916 = vadd.f32 %v776, %v861
  %v917 = vadd.f32 %v777, %v865
  %v918 = vadd.f32 %v778, %v861
  %v919 = vadd.f32 %v779, %v865
  %v920 = vadd.f32 %v780, %v861
  %v921 = vadd.f32 %v781, %v865
  %v922 = vadd.f32 %v782, %v861
  %v923 = vadd.f32 %v783, %v865
  %v924 = vadd.f32 %v784, %v861
  %v925 = vadd.f32 %v785, %v865
  %v926 = vadd.f32 %v786, %v861
  %v927 = vadd.f32 %v787, %v865
  %v928 = vadd.f32 %v788, %v861
  %v929 = vadd.f32 %v789, %v865
  %v930 = vadd.f32 %v790, %v861
  %v931 = vadd.f32 %v791, %v865
  %v932 = vadd.f32 %v792, %v861
  %v933 = vadd.f32 %v793, %v865
  %v934 = vadd.f32 %v794, %v861
  %v935 = vadd.f32 %v795, %v865
  %v936 = vadd.f32 %v796, %v861
  %v937 = vadd.f32 %v797, %v865
  %v938 = vadd.f32 %v798, %v861
  %v939 = vadd.f32 %v799, %v865
  %v940 = vadd.f32 %v800, %v861
  %v941 = vadd.f32 %v801, %v865
  %v942 = vadd.f32 %v802, %v861
  %v943 = vadd.f32 %v803, %v865
  %v944 = vadd.f32 %v804, %v861
  %v945 = vadd.f32 %v805, %v865
  %v946 = vadd.f32 %v806, %v861
  %v947 = vadd.f32 %v807, %v865
  %v948 = vadd.f32 %v808, %v861
  %v949 = vadd.f32 %v809, %v865
  %v950 = vadd.f32 %v810, %v861
  %v951 = vadd.f32 %v811, %v865
  %v952 = vadd.f32 %v812, %v861
  %v953 = vadd.f32 %v813, %v865
  %v954 = vadd.f32 %v814, %v861
  %v955 = vadd.f32 %v815, %v865
  %v956 = vadd.f32 %v816, %v861
  %v957 = vadd.f32 %v817, %v865
  %v958 = vadd.f32 %v818, %v861
  %v959 = vadd.f32 %v819, %v865
  %v960 = vadd.f32 %v820, %v861
  %v961 = vadd.f32 %v821, %v865
  %v962 = vadd.f32 %v822, %v861
  %v963 = vadd.f32 %v823, %v865
  %v964 = vadd.f32 %v824, %v861
  %v965 = vadd.f32 %v825, %v865
  %v966 = vadd.f32 %v826, %v861
  %v967 = vadd.f32 %v827, %v865
  %v968 = vadd.f32 %v828, %v861
  %v969 = vadd.f32 %v829, %v865
  %v970 = vadd.f32 %v830, %v861
  %v971 = vadd.f32 %v831, %v865
  %v972 = vadd.f32 %v832, %v861
  %v973 = vadd.f32 %v833, %v865
  %v974 = vadd.f32 %v834, %v861
  %v975 = vadd.f32 %v835, %v865
  %v976 = vadd.f32 %v836, %v861
  %v977 = vadd.f32 %v837, %v865
  %v978 = vadd.f32 %v838, %v861
  %v979 = vadd.f32 %v839, %v865
  %v980 = vadd.f32 %v840, %v861
  %v981 = vadd.f32 %v841, %v865
  %v982 = vadd.f32 %v842, %v861
  %v983 = vadd.f32 %v843, %v865
  %v984 = vadd.f32 %v844, %v861
  %v985 = vadd.f32 %v845, %v865
  %v986 = vadd.f32 %v846, %v861
  %v987 = vadd.f32 %v847, %v865
  %v988 = vadd.f32 %v848, %v861
  %v989 = vadd.f32 %v849, %v865
  %v990 = vadd.f32 %v850, %v861
  %v991 = vadd.f32 %v851, %v865
  %v992 = vadd.f32 %v852, %v861
  %v993 = vadd.f32 %v853, %v865
  %v994 = vadd.f32 %v854, %v861
  %v995 = vadd.f32 %v855, %v865
  %v996 = vsub.f32 0.0, %v868
  %v997 = vsub.f32 0.0, %v869
  %v998 = vsub.f32 0.0, %v870
  %v999 = vsub.f32 0.0, %v871
  %v1000 = vsub.f32 0.0, %v872
  %v1001 = vsub.f32 0.0, %v873
  %v1002 = vsub.f32 0.0, %v874
  %v1003 = vsub.f32 0.0, %v875
  %v1004 = vsub.f32 0.0, %v876
  %v1005 = vsub.f32 0.0, %v877
  %v1006 = vsub.f32 0.0, %v878
  %v1007 = vsub.f32 0.0, %v879
  %v1008 = vsub.f32 0.0, %v880
  %v1009 = vsub.f32 0.0, %v881
  %v1010 = vsub.f32 0.0, %v882
  %v1011 = vsub.f32 0.0, %v883
  %v1012 = vsub.f32 0.0, %v884
  %v1013 = vsub.f32 0.0, %v885
  %v1014 = vsub.f32 0.0, %v886
  %v1015 = vsub.f32 0.0, %v887
  %v1016 = vsub.f32 0.0, %v888
  %v1017 = vsub.f32 0.0, %v889
  %v1018 = vsub.f32 0.0, %v890
  %v1019 = vsub.f32 0.0, %v891
  %v1020 = vsub.f32 0.0, %v892
  %v1021 = vsub.f32 0.0, %v893
  %v1022 = vsub.f32 0.0, %v894
  %v1023 = vsub.f32 0.0, %v895
  %v1024 = vsub.f32 0.0, %v896
  %v1025 = vsub.f32 0.0, %v897
  %v1026 = vsub.f32 0.0, %v898
  %v1027 = vsub.f32 0.0, %v899
  %v1028 = vsub.f32 0.0, %v900
  %v1029 = vsub.f32 0.0, %v901
  %v1030 = vsub.f32 0.0, %v902
  %v1031 = vsub.f32 0.0, %v903
  %v1032 = vsub.f32 0.0, %v904
  %v1033 = vsub.f32 0.0, %v905
  %v1034 = vsub.f32 0.0, %v906
  %v1035 = vsub.f32 0.0, %v907
  %v1036 = vsub.f32 0.0, %v908
  %v1037 = vsub.f32 0.0, %v909
  %v1038 = vsub.f32 0.0, %v910
  %v1039 = vsub.f32 0.0, %v911
  %v1040 = vsub.f32 0.0, %v912
  %v1041 = vsub.f32 0.0, %v913
  %v1042 = vsub.f32 0.0, %v914
  %v1043 = vsub.f32 0.0, %v915
  %v1044 = vsub.f32 0.0, %v916
  %v1045 = vsub.f32 0.0, %v917
  %v1046 = vsub.f32 0.0, %v918
  %v1047 = vsub.f32 0.0, %v919
  %v1048 = vsub.f32 0.0, %v920
  %v1049 = vsub.f32 0.0, %v921
  %v1050 = vsub.f32 0.0, %v922
  %v1051 = vsub.f32 0.0, %v923
  %v1052 = vsub.f32 0.0, %v924
  %v1053 = vsub.f32 0.0, %v925
  %v1054 = vsub.f32 0.0, %v926
  %v1055 = vsub.f32 0.0, %v927
  %v1056 = vsub.f32 0.0, %v928
  %v1057 = vsub.f32 0.0, %v929
  %v1058 = vsub.f32 0.0, %v930
  %v1059 = vsub.f32 0.0, %v931
  %v1060 = vsub.f32 0.0, %v932
  %v1061 = vsub.f32 0.0, %v933
  %v1062 = vsub.f32 0.0, %v934
  %v1063 = vsub.f32 0.0, %v935
  %v1064 = vsub.f32 0.0, %v936
  %v1065 = vsub.f32 0.0, %v937
  %v1066 = vsub.f32 0.0, %v938
  %v1067 = vsub.f32 0.0, %v939
  %v1068 = vsub.f32 0.0, %v940
  %v1069 = vsub.f32 0.0, %v941
  %v1070 = vsub.f32 0.0, %v942
  %v1071 = vsub.f32 0.0, %v943
  %v1072 = vsub.f32 0.0, %v944
  %v1073 = vsub.f32 0.0, %v945
  %v1074 = vsub.f32 0.0, %v946
  %v1075 = vsub.f32 0.0, %v947
  %v1076 = vsub.f32 0.0, %v948
  %v1077 = vsub.f32 0.0, %v949
  %v1078 = vsub.f32 0.0, %v950
  %v1079 = vsub.f32 0.0, %v951
  %v1080 = vsub.f32 0.0, %v952
  %v1081 = vsub.f32 0.0, %v953
  %v1082 = vsub.f32 0.0, %v954
  %v1083 = vsub.f32 0.0, %v955
  %v1084 = vsub.f32 0.0, %v956
  %v1085 = vsub.f32 0.0, %v957
  %v1086 = vsub.f32 0.0, %v958
  %v1087 = vsub.f32 0.0, %v959
  %v1088 = vsub.f32 0.0, %v960
  %v1089 = vsub.f32 0.0, %v961
  %v1090 = vsub.f32 0.0, %v962
  %v1091 = vsub.f32 0.0, %v963
  %v1092 = vsub.f32 0.0, %v964
  %v1093 = vsub.f32 0.0, %v965
  %v1094 = vsub.f32 0.0, %v966
  %v1095 = vsub.f32 0.0, %v967
  %v1096 = vsub.f32 0.0, %v968
  %v1097 = vsub.f32 0.0, %v969
  %v1098 = vsub.f32 0.0, %v970
  %v1099 = vsub.f32 0.0, %v971
  %v1100 = vsub.f32 0.0, %v972
  %v1101 = vsub.f32 0.0, %v973
  %v1102 = vsub.f32 0.0, %v974
  %v1103 = vsub.f32 0.0, %v975
  %v1104 = vsub.f32 0.0, %v976
  %v1105 = vsub.f32 0.0, %v977
  %v1106 = vsub.f32 0.0, %v978
  %v1107 = vsub.f32 0.0, %v979
  %v1108 = vsub.f32 0.0, %v980
  %v1109 = vsub.f32 0.0, %v981
  %v1110 = vsub.f32 0.0, %v982
  %v1111 = vsub.f32 0.0, %v983
  %v1112 = vsub.f32 0.0, %v984
  %v1113 = vsub.f32 0.0, %v985
  %v1114 = vsub.f32 0.0, %v986
  %v1115 = vsub.f32 0.0, %v987
  %v1116 = vsub.f32 0.0, %v988
  %v1117 = vsub.f32 0.0, %v989
  %v1118 = vsub.f32 0.0, %v990
  %v1119 = vsub.f32 0.0, %v991
  %v1120 = vsub.f32 0.0, %v992
  %v1121 = vsub.f32 0.0, %v993
  %v1122 = vsub.f32 0.0, %v994
  %v1123 = vsub.f32 0.0, %v995
  %v1124 = vmul.f32 %v996, 1.442695
  %v1125 = vpow.pop %v1124
  %v1126 = vmul.f32 %v997, 1.442695
  %v1127 = vpow.pop %v1126
  %v1128 = vmul.f32 %v998, 1.442695
  %v1129 = vpow.pop %v1128
  %v1130 = vmul.f32 %v999, 1.442695
  %v1131 = vpow.pop %v1130
  %v1132 = vmul.f32 %v1000, 1.442695
  %v1133 = vpow.pop %v1132
  %v1134 = vmul.f32 %v1001, 1.442695
  %v1135 = vpow.pop %v1134
  %v1136 = vmul.f32 %v1002, 1.442695
  %v1137 = vpow.pop %v1136
  %v1138 = vmul.f32 %v1003, 1.442695
  %v1139 = vpow.pop %v1138
  %v1140 = vmul.f32 %v1004, 1.442695
  %v1141 = vpow.pop %v1140
  %v1142 = vmul.f32 %v1005, 1.442695
  %v1143 = vpow.pop %v1142
  %v1144 = vmul.f32 %v1006, 1.442695
  %v1145 = vpow.pop %v1144
  %v1146 = vmul.f32 %v1007, 1.442695
  %v1147 = vpow.pop %v1146
  %v1148 = vmul.f32 %v1008, 1.442695
  %v1149 = vpow.pop %v1148
  %v1150 = vmul.f32 %v1009, 1.442695
  %v1151 = vpow.pop %v1150
  %v1152 = vmul.f32 %v1010, 1.442695
  %v1153 = vpow.pop %v1152
  %v1154 = vmul.f32 %v1011, 1.442695
  %v1155 = vpow.pop %v1154
  %v1156 = vmul.f32 %v1012, 1.442695
  %v1157 = vpow.pop %v1156
  %v1158 = vmul.f32 %v1013, 1.442695
  %v1159 = vpow.pop %v1158
  %v1160 = vmul.f32 %v1014, 1.442695
  %v1161 = vpow.pop %v1160
  %v1162 = vmul.f32 %v1015, 1.442695
  %v1163 = vpow.pop %v1162
  %v1164 = vmul.f32 %v1016, 1.442695
  %v1165 = vpow.pop %v1164
  %v1166 = vmul.f32 %v1017, 1.442695
  %v1167 = vpow.pop %v1166
  %v1168 = vmul.f32 %v1018, 1.442695
  %v1169 = vpow.pop %v1168
  %v1170 = vmul.f32 %v1019, 1.442695
  %v1171 = vpow.pop %v1170
  %v1172 = vmul.f32 %v1020, 1.442695
  %v1173 = vpow.pop %v1172
  %v1174 = vmul.f32 %v1021, 1.442695
  %v1175 = vpow.pop %v1174
  %v1176 = vmul.f32 %v1022, 1.442695
  %v1177 = vpow.pop %v1176
  %v1178 = vmul.f32 %v1023, 1.442695
  %v1179 = vpow.pop %v1178
  %v1180 = vmul.f32 %v1024, 1.442695
  %v1181 = vpow.pop %v1180
  %v1182 = vmul.f32 %v1025, 1.442695
  %v1183 = vpow.pop %v1182
  %v1184 = vmul.f32 %v1026, 1.442695
  %v1185 = vpow.pop %v1184
  %v1186 = vmul.f32 %v1027, 1.442695
  %v1187 = vpow.pop %v1186
  %v1188 = vmul.f32 %v1028, 1.442695
  %v1189 = vpow.pop %v1188
  %v1190 = vmul.f32 %v1029, 1.442695
  %v1191 = vpow.pop %v1190
  %v1192 = vmul.f32 %v1030, 1.442695
  %v1193 = vpow.pop %v1192
  %v1194 = vmul.f32 %v1031, 1.442695
  %v1195 = vpow.pop %v1194
  %v1196 = vmul.f32 %v1032, 1.442695
  %v1197 = vpow.pop %v1196
  %v1198 = vmul.f32 %v1033, 1.442695
  %v1199 = vpow.pop %v1198
  %v1200 = vmul.f32 %v1034, 1.442695
  %v1201 = vpow.pop %v1200
  %v1202 = vmul.f32 %v1035, 1.442695
  %v1203 = vpow.pop %v1202
  %v1204 = vmul.f32 %v1036, 1.442695
  %v1205 = vpow.pop %v1204
  %v1206 = vmul.f32 %v1037, 1.442695
  %v1207 = vpow.pop %v1206
  %v1208 = vmul.f32 %v1038, 1.442695
  %v1209 = vpow.pop %v1208
  %v1210 = vmul.f32 %v1039, 1.442695
  %v1211 = vpow.pop %v1210
  %v1212 = vmul.f32 %v1040, 1.442695
  %v1213 = vpow.pop %v1212
  %v1214 = vmul.f32 %v1041, 1.442695
  %v1215 = vpow.pop %v1214
  %v1216 = vmul.f32 %v1042, 1.442695
  %v1217 = vpow.pop %v1216
  %v1218 = vmul.f32 %v1043, 1.442695
  %v1219 = vpow.pop %v1218
  %v1220 = vmul.f32 %v1044, 1.442695
  %v1221 = vpow.pop %v1220
  %v1222 = vmul.f32 %v1045, 1.442695
  %v1223 = vpow.pop %v1222
  %v1224 = vmul.f32 %v1046, 1.442695
  %v1225 = vpow.pop %v1224
  %v1226 = vmul.f32 %v1047, 1.442695
  %v1227 = vpow.pop %v1226
  %v1228 = vmul.f32 %v1048, 1.442695
  %v1229 = vpow.pop %v1228
  %v1230 = vmul.f32 %v1049, 1.442695
  %v1231 = vpow.pop %v1230
  %v1232 = vmul.f32 %v1050, 1.442695
  %v1233 = vpow.pop %v1232
  %v1234 = vmul.f32 %v1051, 1.442695
  %v1235 = vpow.pop %v1234
  %v1236 = vmul.f32 %v1052, 1.442695
  %v1237 = vpow.pop %v1236
  %v1238 = vmul.f32 %v1053, 1.442695
  %v1239 = vpow.pop %v1238
  %v1240 = vmul.f32 %v1054, 1.442695
  %v1241 = vpow.pop %v1240
  %v1242 = vmul.f32 %v1055, 1.442695
  %v1243 = vpow.pop %v1242
  %v1244 = vmul.f32 %v1056, 1.442695
  %v1245 = vpow.pop %v1244
  %v1246 = vmul.f32 %v1057, 1.442695
  %v1247 = vpow.pop %v1246
  %v1248 = vmul.f32 %v1058, 1.442695
  %v1249 = vpow.pop %v1248
  %v1250 = vmul.f32 %v1059, 1.442695
  %v1251 = vpow.pop %v1250
  %v1252 = vmul.f32 %v1060, 1.442695
  %v1253 = vpow.pop %v1252
  %v1254 = vmul.f32 %v1061, 1.442695
  %v1255 = vpow.pop %v1254
  %v1256 = vmul.f32 %v1062, 1.442695
  %v1257 = vpow.pop %v1256
  %v1258 = vmul.f32 %v1063, 1.442695
  %v1259 = vpow.pop %v1258
  %v1260 = vmul.f32 %v1064, 1.442695
  %v1261 = vpow.pop %v1260
  %v1262 = vmul.f32 %v1065, 1.442695
  %v1263 = vpow.pop %v1262
  %v1264 = vmul.f32 %v1066, 1.442695
  %v1265 = vpow.pop %v1264
  %v1266 = vmul.f32 %v1067, 1.442695
  %v1267 = vpow.pop %v1266
  %v1268 = vmul.f32 %v1068, 1.442695
  %v1269 = vpow.pop %v1268
  %v1270 = vmul.f32 %v1069, 1.442695
  %v1271 = vpow.pop %v1270
  %v1272 = vmul.f32 %v1070, 1.442695
  %v1273 = vpow.pop %v1272
  %v1274 = vmul.f32 %v1071, 1.442695
  %v1275 = vpow.pop %v1274
  %v1276 = vmul.f32 %v1072, 1.442695
  %v1277 = vpow.pop %v1276
  %v1278 = vmul.f32 %v1073, 1.442695
  %v1279 = vpow.pop %v1278
  %v1280 = vmul.f32 %v1074, 1.442695
  %v1281 = vpow.pop %v1280
  %v1282 = vmul.f32 %v1075, 1.442695
  %v1283 = vpow.pop %v1282
  %v1284 = vmul.f32 %v1076, 1.442695
  %v1285 = vpow.pop %v1284
  %v1286 = vmul.f32 %v1077, 1.442695
  %v1287 = vpow.pop %v1286
  %v1288 = vmul.f32 %v1078, 1.442695
  %v1289 = vpow.pop %v1288
  %v1290 = vmul.f32 %v1079, 1.442695
  %v1291 = vpow.pop %v1290
  %v1292 = vmul.f32 %v1080, 1.442695
  %v1293 = vpow.pop %v1292
  %v1294 = vmul.f32 %v1081, 1.442695
  %v1295 = vpow.pop %v1294
  %v1296 = vmul.f32 %v1082, 1.442695
  %v1297 = vpow.pop %v1296
  %v1298 = vmul.f32 %v1083, 1.442695
  %v1299 = vpow.pop %v1298
  %v1300 = vmul.f32 %v1084, 1.442695
  %v1301 = vpow.pop %v1300
  %v1302 = vmul.f32 %v1085, 1.442695
  %v1303 = vpow.pop %v1302
  %v1304 = vmul.f32 %v1086, 1.442695
  %v1305 = vpow.pop %v1304
  %v1306 = vmul.f32 %v1087, 1.442695
  %v1307 = vpow.pop %v1306
  %v1308 = vmul.f32 %v1088, 1.442695
  %v1309 = vpow.pop %v1308
  %v1310 = vmul.f32 %v1089, 1.442695
  %v1311 = vpow.pop %v1310
  %v1312 = vmul.f32 %v1090, 1.442695
  %v1313 = vpow.pop %v1312
  %v1314 = vmul.f32 %v1091, 1.442695
  %v1315 = vpow.pop %v1314
  %v1316 = vmul.f32 %v1092, 1.442695
  %v1317 = vpow.pop %v1316
  %v1318 = vmul.f32 %v1093, 1.442695
  %v1319 = vpow.pop %v1318
  %v1320 = vmul.f32 %v1094, 1.442695
  %v1321 = vpow.pop %v1320
  %v1322 = vmul.f32 %v1095, 1.442695
  %v1323 = vpow.pop %v1322
  %v1324 = vmul.f32 %v1096, 1.442695
  %v1325 = vpow.pop %v1324
  %v1326 = vmul.f32 %v1097, 1.442695
  %v1327 = vpow.pop %v1326
  %v1328 = vmul.f32 %v1098, 1.442695
  %v1329 = vpow.pop %v1328
  %v1330 = vmul.f32 %v1099, 1.442695
  %v1331 = vpow.pop %v1330
  %v1332 = vmul.f32 %v1100, 1.442695
  %v1333 = vpow.pop %v1332
  %v1334 = vmul.f32 %v1101, 1.442695
  %v1335 = vpow.pop %v1334
  %v1336 = vmul.f32 %v1102, 1.442695
  %v1337 = vpow.pop %v1336
  %v1338 = vmul.f32 %v1103, 1.442695
  %v1339 = vpow.pop %v1338
  %v1340 = vmul.f32 %v1104, 1.442695
  %v1341 = vpow.pop %v1340
  %v1342 = vmul.f32 %v1105, 1.442695
  %v1343 = vpow.pop %v1342
  %v1344 = vmul.f32 %v1106, 1.442695
  %v1345 = vpow.pop %v1344
  %v1346 = vmul.f32 %v1107, 1.442695
  %v1347 = vpow.pop %v1346
  %v1348 = vmul.f32 %v1108, 1.442695
  %v1349 = vpow.pop %v1348
  %v1350 = vmul.f32 %v1109, 1.442695
  %v1351 = vpow.pop %v1350
  %v1352 = vmul.f32 %v1110, 1.442695
  %v1353 = vpow.pop %v1352
  %v1354 = vmul.f32 %v1111, 1.442695
  %v1355 = vpow.pop %v1354
  %v1356 = vmul.f32 %v1112, 1.442695
  %v1357 = vpow.pop %v1356
  %v1358 = vmul.f32 %v1113, 1.442695
  %v1359 = vpow.pop %v1358
  %v1360 = vmul.f32 %v1114, 1.442695
  %v1361 = vpow.pop %v1360
  %v1362 = vmul.f32 %v1115, 1.442695
  %v1363 = vpow.pop %v1362
  %v1364 = vmul.f32 %v1116, 1.442695
  %v1365 = vpow.pop %v1364
  %v1366 = vmul.f32 %v1117, 1.442695
  %v1367 = vpow.pop %v1366
  %v1368 = vmul.f32 %v1118, 1.442695
  %v1369 = vpow.pop %v1368
  %v1370 = vmul.f32 %v1119, 1.442695
  %v1371 = vpow.pop %v1370
  %v1372 = vmul.f32 %v1120, 1.442695
  %v1373 = vpow.pop %v1372
  %v1374 = vmul.f32 %v1121, 1.442695
  %v1375 = vpow.pop %v1374
  %v1376 = vmul.f32 %v1122, 1.442695
  %v1377 = vpow.pop %v1376
  %v1378 = vmul.f32 %v1123, 1.442695
  %v1379 = vpow.pop %v1378
  %v1380 = vadd.f32 %v1125, 1.0
  %v1381 = vadd.f32 %v1127, 1.0
  %v1382 = vadd.f32 %v1129, 1.0
  %v1383 = vadd.f32 %v1131, 1.0
  %v1384 = vadd.f32 %v1133, 1.0
  %v1385 = vadd.f32 %v1135, 1.0
  %v1386 = vadd.f32 %v1137, 1.0
  %v1387 = vadd.f32 %v1139, 1.0
  %v1388 = vadd.f32 %v1141, 1.0
  %v1389 = vadd.f32 %v1143, 1.0
  %v1390 = vadd.f32 %v1145, 1.0
  %v1391 = vadd.f32 %v1147, 1.0
  %v1392 = vadd.f32 %v1149, 1.0
  %v1393 = vadd.f32 %v1151, 1.0
  %v1394 = vadd.f32 %v1153, 1.0
  %v1395 = vadd.f32 %v1155, 1.0
  %v1396 = vadd.f32 %v1157, 1.0
  %v1397 = vadd.f32 %v1159, 1.0
  %v1398 = vadd.f32 %v1161, 1.0
  %v1399 = vadd.f32 %v1163, 1.0
  %v1400 = vadd.f32 %v1165, 1.0
  %v1401 = vadd.f32 %v1167, 1.0
  %v1402 = vadd.f32 %v1169, 1.0
  %v1403 = vadd.f32 %v1171, 1.0
  %v1404 = vadd.f32 %v1173, 1.0
  %v1405 = vadd.f32 %v1175, 1.0
  %v1406 = vadd.f32 %v1177, 1.0
  %v1407 = vadd.f32 %v1179, 1.0
  %v1408 = vadd.f32 %v1181, 1.0
  %v1409 = vadd.f32 %v1183, 1.0
  %v1410 = vadd.f32 %v1185, 1.0
  %v1411 = vadd.f32 %v1187, 1.0
  %v1412 = vadd.f32 %v1189, 1.0
  %v1413 = vadd.f32 %v1191, 1.0
  %v1414 = vadd.f32 %v1193, 1.0
  %v1415 = vadd.f32 %v1195, 1.0
  %v1416 = vadd.f32 %v1197, 1.0
  %v1417 = vadd.f32 %v1199, 1.0
  %v1418 = vadd.f32 %v1201, 1.0
  %v1419 = vadd.f32 %v1203, 1.0
  %v1420 = vadd.f32 %v1205, 1.0
  %v1421 = vadd.f32 %v1207, 1.0
  %v1422 = vadd.f32 %v1209, 1.0
  %v1423 = vadd.f32 %v1211, 1.0
  %v1424 = vadd.f32 %v1213, 1.0
  %v1425 = vadd.f32 %v1215, 1.0
  %v1426 = vadd.f32 %v1217, 1.0
  %v1427 = vadd.f32 %v1219, 1.0
  %v1428 = vadd.f32 %v1221, 1.0
  %v1429 = vadd.f32 %v1223, 1.0
  %v1430 = vadd.f32 %v1225, 1.0
  %v1431 = vadd.f32 %v1227, 1.0
  %v1432 = vadd.f32 %v1229, 1.0
  %v1433 = vadd.f32 %v1231, 1.0
  %v1434 = vadd.f32 %v1233, 1.0
  %v1435 = vadd.f32 %v1235, 1.0
  %v1436 = vadd.f32 %v1237, 1.0
  %v1437 = vadd.f32 %v1239, 1.0
  %v1438 = vadd.f32 %v1241, 1.0
  %v1439 = vadd.f32 %v1243, 1.0
  %v1440 = vadd.f32 %v1245, 1.0
  %v1441 = vadd.f32 %v1247, 1.0
  %v1442 = vadd.f32 %v1249, 1.0
  %v1443 = vadd.f32 %v1251, 1.0
  %v1444 = vadd.f32 %v1253, 1.0
  %v1445 = vadd.f32 %v1255, 1.0
  %v1446 = vadd.f32 %v1257, 1.0
  %v1447 = vadd.f32 %v1259, 1.0
  %v1448 = vadd.f32 %v1261, 1.0
  %v1449 = vadd.f32 %v1263, 1.0
  %v1450 = vadd.f32 %v1265, 1.0
  %v1451 = vadd.f32 %v1267, 1.0
  %v1452 = vadd.f32 %v1269, 1.0
  %v1453 = vadd.f32 %v1271, 1.0
  %v1454 = vadd.f32 %v1273, 1.0
  %v1455 = vadd.f32 %v1275, 1.0
  %v1456 = vadd.f32 %v1277, 1.0
  %v1457 = vadd.f32 %v1279, 1.0
  %v1458 = vadd.f32 %v1281, 1.0
  %v1459 = vadd.f32 %v1283, 1.0
  %v1460 = vadd.f32 %v1285, 1.0
  %v1461 = vadd.f32 %v1287, 1.0
  %v1462 = vadd.f32 %v1289, 1.0
  %v1463 = vadd.f32 %v1291, 1.0
  %v1464 = vadd.f32 %v1293, 1.0
  %v1465 = vadd.f32 %v1295, 1.0
  %v1466 = vadd.f32 %v1297, 1.0
  %v1467 = vadd.f32 %v1299, 1.0
  %v1468 = vadd.f32 %v1301, 1.0
  %v1469 = vadd.f32 %v1303, 1.0
  %v1470 = vadd.f32 %v1305, 1.0
  %v1471 = vadd.f32 %v1307, 1.0
  %v1472 = vadd.f32 %v1309, 1.0
  %v1473 = vadd.f32 %v1311, 1.0
  %v1474 = vadd.f32 %v1313, 1.0
  %v1475 = vadd.f32 %v1315, 1.0
  %v1476 = vadd.f32 %v1317, 1.0
  %v1477 = vadd.f32 %v1319, 1.0
  %v1478 = vadd.f32 %v1321, 1.0
  %v1479 = vadd.f32 %v1323, 1.0
  %v1480 = vadd.f32 %v1325, 1.0
  %v1481 = vadd.f32 %v1327, 1.0
  %v1482 = vadd.f32 %v1329, 1.0
  %v1483 = vadd.f32 %v1331, 1.0
  %v1484 = vadd.f32 %v1333, 1.0
  %v1485 = vadd.f32 %v1335, 1.0
  %v1486 = vadd.f32 %v1337, 1.0
  %v1487 = vadd.f32 %v1339, 1.0
  %v1488 = vadd.f32 %v1341, 1.0
  %v1489 = vadd.f32 %v1343, 1.0
  %v1490 = vadd.f32 %v1345, 1.0
  %v1491 = vadd.f32 %v1347, 1.0
  %v1492 = vadd.f32 %v1349, 1.0
  %v1493 = vadd.f32 %v1351, 1.0
  %v1494 = vadd.f32 %v1353, 1.0
  %v1495 = vadd.f32 %v1355, 1.0
  %v1496 = vadd.f32 %v1357, 1.0
  %v1497 = vadd.f32 %v1359, 1.0
  %v1498 = vadd.f32 %v1361, 1.0
  %v1499 = vadd.f32 %v1363, 1.0
  %v1500 = vadd.f32 %v1365, 1.0
  %v1501 = vadd.f32 %v1367, 1.0
  %v1502 = vadd.f32 %v1369, 1.0
  %v1503 = vadd.f32 %v1371, 1.0
  %v1504 = vadd.f32 %v1373, 1.0
  %v1505 = vadd.f32 %v1375, 1.0
  %v1506 = vadd.f32 %v1377, 1.0
  %v1507 = vadd.f32 %v1379, 1.0
  %v1508 = vrcp.pop %v1380
  %v1509 = vrcp.pop %v1381
  %v1510 = vrcp.pop %v1382
  %v1511 = vrcp.pop %v1383
  %v1512 = vrcp.pop %v1384
  %v1513 = vrcp.pop %v1385
  %v1514 = vrcp.pop %v1386
  %v1515 = vrcp.pop %v1387
  %v1516 = vrcp.pop %v1388
  %v1517 = vrcp.pop %v1389
  %v1518 = vrcp.pop %v1390
  %v1519 = vrcp.pop %v1391
  %v1520 = vrcp.pop %v1392
  %v1521 = vrcp.pop %v1393
  %v1522 = vrcp.pop %v1394
  %v1523 = vrcp.pop %v1395
  %v1524 = vrcp.pop %v1396
  %v1525 = vrcp.pop %v1397
  %v1526 = vrcp.pop %v1398
  %v1527 = vrcp.pop %v1399
  %v1528 = vrcp.pop %v1400
  %v1529 = vrcp.pop %v1401
  %v1530 = vrcp.pop %v1402
  %v1531 = vrcp.pop %v1403
  %v1532 = vrcp.pop %v1404
  %v1533 = vrcp.pop %v1405
  %v1534 = vrcp.pop %v1406
  %v1535 = vrcp.pop %v1407
  %v1536 = vrcp.pop %v1408
  %v1537 = vrcp.pop %v1409
  %v1538 = vrcp.pop %v1410
  %v1539 = vrcp.pop %v1411
  %v1540 = vrcp.pop %v1412
  %v1541 = vrcp.pop %v1413
  %v1542 = vrcp.pop %v1414
  %v1543 = vrcp.pop %v1415
  %v1544 = vrcp.pop %v1416
  %v1545 = vrcp.pop %v1417
  %v1546 = vrcp.pop %v1418
  %v1547 = vrcp.pop %v1419
  %v1548 = vrcp.pop %v1420
  %v1549 = vrcp.pop %v1421
  %v1550 = vrcp.pop %v1422
  %v1551 = vrcp.pop %v1423
  %v1552 = vrcp.pop %v1424
  %v1553 = vrcp.pop %v1425
  %v1554 = vrcp.pop %v1426
  %v1555 = vrcp.pop %v1427
  %v1556 = vrcp.pop %v1428
  %v1557 = vrcp.pop %v1429
  %v1558 = vrcp.pop %v1430
  %v1559 = vrcp.pop %v1431
  %v1560 = vrcp.pop %v1432
  %v1561 = vrcp.pop %v1433
  %v1562 = vrcp.pop %v1434
  %v1563 = vrcp.pop %v1435
  %v1564 = vrcp.pop %v1436
  %v1565 = vrcp.pop %v1437
  %v1566 = vrcp.pop %v1438
  %v1567 = vrcp.pop %v1439
  %v1568 = vrcp.pop %v1440
  %v1569 = vrcp.pop %v1441
  %v1570 = vrcp.pop %v1442
  %v1571 = vrcp.pop %v1443
  %v1572 = vrcp.pop %v1444
  %v1573 = vrcp.pop %v1445
  %v1574 = vrcp.pop %v1446
  %v1575 = vrcp.pop %v1447
  %v1576 = vrcp.pop %v1448
  %v1577 = vrcp.pop %v1449
  %v1578 = vrcp.pop %v1450
  %v1579 = vrcp.pop %v1451
  %v1580 = vrcp.pop %v1452
  %v1581 = vrcp.pop %v1453
  %v1582 = vrcp.pop %v1454
  %v1583 = vrcp.pop %v1455
  %v1584 = vrcp.pop %v1456
  %v1585 = vrcp.pop %v1457
  %v1586 = vrcp.pop %v1458
  %v1587 = vrcp.pop %v1459
  %v1588 = vrcp.pop %v1460
  %v1589 = vrcp.pop %v1461
  %v1590 = vrcp.pop %v1462
  %v1591 = vrcp.pop %v1463
  %v1592 = vrcp.pop %v1464
  %v1593 = vrcp.pop %v1465
  %v1594 = vrcp.pop %v1466
  %v1595 = vrcp.pop %v1467
  %v1596 = vrcp.pop %v1468
  %v1597 = vrcp.pop %v1469
  %v1598 = vrcp.pop %v1470
  %v1599 = vrcp.pop %v1471
  %v1600 = vrcp.pop %v1472
  %v1601 = vrcp.pop %v1473
  %v1602 = vrcp.pop %v1474
  %v1603 = vrcp.pop %v1475
  %v1604 = vrcp.pop %v1476
  %v1605 = vrcp.pop %v1477
  %v1606 = vrcp.pop %v1478
  %v1607 = vrcp.pop %v1479
  %v1608 = vrcp.pop %v1480
  %v1609 = vrcp.pop %v1481
  %v1610 = vrcp.pop %v1482
  %v1611 = vrcp.pop %v1483
  %v1612 = vrcp.pop %v1484
  %v1613 = vrcp.pop %v1485
  %v1614 = vrcp.pop %v1486
  %v1615 = vrcp.pop %v1487
  %v1616 = vrcp.pop %v1488
  %v1617 = vrcp.pop %v1489
  %v1618 = vrcp.pop %v1490
  %v1619 = vrcp.pop %v1491
  %v1620 = vrcp.pop %v1492
  %v1621 = vrcp.pop %v1493
  %v1622 = vrcp.pop %v1494
  %v1623 = vrcp.pop %v1495
  %v1624 = vrcp.pop %v1496
  %v1625 = vrcp.pop %v1497
  %v1626 = vrcp.pop %v1498
  %v1627 = vrcp.pop %v1499
  %v1628 = vrcp.pop %v1500
  %v1629 = vrcp.pop %v1501
  %v1630 = vrcp.pop %v1502
  %v1631 = vrcp.pop %v1503
  %v1632 = vrcp.pop %v1504
  %v1633 = vrcp.pop %v1505
  %v1634 = vrcp.pop %v1506
  %v1635 = vrcp.pop %v1507
  %v1636 = vmul.f32 %v868, %v1508
  %v1637 = vmul.f32 %v869, %v1509
  %v1638 = vmul.f32 %v870, %v1510
  %v1639 = vmul.f32 %v871, %v1511
  %v1640 = vmul.f32 %v872, %v1512
  %v1641 = vmul.f32 %v873, %v1513
  %v1642 = vmul.f32 %v874, %v1514
  %v1643 = vmul.f32 %v875, %v1515
  %v1644 = vmul.f32 %v876, %v1516
  %v1645 = vmul.f32 %v877, %v1517
  %v1646 = vmul.f32 %v878, %v1518
  %v1647 = vmul.f32 %v879, %v1519
  %v1648 = vmul.f32 %v880, %v1520
  %v1649 = vmul.f32 %v881, %v1521
  %v1650 = vmul.f32 %v882, %v1522
  %v1651 = vmul.f32 %v883, %v1523
  %v1652 = vmul.f32 %v884, %v1524
  %v1653 = vmul.f32 %v885, %v1525
  %v1654 = vmul.f32 %v886, %v1526
  %v1655 = vmul.f32 %v887, %v1527
  %v1656 = vmul.f32 %v888, %v1528
  %v1657 = vmul.f32 %v889, %v1529
  %v1658 = vmul.f32 %v890, %v1530
  %v1659 = vmul.f32 %v891, %v1531
  %v1660 = vmul.f32 %v892, %v1532
  %v1661 = vmul.f32 %v893, %v1533
  %v1662 = vmul.f32 %v894, %v1534
  %v1663 = vmul.f32 %v895, %v1535
  %v1664 = vmul.f32 %v896, %v1536
  %v1665 = vmul.f32 %v897, %v1537
  %v1666 = vmul.f32 %v898, %v1538
  %v1667 = vmul.f32 %v899, %v1539
  %v1668 = vmul.f32 %v900, %v1540
  %v1669 = vmul.f32 %v901, %v1541
  %v1670 = vmul.f32 %v902, %v1542
  %v1671 = vmul.f32 %v903, %v1543
  %v1672 = vmul.f32 %v904, %v1544
  %v1673 = vmul.f32 %v905, %v1545
  %v1674 = vmul.f32 %v906, %v1546
  %v1675 = vmul.f32 %v907, %v1547
  %v1676 = vmul.f32 %v908, %v1548
  %v1677 = vmul.f32 %v909, %v1549
  %v1678 = vmul.f32 %v910, %v1550
  %v1679 = vmul.f32 %v911, %v1551
  %v1680 = vmul.f32 %v912, %v1552
  %v1681 = vmul.f32 %v913, %v1553
  %v1682 = vmul.f32 %v914, %v1554
  %v1683 = vmul.f32 %v915, %v1555
  %v1684 = vmul.f32 %v916, %v1556
  %v1685 = vmul.f32 %v917, %v1557
  %v1686 = vmul.f32 %v918, %v1558
  %v1687 = vmul.f32 %v919, %v1559
  %v1688 = vmul.f32 %v920, %v1560
  %v1689 = vmul.f32 %v921, %v1561
  %v1690 = vmul.f32 %v922, %v1562
  %v1691 = vmul.f32 %v923, %v1563
  %v1692 = vmul.f32 %v924, %v1564
  %v1693 = vmul.f32 %v925, %v1565
  %v1694 = vmul.f32 %v926, %v1566
  %v1695 = vmul.f32 %v927, %v1567
  %v1696 = vmul.f32 %v928, %v1568
  %v1697 = vmul.f32 %v929, %v1569
  %v1698 = vmul.f32 %v930, %v1570
  %v1699 = vmul.f32 %v931, %v1571
  %v1700 = vmul.f32 %v932, %v1572
  %v1701 = vmul.f32 %v933, %v1573
  %v1702 = vmul.f32 %v934, %v1574
  %v1703 = vmul.f32 %v935, %v1575
  %v1704 = vmul.f32 %v936, %v1576
  %v1705 = vmul.f32 %v937, %v1577
  %v1706 = vmul.f32 %v938, %v1578
  %v1707 = vmul.f32 %v939, %v1579
  %v1708 = vmul.f32 %v940, %v1580
  %v1709 = vmul.f32 %v941, %v1581
  %v1710 = vmul.f32 %v942, %v1582
  %v1711 = vmul.f32 %v943, %v1583
  %v1712 = vmul.f32 %v944, %v1584
  %v1713 = vmul.f32 %v945, %v1585
  %v1714 = vmul.f32 %v946, %v1586
  %v1715 = vmul.f32 %v947, %v1587
  %v1716 = vmul.f32 %v948, %v1588
  %v1717 = vmul.f32 %v949, %v1589
  %v1718 = vmul.f32 %v950, %v1590
  %v1719 = vmul.f32 %v951, %v1591
  %v1720 = vmul.f32 %v952, %v1592
  %v1721 = vmul.f32 %v953, %v1593
  %v1722 = vmul.f32 %v954, %v1594
  %v1723 = vmul.f32 %v955, %v1595
  %v1724 = vmul.f32 %v956, %v1596
  %v1725 = vmul.f32 %v957, %v1597
  %v1726 = vmul.f32 %v958, %v1598
  %v1727 = vmul.f32 %v959, %v1599
  %v1728 = vmul.f32 %v960, %v1600
  %v1729 = vmul.f32 %v961, %v1601
  %v1730 = vmul.f32 %v962, %v1602
  %v1731 = vmul.f32 %v963, %v1603
  %v1732 = vmul.f32 %v964, %v1604
  %v1733 = vmul.f32 %v965, %v1605
  %v1734 = vmul.f32 %v966, %v1606
  %v1735 = vmul.f32 %v967, %v1607
  %v1736 = vmul.f32 %v968, %v1608
  %v1737 = vmul.f32 %v969, %v1609
  %v1738 = vmul.f32 %v970, %v1610
  %v1739 = vmul.f32 %v971, %v1611
  %v1740 = vmul.f32 %v972, %v1612
  %v1741 = vmul.f32 %v973, %v1613
  %v1742 = vmul.f32 %v974, %v1614
  %v1743 = vmul.f32 %v975, %v1615
  %v1744 = vmul.f32 %v976, %v1616
  %v1745 = vmul.f32 %v977, %v1617
  %v1746 = vmul.f32 %v978, %v1618
  %v1747 = vmul.f32 %v979, %v1619
  %v1748 = vmul.f32 %v980, %v1620
  %v1749 = vmul.f32 %v981, %v1621
  %v1750 = vmul.f32 %v982, %v1622
  %v1751 = vmul.f32 %v983, %v1623
  %v1752 = vmul.f32 %v984, %v1624
  %v1753 = vmul.f32 %v985, %v1625
  %v1754 = vmul.f32 %v986, %v1626
  %v1755 = vmul.f32 %v987, %v1627
  %v1756 = vmul.f32 %v988, %v1628
  %v1757 = vmul.f32 %v989, %v1629
  %v1758 = vmul.f32 %v990, %v1630
  %v1759 = vmul.f32 %v991, %v1631
  %v1760 = vmul.f32 %v992, %v1632
  %v1761 = vmul.f32 %v993, %v1633
  %v1762 = vmul.f32 %v994, %v1634
  %v1763 = vmul.f32 %v995, %v1635
  %v1764 = vpack.c.bf16 %v1638, %v1636
  %v1765 = vpack.c.bf16 %v1639, %v1637
  %v1766 = vpack.c.bf16 %v1642, %v1640
  %v1767 = vpack.c.bf16 %v1643, %v1641
  %v1768 = vpack.c.bf16 %v1646, %v1644
  %v1769 = vpack.c.bf16 %v1647, %v1645
  %v1770 = vpack.c.bf16 %v1650, %v1648
  %v1771 = vpack.c.bf16 %v1651, %v1649
  %v1772 = vpack.c.bf16 %v1654, %v1652
  %v1773 = vpack.c.bf16 %v1655, %v1653
  %v1774 = vpack.c.bf16 %v1658, %v1656
  %v1775 = vpack.c.bf16 %v1659, %v1657
  %v1776 = vpack.c.bf16 %v1662, %v1660
  %v1777 = vpack.c.bf16 %v1663, %v1661
  %v1778 = vpack.c.bf16 %v1666, %v1664
  %v1779 = vpack.c.bf16 %v1667, %v1665
  %v1780 = vpack.c.bf16 %v1670, %v1668
  %v1781 = vpack.c.bf16 %v1671, %v1669
  %v1782 = vpack.c.bf16 %v1674, %v1672
  %v1783 = vpack.c.bf16 %v1675, %v1673
  %v1784 = vpack.c.bf16 %v1678, %v1676
  %v1785 = vpack.c.bf16 %v1679, %v1677
  %v1786 = vpack.c.bf16 %v1682, %v1680
  %v1787 = vpack.c.bf16 %v1683, %v1681
  %v1788 = vpack.c.bf16 %v1686, %v1684
  %v1789 = vpack.c.bf16 %v1687, %v1685
  %v1790 = vpack.c.bf16 %v1690, %v1688
  %v1791 = vpack.c.bf16 %v1691, %v1689
  %v1792 = vpack.c.bf16 %v1694, %v1692
  %v1793 = vpack.c.bf16 %v1695, %v1693
  %v1794 = vpack.c.bf16 %v1698, %v1696
  %v1795 = vpack.c.bf16 %v1699, %v1697
  %v1796 = vpack.c.bf16 %v1702, %v1700
  %v1797 = vpack.c.bf16 %v1703, %v1701
  %v1798 = vpack.c.bf16 %v1706, %v1704
  %v1799 = vpack.c.bf16 %v1707, %v1705
  %v1800 = vpack.c.bf16 %v1710, %v1708
  %v1801 = vpack.c.bf16 %v1711, %v1709
  %v1802 = vpack.c.bf16 %v1714, %v1712
  %v1803 = vpack.c.bf16 %v1715, %v1713
  %v1804 = vpack.c.bf16 %v1718, %v1716
  %v1805 = vpack.c.bf16 %v1719, %v1717
  %v1806 = vpack.c.bf16 %v1722, %v1720
  %v1807 = vpack.c.bf16 %v1723, %v1721
  %v1808 = vpack.c.bf16 %v1726, %v1724
  %v1809 = vpack.c.bf16 %v1727, %v1725
  %v1810 = vpack.c.bf16 %v1730, %v1728
  %v1811 = vpack.c.bf16 %v1731, %v1729
  %v1812 = vpack.c.bf16 %v1734, %v1732
  %v1813 = vpack.c.bf16 %v1735, %v1733
  %v1814 = vpack.c.bf16 %v1738, %v1736
  %v1815 = vpack.c.bf16 %v1739, %v1737
  %v1816 = vpack.c.bf16 %v1742, %v1740
  %v1817 = vpack.c.bf16 %v1743, %v1741
  %v1818 = vpack.c.bf16 %v1746, %v1744
  %v1819 = vpack.c.bf16 %v1747, %v1745
  %v1820 = vpack.c.bf16 %v1750, %v1748
  %v1821 = vpack.c.bf16 %v1751, %v1749
  %v1822 = vpack.c.bf16 %v1754, %v1752
  %v1823 = vpack.c.bf16 %v1755, %v1753
  %v1824 = vpack.c.bf16 %v1758, %v1756
  %v1825 = vpack.c.bf16 %v1759, %v1757
  %v1826 = vpack.c.bf16 %v1762, %v1760
  %v1827 = vpack.c.bf16 %v1763, %v1761
  %v1892 = vunpack.c.l.b16 %v1764
  %v1893 = vunpack.c.l.b16 %v1765
  %v1894 = vunpack.c.h.b16 %v1764
  %v1895 = vunpack.c.h.b16 %v1765
  %v1896 = vunpack.c.l.b16 %v1766
  %v1897 = vunpack.c.l.b16 %v1767
  %v1898 = vunpack.c.h.b16 %v1766
  %v1899 = vunpack.c.h.b16 %v1767
  %v1900 = vunpack.c.l.b16 %v1768
  %v1901 = vunpack.c.l.b16 %v1769
  %v1902 = vunpack.c.h.b16 %v1768
  %v1903 = vunpack.c.h.b16 %v1769
  %v1904 = vunpack.c.l.b16 %v1770
  %v1905 = vunpack.c.l.b16 %v1771
  %v1906 = vunpack.c.h.b16 %v1770
  %v1907 = vunpack.c.h.b16 %v1771
  %v1908 = vunpack.c.l.b16 %v1772
  %v1909 = vunpack.c.l.b16 %v1773
  %v1910 = vunpack.c.h.b16 %v1772
  %v1911 = vunpack.c.h.b16 %v1773
  %v1912 = vunpack.c.l.b16 %v1774
  %v1913 = vunpack.c.l.b16 %v1775
  %v1914 = vunpack.c.h.b16 %v1774
  %v1915 = vunpack.c.h.b16 %v1775
  %v1916 = vunpack.c.l.b16 %v1776
  %v1917 = vunpack.c.l.b16 %v1777
  %v1918 = vunpack.c.h.b16 %v1776
  %v1919 = vunpack.c.h.b16 %v1777
  %v1920 = vunpack.c.l.b16 %v1778
  %v1921 = vunpack.c.l.b16 %v1779
  %v1922 = vunpack.c.h.b16 %v1778
  %v1923 = vunpack.c.h.b16 %v1779
  %v1924 = vunpack.c.l.b16 %v1780
  %v1925 = vunpack.c.l.b16 %v1781
  %v1926 = vunpack.c.h.b16 %v1780
  %v1927 = vunpack.c.h.b16 %v1781
  %v1928 = vunpack.c.l.b16 %v1782
  %v1929 = vunpack.c.l.b16 %v1783
  %v1930 = vunpack.c.h.b16 %v1782
  %v1931 = vunpack.c.h.b16 %v1783
  %v1932 = vunpack.c.l.b16 %v1784
  %v1933 = vunpack.c.l.b16 %v1785
  %v1934 = vunpack.c.h.b16 %v1784
  %v1935 = vunpack.c.h.b16 %v1785
  %v1936 = vunpack.c.l.b16 %v1786
  %v1937 = vunpack.c.l.b16 %v1787
  %v1938 = vunpack.c.h.b16 %v1786
  %v1939 = vunpack.c.h.b16 %v1787
  %v1940 = vunpack.c.l.b16 %v1788
  %v1941 = vunpack.c.l.b16 %v1789
  %v1942 = vunpack.c.h.b16 %v1788
  %v1943 = vunpack.c.h.b16 %v1789
  %v1944 = vunpack.c.l.b16 %v1790
  %v1945 = vunpack.c.l.b16 %v1791
  %v1946 = vunpack.c.h.b16 %v1790
  %v1947 = vunpack.c.h.b16 %v1791
  %v1948 = vunpack.c.l.b16 %v1792
  %v1949 = vunpack.c.l.b16 %v1793
  %v1950 = vunpack.c.h.b16 %v1792
  %v1951 = vunpack.c.h.b16 %v1793
  %v1952 = vunpack.c.l.b16 %v1794
  %v1953 = vunpack.c.l.b16 %v1795
  %v1954 = vunpack.c.h.b16 %v1794
  %v1955 = vunpack.c.h.b16 %v1795
  %v1956 = vunpack.c.l.b16 %v1796
  %v1957 = vunpack.c.l.b16 %v1797
  %v1958 = vunpack.c.h.b16 %v1796
  %v1959 = vunpack.c.h.b16 %v1797
  %v1960 = vunpack.c.l.b16 %v1798
  %v1961 = vunpack.c.l.b16 %v1799
  %v1962 = vunpack.c.h.b16 %v1798
  %v1963 = vunpack.c.h.b16 %v1799
  %v1964 = vunpack.c.l.b16 %v1800
  %v1965 = vunpack.c.l.b16 %v1801
  %v1966 = vunpack.c.h.b16 %v1800
  %v1967 = vunpack.c.h.b16 %v1801
  %v1968 = vunpack.c.l.b16 %v1802
  %v1969 = vunpack.c.l.b16 %v1803
  %v1970 = vunpack.c.h.b16 %v1802
  %v1971 = vunpack.c.h.b16 %v1803
  %v1972 = vunpack.c.l.b16 %v1804
  %v1973 = vunpack.c.l.b16 %v1805
  %v1974 = vunpack.c.h.b16 %v1804
  %v1975 = vunpack.c.h.b16 %v1805
  %v1976 = vunpack.c.l.b16 %v1806
  %v1977 = vunpack.c.l.b16 %v1807
  %v1978 = vunpack.c.h.b16 %v1806
  %v1979 = vunpack.c.h.b16 %v1807
  %v1980 = vunpack.c.l.b16 %v1808
  %v1981 = vunpack.c.l.b16 %v1809
  %v1982 = vunpack.c.h.b16 %v1808
  %v1983 = vunpack.c.h.b16 %v1809
  %v1984 = vunpack.c.l.b16 %v1810
  %v1985 = vunpack.c.l.b16 %v1811
  %v1986 = vunpack.c.h.b16 %v1810
  %v1987 = vunpack.c.h.b16 %v1811
  %v1988 = vunpack.c.l.b16 %v1812
  %v1989 = vunpack.c.l.b16 %v1813
  %v1990 = vunpack.c.h.b16 %v1812
  %v1991 = vunpack.c.h.b16 %v1813
  %v1992 = vunpack.c.l.b16 %v1814
  %v1993 = vunpack.c.l.b16 %v1815
  %v1994 = vunpack.c.h.b16 %v1814
  %v1995 = vunpack.c.h.b16 %v1815
  %v1996 = vunpack.c.l.b16 %v1816
  %v1997 = vunpack.c.l.b16 %v1817
  %v1998 = vunpack.c.h.b16 %v1816
  %v1999 = vunpack.c.h.b16 %v1817
  %v2000 = vunpack.c.l.b16 %v1818
  %v2001 = vunpack.c.l.b16 %v1819
  %v2002 = vunpack.c.h.b16 %v1818
  %v2003 = vunpack.c.h.b16 %v1819
  %v2004 = vunpack.c.l.b16 %v1820
  %v2005 = vunpack.c.l.b16 %v1821
  %v2006 = vunpack.c.h.b16 %v1820
  %v2007 = vunpack.c.h.b16 %v1821
  %v2008 = vunpack.c.l.b16 %v1822
  %v2009 = vunpack.c.l.b16 %v1823
  %v2010 = vunpack.c.h.b16 %v1822
  %v2011 = vunpack.c.h.b16 %v1823
  %v2012 = vunpack.c.l.b16 %v1824
  %v2013 = vunpack.c.l.b16 %v1825
  %v2014 = vunpack.c.h.b16 %v1824
  %v2015 = vunpack.c.h.b16 %v1825
  %v2016 = vunpack.c.l.b16 %v1826
  %v2017 = vunpack.c.l.b16 %v1827
  %v2018 = vunpack.c.h.b16 %v1826
  %v2019 = vunpack.c.h.b16 %v1827
  %v2020 = vpack.c.b16 %v1893, %v1892
  %v2021 = vpack.c.b16 %v1895, %v1894
  %v2022 = vpack.c.b16 %v1897, %v1896
  %v2023 = vpack.c.b16 %v1899, %v1898
  %v2024 = vpack.c.b16 %v1901, %v1900
  %v2025 = vpack.c.b16 %v1903, %v1902
  %v2026 = vpack.c.b16 %v1905, %v1904
  %v2027 = vpack.c.b16 %v1907, %v1906
  %v2028 = vpack.c.b16 %v1909, %v1908
  %v2029 = vpack.c.b16 %v1911, %v1910
  %v2030 = vpack.c.b16 %v1913, %v1912
  %v2031 = vpack.c.b16 %v1915, %v1914
  %v2032 = vpack.c.b16 %v1917, %v1916
  %v2033 = vpack.c.b16 %v1919, %v1918
  %v2034 = vpack.c.b16 %v1921, %v1920
  %v2035 = vpack.c.b16 %v1923, %v1922
  %v2036 = vpack.c.b16 %v1925, %v1924
  %v2037 = vpack.c.b16 %v1927, %v1926
  %v2038 = vpack.c.b16 %v1929, %v1928
  %v2039 = vpack.c.b16 %v1931, %v1930
  %v2040 = vpack.c.b16 %v1933, %v1932
  %v2041 = vpack.c.b16 %v1935, %v1934
  %v2042 = vpack.c.b16 %v1937, %v1936
  %v2043 = vpack.c.b16 %v1939, %v1938
  %v2044 = vpack.c.b16 %v1941, %v1940
  %v2045 = vpack.c.b16 %v1943, %v1942
  %v2046 = vpack.c.b16 %v1945, %v1944
  %v2047 = vpack.c.b16 %v1947, %v1946
  %v2048 = vpack.c.b16 %v1949, %v1948
  %v2049 = vpack.c.b16 %v1951, %v1950
  %v2050 = vpack.c.b16 %v1953, %v1952
  %v2051 = vpack.c.b16 %v1955, %v1954
  %v2052 = vpack.c.b16 %v1957, %v1956
  %v2053 = vpack.c.b16 %v1959, %v1958
  %v2054 = vpack.c.b16 %v1961, %v1960
  %v2055 = vpack.c.b16 %v1963, %v1962
  %v2056 = vpack.c.b16 %v1965, %v1964
  %v2057 = vpack.c.b16 %v1967, %v1966
  %v2058 = vpack.c.b16 %v1969, %v1968
  %v2059 = vpack.c.b16 %v1971, %v1970
  %v2060 = vpack.c.b16 %v1973, %v1972
  %v2061 = vpack.c.b16 %v1975, %v1974
  %v2062 = vpack.c.b16 %v1977, %v1976
  %v2063 = vpack.c.b16 %v1979, %v1978
  %v2064 = vpack.c.b16 %v1981, %v1980
  %v2065 = vpack.c.b16 %v1983, %v1982
  %v2066 = vpack.c.b16 %v1985, %v1984
  %v2067 = vpack.c.b16 %v1987, %v1986
  %v2068 = vpack.c.b16 %v1989, %v1988
  %v2069 = vpack.c.b16 %v1991, %v1990
  %v2070 = vpack.c.b16 %v1993, %v1992
  %v2071 = vpack.c.b16 %v1995, %v1994
  %v2072 = vpack.c.b16 %v1997, %v1996
  %v2073 = vpack.c.b16 %v1999, %v1998
  %v2074 = vpack.c.b16 %v2001, %v2000
  %v2075 = vpack.c.b16 %v2003, %v2002
  %v2076 = vpack.c.b16 %v2005, %v2004
  %v2077 = vpack.c.b16 %v2007, %v2006
  %v2078 = vpack.c.b16 %v2009, %v2008
  %v2079 = vpack.c.b16 %v2011, %v2010
  %v2080 = vpack.c.b16 %v2013, %v2012
  %v2081 = vpack.c.b16 %v2015, %v2014
  %v2082 = vpack.c.b16 %v2017, %v2016
  %v2083 = vpack.c.b16 %v2019, %v2018
  %vm2148 = vcmask 1043456
  %vm2149 = vcmask 523268
  %vm2150 = vmor %vm2149, %vm2148
  %2151 = vst.msk [vmem:[%s4] sm:$0xff] %vm2150, %v2020
  %2152 = vst.msk [vmem:[%s4 + $0x8] sm:$0xff] %vm2150, %v2021
  %2153 = vst.msk [vmem:[%s4 + $0x10] sm:$0xff] %vm2150, %v2022
  %2154 = vst.msk [vmem:[%s4 + $0x18] sm:$0xff] %vm2150, %v2023
  %2155 = vst.msk [vmem:[%s4 + $0x20] sm:$0xff] %vm2150, %v2024
  %2156 = vst.msk [vmem:[%s4 + $0x28] sm:$0xff] %vm2150, %v2025
  %2157 = vst.msk [vmem:[%s4 + $0x30] sm:$0xff] %vm2150, %v2026
  %2158 = vst.msk [vmem:[%s4 + $0x38] sm:$0xff] %vm2150, %v2027
  %2159 = vst.msk [vmem:[%s4 + $0x40] sm:$0xff] %vm2150, %v2028
  %2160 = vst.msk [vmem:[%s4 + $0x48] sm:$0xff] %vm2150, %v2029
  %2161 = vst.msk [vmem:[%s4 + $0x50] sm:$0xff] %vm2150, %v2030
  %2162 = vst.msk [vmem:[%s4 + $0x58] sm:$0xff] %vm2150, %v2031
  %2163 = vst.msk [vmem:[%s4 + $0x60] sm:$0xff] %vm2150, %v2032
  %2164 = vst.msk [vmem:[%s4 + $0x68] sm:$0xff] %vm2150, %v2033
  %2165 = vst.msk [vmem:[%s4 + $0x70] sm:$0xff] %vm2150, %v2034
  %2166 = vst.msk [vmem:[%s4 + $0x78] sm:$0xff] %vm2150, %v2035
  %2167 = vst.msk [vmem:[%s4 + $0x80] sm:$0xff] %vm2150, %v2036
  %2168 = vst.msk [vmem:[%s4 + $0x88] sm:$0xff] %vm2150, %v2037
  %2169 = vst.msk [vmem:[%s4 + $0x90] sm:$0xff] %vm2150, %v2038
  %2170 = vst.msk [vmem:[%s4 + $0x98] sm:$0xff] %vm2150, %v2039
  %2171 = vst.msk [vmem:[%s4 + $0xa0] sm:$0xff] %vm2150, %v2040
  %2172 = vst.msk [vmem:[%s4 + $0xa8] sm:$0xff] %vm2150, %v2041
  %2173 = vst.msk [vmem:[%s4 + $0xb0] sm:$0xff] %vm2150, %v2042
  %2174 = vst.msk [vmem:[%s4 + $0xb8] sm:$0xff] %vm2150, %v2043
  %2175 = vst.msk [vmem:[%s4 + $0xc0] sm:$0xff] %vm2150, %v2044
  %2176 = vst.msk [vmem:[%s4 + $0xc8] sm:$0xff] %vm2150, %v2045
  %2177 = vst.msk [vmem:[%s4 + $0xd0] sm:$0xff] %vm2150, %v2046
  %2178 = vst.msk [vmem:[%s4 + $0xd8] sm:$0xff] %vm2150, %v2047
  %2179 = vst.msk [vmem:[%s4 + $0xe0] sm:$0xff] %vm2150, %v2048
  %2180 = vst.msk [vmem:[%s4 + $0xe8] sm:$0xff] %vm2150, %v2049
  %2181 = vst.msk [vmem:[%s4 + $0xf0] sm:$0xff] %vm2150, %v2050
  %2182 = vst.msk [vmem:[%s4 + $0xf8] sm:$0xff] %vm2150, %v2051
  %2183 = vst.msk [vmem:[%s4 + $0x100] sm:$0xff] %vm2150, %v2052
  %2184 = vst.msk [vmem:[%s4 + $0x108] sm:$0xff] %vm2150, %v2053
  %2185 = vst.msk [vmem:[%s4 + $0x110] sm:$0xff] %vm2150, %v2054
  %2186 = vst.msk [vmem:[%s4 + $0x118] sm:$0xff] %vm2150, %v2055
  %2187 = vst.msk [vmem:[%s4 + $0x120] sm:$0xff] %vm2150, %v2056
  %2188 = vst.msk [vmem:[%s4 + $0x128] sm:$0xff] %vm2150, %v2057
  %2189 = vst.msk [vmem:[%s4 + $0x130] sm:$0xff] %vm2150, %v2058
  %2190 = vst.msk [vmem:[%s4 + $0x138] sm:$0xff] %vm2150, %v2059
  %2191 = vst.msk [vmem:[%s4 + $0x140] sm:$0xff] %vm2150, %v2060
  %2192 = vst.msk [vmem:[%s4 + $0x148] sm:$0xff] %vm2150, %v2061
  %2193 = vst.msk [vmem:[%s4 + $0x150] sm:$0xff] %vm2150, %v2062
  %2194 = vst.msk [vmem:[%s4 + $0x158] sm:$0xff] %vm2150, %v2063
  %2195 = vst.msk [vmem:[%s4 + $0x160] sm:$0xff] %vm2150, %v2064
  %2196 = vst.msk [vmem:[%s4 + $0x168] sm:$0xff] %vm2150, %v2065
  %2197 = vst.msk [vmem:[%s4 + $0x170] sm:$0xff] %vm2150, %v2066
  %2198 = vst.msk [vmem:[%s4 + $0x178] sm:$0xff] %vm2150, %v2067
  %2199 = vst.msk [vmem:[%s4 + $0x180] sm:$0xff] %vm2150, %v2068
  %2200 = vst.msk [vmem:[%s4 + $0x188] sm:$0xff] %vm2150, %v2069
  %2201 = vst.msk [vmem:[%s4 + $0x190] sm:$0xff] %vm2150, %v2070
  %2202 = vst.msk [vmem:[%s4 + $0x198] sm:$0xff] %vm2150, %v2071
  %2203 = vst.msk [vmem:[%s4 + $0x1a0] sm:$0xff] %vm2150, %v2072
  %2204 = vst.msk [vmem:[%s4 + $0x1a8] sm:$0xff] %vm2150, %v2073
  %2205 = vst.msk [vmem:[%s4 + $0x1b0] sm:$0xff] %vm2150, %v2074
  %2206 = vst.msk [vmem:[%s4 + $0x1b8] sm:$0xff] %vm2150, %v2075
  %2207 = vst.msk [vmem:[%s4 + $0x1c0] sm:$0xff] %vm2150, %v2076
  %2208 = vst.msk [vmem:[%s4 + $0x1c8] sm:$0xff] %vm2150, %v2077
  %2209 = vst.msk [vmem:[%s4 + $0x1d0] sm:$0xff] %vm2150, %v2078
  %2210 = vst.msk [vmem:[%s4 + $0x1d8] sm:$0xff] %vm2150, %v2079
  %2211 = vst.msk [vmem:[%s4 + $0x1e0] sm:$0xff] %vm2150, %v2080
  %2212 = vst.msk [vmem:[%s4 + $0x1e8] sm:$0xff] %vm2150, %v2081
  %2213 = vst.msk [vmem:[%s4 + $0x1f0] sm:$0xff] %vm2150, %v2082
  %2214 = vst.msk [vmem:[%s4 + $0x1f8] sm:$0xff] %vm2150, %v2083
  // Predicated region
  $region18: #{_lambda_.3} parent=0 // pred_check
    _
  $region19: #{_lambda_.3} parent=0 // pred_check_branch
    %2216 = sbr.rel (0) target = $region21
  $region20: #{_lambda_.3} parent=0 // pred_region
    _
  $region21: #{_lambda_.3} parent=0 // pred_fallthru
    _
  // Predicated region
  $region22: #{_lambda_.3} parent=0 // pred_check
    _
  $region23: #{_lambda_.3} parent=0 // pred_check_branch
    %2218 = sbr.rel (0) target = $region25
  $region24: #{_lambda_.3} parent=0 // pred_region
    _
  $region25: #{_lambda_.3} parent=0 // pred_fallthru
    _

// kernel: _lambda_.4
$region0: #{_lambda_.4}
  #allocation0 [shape = 'u32[]', space=smem, size = 0x4, offset = 0x4, fixed_abs, tag = 'smem constant byte address 0x4 - core index']
  #allocation1 [shape = 'u32[144,128]{1,0:T(1,128)}', space=vmem, size = 0x12000, scoped, tag = 'internal scratch']
  %s0 = inlined_call_operand.vmem [shape: bf16[2,18,18,192], index: 0, kind: input, shape index: {}]
  %s1 = inlined_call_operand.vmem [shape: bf16[9,192], index: 1, kind: input, shape index: {}]
  %s2 = inlined_call_operand.vmem [shape: f32[1,192], index: 2, kind: input, shape index: {}]
  %s3 = inlined_call_operand.vmem [shape: f32[1,192], index: 3, kind: input, shape index: {}]
  %s4 = inlined_call_operand.vmem [shape: f32[192,8], index: 4, kind: input, shape index: {}]
  %s5 = inlined_call_operand.vmem [shape: f32[1,8], index: 5, kind: input, shape index: {}]
  %s6 = inlined_call_operand.vmem [shape: f32[8,192], index: 6, kind: input, shape index: {}]
  %s7 = inlined_call_operand.vmem [shape: f32[1,192], index: 7, kind: input, shape index: {}]
  %s8 = inlined_call_operand.vmem [shape: bf16[2,16,16,192], index: 8, kind: output, shape index: {0}]
  %s9 = inlined_call_operand.vmem [shape: bf16[2,1,192], index: 9, kind: output, shape index: {1}]
  %10 = xla_tuple %s8, %s9
  %s11 = sld [smem:[#allocation0]]
  $region73: #{_lambda_.4} parent=0
    _
  %s13 = ssub.s32 1, %s11
  %s14 = scalar_select 0, %s13, %s11
  loop: start=0, step=1, limit=4
  $region2: #{_lambda_.4} parent=0 // loop_pre_header
    _
  $region3: #{_lambda_.4} parent=0 // loop_header
    %s16 = sphi 0, %s20
    %p17 = scmp.ge.s32.totalorder %s16, 4
    %s26 = sphi 0, %s28
    %s29 = sphi 0, %s26
    %s30 = sphi 0, %s29
    %s46 = sphi 0, %s30
    %s50 = sphi 0, %s50
    %s52 = sphi 0, %s50
    %s53 = sphi 0, %s52
    %s67 = sphi 0, %s53
    %s71 = sphi 0, %s71
    %s73 = sphi 0, %s71
    %s74 = sphi 0, %s73
    %s88 = sphi 0, %s74
    %s92 = sphi 0, %s92
    %s94 = sphi 0, %s92
    %s95 = sphi 0, %s94
    %s109 = sphi 0, %s95
    %s113 = sphi 0, %s113
    %s115 = sphi 0, %s113
    %s116 = sphi 0, %s115
    %s130 = sphi 0, %s116
    %s134 = sphi 0, %s134
    %s136 = sphi 0, %s134
    %s137 = sphi 0, %s136
    %s151 = sphi 0, %s137
    %s155 = sphi 0, %s155
    %s157 = sphi 0, %s155
    %s158 = sphi 0, %s157
    %s172 = sphi 0, %s158
    %s176 = sphi 0, %s176
    %s178 = sphi 0, %s176
    %s179 = sphi 0, %s178
    %s193 = sphi 0, %s179
    %s199 = sphi 0, %s201
    %s202 = sphi 0, %s199
    %s203 = sphi 0, %s202
    %s219 = sphi 0, %s203
    %s225 = sphi 0, %s227
    %s228 = sphi 0, %s225
    %s229 = sphi 0, %s228
    %s245 = sphi 0, %s229
  $region4: #{_lambda_.4} parent=0 // loop_header_branch
    %19 = sbr.rel (%p17) target = $region8
  $region5: #{_lambda_.4} parent=0 // loop_body
    %s21 = ssub.s32 %s16, 1
    %s22 = ssub.s32 %s16, 2
    %s23 = sadd.s32 %s16, 1
    %s24 = ssub.s32 %s16, %s23
    %p25 = scmp.eq.s32.totalorder %s24, 0
    %s27 = sadd.s32 %s26, 1
    %s28 = scalar_select %p25, %s26, %s27
    %p31 = pneg %p25
    %p32 = scmp.eq.s32.totalorder %s16, 1
    %p33 = por %p31, %p32
    %p34 = scmp.ne.s32.totalorder %s26, %s29
    %p35 = scmp.eq.s32.totalorder %s16, 0
    %p36 = por %p34, %p35
    %p37 = scmp.ne.s32.totalorder %s26, %s29
    %p38 = scmp.eq.s32.totalorder %s21, 1
    %p39 = por %p37, %p38
    %p40 = scmp.ne.s32.totalorder %s29, %s30
    %p41 = scmp.eq.s32.totalorder %s21, 0
    %p42 = por %p40, %p41
    %p43 = scmp.ne.s32.totalorder %s29, %s30
    %p44 = scmp.eq.s32.totalorder %s22, 1
    %p45 = por %p43, %p44
    %p47 = scmp.ne.s32.totalorder %s30, %s46
    %p48 = scmp.eq.s32.totalorder %s22, 0
    %p49 = por %p47, %p48
    %s51 = sadd.s32 %s50, 1
    %p54 = scmp.eq.s32.totalorder %s16, 1
    %p55 = scmp.ne.s32.totalorder %s50, %s52
    %p56 = scmp.eq.s32.totalorder %s16, 0
    %p57 = por %p55, %p56
    %p58 = scmp.ne.s32.totalorder %s50, %s52
    %p59 = scmp.eq.s32.totalorder %s21, 1
    %p60 = por %p58, %p59
    %p61 = scmp.ne.s32.totalorder %s52, %s53
    %p62 = scmp.eq.s32.totalorder %s21, 0
    %p63 = por %p61, %p62
    %p64 = scmp.ne.s32.totalorder %s52, %s53
    %p65 = scmp.eq.s32.totalorder %s22, 1
    %p66 = por %p64, %p65
    %p68 = scmp.ne.s32.totalorder %s53, %s67
    %p69 = scmp.eq.s32.totalorder %s22, 0
    %p70 = por %p68, %p69
    %s72 = sadd.s32 %s71, 1
    %p75 = scmp.eq.s32.totalorder %s16, 1
    %p76 = scmp.ne.s32.totalorder %s71, %s73
    %p77 = scmp.eq.s32.totalorder %s16, 0
    %p78 = por %p76, %p77
    %p79 = scmp.ne.s32.totalorder %s71, %s73
    %p80 = scmp.eq.s32.totalorder %s21, 1
    %p81 = por %p79, %p80
    %p82 = scmp.ne.s32.totalorder %s73, %s74
    %p83 = scmp.eq.s32.totalorder %s21, 0
    %p84 = por %p82, %p83
    %p85 = scmp.ne.s32.totalorder %s73, %s74
    %p86 = scmp.eq.s32.totalorder %s22, 1
    %p87 = por %p85, %p86
    %p89 = scmp.ne.s32.totalorder %s74, %s88
    %p90 = scmp.eq.s32.totalorder %s22, 0
    %p91 = por %p89, %p90
    %s93 = sadd.s32 %s92, 1
    %p96 = scmp.eq.s32.totalorder %s16, 1
    %p97 = scmp.ne.s32.totalorder %s92, %s94
    %p98 = scmp.eq.s32.totalorder %s16, 0
    %p99 = por %p97, %p98
    %p100 = scmp.ne.s32.totalorder %s92, %s94
    %p101 = scmp.eq.s32.totalorder %s21, 1
    %p102 = por %p100, %p101
    %p103 = scmp.ne.s32.totalorder %s94, %s95
    %p104 = scmp.eq.s32.totalorder %s21, 0
    %p105 = por %p103, %p104
    %p106 = scmp.ne.s32.totalorder %s94, %s95
    %p107 = scmp.eq.s32.totalorder %s22, 1
    %p108 = por %p106, %p107
    %p110 = scmp.ne.s32.totalorder %s95, %s109
    %p111 = scmp.eq.s32.totalorder %s22, 0
    %p112 = por %p110, %p111
    %s114 = sadd.s32 %s113, 1
    %p117 = scmp.eq.s32.totalorder %s16, 1
    %p118 = scmp.ne.s32.totalorder %s113, %s115
    %p119 = scmp.eq.s32.totalorder %s16, 0
    %p120 = por %p118, %p119
    %p121 = scmp.ne.s32.totalorder %s113, %s115
    %p122 = scmp.eq.s32.totalorder %s21, 1
    %p123 = por %p121, %p122
    %p124 = scmp.ne.s32.totalorder %s115, %s116
    %p125 = scmp.eq.s32.totalorder %s21, 0
    %p126 = por %p124, %p125
    %p127 = scmp.ne.s32.totalorder %s115, %s116
    %p128 = scmp.eq.s32.totalorder %s22, 1
    %p129 = por %p127, %p128
    %p131 = scmp.ne.s32.totalorder %s116, %s130
    %p132 = scmp.eq.s32.totalorder %s22, 0
    %p133 = por %p131, %p132
    %s135 = sadd.s32 %s134, 1
    %p138 = scmp.eq.s32.totalorder %s16, 1
    %p139 = scmp.ne.s32.totalorder %s134, %s136
    %p140 = scmp.eq.s32.totalorder %s16, 0
    %p141 = por %p139, %p140
    %p142 = scmp.ne.s32.totalorder %s134, %s136
    %p143 = scmp.eq.s32.totalorder %s21, 1
    %p144 = por %p142, %p143
    %p145 = scmp.ne.s32.totalorder %s136, %s137
    %p146 = scmp.eq.s32.totalorder %s21, 0
    %p147 = por %p145, %p146
    %p148 = scmp.ne.s32.totalorder %s136, %s137
    %p149 = scmp.eq.s32.totalorder %s22, 1
    %p150 = por %p148, %p149
    %p152 = scmp.ne.s32.totalorder %s137, %s151
    %p153 = scmp.eq.s32.totalorder %s22, 0
    %p154 = por %p152, %p153
    %s156 = sadd.s32 %s155, 1
    %p159 = scmp.eq.s32.totalorder %s16, 1
    %p160 = scmp.ne.s32.totalorder %s155, %s157
    %p161 = scmp.eq.s32.totalorder %s16, 0
    %p162 = por %p160, %p161
    %p163 = scmp.ne.s32.totalorder %s155, %s157
    %p164 = scmp.eq.s32.totalorder %s21, 1
    %p165 = por %p163, %p164
    %p166 = scmp.ne.s32.totalorder %s157, %s158
    %p167 = scmp.eq.s32.totalorder %s21, 0
    %p168 = por %p166, %p167
    %p169 = scmp.ne.s32.totalorder %s157, %s158
    %p170 = scmp.eq.s32.totalorder %s22, 1
    %p171 = por %p169, %p170
    %p173 = scmp.ne.s32.totalorder %s158, %s172
    %p174 = scmp.eq.s32.totalorder %s22, 0
    %p175 = por %p173, %p174
    %s177 = sadd.s32 %s176, 1
    %p180 = scmp.eq.s32.totalorder %s16, 1
    %p181 = scmp.ne.s32.totalorder %s176, %s178
    %p182 = scmp.eq.s32.totalorder %s16, 0
    %p183 = por %p181, %p182
    %p184 = scmp.ne.s32.totalorder %s176, %s178
    %p185 = scmp.eq.s32.totalorder %s21, 1
    %p186 = por %p184, %p185
    %p187 = scmp.ne.s32.totalorder %s178, %s179
    %p188 = scmp.eq.s32.totalorder %s21, 0
    %p189 = por %p187, %p188
    %p190 = scmp.ne.s32.totalorder %s178, %s179
    %p191 = scmp.eq.s32.totalorder %s22, 1
    %p192 = por %p190, %p191
    %p194 = scmp.ne.s32.totalorder %s179, %s193
    %p195 = scmp.eq.s32.totalorder %s22, 0
    %p196 = por %p194, %p195
    %s197 = ssub.s32 %s16, %s23
    %p198 = scmp.eq.s32.totalorder %s197, 0
    %s200 = sadd.s32 %s199, 1
    %s201 = scalar_select %p198, %s199, %s200
    %p204 = pneg %p198
    %p205 = scmp.eq.s32.totalorder %s16, 1
    %p206 = por %p204, %p205
    %p207 = scmp.ne.s32.totalorder %s199, %s202
    %p208 = scmp.eq.s32.totalorder %s16, 0
    %p209 = por %p207, %p208
    %p210 = scmp.ne.s32.totalorder %s199, %s202
    %p211 = scmp.eq.s32.totalorder %s21, 1
    %p212 = por %p210, %p211
    %p213 = scmp.ne.s32.totalorder %s202, %s203
    %p214 = scmp.eq.s32.totalorder %s21, 0
    %p215 = por %p213, %p214
    %p216 = scmp.ne.s32.totalorder %s202, %s203
    %p217 = scmp.eq.s32.totalorder %s22, 1
    %p218 = por %p216, %p217
    %p220 = scmp.ne.s32.totalorder %s203, %s219
    %p221 = scmp.eq.s32.totalorder %s22, 0
    %p222 = por %p220, %p221
    %s223 = ssub.s32 %s16, %s23
    %p224 = scmp.eq.s32.totalorder %s223, 0
    %s226 = sadd.s32 %s225, 1
    %s227 = scalar_select %p224, %s225, %s226
    %p230 = pneg %p224
    %p231 = scmp.eq.s32.totalorder %s16, 1
    %p232 = por %p230, %p231
    %p233 = scmp.ne.s32.totalorder %s225, %s228
    %p234 = scmp.eq.s32.totalorder %s16, 0
    %p235 = por %p233, %p234
    %p236 = scmp.ne.s32.totalorder %s225, %s228
    %p237 = scmp.eq.s32.totalorder %s21, 1
    %p238 = por %p236, %p237
    %p239 = scmp.ne.s32.totalorder %s228, %s229
    %p240 = scmp.eq.s32.totalorder %s21, 0
    %p241 = por %p239, %p240
    %p242 = scmp.ne.s32.totalorder %s228, %s229
    %p243 = scmp.eq.s32.totalorder %s22, 1
    %p244 = por %p242, %p243
    %p246 = scmp.ne.s32.totalorder %s229, %s245
    %p247 = scmp.eq.s32.totalorder %s22, 0
    %p248 = por %p246, %p247
    %p249 = scmp.le.s32.totalorder 1, %s16
    %p250 = scmp.lt.s32.totalorder %s16, 3
    %p251 = pnand %p249, %p250
    %p252 = pneg %p251
    // Predicated region
    $region9: #{_lambda_.4} parent=5 // pred_check
      _
    $region10: #{_lambda_.4} parent=5 // pred_check_branch
      %254 = sbr.rel (%p251) target = $region12
    $region11: #{_lambda_.4} parent=5 // pred_region
      %s255 = ssub.s32 %s16, 1
      // Predicated region
      $region13: #{_lambda_.4} parent=11 // pred_check
        %p256 = pneg %p63
      $region14: #{_lambda_.4} parent=11 // pred_check_branch
        %258 = sbr.rel (%p256) target = $region16
      $region15: #{_lambda_.4} parent=11 // pred_region
        _
      $region16: #{_lambda_.4} parent=11 // pred_fallthru
        _
      // Predicated region
      $region17: #{_lambda_.4} parent=11 // pred_check
        %p259 = pneg %p84
      $region18: #{_lambda_.4} parent=11 // pred_check_branch
        %261 = sbr.rel (%p259) target = $region20
      $region19: #{_lambda_.4} parent=11 // pred_region
        _
      $region20: #{_lambda_.4} parent=11 // pred_fallthru
        _
      // Predicated region
      $region21: #{_lambda_.4} parent=11 // pred_check
        %p262 = pneg %p105
      $region22: #{_lambda_.4} parent=11 // pred_check_branch
        %264 = sbr.rel (%p262) target = $region24
      $region23: #{_lambda_.4} parent=11 // pred_region
        _
      $region24: #{_lambda_.4} parent=11 // pred_fallthru
        _
      // Predicated region
      $region25: #{_lambda_.4} parent=11 // pred_check
        %p265 = pneg %p126
      $region26: #{_lambda_.4} parent=11 // pred_check_branch
        %267 = sbr.rel (%p265) target = $region28
      $region27: #{_lambda_.4} parent=11 // pred_region
        _
      $region28: #{_lambda_.4} parent=11 // pred_fallthru
        _
      // Predicated region
      $region29: #{_lambda_.4} parent=11 // pred_check
        %p268 = pneg %p147
      $region30: #{_lambda_.4} parent=11 // pred_check_branch
        %270 = sbr.rel (%p268) target = $region32
      $region31: #{_lambda_.4} parent=11 // pred_region
        _
      $region32: #{_lambda_.4} parent=11 // pred_fallthru
        _
      // Predicated region
      $region33: #{_lambda_.4} parent=11 // pred_check
        %p271 = pneg %p168
      $region34: #{_lambda_.4} parent=11 // pred_check_branch
        %273 = sbr.rel (%p271) target = $region36
      $region35: #{_lambda_.4} parent=11 // pred_region
        _
      $region36: #{_lambda_.4} parent=11 // pred_fallthru
        _
      // Predicated region
      $region37: #{_lambda_.4} parent=11 // pred_check
        %p274 = pneg %p189
      $region38: #{_lambda_.4} parent=11 // pred_check_branch
        %276 = sbr.rel (%p274) target = $region40
      $region39: #{_lambda_.4} parent=11 // pred_region
        _
      $region40: #{_lambda_.4} parent=11 // pred_fallthru
        _
    $region12: #{_lambda_.4} parent=5 // pred_fallthru
      _
    %p277 = scmp.lt.s32.totalorder %s16, 2
    // Predicated region
    $region41: #{_lambda_.4} parent=5 // pred_check
      %p278 = pneg %p277
    $region42: #{_lambda_.4} parent=5 // pred_check_branch
      %280 = sbr.rel (%p278) target = $region44
    $region43: #{_lambda_.4} parent=5 // pred_region
      // Predicated region
      $region45: #{_lambda_.4} parent=43 // pred_check
        %p281 = pneg %p36
      $region46: #{_lambda_.4} parent=43 // pred_check_branch
        %283 = sbr.rel (%p281) target = $region48
      $region47: #{_lambda_.4} parent=43 // pred_region
        %p284 = scmp.lt.s32.totalorder %s16, 1
        %s285 = scalar_select %p284, %s16, 1
        %s286 = smul.addr %s285, 108
        %s287 = smul.addr %s286, 4
        %s288 = scalar_lea.vmem %s0, %s287
      $region48: #{_lambda_.4} parent=43 // pred_fallthru
        _
    $region44: #{_lambda_.4} parent=5 // pred_fallthru
      _
    %p289 = scmp.le.s32.totalorder 1, %s16
    %p290 = scmp.lt.s32.totalorder %s16, 3
    %p291 = pnand %p289, %p290
    %p292 = pneg %p291
    // Predicated region
    $region49: #{_lambda_.4} parent=5 // pred_check
      _
    $region50: #{_lambda_.4} parent=5 // pred_check_branch
      %294 = sbr.rel (%p291) target = $region52
    $region51: #{_lambda_.4} parent=5 // pred_region
      %s295 = ssub.s32 %s16, 1
      %p296 = scmp.lt.s32.totalorder %s21, 1
      %s297 = scalar_select %p296, %s21, 1
      %s298 = smul.addr %s297, 108
      %s299 = smul.addr %s298, 4
      %s300 = scalar_lea.vmem %s0, %s299
      %p301 = pneg %p42
      %p302 = pneg %p39
      %p303 = pneg %p63
      %p304 = pneg %p60
      %p305 = pneg %p84
      %p306 = pneg %p81
      %p307 = pneg %p105
      %p308 = pneg %p102
      %p309 = pneg %p126
      %p310 = pneg %p123
      %p311 = pneg %p147
      %p312 = pneg %p144
      %p313 = pneg %p168
      %p314 = pneg %p165
      %p315 = pneg %p189
      %p316 = pneg %p186
      %p317 = pneg %p215
      %p318 = pneg %p212
      %p319 = scmp.lt.s32.totalorder %s21, 1
      %s320 = scalar_select %p319, %s21, 1
      %s321 = smul.addr %s320, 64
      %s322 = smul.addr %s321, 4
      %s323 = scalar_lea.vmem %s8, %s322
      %p324 = pneg %p241
      %p325 = pneg %p238
      %p326 = scmp.lt.s32.totalorder %s21, 1
      %s327 = scalar_select %p326, %s21, 1
      %s328 = smul.addr %s327, 2
      %s329 = scalar_lea.vmem %s9, %s328
      %p330 = scmp.lt.s32.totalorder %s21, 1
      %s331 = scalar_select %p330, %s21, 1
      %s332 = smul.addr %s331, 108
      %s333 = smul.addr %s332, 4
      %s334 = scalar_lea.vmem %s0, %s333
      %p335 = scmp.lt.s32.totalorder %s21, 1
      %s336 = scalar_select %p335, %s21, 1
      %s337 = smul.addr %s336, 64
      %s338 = smul.addr %s337, 4
      %s339 = scalar_lea.vmem %s8, %s338
      %p340 = scmp.lt.s32.totalorder %s21, 1
      %s341 = scalar_select %p340, %s21, 1
      %s342 = smul.addr %s341, 2
      %s343 = scalar_lea.vmem %s9, %s342
      %v344 = vld [vmem:[%s1] sm:$0xff]
      %v345 = vld [vmem:[%s1 + $0x8] sm:$0x11]
      %v346 = vunpack.c.l.bf16 %v344
      %v347 = vunpack.c.h.bf16 %v344
      %v348 = vunpack.c.l.bf16 %v345
      %v349 = vunpack.c.h.bf16 %v345
      %v350 = vld [vmem:[%s2] sm:$0x3]
      %v351 = vld [vmem:[%s3] sm:$0x3]
      %v352 = vld [vmem:[%s334] sm:$0xff]
      %v353 = vld [vmem:[%s334 + $0x8] sm:$0xff]
      %v354 = vld [vmem:[%s334 + $0x10] sm:$0x11]
      %v355 = vld [vmem:[%s334 + $0x18] sm:$0xff]
      %v356 = vld [vmem:[%s334 + $0x20] sm:$0xff]
      %v357 = vld [vmem:[%s334 + $0x28] sm:$0x11]
      %v358 = vld [vmem:[%s334 + $0x30] sm:$0xff]
      %v359 = vld [vmem:[%s334 + $0x38] sm:$0xff]
      %v360 = vld [vmem:[%s334 + $0x40] sm:$0x11]
      %v361 = vld [vmem:[%s334 + $0x48] sm:$0xff]
      %v362 = vld [vmem:[%s334 + $0x50] sm:$0xff]
      %v363 = vld [vmem:[%s334 + $0x58] sm:$0x11]
      %v364 = vld [vmem:[%s334 + $0x60] sm:$0xff]
      %v365 = vld [vmem:[%s334 + $0x68] sm:$0xff]
      %v366 = vld [vmem:[%s334 + $0x70] sm:$0x11]
      %v367 = vld [vmem:[%s334 + $0x78] sm:$0xff]
      %v368 = vld [vmem:[%s334 + $0x80] sm:$0xff]
      %v369 = vld [vmem:[%s334 + $0x88] sm:$0x11]
      %v370 = vld [vmem:[%s334 + $0x90] sm:$0xff]
      %v371 = vld [vmem:[%s334 + $0x98] sm:$0xff]
      %v372 = vld [vmem:[%s334 + $0xa0] sm:$0x11]
      %v373 = vld [vmem:[%s334 + $0xa8] sm:$0xff]
      %v374 = vld [vmem:[%s334 + $0xb0] sm:$0xff]
      %v375 = vld [vmem:[%s334 + $0xb8] sm:$0x11]
      %v376 = vld [vmem:[%s334 + $0xc0] sm:$0xff]
      %v377 = vld [vmem:[%s334 + $0xc8] sm:$0xff]
      %v378 = vld [vmem:[%s334 + $0xd0] sm:$0x11]
      %v379 = vld [vmem:[%s334 + $0xd8] sm:$0xff]
      %v380 = vld [vmem:[%s334 + $0xe0] sm:$0xff]
      %v381 = vld [vmem:[%s334 + $0xe8] sm:$0x11]
      %v382 = vunpack.c.l.bf16 %v352
      %v383 = vunpack.c.h.bf16 %v352
      %v384 = vunpack.c.l.bf16 %v353
      %v385 = vunpack.c.h.bf16 %v353
      %v386 = vunpack.c.l.bf16 %v355
      %v387 = vunpack.c.h.bf16 %v355
      %v388 = vunpack.c.l.bf16 %v356
      %v389 = vunpack.c.h.bf16 %v356
      %v390 = vunpack.c.l.bf16 %v358
      %v391 = vunpack.c.h.bf16 %v358
      %v392 = vunpack.c.l.bf16 %v359
      %v393 = vunpack.c.h.bf16 %v359
      %v394 = vunpack.c.l.bf16 %v361
      %v395 = vunpack.c.h.bf16 %v361
      %v396 = vunpack.c.l.bf16 %v362
      %v397 = vunpack.c.h.bf16 %v362
      %v398 = vunpack.c.l.bf16 %v364
      %v399 = vunpack.c.h.bf16 %v364
      %v400 = vunpack.c.l.bf16 %v365
      %v401 = vunpack.c.h.bf16 %v365
      %v402 = vunpack.c.l.bf16 %v367
      %v403 = vunpack.c.h.bf16 %v367
      %v404 = vunpack.c.l.bf16 %v368
      %v405 = vunpack.c.h.bf16 %v368
      %v406 = vunpack.c.l.bf16 %v370
      %v407 = vunpack.c.h.bf16 %v370
      %v408 = vunpack.c.l.bf16 %v371
      %v409 = vunpack.c.h.bf16 %v371
      %v410 = vunpack.c.l.bf16 %v373
      %v411 = vunpack.c.h.bf16 %v373
      %v412 = vunpack.c.l.bf16 %v374
      %v413 = vunpack.c.h.bf16 %v374
      %v414 = vlaneseq
      %v415 = vshrl.u32 %v414, 7
      %v416 = vsub.s32 0, %v415
      %v417 = vrot.slane %v346, %v416
      %v418 = vlaneseq
      %v419 = vshrl.u32 %v418, 7
      %v420 = vsub.s32 0, %v419
      %v421 = vrot.slane %v347, %v420
      %v422 = vmul.f32 %v382, %v417
      %v423 = vmul.f32 %v383, %v421
      %v424 = vmul.f32 %v384, %v417
      %v425 = vmul.f32 %v385, %v421
      %v426 = vmul.f32 %v386, %v417
      %v427 = vmul.f32 %v387, %v421
      %v428 = vmul.f32 %v388, %v417
      %v429 = vmul.f32 %v389, %v421
      %v430 = vmul.f32 %v390, %v417
      %v431 = vmul.f32 %v391, %v421
      %v432 = vmul.f32 %v392, %v417
      %v433 = vmul.f32 %v393, %v421
      %v434 = vmul.f32 %v394, %v417
      %v435 = vmul.f32 %v395, %v421
      %v436 = vmul.f32 %v396, %v417
      %v437 = vmul.f32 %v397, %v421
      %v438 = vmul.f32 %v398, %v417
      %v439 = vmul.f32 %v399, %v421
      %v440 = vmul.f32 %v400, %v417
      %v441 = vmul.f32 %v401, %v421
      %v442 = vmul.f32 %v402, %v417
      %v443 = vmul.f32 %v403, %v421
      %v444 = vmul.f32 %v404, %v417
      %v445 = vmul.f32 %v405, %v421
      %v446 = vmul.f32 %v406, %v417
      %v447 = vmul.f32 %v407, %v421
      %v448 = vmul.f32 %v408, %v417
      %v449 = vmul.f32 %v409, %v421
      %v450 = vmul.f32 %v410, %v417
      %v451 = vmul.f32 %v411, %v421
      %v452 = vmul.f32 %v412, %v417
      %v453 = vmul.f32 %v413, %v421
      %v454 = vadd.f32 %v422, 0.0
      %v455 = vadd.f32 %v423, 0.0
      %v456 = vadd.f32 %v424, 0.0
      %v457 = vadd.f32 %v425, 0.0
      %v458 = vadd.f32 %v426, 0.0
      %v459 = vadd.f32 %v427, 0.0
      %v460 = vadd.f32 %v428, 0.0
      %v461 = vadd.f32 %v429, 0.0
      %v462 = vadd.f32 %v430, 0.0
      %v463 = vadd.f32 %v431, 0.0
      %v464 = vadd.f32 %v432, 0.0
      %v465 = vadd.f32 %v433, 0.0
      %v466 = vadd.f32 %v434, 0.0
      %v467 = vadd.f32 %v435, 0.0
      %v468 = vadd.f32 %v436, 0.0
      %v469 = vadd.f32 %v437, 0.0
      %v470 = vadd.f32 %v438, 0.0
      %v471 = vadd.f32 %v439, 0.0
      %v472 = vadd.f32 %v440, 0.0
      %v473 = vadd.f32 %v441, 0.0
      %v474 = vadd.f32 %v442, 0.0
      %v475 = vadd.f32 %v443, 0.0
      %v476 = vadd.f32 %v444, 0.0
      %v477 = vadd.f32 %v445, 0.0
      %v478 = vadd.f32 %v446, 0.0
      %v479 = vadd.f32 %v447, 0.0
      %v480 = vadd.f32 %v448, 0.0
      %v481 = vadd.f32 %v449, 0.0
      %v482 = vadd.f32 %v450, 0.0
      %v483 = vadd.f32 %v451, 0.0
      %v484 = vadd.f32 %v452, 0.0
      %v485 = vadd.f32 %v453, 0.0
      %v486 = vunpack.c.l.bf16 %v354
      %v487 = vunpack.c.h.bf16 %v354
      %v488 = vunpack.c.l.bf16 %v357
      %v489 = vunpack.c.h.bf16 %v357
      %v490 = vunpack.c.l.bf16 %v360
      %v491 = vunpack.c.h.bf16 %v360
      %v492 = vunpack.c.l.bf16 %v363
      %v493 = vunpack.c.h.bf16 %v363
      %v494 = vunpack.c.l.bf16 %v366
      %v495 = vunpack.c.h.bf16 %v366
      %v496 = vunpack.c.l.bf16 %v369
      %v497 = vunpack.c.h.bf16 %v369
      %v498 = vunpack.c.l.bf16 %v372
      %v499 = vunpack.c.h.bf16 %v372
      %v500 = vunpack.c.l.bf16 %v375
      %v501 = vunpack.c.h.bf16 %v375
      %v502 = vlaneseq
      %v503 = vshrl.u32 %v502, 7
      %v504 = vsub.s32 1, %v503
      %v505 = vrot.slane %v346, %v504
      %v506 = vlaneseq
      %v507 = vshrl.u32 %v506, 7
      %v508 = vsub.s32 1, %v507
      %v509 = vrot.slane %v347, %v508
      %v510 = vmul.f32 %v382, %v505
      %v511 = vmul.f32 %v383, %v509
      %v512 = vmul.f32 %v384, %v505
      %v513 = vmul.f32 %v385, %v509
      %v514 = vmul.f32 %v486, %v505
      %v515 = vmul.f32 %v487, %v509
      %v516 = vmul.f32 %v386, %v505
      %v517 = vmul.f32 %v387, %v509
      %v518 = vmul.f32 %v388, %v505
      %v519 = vmul.f32 %v389, %v509
      %v520 = vmul.f32 %v488, %v505
      %v521 = vmul.f32 %v489, %v509
      %v522 = vmul.f32 %v390, %v505
      %v523 = vmul.f32 %v391, %v509
      %v524 = vmul.f32 %v392, %v505
      %v525 = vmul.f32 %v393, %v509
      %v526 = vmul.f32 %v490, %v505
      %v527 = vmul.f32 %v491, %v509
      %v528 = vmul.f32 %v394, %v505
      %v529 = vmul.f32 %v395, %v509
      %v530 = vmul.f32 %v396, %v505
      %v531 = vmul.f32 %v397, %v509
      %v532 = vmul.f32 %v492, %v505
      %v533 = vmul.f32 %v493, %v509
      %v534 = vmul.f32 %v398, %v505
      %v535 = vmul.f32 %v399, %v509
      %v536 = vmul.f32 %v400, %v505
      %v537 = vmul.f32 %v401, %v509
      %v538 = vmul.f32 %v494, %v505
      %v539 = vmul.f32 %v495, %v509
      %v540 = vmul.f32 %v402, %v505
      %v541 = vmul.f32 %v403, %v509
      %v542 = vmul.f32 %v404, %v505
      %v543 = vmul.f32 %v405, %v509
      %v544 = vmul.f32 %v496, %v505
      %v545 = vmul.f32 %v497, %v509
      %v546 = vmul.f32 %v406, %v505
      %v547 = vmul.f32 %v407, %v509
      %v548 = vmul.f32 %v408, %v505
      %v549 = vmul.f32 %v409, %v509
      %v550 = vmul.f32 %v498, %v505
      %v551 = vmul.f32 %v499, %v509
      %v552 = vmul.f32 %v410, %v505
      %v553 = vmul.f32 %v411, %v509
      %v554 = vmul.f32 %v412, %v505
      %v555 = vmul.f32 %v413, %v509
      %v556 = vmul.f32 %v500, %v505
      %v557 = vmul.f32 %v501, %v509
      %vm606 = vcmask 1046528
      %v607 = vrot.slane %v510, 1
      %v608 = vrot.slane %v512, 1
      %v609 = vsel %vm606, %v607, %v608
      %v610 = vrot.slane %v511, 1
      %v611 = vrot.slane %v513, 1
      %v612 = vsel %vm606, %v610, %v611
      %v613 = vrot.slane %v514, 1
      %v614 = vsel %vm606, %v608, %v613
      %v615 = vrot.slane %v515, 1
      %v616 = vsel %vm606, %v611, %v615
      %v617 = vrot.slane %v516, 1
      %v618 = vrot.slane %v518, 1
      %v619 = vsel %vm606, %v617, %v618
      %v620 = vrot.slane %v517, 1
      %v621 = vrot.slane %v519, 1
      %v622 = vsel %vm606, %v620, %v621
      %v623 = vrot.slane %v520, 1
      %v624 = vsel %vm606, %v618, %v623
      %v625 = vrot.slane %v521, 1
      %v626 = vsel %vm606, %v621, %v625
      %v627 = vrot.slane %v522, 1
      %v628 = vrot.slane %v524, 1
      %v629 = vsel %vm606, %v627, %v628
      %v630 = vrot.slane %v523, 1
      %v631 = vrot.slane %v525, 1
      %v632 = vsel %vm606, %v630, %v631
      %v633 = vrot.slane %v526, 1
      %v634 = vsel %vm606, %v628, %v633
      %v635 = vrot.slane %v527, 1
      %v636 = vsel %vm606, %v631, %v635
      %v637 = vrot.slane %v528, 1
      %v638 = vrot.slane %v530, 1
      %v639 = vsel %vm606, %v637, %v638
      %v640 = vrot.slane %v529, 1
      %v641 = vrot.slane %v531, 1
      %v642 = vsel %vm606, %v640, %v641
      %v643 = vrot.slane %v532, 1
      %v644 = vsel %vm606, %v638, %v643
      %v645 = vrot.slane %v533, 1
      %v646 = vsel %vm606, %v641, %v645
      %v647 = vrot.slane %v534, 1
      %v648 = vrot.slane %v536, 1
      %v649 = vsel %vm606, %v647, %v648
      %v650 = vrot.slane %v535, 1
      %v651 = vrot.slane %v537, 1
      %v652 = vsel %vm606, %v650, %v651
      %v653 = vrot.slane %v538, 1
      %v654 = vsel %vm606, %v648, %v653
      %v655 = vrot.slane %v539, 1
      %v656 = vsel %vm606, %v651, %v655
      %v657 = vrot.slane %v540, 1
      %v658 = vrot.slane %v542, 1
      %v659 = vsel %vm606, %v657, %v658
      %v660 = vrot.slane %v541, 1
      %v661 = vrot.slane %v543, 1
      %v662 = vsel %vm606, %v660, %v661
      %v663 = vrot.slane %v544, 1
      %v664 = vsel %vm606, %v658, %v663
      %v665 = vrot.slane %v545, 1
      %v666 = vsel %vm606, %v661, %v665
      %v667 = vrot.slane %v546, 1
      %v668 = vrot.slane %v548, 1
      %v669 = vsel %vm606, %v667, %v668
      %v670 = vrot.slane %v547, 1
      %v671 = vrot.slane %v549, 1
      %v672 = vsel %vm606, %v670, %v671
      %v673 = vrot.slane %v550, 1
      %v674 = vsel %vm606, %v668, %v673
      %v675 = vrot.slane %v551, 1
      %v676 = vsel %vm606, %v671, %v675
      %v677 = vrot.slane %v552, 1
      %v678 = vrot.slane %v554, 1
      %v679 = vsel %vm606, %v677, %v678
      %v680 = vrot.slane %v553, 1
      %v681 = vrot.slane %v555, 1
      %v682 = vsel %vm606, %v680, %v681
      %v683 = vrot.slane %v556, 1
      %v684 = vsel %vm606, %v678, %v683
      %v685 = vrot.slane %v557, 1
      %v686 = vsel %vm606, %v681, %v685
      %v719 = vadd.f32 %v454, %v609
      %v720 = vadd.f32 %v455, %v612
      %v721 = vadd.f32 %v456, %v614
      %v722 = vadd.f32 %v457, %v616
      %v723 = vadd.f32 %v458, %v619
      %v724 = vadd.f32 %v459, %v622
      %v725 = vadd.f32 %v460, %v624
      %v726 = vadd.f32 %v461, %v626
      %v727 = vadd.f32 %v462, %v629
      %v728 = vadd.f32 %v463, %v632
      %v729 = vadd.f32 %v464, %v634
      %v730 = vadd.f32 %v465, %v636
      %v731 = vadd.f32 %v466, %v639
      %v732 = vadd.f32 %v467, %v642
      %v733 = vadd.f32 %v468, %v644
      %v734 = vadd.f32 %v469, %v646
      %v735 = vadd.f32 %v470, %v649
      %v736 = vadd.f32 %v471, %v652
      %v737 = vadd.f32 %v472, %v654
      %v738 = vadd.f32 %v473, %v656
      %v739 = vadd.f32 %v474, %v659
      %v740 = vadd.f32 %v475, %v662
      %v741 = vadd.f32 %v476, %v664
      %v742 = vadd.f32 %v477, %v666
      %v743 = vadd.f32 %v478, %v669
      %v744 = vadd.f32 %v479, %v672
      %v745 = vadd.f32 %v480, %v674
      %v746 = vadd.f32 %v481, %v676
      %v747 = vadd.f32 %v482, %v679
      %v748 = vadd.f32 %v483, %v682
      %v749 = vadd.f32 %v484, %v684
      %v750 = vadd.f32 %v485, %v686
      %v751 = vlaneseq
      %v752 = vshrl.u32 %v751, 7
      %v753 = vsub.s32 2, %v752
      %v754 = vrot.slane %v346, %v753
      %v755 = vlaneseq
      %v756 = vshrl.u32 %v755, 7
      %v757 = vsub.s32 2, %v756
      %v758 = vrot.slane %v347, %v757
      %v759 = vmul.f32 %v382, %v754
      %v760 = vmul.f32 %v383, %v758
      %v761 = vmul.f32 %v384, %v754
      %v762 = vmul.f32 %v385, %v758
      %v763 = vmul.f32 %v486, %v754
      %v764 = vmul.f32 %v487, %v758
      %v765 = vmul.f32 %v386, %v754
      %v766 = vmul.f32 %v387, %v758
      %v767 = vmul.f32 %v388, %v754
      %v768 = vmul.f32 %v389, %v758
      %v769 = vmul.f32 %v488, %v754
      %v770 = vmul.f32 %v489, %v758
      %v771 = vmul.f32 %v390, %v754
      %v772 = vmul.f32 %v391, %v758
      %v773 = vmul.f32 %v392, %v754
      %v774 = vmul.f32 %v393, %v758
      %v775 = vmul.f32 %v490, %v754
      %v776 = vmul.f32 %v491, %v758
      %v777 = vmul.f32 %v394, %v754
      %v778 = vmul.f32 %v395, %v758
      %v779 = vmul.f32 %v396, %v754
      %v780 = vmul.f32 %v397, %v758
      %v781 = vmul.f32 %v492, %v754
      %v782 = vmul.f32 %v493, %v758
      %v783 = vmul.f32 %v398, %v754
      %v784 = vmul.f32 %v399, %v758
      %v785 = vmul.f32 %v400, %v754
      %v786 = vmul.f32 %v401, %v758
      %v787 = vmul.f32 %v494, %v754
      %v788 = vmul.f32 %v495, %v758
      %v789 = vmul.f32 %v402, %v754
      %v790 = vmul.f32 %v403, %v758
      %v791 = vmul.f32 %v404, %v754
      %v792 = vmul.f32 %v405, %v758
      %v793 = vmul.f32 %v496, %v754
      %v794 = vmul.f32 %v497, %v758
      %v795 = vmul.f32 %v406, %v754
      %v796 = vmul.f32 %v407, %v758
      %v797 = vmul.f32 %v408, %v754
      %v798 = vmul.f32 %v409, %v758
      %v799 = vmul.f32 %v498, %v754
      %v800 = vmul.f32 %v499, %v758
      %v801 = vmul.f32 %v410, %v754
      %v802 = vmul.f32 %v411, %v758
      %v803 = vmul.f32 %v412, %v754
      %v804 = vmul.f32 %v413, %v758
      %v805 = vmul.f32 %v500, %v754
      %v806 = vmul.f32 %v501, %v758
      %vm855 = vcmask 1045504
      %v856 = vrot.slane %v759, 2
      %v857 = vrot.slane %v761, 2
      %v858 = vsel %vm855, %v856, %v857
      %v859 = vrot.slane %v760, 2
      %v860 = vrot.slane %v762, 2
      %v861 = vsel %vm855, %v859, %v860
      %v862 = vrot.slane %v763, 2
      %v863 = vsel %vm855, %v857, %v862
      %v864 = vrot.slane %v764, 2
      %v865 = vsel %vm855, %v860, %v864
      %v866 = vrot.slane %v765, 2
      %v867 = vrot.slane %v767, 2
      %v868 = vsel %vm855, %v866, %v867
      %v869 = vrot.slane %v766, 2
      %v870 = vrot.slane %v768, 2
      %v871 = vsel %vm855, %v869, %v870
      %v872 = vrot.slane %v769, 2
      %v873 = vsel %vm855, %v867, %v872
      %v874 = vrot.slane %v770, 2
      %v875 = vsel %vm855, %v870, %v874
      %v876 = vrot.slane %v771, 2
      %v877 = vrot.slane %v773, 2
      %v878 = vsel %vm855, %v876, %v877
      %v879 = vrot.slane %v772, 2
      %v880 = vrot.slane %v774, 2
      %v881 = vsel %vm855, %v879, %v880
      %v882 = vrot.slane %v775, 2
      %v883 = vsel %vm855, %v877, %v882
      %v884 = vrot.slane %v776, 2
      %v885 = vsel %vm855, %v880, %v884
      %v886 = vrot.slane %v777, 2
      %v887 = vrot.slane %v779, 2
      %v888 = vsel %vm855, %v886, %v887
      %v889 = vrot.slane %v778, 2
      %v890 = vrot.slane %v780, 2
      %v891 = vsel %vm855, %v889, %v890
      %v892 = vrot.slane %v781, 2
      %v893 = vsel %vm855, %v887, %v892
      %v894 = vrot.slane %v782, 2
      %v895 = vsel %vm855, %v890, %v894
      %v896 = vrot.slane %v783, 2
      %v897 = vrot.slane %v785, 2
      %v898 = vsel %vm855, %v896, %v897
      %v899 = vrot.slane %v784, 2
      %v900 = vrot.slane %v786, 2
      %v901 = vsel %vm855, %v899, %v900
      %v902 = vrot.slane %v787, 2
      %v903 = vsel %vm855, %v897, %v902
      %v904 = vrot.slane %v788, 2
      %v905 = vsel %vm855, %v900, %v904
      %v906 = vrot.slane %v789, 2
      %v907 = vrot.slane %v791, 2
      %v908 = vsel %vm855, %v906, %v907
      %v909 = vrot.slane %v790, 2
      %v910 = vrot.slane %v792, 2
      %v911 = vsel %vm855, %v909, %v910
      %v912 = vrot.slane %v793, 2
      %v913 = vsel %vm855, %v907, %v912
      %v914 = vrot.slane %v794, 2
      %v915 = vsel %vm855, %v910, %v914
      %v916 = vrot.slane %v795, 2
      %v917 = vrot.slane %v797, 2
      %v918 = vsel %vm855, %v916, %v917
      %v919 = vrot.slane %v796, 2
      %v920 = vrot.slane %v798, 2
      %v921 = vsel %vm855, %v919, %v920
      %v922 = vrot.slane %v799, 2
      %v923 = vsel %vm855, %v917, %v922
      %v924 = vrot.slane %v800, 2
      %v925 = vsel %vm855, %v920, %v924
      %v926 = vrot.slane %v801, 2
      %v927 = vrot.slane %v803, 2
      %v928 = vsel %vm855, %v926, %v927
      %v929 = vrot.slane %v802, 2
      %v930 = vrot.slane %v804, 2
      %v931 = vsel %vm855, %v929, %v930
      %v932 = vrot.slane %v805, 2
      %v933 = vsel %vm855, %v927, %v932
      %v934 = vrot.slane %v806, 2
      %v935 = vsel %vm855, %v930, %v934
      %v968 = vadd.f32 %v719, %v858
      %v969 = vadd.f32 %v720, %v861
      %v970 = vadd.f32 %v721, %v863
      %v971 = vadd.f32 %v722, %v865
      %v972 = vadd.f32 %v723, %v868
      %v973 = vadd.f32 %v724, %v871
      %v974 = vadd.f32 %v725, %v873
      %v975 = vadd.f32 %v726, %v875
      %v976 = vadd.f32 %v727, %v878
      %v977 = vadd.f32 %v728, %v881
      %v978 = vadd.f32 %v729, %v883
      %v979 = vadd.f32 %v730, %v885
      %v980 = vadd.f32 %v731, %v888
      %v981 = vadd.f32 %v732, %v891
      %v982 = vadd.f32 %v733, %v893
      %v983 = vadd.f32 %v734, %v895
      %v984 = vadd.f32 %v735, %v898
      %v985 = vadd.f32 %v736, %v901
      %v986 = vadd.f32 %v737, %v903
      %v987 = vadd.f32 %v738, %v905
      %v988 = vadd.f32 %v739, %v908
      %v989 = vadd.f32 %v740, %v911
      %v990 = vadd.f32 %v741, %v913
      %v991 = vadd.f32 %v742, %v915
      %v992 = vadd.f32 %v743, %v918
      %v993 = vadd.f32 %v744, %v921
      %v994 = vadd.f32 %v745, %v923
      %v995 = vadd.f32 %v746, %v925
      %v996 = vadd.f32 %v747, %v928
      %v997 = vadd.f32 %v748, %v931
      %v998 = vadd.f32 %v749, %v933
      %v999 = vadd.f32 %v750, %v935
      %v1000 = vunpack.c.l.bf16 %v376
      %v1001 = vunpack.c.h.bf16 %v376
      %v1002 = vunpack.c.l.bf16 %v377
      %v1003 = vunpack.c.h.bf16 %v377
      %v1004 = vlaneseq
      %v1005 = vshrl.u32 %v1004, 7
      %v1006 = vsub.s32 3, %v1005
      %v1007 = vrot.slane %v346, %v1006
      %v1008 = vlaneseq
      %v1009 = vshrl.u32 %v1008, 7
      %v1010 = vsub.s32 3, %v1009
      %v1011 = vrot.slane %v347, %v1010
      %v1012 = vmul.f32 %v386, %v1007
      %v1013 = vmul.f32 %v387, %v1011
      %v1014 = vmul.f32 %v388, %v1007
      %v1015 = vmul.f32 %v389, %v1011
      %v1016 = vmul.f32 %v390, %v1007
      %v1017 = vmul.f32 %v391, %v1011
      %v1018 = vmul.f32 %v392, %v1007
      %v1019 = vmul.f32 %v393, %v1011
      %v1020 = vmul.f32 %v394, %v1007
      %v1021 = vmul.f32 %v395, %v1011
      %v1022 = vmul.f32 %v396, %v1007
      %v1023 = vmul.f32 %v397, %v1011
      %v1024 = vmul.f32 %v398, %v1007
      %v1025 = vmul.f32 %v399, %v1011
      %v1026 = vmul.f32 %v400, %v1007
      %v1027 = vmul.f32 %v401, %v1011
      %v1028 = vmul.f32 %v402, %v1007
      %v1029 = vmul.f32 %v403, %v1011
      %v1030 = vmul.f32 %v404, %v1007
      %v1031 = vmul.f32 %v405, %v1011
      %v1032 = vmul.f32 %v406, %v1007
      %v1033 = vmul.f32 %v407, %v1011
      %v1034 = vmul.f32 %v408, %v1007
      %v1035 = vmul.f32 %v409, %v1011
      %v1036 = vmul.f32 %v410, %v1007
      %v1037 = vmul.f32 %v411, %v1011
      %v1038 = vmul.f32 %v412, %v1007
      %v1039 = vmul.f32 %v413, %v1011
      %v1040 = vmul.f32 %v1000, %v1007
      %v1041 = vmul.f32 %v1001, %v1011
      %v1042 = vmul.f32 %v1002, %v1007
      %v1043 = vmul.f32 %v1003, %v1011
      %v1044 = vadd.f32 %v968, %v1012
      %v1045 = vadd.f32 %v969, %v1013
      %v1046 = vadd.f32 %v970, %v1014
      %v1047 = vadd.f32 %v971, %v1015
      %v1048 = vadd.f32 %v972, %v1016
      %v1049 = vadd.f32 %v973, %v1017
      %v1050 = vadd.f32 %v974, %v1018
      %v1051 = vadd.f32 %v975, %v1019
      %v1052 = vadd.f32 %v976, %v1020
      %v1053 = vadd.f32 %v977, %v1021
      %v1054 = vadd.f32 %v978, %v1022
      %v1055 = vadd.f32 %v979, %v1023
      %v1056 = vadd.f32 %v980, %v1024
      %v1057 = vadd.f32 %v981, %v1025
      %v1058 = vadd.f32 %v982, %v1026
      %v1059 = vadd.f32 %v983, %v1027
      %v1060 = vadd.f32 %v984, %v1028
      %v1061 = vadd.f32 %v985, %v1029
      %v1062 = vadd.f32 %v986, %v1030
      %v1063 = vadd.f32 %v987, %v1031
      %v1064 = vadd.f32 %v988, %v1032
      %v1065 = vadd.f32 %v989, %v1033
      %v1066 = vadd.f32 %v990, %v1034
      %v1067 = vadd.f32 %v991, %v1035
      %v1068 = vadd.f32 %v992, %v1036
      %v1069 = vadd.f32 %v993, %v1037
      %v1070 = vadd.f32 %v994, %v1038
      %v1071 = vadd.f32 %v995, %v1039
      %v1072 = vadd.f32 %v996, %v1040
      %v1073 = vadd.f32 %v997, %v1041
      %v1074 = vadd.f32 %v998, %v1042
      %v1075 = vadd.f32 %v999, %v1043
      %v1076 = vunpack.c.l.bf16 %v378
      %v1077 = vunpack.c.h.bf16 %v378
      %v1078 = vlaneseq
      %v1079 = vshrl.u32 %v1078, 7
      %v1080 = vsub.s32 4, %v1079
      %v1081 = vrot.slane %v346, %v1080
      %v1082 = vlaneseq
      %v1083 = vshrl.u32 %v1082, 7
      %v1084 = vsub.s32 4, %v1083
      %v1085 = vrot.slane %v347, %v1084
      %v1086 = vmul.f32 %v386, %v1081
      %v1087 = vmul.f32 %v387, %v1085
      %v1088 = vmul.f32 %v388, %v1081
      %v1089 = vmul.f32 %v389, %v1085
      %v1090 = vmul.f32 %v488, %v1081
      %v1091 = vmul.f32 %v489, %v1085
      %v1092 = vmul.f32 %v390, %v1081
      %v1093 = vmul.f32 %v391, %v1085
      %v1094 = vmul.f32 %v392, %v1081
      %v1095 = vmul.f32 %v393, %v1085
      %v1096 = vmul.f32 %v490, %v1081
      %v1097 = vmul.f32 %v491, %v1085
      %v1098 = vmul.f32 %v394, %v1081
      %v1099 = vmul.f32 %v395, %v1085
      %v1100 = vmul.f32 %v396, %v1081
      %v1101 = vmul.f32 %v397, %v1085
      %v1102 = vmul.f32 %v492, %v1081
      %v1103 = vmul.f32 %v493, %v1085
      %v1104 = vmul.f32 %v398, %v1081
      %v1105 = vmul.f32 %v399, %v1085
      %v1106 = vmul.f32 %v400, %v1081
      %v1107 = vmul.f32 %v401, %v1085
      %v1108 = vmul.f32 %v494, %v1081
      %v1109 = vmul.f32 %v495, %v1085
      %v1110 = vmul.f32 %v402, %v1081
      %v1111 = vmul.f32 %v403, %v1085
      %v1112 = vmul.f32 %v404, %v1081
      %v1113 = vmul.f32 %v405, %v1085
      %v1114 = vmul.f32 %v496, %v1081
      %v1115 = vmul.f32 %v497, %v1085
      %v1116 = vmul.f32 %v406, %v1081
      %v1117 = vmul.f32 %v407, %v1085
      %v1118 = vmul.f32 %v408, %v1081
      %v1119 = vmul.f32 %v409, %v1085
      %v1120 = vmul.f32 %v498, %v1081
      %v1121 = vmul.f32 %v499, %v1085
      %v1122 = vmul.f32 %v410, %v1081
      %v1123 = vmul.f32 %v411, %v1085
      %v1124 = vmul.f32 %v412, %v1081
      %v1125 = vmul.f32 %v413, %v1085
      %v1126 = vmul.f32 %v500, %v1081
      %v1127 = vmul.f32 %v501, %v1085
      %v1128 = vmul.f32 %v1000, %v1081
      %v1129 = vmul.f32 %v1001, %v1085
      %v1130 = vmul.f32 %v1002, %v1081
      %v1131 = vmul.f32 %v1003, %v1085
      %v1132 = vmul.f32 %v1076, %v1081
      %v1133 = vmul.f32 %v1077, %v1085
      %v1182 = vrot.slane %v1086, 1
      %v1183 = vrot.slane %v1088, 1
      %v1184 = vsel %vm606, %v1182, %v1183
      %v1185 = vrot.slane %v1087, 1
      %v1186 = vrot.slane %v1089, 1
      %v1187 = vsel %vm606, %v1185, %v1186
      %v1188 = vrot.slane %v1090, 1
      %v1189 = vsel %vm606, %v1183, %v1188
      %v1190 = vrot.slane %v1091, 1
      %v1191 = vsel %vm606, %v1186, %v1190
      %v1192 = vrot.slane %v1092, 1
      %v1193 = vrot.slane %v1094, 1
      %v1194 = vsel %vm606, %v1192, %v1193
      %v1195 = vrot.slane %v1093, 1
      %v1196 = vrot.slane %v1095, 1
      %v1197 = vsel %vm606, %v1195, %v1196
      %v1198 = vrot.slane %v1096, 1
      %v1199 = vsel %vm606, %v1193, %v1198
      %v1200 = vrot.slane %v1097, 1
      %v1201 = vsel %vm606, %v1196, %v1200
      %v1202 = vrot.slane %v1098, 1
      %v1203 = vrot.slane %v1100, 1
      %v1204 = vsel %vm606, %v1202, %v1203
      %v1205 = vrot.slane %v1099, 1
      %v1206 = vrot.slane %v1101, 1
      %v1207 = vsel %vm606, %v1205, %v1206
      %v1208 = vrot.slane %v1102, 1
      %v1209 = vsel %vm606, %v1203, %v1208
      %v1210 = vrot.slane %v1103, 1
      %v1211 = vsel %vm606, %v1206, %v1210
      %v1212 = vrot.slane %v1104, 1
      %v1213 = vrot.slane %v1106, 1
      %v1214 = vsel %vm606, %v1212, %v1213
      %v1215 = vrot.slane %v1105, 1
      %v1216 = vrot.slane %v1107, 1
      %v1217 = vsel %vm606, %v1215, %v1216
      %v1218 = vrot.slane %v1108, 1
      %v1219 = vsel %vm606, %v1213, %v1218
      %v1220 = vrot.slane %v1109, 1
      %v1221 = vsel %vm606, %v1216, %v1220
      %v1222 = vrot.slane %v1110, 1
      %v1223 = vrot.slane %v1112, 1
      %v1224 = vsel %vm606, %v1222, %v1223
      %v1225 = vrot.slane %v1111, 1
      %v1226 = vrot.slane %v1113, 1
      %v1227 = vsel %vm606, %v1225, %v1226
      %v1228 = vrot.slane %v1114, 1
      %v1229 = vsel %vm606, %v1223, %v1228
      %v1230 = vrot.slane %v1115, 1
      %v1231 = vsel %vm606, %v1226, %v1230
      %v1232 = vrot.slane %v1116, 1
      %v1233 = vrot.slane %v1118, 1
      %v1234 = vsel %vm606, %v1232, %v1233
      %v1235 = vrot.slane %v1117, 1
      %v1236 = vrot.slane %v1119, 1
      %v1237 = vsel %vm606, %v1235, %v1236
      %v1238 = vrot.slane %v1120, 1
      %v1239 = vsel %vm606, %v1233, %v1238
      %v1240 = vrot.slane %v1121, 1
      %v1241 = vsel %vm606, %v1236, %v1240
      %v1242 = vrot.slane %v1122, 1
      %v1243 = vrot.slane %v1124, 1
      %v1244 = vsel %vm606, %v1242, %v1243
      %v1245 = vrot.slane %v1123, 1
      %v1246 = vrot.slane %v1125, 1
      %v1247 = vsel %vm606, %v1245, %v1246
      %v1248 = vrot.slane %v1126, 1
      %v1249 = vsel %vm606, %v1243, %v1248
      %v1250 = vrot.slane %v1127, 1
      %v1251 = vsel %vm606, %v1246, %v1250
      %v1252 = vrot.slane %v1128, 1
      %v1253 = vrot.slane %v1130, 1
      %v1254 = vsel %vm606, %v1252, %v1253
      %v1255 = vrot.slane %v1129, 1
      %v1256 = vrot.slane %v1131, 1
      %v1257 = vsel %vm606, %v1255, %v1256
      %v1258 = vrot.slane %v1132, 1
      %v1259 = vsel %vm606, %v1253, %v1258
      %v1260 = vrot.slane %v1133, 1
      %v1261 = vsel %vm606, %v1256, %v1260
      %v1294 = vadd.f32 %v1044, %v1184
      %v1295 = vadd.f32 %v1045, %v1187
      %v1296 = vadd.f32 %v1046, %v1189
      %v1297 = vadd.f32 %v1047, %v1191
      %v1298 = vadd.f32 %v1048, %v1194
      %v1299 = vadd.f32 %v1049, %v1197
      %v1300 = vadd.f32 %v1050, %v1199
      %v1301 = vadd.f32 %v1051, %v1201
      %v1302 = vadd.f32 %v1052, %v1204
      %v1303 = vadd.f32 %v1053, %v1207
      %v1304 = vadd.f32 %v1054, %v1209
      %v1305 = vadd.f32 %v1055, %v1211
      %v1306 = vadd.f32 %v1056, %v1214
      %v1307 = vadd.f32 %v1057, %v1217
      %v1308 = vadd.f32 %v1058, %v1219
      %v1309 = vadd.f32 %v1059, %v1221
      %v1310 = vadd.f32 %v1060, %v1224
      %v1311 = vadd.f32 %v1061, %v1227
      %v1312 = vadd.f32 %v1062, %v1229
      %v1313 = vadd.f32 %v1063, %v1231
      %v1314 = vadd.f32 %v1064, %v1234
      %v1315 = vadd.f32 %v1065, %v1237
      %v1316 = vadd.f32 %v1066, %v1239
      %v1317 = vadd.f32 %v1067, %v1241
      %v1318 = vadd.f32 %v1068, %v1244
      %v1319 = vadd.f32 %v1069, %v1247
      %v1320 = vadd.f32 %v1070, %v1249
      %v1321 = vadd.f32 %v1071, %v1251
      %v1322 = vadd.f32 %v1072, %v1254
      %v1323 = vadd.f32 %v1073, %v1257
      %v1324 = vadd.f32 %v1074, %v1259
      %v1325 = vadd.f32 %v1075, %v1261
      %v1326 = vlaneseq
      %v1327 = vshrl.u32 %v1326, 7
      %v1328 = vsub.s32 5, %v1327
      %v1329 = vrot.slane %v346, %v1328
      %v1330 = vlaneseq
      %v1331 = vshrl.u32 %v1330, 7
      %v1332 = vsub.s32 5, %v1331
      %v1333 = vrot.slane %v347, %v1332
      %v1334 = vmul.f32 %v386, %v1329
      %v1335 = vmul.f32 %v387, %v1333
      %v1336 = vmul.f32 %v388, %v1329
      %v1337 = vmul.f32 %v389, %v1333
      %v1338 = vmul.f32 %v488, %v1329
      %v1339 = vmul.f32 %v489, %v1333
      %v1340 = vmul.f32 %v390, %v1329
      %v1341 = vmul.f32 %v391, %v1333
      %v1342 = vmul.f32 %v392, %v1329
      %v1343 = vmul.f32 %v393, %v1333
      %v1344 = vmul.f32 %v490, %v1329
      %v1345 = vmul.f32 %v491, %v1333
      %v1346 = vmul.f32 %v394, %v1329
      %v1347 = vmul.f32 %v395, %v1333
      %v1348 = vmul.f32 %v396, %v1329
      %v1349 = vmul.f32 %v397, %v1333
      %v1350 = vmul.f32 %v492, %v1329
      %v1351 = vmul.f32 %v493, %v1333
      %v1352 = vmul.f32 %v398, %v1329
      %v1353 = vmul.f32 %v399, %v1333
      %v1354 = vmul.f32 %v400, %v1329
      %v1355 = vmul.f32 %v401, %v1333
      %v1356 = vmul.f32 %v494, %v1329
      %v1357 = vmul.f32 %v495, %v1333
      %v1358 = vmul.f32 %v402, %v1329
      %v1359 = vmul.f32 %v403, %v1333
      %v1360 = vmul.f32 %v404, %v1329
      %v1361 = vmul.f32 %v405, %v1333
      %v1362 = vmul.f32 %v496, %v1329
      %v1363 = vmul.f32 %v497, %v1333
      %v1364 = vmul.f32 %v406, %v1329
      %v1365 = vmul.f32 %v407, %v1333
      %v1366 = vmul.f32 %v408, %v1329
      %v1367 = vmul.f32 %v409, %v1333
      %v1368 = vmul.f32 %v498, %v1329
      %v1369 = vmul.f32 %v499, %v1333
      %v1370 = vmul.f32 %v410, %v1329
      %v1371 = vmul.f32 %v411, %v1333
      %v1372 = vmul.f32 %v412, %v1329
      %v1373 = vmul.f32 %v413, %v1333
      %v1374 = vmul.f32 %v500, %v1329
      %v1375 = vmul.f32 %v501, %v1333
      %v1376 = vmul.f32 %v1000, %v1329
      %v1377 = vmul.f32 %v1001, %v1333
      %v1378 = vmul.f32 %v1002, %v1329
      %v1379 = vmul.f32 %v1003, %v1333
      %v1380 = vmul.f32 %v1076, %v1329
      %v1381 = vmul.f32 %v1077, %v1333
      %v1430 = vrot.slane %v1334, 2
      %v1431 = vrot.slane %v1336, 2
      %v1432 = vsel %vm855, %v1430, %v1431
      %v1433 = vrot.slane %v1335, 2
      %v1434 = vrot.slane %v1337, 2
      %v1435 = vsel %vm855, %v1433, %v1434
      %v1436 = vrot.slane %v1338, 2
      %v1437 = vsel %vm855, %v1431, %v1436
      %v1438 = vrot.slane %v1339, 2
      %v1439 = vsel %vm855, %v1434, %v1438
      %v1440 = vrot.slane %v1340, 2
      %v1441 = vrot.slane %v1342, 2
      %v1442 = vsel %vm855, %v1440, %v1441
      %v1443 = vrot.slane %v1341, 2
      %v1444 = vrot.slane %v1343, 2
      %v1445 = vsel %vm855, %v1443, %v1444
      %v1446 = vrot.slane %v1344, 2
      %v1447 = vsel %vm855, %v1441, %v1446
      %v1448 = vrot.slane %v1345, 2
      %v1449 = vsel %vm855, %v1444, %v1448
      %v1450 = vrot.slane %v1346, 2
      %v1451 = vrot.slane %v1348, 2
      %v1452 = vsel %vm855, %v1450, %v1451
      %v1453 = vrot.slane %v1347, 2
      %v1454 = vrot.slane %v1349, 2
      %v1455 = vsel %vm855, %v1453, %v1454
      %v1456 = vrot.slane %v1350, 2
      %v1457 = vsel %vm855, %v1451, %v1456
      %v1458 = vrot.slane %v1351, 2
      %v1459 = vsel %vm855, %v1454, %v1458
      %v1460 = vrot.slane %v1352, 2
      %v1461 = vrot.slane %v1354, 2
      %v1462 = vsel %vm855, %v1460, %v1461
      %v1463 = vrot.slane %v1353, 2
      %v1464 = vrot.slane %v1355, 2
      %v1465 = vsel %vm855, %v1463, %v1464
      %v1466 = vrot.slane %v1356, 2
      %v1467 = vsel %vm855, %v1461, %v1466
      %v1468 = vrot.slane %v1357, 2
      %v1469 = vsel %vm855, %v1464, %v1468
      %v1470 = vrot.slane %v1358, 2
      %v1471 = vrot.slane %v1360, 2
      %v1472 = vsel %vm855, %v1470, %v1471
      %v1473 = vrot.slane %v1359, 2
      %v1474 = vrot.slane %v1361, 2
      %v1475 = vsel %vm855, %v1473, %v1474
      %v1476 = vrot.slane %v1362, 2
      %v1477 = vsel %vm855, %v1471, %v1476
      %v1478 = vrot.slane %v1363, 2
      %v1479 = vsel %vm855, %v1474, %v1478
      %v1480 = vrot.slane %v1364, 2
      %v1481 = vrot.slane %v1366, 2
      %v1482 = vsel %vm855, %v1480, %v1481
      %v1483 = vrot.slane %v1365, 2
      %v1484 = vrot.slane %v1367, 2
      %v1485 = vsel %vm855, %v1483, %v1484
      %v1486 = vrot.slane %v1368, 2
      %v1487 = vsel %vm855, %v1481, %v1486
      %v1488 = vrot.slane %v1369, 2
      %v1489 = vsel %vm855, %v1484, %v1488
      %v1490 = vrot.slane %v1370, 2
      %v1491 = vrot.slane %v1372, 2
      %v1492 = vsel %vm855, %v1490, %v1491
      %v1493 = vrot.slane %v1371, 2
      %v1494 = vrot.slane %v1373, 2
      %v1495 = vsel %vm855, %v1493, %v1494
      %v1496 = vrot.slane %v1374, 2
      %v1497 = vsel %vm855, %v1491, %v1496
      %v1498 = vrot.slane %v1375, 2
      %v1499 = vsel %vm855, %v1494, %v1498
      %v1500 = vrot.slane %v1376, 2
      %v1501 = vrot.slane %v1378, 2
      %v1502 = vsel %vm855, %v1500, %v1501
      %v1503 = vrot.slane %v1377, 2
      %v1504 = vrot.slane %v1379, 2
      %v1505 = vsel %vm855, %v1503, %v1504
      %v1506 = vrot.slane %v1380, 2
      %v1507 = vsel %vm855, %v1501, %v1506
      %v1508 = vrot.slane %v1381, 2
      %v1509 = vsel %vm855, %v1504, %v1508
      %v1542 = vadd.f32 %v1294, %v1432
      %v1543 = vadd.f32 %v1295, %v1435
      %v1544 = vadd.f32 %v1296, %v1437
      %v1545 = vadd.f32 %v1297, %v1439
      %v1546 = vadd.f32 %v1298, %v1442
      %v1547 = vadd.f32 %v1299, %v1445
      %v1548 = vadd.f32 %v1300, %v1447
      %v1549 = vadd.f32 %v1301, %v1449
      %v1550 = vadd.f32 %v1302, %v1452
      %v1551 = vadd.f32 %v1303, %v1455
      %v1552 = vadd.f32 %v1304, %v1457
      %v1553 = vadd.f32 %v1305, %v1459
      %v1554 = vadd.f32 %v1306, %v1462
      %v1555 = vadd.f32 %v1307, %v1465
      %v1556 = vadd.f32 %v1308, %v1467
      %v1557 = vadd.f32 %v1309, %v1469
      %v1558 = vadd.f32 %v1310, %v1472
      %v1559 = vadd.f32 %v1311, %v1475
      %v1560 = vadd.f32 %v1312, %v1477
      %v1561 = vadd.f32 %v1313, %v1479
      %v1562 = vadd.f32 %v1314, %v1482
      %v1563 = vadd.f32 %v1315, %v1485
      %v1564 = vadd.f32 %v1316, %v1487
      %v1565 = vadd.f32 %v1317, %v1489
      %v1566 = vadd.f32 %v1318, %v1492
      %v1567 = vadd.f32 %v1319, %v1495
      %v1568 = vadd.f32 %v1320, %v1497
      %v1569 = vadd.f32 %v1321, %v1499
      %v1570 = vadd.f32 %v1322, %v1502
      %v1571 = vadd.f32 %v1323, %v1505
      %v1572 = vadd.f32 %v1324, %v1507
      %v1573 = vadd.f32 %v1325, %v1509
      %v1574 = vunpack.c.l.bf16 %v379
      %v1575 = vunpack.c.h.bf16 %v379
      %v1576 = vunpack.c.l.bf16 %v380
      %v1577 = vunpack.c.h.bf16 %v380
      %v1578 = vlaneseq
      %v1579 = vshrl.u32 %v1578, 7
      %v1580 = vsub.s32 6, %v1579
      %v1581 = vrot.slane %v346, %v1580
      %v1582 = vlaneseq
      %v1583 = vshrl.u32 %v1582, 7
      %v1584 = vsub.s32 6, %v1583
      %v1585 = vrot.slane %v347, %v1584
      %v1586 = vmul.f32 %v390, %v1581
      %v1587 = vmul.f32 %v391, %v1585
      %v1588 = vmul.f32 %v392, %v1581
      %v1589 = vmul.f32 %v393, %v1585
      %v1590 = vmul.f32 %v394, %v1581
      %v1591 = vmul.f32 %v395, %v1585
      %v1592 = vmul.f32 %v396, %v1581
      %v1593 = vmul.f32 %v397, %v1585
      %v1594 = vmul.f32 %v398, %v1581
      %v1595 = vmul.f32 %v399, %v1585
      %v1596 = vmul.f32 %v400, %v1581
      %v1597 = vmul.f32 %v401, %v1585
      %v1598 = vmul.f32 %v402, %v1581
      %v1599 = vmul.f32 %v403, %v1585
      %v1600 = vmul.f32 %v404, %v1581
      %v1601 = vmul.f32 %v405, %v1585
      %v1602 = vmul.f32 %v406, %v1581
      %v1603 = vmul.f32 %v407, %v1585
      %v1604 = vmul.f32 %v408, %v1581
      %v1605 = vmul.f32 %v409, %v1585
      %v1606 = vmul.f32 %v410, %v1581
      %v1607 = vmul.f32 %v411, %v1585
      %v1608 = vmul.f32 %v412, %v1581
      %v1609 = vmul.f32 %v413, %v1585
      %v1610 = vmul.f32 %v1000, %v1581
      %v1611 = vmul.f32 %v1001, %v1585
      %v1612 = vmul.f32 %v1002, %v1581
      %v1613 = vmul.f32 %v1003, %v1585
      %v1614 = vmul.f32 %v1574, %v1581
      %v1615 = vmul.f32 %v1575, %v1585
      %v1616 = vmul.f32 %v1576, %v1581
      %v1617 = vmul.f32 %v1577, %v1585
      %v1618 = vadd.f32 %v1542, %v1586
      %v1619 = vadd.f32 %v1543, %v1587
      %v1620 = vadd.f32 %v1544, %v1588
      %v1621 = vadd.f32 %v1545, %v1589
      %v1622 = vadd.f32 %v1546, %v1590
      %v1623 = vadd.f32 %v1547, %v1591
      %v1624 = vadd.f32 %v1548, %v1592
      %v1625 = vadd.f32 %v1549, %v1593
      %v1626 = vadd.f32 %v1550, %v1594
      %v1627 = vadd.f32 %v1551, %v1595
      %v1628 = vadd.f32 %v1552, %v1596
      %v1629 = vadd.f32 %v1553, %v1597
      %v1630 = vadd.f32 %v1554, %v1598
      %v1631 = vadd.f32 %v1555, %v1599
      %v1632 = vadd.f32 %v1556, %v1600
      %v1633 = vadd.f32 %v1557, %v1601
      %v1634 = vadd.f32 %v1558, %v1602
      %v1635 = vadd.f32 %v1559, %v1603
      %v1636 = vadd.f32 %v1560, %v1604
      %v1637 = vadd.f32 %v1561, %v1605
      %v1638 = vadd.f32 %v1562, %v1606
      %v1639 = vadd.f32 %v1563, %v1607
      %v1640 = vadd.f32 %v1564, %v1608
      %v1641 = vadd.f32 %v1565, %v1609
      %v1642 = vadd.f32 %v1566, %v1610
      %v1643 = vadd.f32 %v1567, %v1611
      %v1644 = vadd.f32 %v1568, %v1612
      %v1645 = vadd.f32 %v1569, %v1613
      %v1646 = vadd.f32 %v1570, %v1614
      %v1647 = vadd.f32 %v1571, %v1615
      %v1648 = vadd.f32 %v1572, %v1616
      %v1649 = vadd.f32 %v1573, %v1617
      %v1650 = vunpack.c.l.bf16 %v381
      %v1651 = vunpack.c.h.bf16 %v381
      %v1652 = vlaneseq
      %v1653 = vshrl.u32 %v1652, 7
      %v1654 = vsub.s32 7, %v1653
      %v1655 = vrot.slane %v346, %v1654
      %v1656 = vlaneseq
      %v1657 = vshrl.u32 %v1656, 7
      %v1658 = vsub.s32 7, %v1657
      %v1659 = vrot.slane %v347, %v1658
      %v1660 = vmul.f32 %v390, %v1655
      %v1661 = vmul.f32 %v391, %v1659
      %v1662 = vmul.f32 %v392, %v1655
      %v1663 = vmul.f32 %v393, %v1659
      %v1664 = vmul.f32 %v490, %v1655
      %v1665 = vmul.f32 %v491, %v1659
      %v1666 = vmul.f32 %v394, %v1655
      %v1667 = vmul.f32 %v395, %v1659
      %v1668 = vmul.f32 %v396, %v1655
      %v1669 = vmul.f32 %v397, %v1659
      %v1670 = vmul.f32 %v492, %v1655
      %v1671 = vmul.f32 %v493, %v1659
      %v1672 = vmul.f32 %v398, %v1655
      %v1673 = vmul.f32 %v399, %v1659
      %v1674 = vmul.f32 %v400, %v1655
      %v1675 = vmul.f32 %v401, %v1659
      %v1676 = vmul.f32 %v494, %v1655
      %v1677 = vmul.f32 %v495, %v1659
      %v1678 = vmul.f32 %v402, %v1655
      %v1679 = vmul.f32 %v403, %v1659
      %v1680 = vmul.f32 %v404, %v1655
      %v1681 = vmul.f32 %v405, %v1659
      %v1682 = vmul.f32 %v496, %v1655
      %v1683 = vmul.f32 %v497, %v1659
      %v1684 = vmul.f32 %v406, %v1655
      %v1685 = vmul.f32 %v407, %v1659
      %v1686 = vmul.f32 %v408, %v1655
      %v1687 = vmul.f32 %v409, %v1659
      %v1688 = vmul.f32 %v498, %v1655
      %v1689 = vmul.f32 %v499, %v1659
      %v1690 = vmul.f32 %v410, %v1655
      %v1691 = vmul.f32 %v411, %v1659
      %v1692 = vmul.f32 %v412, %v1655
      %v1693 = vmul.f32 %v413, %v1659
      %v1694 = vmul.f32 %v500, %v1655
      %v1695 = vmul.f32 %v501, %v1659
      %v1696 = vmul.f32 %v1000, %v1655
      %v1697 = vmul.f32 %v1001, %v1659
      %v1698 = vmul.f32 %v1002, %v1655
      %v1699 = vmul.f32 %v1003, %v1659
      %v1700 = vmul.f32 %v1076, %v1655
      %v1701 = vmul.f32 %v1077, %v1659
      %v1702 = vmul.f32 %v1574, %v1655
      %v1703 = vmul.f32 %v1575, %v1659
      %v1704 = vmul.f32 %v1576, %v1655
      %v1705 = vmul.f32 %v1577, %v1659
      %v1706 = vmul.f32 %v1650, %v1655
      %v1707 = vmul.f32 %v1651, %v1659
      %v1756 = vrot.slane %v1660, 1
      %v1757 = vrot.slane %v1662, 1
      %v1758 = vsel %vm606, %v1756, %v1757
      %v1759 = vrot.slane %v1661, 1
      %v1760 = vrot.slane %v1663, 1
      %v1761 = vsel %vm606, %v1759, %v1760
      %v1762 = vrot.slane %v1664, 1
      %v1763 = vsel %vm606, %v1757, %v1762
      %v1764 = vrot.slane %v1665, 1
      %v1765 = vsel %vm606, %v1760, %v1764
      %v1766 = vrot.slane %v1666, 1
      %v1767 = vrot.slane %v1668, 1
      %v1768 = vsel %vm606, %v1766, %v1767
      %v1769 = vrot.slane %v1667, 1
      %v1770 = vrot.slane %v1669, 1
      %v1771 = vsel %vm606, %v1769, %v1770
      %v1772 = vrot.slane %v1670, 1
      %v1773 = vsel %vm606, %v1767, %v1772
      %v1774 = vrot.slane %v1671, 1
      %v1775 = vsel %vm606, %v1770, %v1774
      %v1776 = vrot.slane %v1672, 1
      %v1777 = vrot.slane %v1674, 1
      %v1778 = vsel %vm606, %v1776, %v1777
      %v1779 = vrot.slane %v1673, 1
      %v1780 = vrot.slane %v1675, 1
      %v1781 = vsel %vm606, %v1779, %v1780
      %v1782 = vrot.slane %v1676, 1
      %v1783 = vsel %vm606, %v1777, %v1782
      %v1784 = vrot.slane %v1677, 1
      %v1785 = vsel %vm606, %v1780, %v1784
      %v1786 = vrot.slane %v1678, 1
      %v1787 = vrot.slane %v1680, 1
      %v1788 = vsel %vm606, %v1786, %v1787
      %v1789 = vrot.slane %v1679, 1
      %v1790 = vrot.slane %v1681, 1
      %v1791 = vsel %vm606, %v1789, %v1790
      %v1792 = vrot.slane %v1682, 1
      %v1793 = vsel %vm606, %v1787, %v1792
      %v1794 = vrot.slane %v1683, 1
      %v1795 = vsel %vm606, %v1790, %v1794
      %v1796 = vrot.slane %v1684, 1
      %v1797 = vrot.slane %v1686, 1
      %v1798 = vsel %vm606, %v1796, %v1797
      %v1799 = vrot.slane %v1685, 1
      %v1800 = vrot.slane %v1687, 1
      %v1801 = vsel %vm606, %v1799, %v1800
      %v1802 = vrot.slane %v1688, 1
      %v1803 = vsel %vm606, %v1797, %v1802
      %v1804 = vrot.slane %v1689, 1
      %v1805 = vsel %vm606, %v1800, %v1804
      %v1806 = vrot.slane %v1690, 1
      %v1807 = vrot.slane %v1692, 1
      %v1808 = vsel %vm606, %v1806, %v1807
      %v1809 = vrot.slane %v1691, 1
      %v1810 = vrot.slane %v1693, 1
      %v1811 = vsel %vm606, %v1809, %v1810
      %v1812 = vrot.slane %v1694, 1
      %v1813 = vsel %vm606, %v1807, %v1812
      %v1814 = vrot.slane %v1695, 1
      %v1815 = vsel %vm606, %v1810, %v1814
      %v1816 = vrot.slane %v1696, 1
      %v1817 = vrot.slane %v1698, 1
      %v1818 = vsel %vm606, %v1816, %v1817
      %v1819 = vrot.slane %v1697, 1
      %v1820 = vrot.slane %v1699, 1
      %v1821 = vsel %vm606, %v1819, %v1820
      %v1822 = vrot.slane %v1700, 1
      %v1823 = vsel %vm606, %v1817, %v1822
      %v1824 = vrot.slane %v1701, 1
      %v1825 = vsel %vm606, %v1820, %v1824
      %v1826 = vrot.slane %v1702, 1
      %v1827 = vrot.slane %v1704, 1
      %v1828 = vsel %vm606, %v1826, %v1827
      %v1829 = vrot.slane %v1703, 1
      %v1830 = vrot.slane %v1705, 1
      %v1831 = vsel %vm606, %v1829, %v1830
      %v1832 = vrot.slane %v1706, 1
      %v1833 = vsel %vm606, %v1827, %v1832
      %v1834 = vrot.slane %v1707, 1
      %v1835 = vsel %vm606, %v1830, %v1834
      %v1868 = vadd.f32 %v1618, %v1758
      %v1869 = vadd.f32 %v1619, %v1761
      %v1870 = vadd.f32 %v1620, %v1763
      %v1871 = vadd.f32 %v1621, %v1765
      %v1872 = vadd.f32 %v1622, %v1768
      %v1873 = vadd.f32 %v1623, %v1771
      %v1874 = vadd.f32 %v1624, %v1773
      %v1875 = vadd.f32 %v1625, %v1775
      %v1876 = vadd.f32 %v1626, %v1778
      %v1877 = vadd.f32 %v1627, %v1781
      %v1878 = vadd.f32 %v1628, %v1783
      %v1879 = vadd.f32 %v1629, %v1785
      %v1880 = vadd.f32 %v1630, %v1788
      %v1881 = vadd.f32 %v1631, %v1791
      %v1882 = vadd.f32 %v1632, %v1793
      %v1883 = vadd.f32 %v1633, %v1795
      %v1884 = vadd.f32 %v1634, %v1798
      %v1885 = vadd.f32 %v1635, %v1801
      %v1886 = vadd.f32 %v1636, %v1803
      %v1887 = vadd.f32 %v1637, %v1805
      %v1888 = vadd.f32 %v1638, %v1808
      %v1889 = vadd.f32 %v1639, %v1811
      %v1890 = vadd.f32 %v1640, %v1813
      %v1891 = vadd.f32 %v1641, %v1815
      %v1892 = vadd.f32 %v1642, %v1818
      %v1893 = vadd.f32 %v1643, %v1821
      %v1894 = vadd.f32 %v1644, %v1823
      %v1895 = vadd.f32 %v1645, %v1825
      %v1896 = vadd.f32 %v1646, %v1828
      %v1897 = vadd.f32 %v1647, %v1831
      %v1898 = vadd.f32 %v1648, %v1833
      %v1899 = vadd.f32 %v1649, %v1835
      %v1900 = vlaneseq
      %v1901 = vshrl.u32 %v1900, 7
      %v1902 = vsub.s32 0, %v1901
      %v1903 = vrot.slane %v348, %v1902
      %v1904 = vlaneseq
      %v1905 = vshrl.u32 %v1904, 7
      %v1906 = vsub.s32 0, %v1905
      %v1907 = vrot.slane %v349, %v1906
      %v1908 = vmul.f32 %v390, %v1903
      %v1909 = vmul.f32 %v391, %v1907
      %v1910 = vmul.f32 %v392, %v1903
      %v1911 = vmul.f32 %v393, %v1907
      %v1912 = vmul.f32 %v490, %v1903
      %v1913 = vmul.f32 %v491, %v1907
      %v1914 = vmul.f32 %v394, %v1903
      %v1915 = vmul.f32 %v395, %v1907
      %v1916 = vmul.f32 %v396, %v1903
      %v1917 = vmul.f32 %v397, %v1907
      %v1918 = vmul.f32 %v492, %v1903
      %v1919 = vmul.f32 %v493, %v1907
      %v1920 = vmul.f32 %v398, %v1903
      %v1921 = vmul.f32 %v399, %v1907
      %v1922 = vmul.f32 %v400, %v1903
      %v1923 = vmul.f32 %v401, %v1907
      %v1924 = vmul.f32 %v494, %v1903
      %v1925 = vmul.f32 %v495, %v1907
      %v1926 = vmul.f32 %v402, %v1903
      %v1927 = vmul.f32 %v403, %v1907
      %v1928 = vmul.f32 %v404, %v1903
      %v1929 = vmul.f32 %v405, %v1907
      %v1930 = vmul.f32 %v496, %v1903
      %v1931 = vmul.f32 %v497, %v1907
      %v1932 = vmul.f32 %v406, %v1903
      %v1933 = vmul.f32 %v407, %v1907
      %v1934 = vmul.f32 %v408, %v1903
      %v1935 = vmul.f32 %v409, %v1907
      %v1936 = vmul.f32 %v498, %v1903
      %v1937 = vmul.f32 %v499, %v1907
      %v1938 = vmul.f32 %v410, %v1903
      %v1939 = vmul.f32 %v411, %v1907
      %v1940 = vmul.f32 %v412, %v1903
      %v1941 = vmul.f32 %v413, %v1907
      %v1942 = vmul.f32 %v500, %v1903
      %v1943 = vmul.f32 %v501, %v1907
      %v1944 = vmul.f32 %v1000, %v1903
      %v1945 = vmul.f32 %v1001, %v1907
      %v1946 = vmul.f32 %v1002, %v1903
      %v1947 = vmul.f32 %v1003, %v1907
      %v1948 = vmul.f32 %v1076, %v1903
      %v1949 = vmul.f32 %v1077, %v1907
      %v1950 = vmul.f32 %v1574, %v1903
      %v1951 = vmul.f32 %v1575, %v1907
      %v1952 = vmul.f32 %v1576, %v1903
      %v1953 = vmul.f32 %v1577, %v1907
      %v1954 = vmul.f32 %v1650, %v1903
      %v1955 = vmul.f32 %v1651, %v1907
      %v2004 = vrot.slane %v1908, 2
      %v2005 = vrot.slane %v1910, 2
      %v2006 = vsel %vm855, %v2004, %v2005
      %v2007 = vrot.slane %v1909, 2
      %v2008 = vrot.slane %v1911, 2
      %v2009 = vsel %vm855, %v2007, %v2008
      %v2010 = vrot.slane %v1912, 2
      %v2011 = vsel %vm855, %v2005, %v2010
      %v2012 = vrot.slane %v1913, 2
      %v2013 = vsel %vm855, %v2008, %v2012
      %v2014 = vrot.slane %v1914, 2
      %v2015 = vrot.slane %v1916, 2
      %v2016 = vsel %vm855, %v2014, %v2015
      %v2017 = vrot.slane %v1915, 2
      %v2018 = vrot.slane %v1917, 2
      %v2019 = vsel %vm855, %v2017, %v2018
      %v2020 = vrot.slane %v1918, 2
      %v2021 = vsel %vm855, %v2015, %v2020
      %v2022 = vrot.slane %v1919, 2
      %v2023 = vsel %vm855, %v2018, %v2022
      %v2024 = vrot.slane %v1920, 2
      %v2025 = vrot.slane %v1922, 2
      %v2026 = vsel %vm855, %v2024, %v2025
      %v2027 = vrot.slane %v1921, 2
      %v2028 = vrot.slane %v1923, 2
      %v2029 = vsel %vm855, %v2027, %v2028
      %v2030 = vrot.slane %v1924, 2
      %v2031 = vsel %vm855, %v2025, %v2030
      %v2032 = vrot.slane %v1925, 2
      %v2033 = vsel %vm855, %v2028, %v2032
      %v2034 = vrot.slane %v1926, 2
      %v2035 = vrot.slane %v1928, 2
      %v2036 = vsel %vm855, %v2034, %v2035
      %v2037 = vrot.slane %v1927, 2
      %v2038 = vrot.slane %v1929, 2
      %v2039 = vsel %vm855, %v2037, %v2038
      %v2040 = vrot.slane %v1930, 2
      %v2041 = vsel %vm855, %v2035, %v2040
      %v2042 = vrot.slane %v1931, 2
      %v2043 = vsel %vm855, %v2038, %v2042
      %v2044 = vrot.slane %v1932, 2
      %v2045 = vrot.slane %v1934, 2
      %v2046 = vsel %vm855, %v2044, %v2045
      %v2047 = vrot.slane %v1933, 2
      %v2048 = vrot.slane %v1935, 2
      %v2049 = vsel %vm855, %v2047, %v2048
      %v2050 = vrot.slane %v1936, 2
      %v2051 = vsel %vm855, %v2045, %v2050
      %v2052 = vrot.slane %v1937, 2
      %v2053 = vsel %vm855, %v2048, %v2052
      %v2054 = vrot.slane %v1938, 2
      %v2055 = vrot.slane %v1940, 2
      %v2056 = vsel %vm855, %v2054, %v2055
      %v2057 = vrot.slane %v1939, 2
      %v2058 = vrot.slane %v1941, 2
      %v2059 = vsel %vm855, %v2057, %v2058
      %v2060 = vrot.slane %v1942, 2
      %v2061 = vsel %vm855, %v2055, %v2060
      %v2062 = vrot.slane %v1943, 2
      %v2063 = vsel %vm855, %v2058, %v2062
      %v2064 = vrot.slane %v1944, 2
      %v2065 = vrot.slane %v1946, 2
      %v2066 = vsel %vm855, %v2064, %v2065
      %v2067 = vrot.slane %v1945, 2
      %v2068 = vrot.slane %v1947, 2
      %v2069 = vsel %vm855, %v2067, %v2068
      %v2070 = vrot.slane %v1948, 2
      %v2071 = vsel %vm855, %v2065, %v2070
      %v2072 = vrot.slane %v1949, 2
      %v2073 = vsel %vm855, %v2068, %v2072
      %v2074 = vrot.slane %v1950, 2
      %v2075 = vrot.slane %v1952, 2
      %v2076 = vsel %vm855, %v2074, %v2075
      %v2077 = vrot.slane %v1951, 2
      %v2078 = vrot.slane %v1953, 2
      %v2079 = vsel %vm855, %v2077, %v2078
      %v2080 = vrot.slane %v1954, 2
      %v2081 = vsel %vm855, %v2075, %v2080
      %v2082 = vrot.slane %v1955, 2
      %v2083 = vsel %vm855, %v2078, %v2082
      %v2116 = vadd.f32 %v1868, %v2006
      %v2117 = vadd.f32 %v1869, %v2009
      %v2118 = vadd.f32 %v1870, %v2011
      %v2119 = vadd.f32 %v1871, %v2013
      %v2120 = vadd.f32 %v1872, %v2016
      %v2121 = vadd.f32 %v1873, %v2019
      %v2122 = vadd.f32 %v1874, %v2021
      %v2123 = vadd.f32 %v1875, %v2023
      %v2124 = vadd.f32 %v1876, %v2026
      %v2125 = vadd.f32 %v1877, %v2029
      %v2126 = vadd.f32 %v1878, %v2031
      %v2127 = vadd.f32 %v1879, %v2033
      %v2128 = vadd.f32 %v1880, %v2036
      %v2129 = vadd.f32 %v1881, %v2039
      %v2130 = vadd.f32 %v1882, %v2041
      %v2131 = vadd.f32 %v1883, %v2043
      %v2132 = vadd.f32 %v1884, %v2046
      %v2133 = vadd.f32 %v1885, %v2049
      %v2134 = vadd.f32 %v1886, %v2051
      %v2135 = vadd.f32 %v1887, %v2053
      %v2136 = vadd.f32 %v1888, %v2056
      %v2137 = vadd.f32 %v1889, %v2059
      %v2138 = vadd.f32 %v1890, %v2061
      %v2139 = vadd.f32 %v1891, %v2063
      %v2140 = vadd.f32 %v1892, %v2066
      %v2141 = vadd.f32 %v1893, %v2069
      %v2142 = vadd.f32 %v1894, %v2071
      %v2143 = vadd.f32 %v1895, %v2073
      %v2144 = vadd.f32 %v1896, %v2076
      %v2145 = vadd.f32 %v1897, %v2079
      %v2146 = vadd.f32 %v1898, %v2081
      %v2147 = vadd.f32 %v1899, %v2083
      %v2149 = vlaneseq
      %v2150 = vshrl.u32 %v2149, 7
      %v2151 = vsub.s32 0, %v2150
      %v2152 = vrot.slane %v350, %v2151
      %v2153 = vlaneseq
      %v2154 = vshrl.u32 %v2153, 7
      %v2155 = vsub.s32 1, %v2154
      %v2156 = vrot.slane %v350, %v2155
      %v2159 = vmul.f32 %v2116, %v2152
      %v2160 = vmul.f32 %v2117, %v2156
      %v2161 = vmul.f32 %v2118, %v2152
      %v2162 = vmul.f32 %v2119, %v2156
      %v2163 = vmul.f32 %v2120, %v2152
      %v2164 = vmul.f32 %v2121, %v2156
      %v2165 = vmul.f32 %v2122, %v2152
      %v2166 = vmul.f32 %v2123, %v2156
      %v2167 = vmul.f32 %v2124, %v2152
      %v2168 = vmul.f32 %v2125, %v2156
      %v2169 = vmul.f32 %v2126, %v2152
      %v2170 = vmul.f32 %v2127, %v2156
      %v2171 = vmul.f32 %v2128, %v2152
      %v2172 = vmul.f32 %v2129, %v2156
      %v2173 = vmul.f32 %v2130, %v2152
      %v2174 = vmul.f32 %v2131, %v2156
      %v2175 = vmul.f32 %v2132, %v2152
      %v2176 = vmul.f32 %v2133, %v2156
      %v2177 = vmul.f32 %v2134, %v2152
      %v2178 = vmul.f32 %v2135, %v2156
      %v2179 = vmul.f32 %v2136, %v2152
      %v2180 = vmul.f32 %v2137, %v2156
      %v2181 = vmul.f32 %v2138, %v2152
      %v2182 = vmul.f32 %v2139, %v2156
      %v2183 = vmul.f32 %v2140, %v2152
      %v2184 = vmul.f32 %v2141, %v2156
      %v2185 = vmul.f32 %v2142, %v2152
      %v2186 = vmul.f32 %v2143, %v2156
      %v2187 = vmul.f32 %v2144, %v2152
      %v2188 = vmul.f32 %v2145, %v2156
      %v2189 = vmul.f32 %v2146, %v2152
      %v2190 = vmul.f32 %v2147, %v2156
      %v2192 = vlaneseq
      %v2193 = vshrl.u32 %v2192, 7
      %v2194 = vsub.s32 0, %v2193
      %v2195 = vrot.slane %v351, %v2194
      %v2196 = vlaneseq
      %v2197 = vshrl.u32 %v2196, 7
      %v2198 = vsub.s32 1, %v2197
      %v2199 = vrot.slane %v351, %v2198
      %v2202 = vadd.f32 %v2159, %v2195
      %v2203 = vadd.f32 %v2160, %v2199
      %v2204 = vadd.f32 %v2161, %v2195
      %v2205 = vadd.f32 %v2162, %v2199
      %v2206 = vadd.f32 %v2163, %v2195
      %v2207 = vadd.f32 %v2164, %v2199
      %v2208 = vadd.f32 %v2165, %v2195
      %v2209 = vadd.f32 %v2166, %v2199
      %v2210 = vadd.f32 %v2167, %v2195
      %v2211 = vadd.f32 %v2168, %v2199
      %v2212 = vadd.f32 %v2169, %v2195
      %v2213 = vadd.f32 %v2170, %v2199
      %v2214 = vadd.f32 %v2171, %v2195
      %v2215 = vadd.f32 %v2172, %v2199
      %v2216 = vadd.f32 %v2173, %v2195
      %v2217 = vadd.f32 %v2174, %v2199
      %v2218 = vadd.f32 %v2175, %v2195
      %v2219 = vadd.f32 %v2176, %v2199
      %v2220 = vadd.f32 %v2177, %v2195
      %v2221 = vadd.f32 %v2178, %v2199
      %v2222 = vadd.f32 %v2179, %v2195
      %v2223 = vadd.f32 %v2180, %v2199
      %v2224 = vadd.f32 %v2181, %v2195
      %v2225 = vadd.f32 %v2182, %v2199
      %v2226 = vadd.f32 %v2183, %v2195
      %v2227 = vadd.f32 %v2184, %v2199
      %v2228 = vadd.f32 %v2185, %v2195
      %v2229 = vadd.f32 %v2186, %v2199
      %v2230 = vadd.f32 %v2187, %v2195
      %v2231 = vadd.f32 %v2188, %v2199
      %v2232 = vadd.f32 %v2189, %v2195
      %v2233 = vadd.f32 %v2190, %v2199
      %v2234 = vsub.f32 0.0, %v2202
      %v2235 = vsub.f32 0.0, %v2203
      %v2236 = vsub.f32 0.0, %v2204
      %v2237 = vsub.f32 0.0, %v2205
      %v2238 = vsub.f32 0.0, %v2206
      %v2239 = vsub.f32 0.0, %v2207
      %v2240 = vsub.f32 0.0, %v2208
      %v2241 = vsub.f32 0.0, %v2209
      %v2242 = vsub.f32 0.0, %v2210
      %v2243 = vsub.f32 0.0, %v2211
      %v2244 = vsub.f32 0.0, %v2212
      %v2245 = vsub.f32 0.0, %v2213
      %v2246 = vsub.f32 0.0, %v2214
      %v2247 = vsub.f32 0.0, %v2215
      %v2248 = vsub.f32 0.0, %v2216
      %v2249 = vsub.f32 0.0, %v2217
      %v2250 = vsub.f32 0.0, %v2218
      %v2251 = vsub.f32 0.0, %v2219
      %v2252 = vsub.f32 0.0, %v2220
      %v2253 = vsub.f32 0.0, %v2221
      %v2254 = vsub.f32 0.0, %v2222
      %v2255 = vsub.f32 0.0, %v2223
      %v2256 = vsub.f32 0.0, %v2224
      %v2257 = vsub.f32 0.0, %v2225
      %v2258 = vsub.f32 0.0, %v2226
      %v2259 = vsub.f32 0.0, %v2227
      %v2260 = vsub.f32 0.0, %v2228
      %v2261 = vsub.f32 0.0, %v2229
      %v2262 = vsub.f32 0.0, %v2230
      %v2263 = vsub.f32 0.0, %v2231
      %v2264 = vsub.f32 0.0, %v2232
      %v2265 = vsub.f32 0.0, %v2233
      %v2266 = vmul.f32 %v2234, 1.442695
      %v2267 = vpow.pop %v2266
      %v2268 = vmul.f32 %v2235, 1.442695
      %v2269 = vpow.pop %v2268
      %v2270 = vmul.f32 %v2236, 1.442695
      %v2271 = vpow.pop %v2270
      %v2272 = vmul.f32 %v2237, 1.442695
      %v2273 = vpow.pop %v2272
      %v2274 = vmul.f32 %v2238, 1.442695
      %v2275 = vpow.pop %v2274
      %v2276 = vmul.f32 %v2239, 1.442695
      %v2277 = vpow.pop %v2276
      %v2278 = vmul.f32 %v2240, 1.442695
      %v2279 = vpow.pop %v2278
      %v2280 = vmul.f32 %v2241, 1.442695
      %v2281 = vpow.pop %v2280
      %v2282 = vmul.f32 %v2242, 1.442695
      %v2283 = vpow.pop %v2282
      %v2284 = vmul.f32 %v2243, 1.442695
      %v2285 = vpow.pop %v2284
      %v2286 = vmul.f32 %v2244, 1.442695
      %v2287 = vpow.pop %v2286
      %v2288 = vmul.f32 %v2245, 1.442695
      %v2289 = vpow.pop %v2288
      %v2290 = vmul.f32 %v2246, 1.442695
      %v2291 = vpow.pop %v2290
      %v2292 = vmul.f32 %v2247, 1.442695
      %v2293 = vpow.pop %v2292
      %v2294 = vmul.f32 %v2248, 1.442695
      %v2295 = vpow.pop %v2294
      %v2296 = vmul.f32 %v2249, 1.442695
      %v2297 = vpow.pop %v2296
      %v2298 = vmul.f32 %v2250, 1.442695
      %v2299 = vpow.pop %v2298
      %v2300 = vmul.f32 %v2251, 1.442695
      %v2301 = vpow.pop %v2300
      %v2302 = vmul.f32 %v2252, 1.442695
      %v2303 = vpow.pop %v2302
      %v2304 = vmul.f32 %v2253, 1.442695
      %v2305 = vpow.pop %v2304
      %v2306 = vmul.f32 %v2254, 1.442695
      %v2307 = vpow.pop %v2306
      %v2308 = vmul.f32 %v2255, 1.442695
      %v2309 = vpow.pop %v2308
      %v2310 = vmul.f32 %v2256, 1.442695
      %v2311 = vpow.pop %v2310
      %v2312 = vmul.f32 %v2257, 1.442695
      %v2313 = vpow.pop %v2312
      %v2314 = vmul.f32 %v2258, 1.442695
      %v2315 = vpow.pop %v2314
      %v2316 = vmul.f32 %v2259, 1.442695
      %v2317 = vpow.pop %v2316
      %v2318 = vmul.f32 %v2260, 1.442695
      %v2319 = vpow.pop %v2318
      %v2320 = vmul.f32 %v2261, 1.442695
      %v2321 = vpow.pop %v2320
      %v2322 = vmul.f32 %v2262, 1.442695
      %v2323 = vpow.pop %v2322
      %v2324 = vmul.f32 %v2263, 1.442695
      %v2325 = vpow.pop %v2324
      %v2326 = vmul.f32 %v2264, 1.442695
      %v2327 = vpow.pop %v2326
      %v2328 = vmul.f32 %v2265, 1.442695
      %v2329 = vpow.pop %v2328
      %v2330 = vadd.f32 %v2267, 1.0
      %v2331 = vadd.f32 %v2269, 1.0
      %v2332 = vadd.f32 %v2271, 1.0
      %v2333 = vadd.f32 %v2273, 1.0
      %v2334 = vadd.f32 %v2275, 1.0
      %v2335 = vadd.f32 %v2277, 1.0
      %v2336 = vadd.f32 %v2279, 1.0
      %v2337 = vadd.f32 %v2281, 1.0
      %v2338 = vadd.f32 %v2283, 1.0
      %v2339 = vadd.f32 %v2285, 1.0
      %v2340 = vadd.f32 %v2287, 1.0
      %v2341 = vadd.f32 %v2289, 1.0
      %v2342 = vadd.f32 %v2291, 1.0
      %v2343 = vadd.f32 %v2293, 1.0
      %v2344 = vadd.f32 %v2295, 1.0
      %v2345 = vadd.f32 %v2297, 1.0
      %v2346 = vadd.f32 %v2299, 1.0
      %v2347 = vadd.f32 %v2301, 1.0
      %v2348 = vadd.f32 %v2303, 1.0
      %v2349 = vadd.f32 %v2305, 1.0
      %v2350 = vadd.f32 %v2307, 1.0
      %v2351 = vadd.f32 %v2309, 1.0
      %v2352 = vadd.f32 %v2311, 1.0
      %v2353 = vadd.f32 %v2313, 1.0
      %v2354 = vadd.f32 %v2315, 1.0
      %v2355 = vadd.f32 %v2317, 1.0
      %v2356 = vadd.f32 %v2319, 1.0
      %v2357 = vadd.f32 %v2321, 1.0
      %v2358 = vadd.f32 %v2323, 1.0
      %v2359 = vadd.f32 %v2325, 1.0
      %v2360 = vadd.f32 %v2327, 1.0
      %v2361 = vadd.f32 %v2329, 1.0
      %v2362 = vrcp.pop %v2330
      %v2363 = vrcp.pop %v2331
      %v2364 = vrcp.pop %v2332
      %v2365 = vrcp.pop %v2333
      %v2366 = vrcp.pop %v2334
      %v2367 = vrcp.pop %v2335
      %v2368 = vrcp.pop %v2336
      %v2369 = vrcp.pop %v2337
      %v2370 = vrcp.pop %v2338
      %v2371 = vrcp.pop %v2339
      %v2372 = vrcp.pop %v2340
      %v2373 = vrcp.pop %v2341
      %v2374 = vrcp.pop %v2342
      %v2375 = vrcp.pop %v2343
      %v2376 = vrcp.pop %v2344
      %v2377 = vrcp.pop %v2345
      %v2378 = vrcp.pop %v2346
      %v2379 = vrcp.pop %v2347
      %v2380 = vrcp.pop %v2348
      %v2381 = vrcp.pop %v2349
      %v2382 = vrcp.pop %v2350
      %v2383 = vrcp.pop %v2351
      %v2384 = vrcp.pop %v2352
      %v2385 = vrcp.pop %v2353
      %v2386 = vrcp.pop %v2354
      %v2387 = vrcp.pop %v2355
      %v2388 = vrcp.pop %v2356
      %v2389 = vrcp.pop %v2357
      %v2390 = vrcp.pop %v2358
      %v2391 = vrcp.pop %v2359
      %v2392 = vrcp.pop %v2360
      %v2393 = vrcp.pop %v2361
      %v2394 = vmul.f32 %v2202, %v2362
      %v2395 = vmul.f32 %v2203, %v2363
      %v2396 = vmul.f32 %v2204, %v2364
      %v2397 = vmul.f32 %v2205, %v2365
      %v2398 = vmul.f32 %v2206, %v2366
      %v2399 = vmul.f32 %v2207, %v2367
      %v2400 = vmul.f32 %v2208, %v2368
      %v2401 = vmul.f32 %v2209, %v2369
      %v2402 = vmul.f32 %v2210, %v2370
      %v2403 = vmul.f32 %v2211, %v2371
      %v2404 = vmul.f32 %v2212, %v2372
      %v2405 = vmul.f32 %v2213, %v2373
      %v2406 = vmul.f32 %v2214, %v2374
      %v2407 = vmul.f32 %v2215, %v2375
      %v2408 = vmul.f32 %v2216, %v2376
      %v2409 = vmul.f32 %v2217, %v2377
      %v2410 = vmul.f32 %v2218, %v2378
      %v2411 = vmul.f32 %v2219, %v2379
      %v2412 = vmul.f32 %v2220, %v2380
      %v2413 = vmul.f32 %v2221, %v2381
      %v2414 = vmul.f32 %v2222, %v2382
      %v2415 = vmul.f32 %v2223, %v2383
      %v2416 = vmul.f32 %v2224, %v2384
      %v2417 = vmul.f32 %v2225, %v2385
      %v2418 = vmul.f32 %v2226, %v2386
      %v2419 = vmul.f32 %v2227, %v2387
      %v2420 = vmul.f32 %v2228, %v2388
      %v2421 = vmul.f32 %v2229, %v2389
      %v2422 = vmul.f32 %v2230, %v2390
      %v2423 = vmul.f32 %v2231, %v2391
      %v2424 = vmul.f32 %v2232, %v2392
      %v2425 = vmul.f32 %v2233, %v2393
      %v2426 = vpack.c.bf16 %v2396, %v2394
      %v2427 = vpack.c.bf16 %v2397, %v2395
      %v2428 = vpack.c.bf16 %v2400, %v2398
      %v2429 = vpack.c.bf16 %v2401, %v2399
      %v2430 = vpack.c.bf16 %v2404, %v2402
      %v2431 = vpack.c.bf16 %v2405, %v2403
      %v2432 = vpack.c.bf16 %v2408, %v2406
      %v2433 = vpack.c.bf16 %v2409, %v2407
      %v2434 = vpack.c.bf16 %v2412, %v2410
      %v2435 = vpack.c.bf16 %v2413, %v2411
      %v2436 = vpack.c.bf16 %v2416, %v2414
      %v2437 = vpack.c.bf16 %v2417, %v2415
      %v2438 = vpack.c.bf16 %v2420, %v2418
      %v2439 = vpack.c.bf16 %v2421, %v2419
      %v2440 = vpack.c.bf16 %v2424, %v2422
      %v2441 = vpack.c.bf16 %v2425, %v2423
      %v2458 = vunpack.c.l.b16 %v2426
      %v2459 = vunpack.c.l.b16 %v2427
      %v2460 = vunpack.c.h.b16 %v2426
      %v2461 = vunpack.c.h.b16 %v2427
      %v2462 = vunpack.c.l.b16 %v2428
      %v2463 = vunpack.c.l.b16 %v2429
      %v2464 = vunpack.c.h.b16 %v2428
      %v2465 = vunpack.c.h.b16 %v2429
      %v2466 = vunpack.c.l.b16 %v2430
      %v2467 = vunpack.c.l.b16 %v2431
      %v2468 = vunpack.c.h.b16 %v2430
      %v2469 = vunpack.c.h.b16 %v2431
      %v2470 = vunpack.c.l.b16 %v2432
      %v2471 = vunpack.c.l.b16 %v2433
      %v2472 = vunpack.c.h.b16 %v2432
      %v2473 = vunpack.c.h.b16 %v2433
      %v2474 = vunpack.c.l.b16 %v2434
      %v2475 = vunpack.c.l.b16 %v2435
      %v2476 = vunpack.c.h.b16 %v2434
      %v2477 = vunpack.c.h.b16 %v2435
      %v2478 = vunpack.c.l.b16 %v2436
      %v2479 = vunpack.c.l.b16 %v2437
      %v2480 = vunpack.c.h.b16 %v2436
      %v2481 = vunpack.c.h.b16 %v2437
      %v2482 = vunpack.c.l.b16 %v2438
      %v2483 = vunpack.c.l.b16 %v2439
      %v2484 = vunpack.c.h.b16 %v2438
      %v2485 = vunpack.c.h.b16 %v2439
      %v2486 = vunpack.c.l.b16 %v2440
      %v2487 = vunpack.c.l.b16 %v2441
      %v2488 = vunpack.c.h.b16 %v2440
      %v2489 = vunpack.c.h.b16 %v2441
      %v2490 = vpack.c.b16 %v2459, %v2458
      %v2491 = vpack.c.b16 %v2461, %v2460
      %v2492 = vpack.c.b16 %v2463, %v2462
      %v2493 = vpack.c.b16 %v2465, %v2464
      %v2494 = vpack.c.b16 %v2467, %v2466
      %v2495 = vpack.c.b16 %v2469, %v2468
      %v2496 = vpack.c.b16 %v2471, %v2470
      %v2497 = vpack.c.b16 %v2473, %v2472
      %v2498 = vpack.c.b16 %v2475, %v2474
      %v2499 = vpack.c.b16 %v2477, %v2476
      %v2500 = vpack.c.b16 %v2479, %v2478
      %v2501 = vpack.c.b16 %v2481, %v2480
      %v2502 = vpack.c.b16 %v2483, %v2482
      %v2503 = vpack.c.b16 %v2485, %v2484
      %v2504 = vpack.c.b16 %v2487, %v2486
      %v2505 = vpack.c.b16 %v2489, %v2488
      %vm2522 = vcmask 1043456
      %vm2523 = vcmask 523268
      %vm2524 = vmor %vm2523, %vm2522
      %2525 = vst.msk [vmem:[%s339] sm:$0xff] %vm2524, %v2490
      %2526 = vst.msk [vmem:[%s339 + $0x8] sm:$0xff] %vm2524, %v2491
      %2527 = vst.msk [vmem:[%s339 + $0x10] sm:$0xff] %vm2524, %v2492
      %2528 = vst.msk [vmem:[%s339 + $0x18] sm:$0xff] %vm2524, %v2493
      %2529 = vst.msk [vmem:[%s339 + $0x20] sm:$0xff] %vm2524, %v2494
      %2530 = vst.msk [vmem:[%s339 + $0x28] sm:$0xff] %vm2524, %v2495
      %2531 = vst.msk [vmem:[%s339 + $0x30] sm:$0xff] %vm2524, %v2496
      %2532 = vst.msk [vmem:[%s339 + $0x38] sm:$0xff] %vm2524, %v2497
      %2533 = vst.msk [vmem:[%s339 + $0x40] sm:$0xff] %vm2524, %v2498
      %2534 = vst.msk [vmem:[%s339 + $0x48] sm:$0xff] %vm2524, %v2499
      %2535 = vst.msk [vmem:[%s339 + $0x50] sm:$0xff] %vm2524, %v2500
      %2536 = vst.msk [vmem:[%s339 + $0x58] sm:$0xff] %vm2524, %v2501
      %2537 = vst.msk [vmem:[%s339 + $0x60] sm:$0xff] %vm2524, %v2502
      %2538 = vst.msk [vmem:[%s339 + $0x68] sm:$0xff] %vm2524, %v2503
      %2539 = vst.msk [vmem:[%s339 + $0x70] sm:$0xff] %vm2524, %v2504
      %2540 = vst.msk [vmem:[%s339 + $0x78] sm:$0xff] %vm2524, %v2505
      %v2541 = vadd.f32 %v2394, %v2396
      %v2542 = vadd.f32 %v2541, %v2398
      %v2543 = vadd.f32 %v2542, %v2400
      %v2544 = vadd.f32 %v2543, %v2402
      %v2545 = vadd.f32 %v2544, %v2404
      %v2546 = vadd.f32 %v2545, %v2406
      %v2547 = vadd.f32 %v2546, %v2408
      %v2548 = vadd.f32 %v2547, %v2410
      %v2549 = vadd.f32 %v2548, %v2412
      %v2550 = vadd.f32 %v2549, %v2414
      %v2551 = vadd.f32 %v2550, %v2416
      %v2552 = vadd.f32 %v2551, %v2418
      %v2553 = vadd.f32 %v2552, %v2420
      %v2554 = vadd.f32 %v2553, %v2422
      %v2555 = vadd.f32 %v2554, %v2424
      %v2556 = vrot.slane %v2555, 4
      %v2557 = vadd.f32 %v2555, %v2556
      %v2558 = vrot.slane %v2557, 2
      %v2559 = vadd.f32 %v2557, %v2558
      %v2560 = vrot.slane %v2559, 1
      %v2561 = vadd.f32 %v2559, %v2560
      %vm2562 = vcmask 523264
      %v2563 = vsel %vm2562, %v2395, 0.0
      %v2564 = vsel %vm2562, %v2397, 0.0
      %v2565 = vadd.f32 %v2563, %v2564
      %v2566 = vsel %vm2562, %v2399, 0.0
      %v2567 = vadd.f32 %v2565, %v2566
      %v2568 = vsel %vm2562, %v2401, 0.0
      %v2569 = vadd.f32 %v2567, %v2568
      %v2570 = vsel %vm2562, %v2403, 0.0
      %v2571 = vadd.f32 %v2569, %v2570
      %v2572 = vsel %vm2562, %v2405, 0.0
      %v2573 = vadd.f32 %v2571, %v2572
      %v2574 = vsel %vm2562, %v2407, 0.0
      %v2575 = vadd.f32 %v2573, %v2574
      %v2576 = vsel %vm2562, %v2409, 0.0
      %v2577 = vadd.f32 %v2575, %v2576
      %v2578 = vsel %vm2562, %v2411, 0.0
      %v2579 = vadd.f32 %v2577, %v2578
      %v2580 = vsel %vm2562, %v2413, 0.0
      %v2581 = vadd.f32 %v2579, %v2580
      %v2582 = vsel %vm2562, %v2415, 0.0
      %v2583 = vadd.f32 %v2581, %v2582
      %v2584 = vsel %vm2562, %v2417, 0.0
      %v2585 = vadd.f32 %v2583, %v2584
      %v2586 = vsel %vm2562, %v2419, 0.0
      %v2587 = vadd.f32 %v2585, %v2586
      %v2588 = vsel %vm2562, %v2421, 0.0
      %v2589 = vadd.f32 %v2587, %v2588
      %v2590 = vsel %vm2562, %v2423, 0.0
      %v2591 = vadd.f32 %v2589, %v2590
      %v2592 = vsel %vm2562, %v2425, 0.0
      %v2593 = vadd.f32 %v2591, %v2592
      %v2594 = vrot.slane %v2593, 4
      %v2595 = vadd.f32 %v2593, %v2594
      %v2596 = vrot.slane %v2595, 2
      %v2597 = vadd.f32 %v2595, %v2596
      %v2598 = vrot.slane %v2597, 1
      %v2599 = vadd.f32 %v2597, %v2598
      %v2600 = vadd.f32 %v2561, 0.0
      %v2601 = vadd.f32 %v2599, 0.0
      %s2602 = scalar_lea.vmem %s334, 192
      %v2603 = vld [vmem:[%s2602] sm:$0xff]
      %v2604 = vld [vmem:[%s2602 + $0x8] sm:$0xff]
      %v2605 = vld [vmem:[%s2602 + $0x10] sm:$0x11]
      %v2606 = vld [vmem:[%s2602 + $0x18] sm:$0xff]
      %v2607 = vld [vmem:[%s2602 + $0x20] sm:$0xff]
      %v2608 = vld [vmem:[%s2602 + $0x28] sm:$0x11]
      %v2609 = vld [vmem:[%s2602 + $0x30] sm:$0xff]
      %v2610 = vld [vmem:[%s2602 + $0x38] sm:$0xff]
      %v2611 = vld [vmem:[%s2602 + $0x40] sm:$0x11]
      %v2612 = vld [vmem:[%s2602 + $0x48] sm:$0xff]
      %v2613 = vld [vmem:[%s2602 + $0x50] sm:$0xff]
      %v2614 = vld [vmem:[%s2602 + $0x58] sm:$0x11]
      %v2615 = vld [vmem:[%s2602 + $0x60] sm:$0xff]
      %v2616 = vld [vmem:[%s2602 + $0x68] sm:$0xff]
      %v2617 = vld [vmem:[%s2602 + $0x70] sm:$0x11]
      %v2618 = vld [vmem:[%s2602 + $0x78] sm:$0xff]
      %v2619 = vld [vmem:[%s2602 + $0x80] sm:$0xff]
      %v2620 = vld [vmem:[%s2602 + $0x88] sm:$0x11]
      %v2621 = vld [vmem:[%s2602 + $0x90] sm:$0xff]
      %v2622 = vld [vmem:[%s2602 + $0x98] sm:$0xff]
      %v2623 = vld [vmem:[%s2602 + $0xa0] sm:$0x11]
      %v2624 = vld [vmem:[%s2602 + $0xa8] sm:$0xff]
      %v2625 = vld [vmem:[%s2602 + $0xb0] sm:$0xff]
      %v2626 = vld [vmem:[%s2602 + $0xb8] sm:$0x11]
      %v2627 = vld [vmem:[%s2602 + $0xc0] sm:$0xff]
      %v2628 = vld [vmem:[%s2602 + $0xc8] sm:$0xff]
      %v2629 = vld [vmem:[%s2602 + $0xd0] sm:$0x11]
      %v2630 = vld [vmem:[%s2602 + $0xd8] sm:$0xff]
      %v2631 = vld [vmem:[%s2602 + $0xe0] sm:$0xff]
      %v2632 = vld [vmem:[%s2602 + $0xe8] sm:$0x11]
      %v2633 = vunpack.c.l.bf16 %v2603
      %v2634 = vunpack.c.h.bf16 %v2603
      %v2635 = vunpack.c.l.bf16 %v2604
      %v2636 = vunpack.c.h.bf16 %v2604
      %v2637 = vunpack.c.l.bf16 %v2606
      %v2638 = vunpack.c.h.bf16 %v2606
      %v2639 = vunpack.c.l.bf16 %v2607
      %v2640 = vunpack.c.h.bf16 %v2607
      %v2641 = vunpack.c.l.bf16 %v2609
      %v2642 = vunpack.c.h.bf16 %v2609
      %v2643 = vunpack.c.l.bf16 %v2610
      %v2644 = vunpack.c.h.bf16 %v2610
      %v2645 = vunpack.c.l.bf16 %v2612
      %v2646 = vunpack.c.h.bf16 %v2612
      %v2647 = vunpack.c.l.bf16 %v2613
      %v2648 = vunpack.c.h.bf16 %v2613
      %v2649 = vunpack.c.l.bf16 %v2615
      %v2650 = vunpack.c.h.bf16 %v2615
      %v2651 = vunpack.c.l.bf16 %v2616
      %v2652 = vunpack.c.h.bf16 %v2616
      %v2653 = vunpack.c.l.bf16 %v2618
      %v2654 = vunpack.c.h.bf16 %v2618
      %v2655 = vunpack.c.l.bf16 %v2619
      %v2656 = vunpack.c.h.bf16 %v2619
      %v2657 = vunpack.c.l.bf16 %v2621
      %v2658 = vunpack.c.h.bf16 %v2621
      %v2659 = vunpack.c.l.bf16 %v2622
      %v2660 = vunpack.c.h.bf16 %v2622
      %v2661 = vunpack.c.l.bf16 %v2624
      %v2662 = vunpack.c.h.bf16 %v2624
      %v2663 = vunpack.c.l.bf16 %v2625
      %v2664 = vunpack.c.h.bf16 %v2625
      %v2665 = vmul.f32 %v2633, %v417
      %v2666 = vmul.f32 %v2634, %v421
      %v2667 = vmul.f32 %v2635, %v417
      %v2668 = vmul.f32 %v2636, %v421
      %v2669 = vmul.f32 %v2637, %v417
      %v2670 = vmul.f32 %v2638, %v421
      %v2671 = vmul.f32 %v2639, %v417
      %v2672 = vmul.f32 %v2640, %v421
      %v2673 = vmul.f32 %v2641, %v417
      %v2674 = vmul.f32 %v2642, %v421
      %v2675 = vmul.f32 %v2643, %v417
      %v2676 = vmul.f32 %v2644, %v421
      %v2677 = vmul.f32 %v2645, %v417
      %v2678 = vmul.f32 %v2646, %v421
      %v2679 = vmul.f32 %v2647, %v417
      %v2680 = vmul.f32 %v2648, %v421
      %v2681 = vmul.f32 %v2649, %v417
      %v2682 = vmul.f32 %v2650, %v421
      %v2683 = vmul.f32 %v2651, %v417
      %v2684 = vmul.f32 %v2652, %v421
      %v2685 = vmul.f32 %v2653, %v417
      %v2686 = vmul.f32 %v2654, %v421
      %v2687 = vmul.f32 %v2655, %v417
      %v2688 = vmul.f32 %v2656, %v421
      %v2689 = vmul.f32 %v2657, %v417
      %v2690 = vmul.f32 %v2658, %v421
      %v2691 = vmul.f32 %v2659, %v417
      %v2692 = vmul.f32 %v2660, %v421
      %v2693 = vmul.f32 %v2661, %v417
      %v2694 = vmul.f32 %v2662, %v421
      %v2695 = vmul.f32 %v2663, %v417
      %v2696 = vmul.f32 %v2664, %v421
      %v2697 = vadd.f32 %v2665, 0.0
      %v2698 = vadd.f32 %v2666, 0.0
      %v2699 = vadd.f32 %v2667, 0.0
      %v2700 = vadd.f32 %v2668, 0.0
      %v2701 = vadd.f32 %v2669, 0.0
      %v2702 = vadd.f32 %v2670, 0.0
      %v2703 = vadd.f32 %v2671, 0.0
      %v2704 = vadd.f32 %v2672, 0.0
      %v2705 = vadd.f32 %v2673, 0.0
      %v2706 = vadd.f32 %v2674, 0.0
      %v2707 = vadd.f32 %v2675, 0.0
      %v2708 = vadd.f32 %v2676, 0.0
      %v2709 = vadd.f32 %v2677, 0.0
      %v2710 = vadd.f32 %v2678, 0.0
      %v2711 = vadd.f32 %v2679, 0.0
      %v2712 = vadd.f32 %v2680, 0.0
      %v2713 = vadd.f32 %v2681, 0.0
      %v2714 = vadd.f32 %v2682, 0.0
      %v2715 = vadd.f32 %v2683, 0.0
      %v2716 = vadd.f32 %v2684, 0.0
      %v2717 = vadd.f32 %v2685, 0.0
      %v2718 = vadd.f32 %v2686, 0.0
      %v2719 = vadd.f32 %v2687, 0.0
      %v2720 = vadd.f32 %v2688, 0.0
      %v2721 = vadd.f32 %v2689, 0.0
      %v2722 = vadd.f32 %v2690, 0.0
      %v2723 = vadd.f32 %v2691, 0.0
      %v2724 = vadd.f32 %v2692, 0.0
      %v2725 = vadd.f32 %v2693, 0.0
      %v2726 = vadd.f32 %v2694, 0.0
      %v2727 = vadd.f32 %v2695, 0.0
      %v2728 = vadd.f32 %v2696, 0.0
      %v2729 = vunpack.c.l.bf16 %v2605
      %v2730 = vunpack.c.h.bf16 %v2605
      %v2731 = vunpack.c.l.bf16 %v2608
      %v2732 = vunpack.c.h.bf16 %v2608
      %v2733 = vunpack.c.l.bf16 %v2611
      %v2734 = vunpack.c.h.bf16 %v2611
      %v2735 = vunpack.c.l.bf16 %v2614
      %v2736 = vunpack.c.h.bf16 %v2614
      %v2737 = vunpack.c.l.bf16 %v2617
      %v2738 = vunpack.c.h.bf16 %v2617
      %v2739 = vunpack.c.l.bf16 %v2620
      %v2740 = vunpack.c.h.bf16 %v2620
      %v2741 = vunpack.c.l.bf16 %v2623
      %v2742 = vunpack.c.h.bf16 %v2623
      %v2743 = vunpack.c.l.bf16 %v2626
      %v2744 = vunpack.c.h.bf16 %v2626
      %v2745 = vmul.f32 %v2633, %v505
      %v2746 = vmul.f32 %v2634, %v509
      %v2747 = vmul.f32 %v2635, %v505
      %v2748 = vmul.f32 %v2636, %v509
      %v2749 = vmul.f32 %v2729, %v505
      %v2750 = vmul.f32 %v2730, %v509
      %v2751 = vmul.f32 %v2637, %v505
      %v2752 = vmul.f32 %v2638, %v509
      %v2753 = vmul.f32 %v2639, %v505
      %v2754 = vmul.f32 %v2640, %v509
      %v2755 = vmul.f32 %v2731, %v505
      %v2756 = vmul.f32 %v2732, %v509
      %v2757 = vmul.f32 %v2641, %v505
      %v2758 = vmul.f32 %v2642, %v509
      %v2759 = vmul.f32 %v2643, %v505
      %v2760 = vmul.f32 %v2644, %v509
      %v2761 = vmul.f32 %v2733, %v505
      %v2762 = vmul.f32 %v2734, %v509
      %v2763 = vmul.f32 %v2645, %v505
      %v2764 = vmul.f32 %v2646, %v509
      %v2765 = vmul.f32 %v2647, %v505
      %v2766 = vmul.f32 %v2648, %v509
      %v2767 = vmul.f32 %v2735, %v505
      %v2768 = vmul.f32 %v2736, %v509
      %v2769 = vmul.f32 %v2649, %v505
      %v2770 = vmul.f32 %v2650, %v509
      %v2771 = vmul.f32 %v2651, %v505
      %v2772 = vmul.f32 %v2652, %v509
      %v2773 = vmul.f32 %v2737, %v505
      %v2774 = vmul.f32 %v2738, %v509
      %v2775 = vmul.f32 %v2653, %v505
      %v2776 = vmul.f32 %v2654, %v509
      %v2777 = vmul.f32 %v2655, %v505
      %v2778 = vmul.f32 %v2656, %v509
      %v2779 = vmul.f32 %v2739, %v505
      %v2780 = vmul.f32 %v2740, %v509
      %v2781 = vmul.f32 %v2657, %v505
      %v2782 = vmul.f32 %v2658, %v509
      %v2783 = vmul.f32 %v2659, %v505
      %v2784 = vmul.f32 %v2660, %v509
      %v2785 = vmul.f32 %v2741, %v505
      %v2786 = vmul.f32 %v2742, %v509
      %v2787 = vmul.f32 %v2661, %v505
      %v2788 = vmul.f32 %v2662, %v509
      %v2789 = vmul.f32 %v2663, %v505
      %v2790 = vmul.f32 %v2664, %v509
      %v2791 = vmul.f32 %v2743, %v505
      %v2792 = vmul.f32 %v2744, %v509
      %v2841 = vrot.slane %v2745, 1
      %v2842 = vrot.slane %v2747, 1
      %v2843 = vsel %vm606, %v2841, %v2842
      %v2844 = vrot.slane %v2746, 1
      %v2845 = vrot.slane %v2748, 1
      %v2846 = vsel %vm606, %v2844, %v2845
      %v2847 = vrot.slane %v2749, 1
      %v2848 = vsel %vm606, %v2842, %v2847
      %v2849 = vrot.slane %v2750, 1
      %v2850 = vsel %vm606, %v2845, %v2849
      %v2851 = vrot.slane %v2751, 1
      %v2852 = vrot.slane %v2753, 1
      %v2853 = vsel %vm606, %v2851, %v2852
      %v2854 = vrot.slane %v2752, 1
      %v2855 = vrot.slane %v2754, 1
      %v2856 = vsel %vm606, %v2854, %v2855
      %v2857 = vrot.slane %v2755, 1
      %v2858 = vsel %vm606, %v2852, %v2857
      %v2859 = vrot.slane %v2756, 1
      %v2860 = vsel %vm606, %v2855, %v2859
      %v2861 = vrot.slane %v2757, 1
      %v2862 = vrot.slane %v2759, 1
      %v2863 = vsel %vm606, %v2861, %v2862
      %v2864 = vrot.slane %v2758, 1
      %v2865 = vrot.slane %v2760, 1
      %v2866 = vsel %vm606, %v2864, %v2865
      %v2867 = vrot.slane %v2761, 1
      %v2868 = vsel %vm606, %v2862, %v2867
      %v2869 = vrot.slane %v2762, 1
      %v2870 = vsel %vm606, %v2865, %v2869
      %v2871 = vrot.slane %v2763, 1
      %v2872 = vrot.slane %v2765, 1
      %v2873 = vsel %vm606, %v2871, %v2872
      %v2874 = vrot.slane %v2764, 1
      %v2875 = vrot.slane %v2766, 1
      %v2876 = vsel %vm606, %v2874, %v2875
      %v2877 = vrot.slane %v2767, 1
      %v2878 = vsel %vm606, %v2872, %v2877
      %v2879 = vrot.slane %v2768, 1
      %v2880 = vsel %vm606, %v2875, %v2879
      %v2881 = vrot.slane %v2769, 1
      %v2882 = vrot.slane %v2771, 1
      %v2883 = vsel %vm606, %v2881, %v2882
      %v2884 = vrot.slane %v2770, 1
      %v2885 = vrot.slane %v2772, 1
      %v2886 = vsel %vm606, %v2884, %v2885
      %v2887 = vrot.slane %v2773, 1
      %v2888 = vsel %vm606, %v2882, %v2887
      %v2889 = vrot.slane %v2774, 1
      %v2890 = vsel %vm606, %v2885, %v2889
      %v2891 = vrot.slane %v2775, 1
      %v2892 = vrot.slane %v2777, 1
      %v2893 = vsel %vm606, %v2891, %v2892
      %v2894 = vrot.slane %v2776, 1
      %v2895 = vrot.slane %v2778, 1
      %v2896 = vsel %vm606, %v2894, %v2895
      %v2897 = vrot.slane %v2779, 1
      %v2898 = vsel %vm606, %v2892, %v2897
      %v2899 = vrot.slane %v2780, 1
      %v2900 = vsel %vm606, %v2895, %v2899
      %v2901 = vrot.slane %v2781, 1
      %v2902 = vrot.slane %v2783, 1
      %v2903 = vsel %vm606, %v2901, %v2902
      %v2904 = vrot.slane %v2782, 1
      %v2905 = vrot.slane %v2784, 1
      %v2906 = vsel %vm606, %v2904, %v2905
      %v2907 = vrot.slane %v2785, 1
      %v2908 = vsel %vm606, %v2902, %v2907
      %v2909 = vrot.slane %v2786, 1
      %v2910 = vsel %vm606, %v2905, %v2909
      %v2911 = vrot.slane %v2787, 1
      %v2912 = vrot.slane %v2789, 1
      %v2913 = vsel %vm606, %v2911, %v2912
      %v2914 = vrot.slane %v2788, 1
      %v2915 = vrot.slane %v2790, 1
      %v2916 = vsel %vm606, %v2914, %v2915
      %v2917 = vrot.slane %v2791, 1
      %v2918 = vsel %vm606, %v2912, %v2917
      %v2919 = vrot.slane %v2792, 1
      %v2920 = vsel %vm606, %v2915, %v2919
      %v2953 = vadd.f32 %v2697, %v2843
      %v2954 = vadd.f32 %v2698, %v2846
      %v2955 = vadd.f32 %v2699, %v2848
      %v2956 = vadd.f32 %v2700, %v2850
      %v2957 = vadd.f32 %v2701, %v2853
      %v2958 = vadd.f32 %v2702, %v2856
      %v2959 = vadd.f32 %v2703, %v2858
      %v2960 = vadd.f32 %v2704, %v2860
      %v2961 = vadd.f32 %v2705, %v2863
      %v2962 = vadd.f32 %v2706, %v2866
      %v2963 = vadd.f32 %v2707, %v2868
      %v2964 = vadd.f32 %v2708, %v2870
      %v2965 = vadd.f32 %v2709, %v2873
      %v2966 = vadd.f32 %v2710, %v2876
      %v2967 = vadd.f32 %v2711, %v2878
      %v2968 = vadd.f32 %v2712, %v2880
      %v2969 = vadd.f32 %v2713, %v2883
      %v2970 = vadd.f32 %v2714, %v2886
      %v2971 = vadd.f32 %v2715, %v2888
      %v2972 = vadd.f32 %v2716, %v2890
      %v2973 = vadd.f32 %v2717, %v2893
      %v2974 = vadd.f32 %v2718, %v2896
      %v2975 = vadd.f32 %v2719, %v2898
      %v2976 = vadd.f32 %v2720, %v2900
      %v2977 = vadd.f32 %v2721, %v2903
      %v2978 = vadd.f32 %v2722, %v2906
      %v2979 = vadd.f32 %v2723, %v2908
      %v2980 = vadd.f32 %v2724, %v2910
      %v2981 = vadd.f32 %v2725, %v2913
      %v2982 = vadd.f32 %v2726, %v2916
      %v2983 = vadd.f32 %v2727, %v2918
      %v2984 = vadd.f32 %v2728, %v2920
      %v2985 = vmul.f32 %v2633, %v754
      %v2986 = vmul.f32 %v2634, %v758
      %v2987 = vmul.f32 %v2635, %v754
      %v2988 = vmul.f32 %v2636, %v758
      %v2989 = vmul.f32 %v2729, %v754
      %v2990 = vmul.f32 %v2730, %v758
      %v2991 = vmul.f32 %v2637, %v754
      %v2992 = vmul.f32 %v2638, %v758
      %v2993 = vmul.f32 %v2639, %v754
      %v2994 = vmul.f32 %v2640, %v758
      %v2995 = vmul.f32 %v2731, %v754
      %v2996 = vmul.f32 %v2732, %v758
      %v2997 = vmul.f32 %v2641, %v754
      %v2998 = vmul.f32 %v2642, %v758
      %v2999 = vmul.f32 %v2643, %v754
      %v3000 = vmul.f32 %v2644, %v758
      %v3001 = vmul.f32 %v2733, %v754
      %v3002 = vmul.f32 %v2734, %v758
      %v3003 = vmul.f32 %v2645, %v754
      %v3004 = vmul.f32 %v2646, %v758
      %v3005 = vmul.f32 %v2647, %v754
      %v3006 = vmul.f32 %v2648, %v758
      %v3007 = vmul.f32 %v2735, %v754
      %v3008 = vmul.f32 %v2736, %v758
      %v3009 = vmul.f32 %v2649, %v754
      %v3010 = vmul.f32 %v2650, %v758
      %v3011 = vmul.f32 %v2651, %v754
      %v3012 = vmul.f32 %v2652, %v758
      %v3013 = vmul.f32 %v2737, %v754
      %v3014 = vmul.f32 %v2738, %v758
      %v3015 = vmul.f32 %v2653, %v754
      %v3016 = vmul.f32 %v2654, %v758
      %v3017 = vmul.f32 %v2655, %v754
      %v3018 = vmul.f32 %v2656, %v758
      %v3019 = vmul.f32 %v2739, %v754
      %v3020 = vmul.f32 %v2740, %v758
      %v3021 = vmul.f32 %v2657, %v754
      %v3022 = vmul.f32 %v2658, %v758
      %v3023 = vmul.f32 %v2659, %v754
      %v3024 = vmul.f32 %v2660, %v758
      %v3025 = vmul.f32 %v2741, %v754
      %v3026 = vmul.f32 %v2742, %v758
      %v3027 = vmul.f32 %v2661, %v754
      %v3028 = vmul.f32 %v2662, %v758
      %v3029 = vmul.f32 %v2663, %v754
      %v3030 = vmul.f32 %v2664, %v758
      %v3031 = vmul.f32 %v2743, %v754
      %v3032 = vmul.f32 %v2744, %v758
      %v3081 = vrot.slane %v2985, 2
      %v3082 = vrot.slane %v2987, 2
      %v3083 = vsel %vm855, %v3081, %v3082
      %v3084 = vrot.slane %v2986, 2
      %v3085 = vrot.slane %v2988, 2
      %v3086 = vsel %vm855, %v3084, %v3085
      %v3087 = vrot.slane %v2989, 2
      %v3088 = vsel %vm855, %v3082, %v3087
      %v3089 = vrot.slane %v2990, 2
      %v3090 = vsel %vm855, %v3085, %v3089
      %v3091 = vrot.slane %v2991, 2
      %v3092 = vrot.slane %v2993, 2
      %v3093 = vsel %vm855, %v3091, %v3092
      %v3094 = vrot.slane %v2992, 2
      %v3095 = vrot.slane %v2994, 2
      %v3096 = vsel %vm855, %v3094, %v3095
      %v3097 = vrot.slane %v2995, 2
      %v3098 = vsel %vm855, %v3092, %v3097
      %v3099 = vrot.slane %v2996, 2
      %v3100 = vsel %vm855, %v3095, %v3099
      %v3101 = vrot.slane %v2997, 2
      %v3102 = vrot.slane %v2999, 2
      %v3103 = vsel %vm855, %v3101, %v3102
      %v3104 = vrot.slane %v2998, 2
      %v3105 = vrot.slane %v3000, 2
      %v3106 = vsel %vm855, %v3104, %v3105
      %v3107 = vrot.slane %v3001, 2
      %v3108 = vsel %vm855, %v3102, %v3107
      %v3109 = vrot.slane %v3002, 2
      %v3110 = vsel %vm855, %v3105, %v3109
      %v3111 = vrot.slane %v3003, 2
      %v3112 = vrot.slane %v3005, 2
      %v3113 = vsel %vm855, %v3111, %v3112
      %v3114 = vrot.slane %v3004, 2
      %v3115 = vrot.slane %v3006, 2
      %v3116 = vsel %vm855, %v3114, %v3115
      %v3117 = vrot.slane %v3007, 2
      %v3118 = vsel %vm855, %v3112, %v3117
      %v3119 = vrot.slane %v3008, 2
      %v3120 = vsel %vm855, %v3115, %v3119
      %v3121 = vrot.slane %v3009, 2
      %v3122 = vrot.slane %v3011, 2
      %v3123 = vsel %vm855, %v3121, %v3122
      %v3124 = vrot.slane %v3010, 2
      %v3125 = vrot.slane %v3012, 2
      %v3126 = vsel %vm855, %v3124, %v3125
      %v3127 = vrot.slane %v3013, 2
      %v3128 = vsel %vm855, %v3122, %v3127
      %v3129 = vrot.slane %v3014, 2
      %v3130 = vsel %vm855, %v3125, %v3129
      %v3131 = vrot.slane %v3015, 2
      %v3132 = vrot.slane %v3017, 2
      %v3133 = vsel %vm855, %v3131, %v3132
      %v3134 = vrot.slane %v3016, 2
      %v3135 = vrot.slane %v3018, 2
      %v3136 = vsel %vm855, %v3134, %v3135
      %v3137 = vrot.slane %v3019, 2
      %v3138 = vsel %vm855, %v3132, %v3137
      %v3139 = vrot.slane %v3020, 2
      %v3140 = vsel %vm855, %v3135, %v3139
      %v3141 = vrot.slane %v3021, 2
      %v3142 = vrot.slane %v3023, 2
      %v3143 = vsel %vm855, %v3141, %v3142
      %v3144 = vrot.slane %v3022, 2
      %v3145 = vrot.slane %v3024, 2
      %v3146 = vsel %vm855, %v3144, %v3145
      %v3147 = vrot.slane %v3025, 2
      %v3148 = vsel %vm855, %v3142, %v3147
      %v3149 = vrot.slane %v3026, 2
      %v3150 = vsel %vm855, %v3145, %v3149
      %v3151 = vrot.slane %v3027, 2
      %v3152 = vrot.slane %v3029, 2
      %v3153 = vsel %vm855, %v3151, %v3152
      %v3154 = vrot.slane %v3028, 2
      %v3155 = vrot.slane %v3030, 2
      %v3156 = vsel %vm855, %v3154, %v3155
      %v3157 = vrot.slane %v3031, 2
      %v3158 = vsel %vm855, %v3152, %v3157
      %v3159 = vrot.slane %v3032, 2
      %v3160 = vsel %vm855, %v3155, %v3159
      %v3193 = vadd.f32 %v2953, %v3083
      %v3194 = vadd.f32 %v2954, %v3086
      %v3195 = vadd.f32 %v2955, %v3088
      %v3196 = vadd.f32 %v2956, %v3090
      %v3197 = vadd.f32 %v2957, %v3093
      %v3198 = vadd.f32 %v2958, %v3096
      %v3199 = vadd.f32 %v2959, %v3098
      %v3200 = vadd.f32 %v2960, %v3100
      %v3201 = vadd.f32 %v2961, %v3103
      %v3202 = vadd.f32 %v2962, %v3106
      %v3203 = vadd.f32 %v2963, %v3108
      %v3204 = vadd.f32 %v2964, %v3110
      %v3205 = vadd.f32 %v2965, %v3113
      %v3206 = vadd.f32 %v2966, %v3116
      %v3207 = vadd.f32 %v2967, %v3118
      %v3208 = vadd.f32 %v2968, %v3120
      %v3209 = vadd.f32 %v2969, %v3123
      %v3210 = vadd.f32 %v2970, %v3126
      %v3211 = vadd.f32 %v2971, %v3128
      %v3212 = vadd.f32 %v2972, %v3130
      %v3213 = vadd.f32 %v2973, %v3133
      %v3214 = vadd.f32 %v2974, %v3136
      %v3215 = vadd.f32 %v2975, %v3138
      %v3216 = vadd.f32 %v2976, %v3140
      %v3217 = vadd.f32 %v2977, %v3143
      %v3218 = vadd.f32 %v2978, %v3146
      %v3219 = vadd.f32 %v2979, %v3148
      %v3220 = vadd.f32 %v2980, %v3150
      %v3221 = vadd.f32 %v2981, %v3153
      %v3222 = vadd.f32 %v2982, %v3156
      %v3223 = vadd.f32 %v2983, %v3158
      %v3224 = vadd.f32 %v2984, %v3160
      %v3225 = vunpack.c.l.bf16 %v2627
      %v3226 = vunpack.c.h.bf16 %v2627
      %v3227 = vunpack.c.l.bf16 %v2628
      %v3228 = vunpack.c.h.bf16 %v2628
      %v3229 = vmul.f32 %v2637, %v1007
      %v3230 = vmul.f32 %v2638, %v1011
      %v3231 = vmul.f32 %v2639, %v1007
      %v3232 = vmul.f32 %v2640, %v1011
      %v3233 = vmul.f32 %v2641, %v1007
      %v3234 = vmul.f32 %v2642, %v1011
      %v3235 = vmul.f32 %v2643, %v1007
      %v3236 = vmul.f32 %v2644, %v1011
      %v3237 = vmul.f32 %v2645, %v1007
      %v3238 = vmul.f32 %v2646, %v1011
      %v3239 = vmul.f32 %v2647, %v1007
      %v3240 = vmul.f32 %v2648, %v1011
      %v3241 = vmul.f32 %v2649, %v1007
      %v3242 = vmul.f32 %v2650, %v1011
      %v3243 = vmul.f32 %v2651, %v1007
      %v3244 = vmul.f32 %v2652, %v1011
      %v3245 = vmul.f32 %v2653, %v1007
      %v3246 = vmul.f32 %v2654, %v1011
      %v3247 = vmul.f32 %v2655, %v1007
      %v3248 = vmul.f32 %v2656, %v1011
      %v3249 = vmul.f32 %v2657, %v1007
      %v3250 = vmul.f32 %v2658, %v1011
      %v3251 = vmul.f32 %v2659, %v1007
      %v3252 = vmul.f32 %v2660, %v1011
      %v3253 = vmul.f32 %v2661, %v1007
      %v3254 = vmul.f32 %v2662, %v1011
      %v3255 = vmul.f32 %v2663, %v1007
      %v3256 = vmul.f32 %v2664, %v1011
      %v3257 = vmul.f32 %v3225, %v1007
      %v3258 = vmul.f32 %v3226, %v1011
      %v3259 = vmul.f32 %v3227, %v1007
      %v3260 = vmul.f32 %v3228, %v1011
      %v3261 = vadd.f32 %v3193, %v3229
      %v3262 = vadd.f32 %v3194, %v3230
      %v3263 = vadd.f32 %v3195, %v3231
      %v3264 = vadd.f32 %v3196, %v3232
      %v3265 = vadd.f32 %v3197, %v3233
      %v3266 = vadd.f32 %v3198, %v3234
      %v3267 = vadd.f32 %v3199, %v3235
      %v3268 = vadd.f32 %v3200, %v3236
      %v3269 = vadd.f32 %v3201, %v3237
      %v3270 = vadd.f32 %v3202, %v3238
      %v3271 = vadd.f32 %v3203, %v3239
      %v3272 = vadd.f32 %v3204, %v3240
      %v3273 = vadd.f32 %v3205, %v3241
      %v3274 = vadd.f32 %v3206, %v3242
      %v3275 = vadd.f32 %v3207, %v3243
      %v3276 = vadd.f32 %v3208, %v3244
      %v3277 = vadd.f32 %v3209, %v3245
      %v3278 = vadd.f32 %v3210, %v3246
      %v3279 = vadd.f32 %v3211, %v3247
      %v3280 = vadd.f32 %v3212, %v3248
      %v3281 = vadd.f32 %v3213, %v3249
      %v3282 = vadd.f32 %v3214, %v3250
      %v3283 = vadd.f32 %v3215, %v3251
      %v3284 = vadd.f32 %v3216, %v3252
      %v3285 = vadd.f32 %v3217, %v3253
      %v3286 = vadd.f32 %v3218, %v3254
      %v3287 = vadd.f32 %v3219, %v3255
      %v3288 = vadd.f32 %v3220, %v3256
      %v3289 = vadd.f32 %v3221, %v3257
      %v3290 = vadd.f32 %v3222, %v3258
      %v3291 = vadd.f32 %v3223, %v3259
      %v3292 = vadd.f32 %v3224, %v3260
      %v3293 = vunpack.c.l.bf16 %v2629
      %v3294 = vunpack.c.h.bf16 %v2629
      %v3295 = vmul.f32 %v2637, %v1081
      %v3296 = vmul.f32 %v2638, %v1085
      %v3297 = vmul.f32 %v2639, %v1081
      %v3298 = vmul.f32 %v2640, %v1085
      %v3299 = vmul.f32 %v2731, %v1081
      %v3300 = vmul.f32 %v2732, %v1085
      %v3301 = vmul.f32 %v2641, %v1081
      %v3302 = vmul.f32 %v2642, %v1085
      %v3303 = vmul.f32 %v2643, %v1081
      %v3304 = vmul.f32 %v2644, %v1085
      %v3305 = vmul.f32 %v2733, %v1081
      %v3306 = vmul.f32 %v2734, %v1085
      %v3307 = vmul.f32 %v2645, %v1081
      %v3308 = vmul.f32 %v2646, %v1085
      %v3309 = vmul.f32 %v2647, %v1081
      %v3310 = vmul.f32 %v2648, %v1085
      %v3311 = vmul.f32 %v2735, %v1081
      %v3312 = vmul.f32 %v2736, %v1085
      %v3313 = vmul.f32 %v2649, %v1081
      %v3314 = vmul.f32 %v2650, %v1085
      %v3315 = vmul.f32 %v2651, %v1081
      %v3316 = vmul.f32 %v2652, %v1085
      %v3317 = vmul.f32 %v2737, %v1081
      %v3318 = vmul.f32 %v2738, %v1085
      %v3319 = vmul.f32 %v2653, %v1081
      %v3320 = vmul.f32 %v2654, %v1085
      %v3321 = vmul.f32 %v2655, %v1081
      %v3322 = vmul.f32 %v2656, %v1085
      %v3323 = vmul.f32 %v2739, %v1081
      %v3324 = vmul.f32 %v2740, %v1085
      %v3325 = vmul.f32 %v2657, %v1081
      %v3326 = vmul.f32 %v2658, %v1085
      %v3327 = vmul.f32 %v2659, %v1081
      %v3328 = vmul.f32 %v2660, %v1085
      %v3329 = vmul.f32 %v2741, %v1081
      %v3330 = vmul.f32 %v2742, %v1085
      %v3331 = vmul.f32 %v2661, %v1081
      %v3332 = vmul.f32 %v2662, %v1085
      %v3333 = vmul.f32 %v2663, %v1081
      %v3334 = vmul.f32 %v2664, %v1085
      %v3335 = vmul.f32 %v2743, %v1081
      %v3336 = vmul.f32 %v2744, %v1085
      %v3337 = vmul.f32 %v3225, %v1081
      %v3338 = vmul.f32 %v3226, %v1085
      %v3339 = vmul.f32 %v3227, %v1081
      %v3340 = vmul.f32 %v3228, %v1085
      %v3341 = vmul.f32 %v3293, %v1081
      %v3342 = vmul.f32 %v3294, %v1085
      %v3391 = vrot.slane %v3295, 1
      %v3392 = vrot.slane %v3297, 1
      %v3393 = vsel %vm606, %v3391, %v3392
      %v3394 = vrot.slane %v3296, 1
      %v3395 = vrot.slane %v3298, 1
      %v3396 = vsel %vm606, %v3394, %v3395
      %v3397 = vrot.slane %v3299, 1
      %v3398 = vsel %vm606, %v3392, %v3397
      %v3399 = vrot.slane %v3300, 1
      %v3400 = vsel %vm606, %v3395, %v3399
      %v3401 = vrot.slane %v3301, 1
      %v3402 = vrot.slane %v3303, 1
      %v3403 = vsel %vm606, %v3401, %v3402
      %v3404 = vrot.slane %v3302, 1
      %v3405 = vrot.slane %v3304, 1
      %v3406 = vsel %vm606, %v3404, %v3405
      %v3407 = vrot.slane %v3305, 1
      %v3408 = vsel %vm606, %v3402, %v3407
      %v3409 = vrot.slane %v3306, 1
      %v3410 = vsel %vm606, %v3405, %v3409
      %v3411 = vrot.slane %v3307, 1
      %v3412 = vrot.slane %v3309, 1
      %v3413 = vsel %vm606, %v3411, %v3412
      %v3414 = vrot.slane %v3308, 1
      %v3415 = vrot.slane %v3310, 1
      %v3416 = vsel %vm606, %v3414, %v3415
      %v3417 = vrot.slane %v3311, 1
      %v3418 = vsel %vm606, %v3412, %v3417
      %v3419 = vrot.slane %v3312, 1
      %v3420 = vsel %vm606, %v3415, %v3419
      %v3421 = vrot.slane %v3313, 1
      %v3422 = vrot.slane %v3315, 1
      %v3423 = vsel %vm606, %v3421, %v3422
      %v3424 = vrot.slane %v3314, 1
      %v3425 = vrot.slane %v3316, 1
      %v3426 = vsel %vm606, %v3424, %v3425
      %v3427 = vrot.slane %v3317, 1
      %v3428 = vsel %vm606, %v3422, %v3427
      %v3429 = vrot.slane %v3318, 1
      %v3430 = vsel %vm606, %v3425, %v3429
      %v3431 = vrot.slane %v3319, 1
      %v3432 = vrot.slane %v3321, 1
      %v3433 = vsel %vm606, %v3431, %v3432
      %v3434 = vrot.slane %v3320, 1
      %v3435 = vrot.slane %v3322, 1
      %v3436 = vsel %vm606, %v3434, %v3435
      %v3437 = vrot.slane %v3323, 1
      %v3438 = vsel %vm606, %v3432, %v3437
      %v3439 = vrot.slane %v3324, 1
      %v3440 = vsel %vm606, %v3435, %v3439
      %v3441 = vrot.slane %v3325, 1
      %v3442 = vrot.slane %v3327, 1
      %v3443 = vsel %vm606, %v3441, %v3442
      %v3444 = vrot.slane %v3326, 1
      %v3445 = vrot.slane %v3328, 1
      %v3446 = vsel %vm606, %v3444, %v3445
      %v3447 = vrot.slane %v3329, 1
      %v3448 = vsel %vm606, %v3442, %v3447
      %v3449 = vrot.slane %v3330, 1
      %v3450 = vsel %vm606, %v3445, %v3449
      %v3451 = vrot.slane %v3331, 1
      %v3452 = vrot.slane %v3333, 1
      %v3453 = vsel %vm606, %v3451, %v3452
      %v3454 = vrot.slane %v3332, 1
      %v3455 = vrot.slane %v3334, 1
      %v3456 = vsel %vm606, %v3454, %v3455
      %v3457 = vrot.slane %v3335, 1
      %v3458 = vsel %vm606, %v3452, %v3457
      %v3459 = vrot.slane %v3336, 1
      %v3460 = vsel %vm606, %v3455, %v3459
      %v3461 = vrot.slane %v3337, 1
      %v3462 = vrot.slane %v3339, 1
      %v3463 = vsel %vm606, %v3461, %v3462
      %v3464 = vrot.slane %v3338, 1
      %v3465 = vrot.slane %v3340, 1
      %v3466 = vsel %vm606, %v3464, %v3465
      %v3467 = vrot.slane %v3341, 1
      %v3468 = vsel %vm606, %v3462, %v3467
      %v3469 = vrot.slane %v3342, 1
      %v3470 = vsel %vm606, %v3465, %v3469
      %v3503 = vadd.f32 %v3261, %v3393
      %v3504 = vadd.f32 %v3262, %v3396
      %v3505 = vadd.f32 %v3263, %v3398
      %v3506 = vadd.f32 %v3264, %v3400
      %v3507 = vadd.f32 %v3265, %v3403
      %v3508 = vadd.f32 %v3266, %v3406
      %v3509 = vadd.f32 %v3267, %v3408
      %v3510 = vadd.f32 %v3268, %v3410
      %v3511 = vadd.f32 %v3269, %v3413
      %v3512 = vadd.f32 %v3270, %v3416
      %v3513 = vadd.f32 %v3271, %v3418
      %v3514 = vadd.f32 %v3272, %v3420
      %v3515 = vadd.f32 %v3273, %v3423
      %v3516 = vadd.f32 %v3274, %v3426
      %v3517 = vadd.f32 %v3275, %v3428
      %v3518 = vadd.f32 %v3276, %v3430
      %v3519 = vadd.f32 %v3277, %v3433
      %v3520 = vadd.f32 %v3278, %v3436
      %v3521 = vadd.f32 %v3279, %v3438
      %v3522 = vadd.f32 %v3280, %v3440
      %v3523 = vadd.f32 %v3281, %v3443
      %v3524 = vadd.f32 %v3282, %v3446
      %v3525 = vadd.f32 %v3283, %v3448
      %v3526 = vadd.f32 %v3284, %v3450
      %v3527 = vadd.f32 %v3285, %v3453
      %v3528 = vadd.f32 %v3286, %v3456
      %v3529 = vadd.f32 %v3287, %v3458
      %v3530 = vadd.f32 %v3288, %v3460
      %v3531 = vadd.f32 %v3289, %v3463
      %v3532 = vadd.f32 %v3290, %v3466
      %v3533 = vadd.f32 %v3291, %v3468
      %v3534 = vadd.f32 %v3292, %v3470
      %v3535 = vmul.f32 %v2637, %v1329
      %v3536 = vmul.f32 %v2638, %v1333
      %v3537 = vmul.f32 %v2639, %v1329
      %v3538 = vmul.f32 %v2640, %v1333
      %v3539 = vmul.f32 %v2731, %v1329
      %v3540 = vmul.f32 %v2732, %v1333
      %v3541 = vmul.f32 %v2641, %v1329
      %v3542 = vmul.f32 %v2642, %v1333
      %v3543 = vmul.f32 %v2643, %v1329
      %v3544 = vmul.f32 %v2644, %v1333
      %v3545 = vmul.f32 %v2733, %v1329
      %v3546 = vmul.f32 %v2734, %v1333
      %v3547 = vmul.f32 %v2645, %v1329
      %v3548 = vmul.f32 %v2646, %v1333
      %v3549 = vmul.f32 %v2647, %v1329
      %v3550 = vmul.f32 %v2648, %v1333
      %v3551 = vmul.f32 %v2735, %v1329
      %v3552 = vmul.f32 %v2736, %v1333
      %v3553 = vmul.f32 %v2649, %v1329
      %v3554 = vmul.f32 %v2650, %v1333
      %v3555 = vmul.f32 %v2651, %v1329
      %v3556 = vmul.f32 %v2652, %v1333
      %v3557 = vmul.f32 %v2737, %v1329
      %v3558 = vmul.f32 %v2738, %v1333
      %v3559 = vmul.f32 %v2653, %v1329
      %v3560 = vmul.f32 %v2654, %v1333
      %v3561 = vmul.f32 %v2655, %v1329
      %v3562 = vmul.f32 %v2656, %v1333
      %v3563 = vmul.f32 %v2739, %v1329
      %v3564 = vmul.f32 %v2740, %v1333
      %v3565 = vmul.f32 %v2657, %v1329
      %v3566 = vmul.f32 %v2658, %v1333
      %v3567 = vmul.f32 %v2659, %v1329
      %v3568 = vmul.f32 %v2660, %v1333
      %v3569 = vmul.f32 %v2741, %v1329
      %v3570 = vmul.f32 %v2742, %v1333
      %v3571 = vmul.f32 %v2661, %v1329
      %v3572 = vmul.f32 %v2662, %v1333
      %v3573 = vmul.f32 %v2663, %v1329
      %v3574 = vmul.f32 %v2664, %v1333
      %v3575 = vmul.f32 %v2743, %v1329
      %v3576 = vmul.f32 %v2744, %v1333
      %v3577 = vmul.f32 %v3225, %v1329
      %v3578 = vmul.f32 %v3226, %v1333
      %v3579 = vmul.f32 %v3227, %v1329
      %v3580 = vmul.f32 %v3228, %v1333
      %v3581 = vmul.f32 %v3293, %v1329
      %v3582 = vmul.f32 %v3294, %v1333
      %v3631 = vrot.slane %v3535, 2
      %v3632 = vrot.slane %v3537, 2
      %v3633 = vsel %vm855, %v3631, %v3632
      %v3634 = vrot.slane %v3536, 2
      %v3635 = vrot.slane %v3538, 2
      %v3636 = vsel %vm855, %v3634, %v3635
      %v3637 = vrot.slane %v3539, 2
      %v3638 = vsel %vm855, %v3632, %v3637
      %v3639 = vrot.slane %v3540, 2
      %v3640 = vsel %vm855, %v3635, %v3639
      %v3641 = vrot.slane %v3541, 2
      %v3642 = vrot.slane %v3543, 2
      %v3643 = vsel %vm855, %v3641, %v3642
      %v3644 = vrot.slane %v3542, 2
      %v3645 = vrot.slane %v3544, 2
      %v3646 = vsel %vm855, %v3644, %v3645
      %v3647 = vrot.slane %v3545, 2
      %v3648 = vsel %vm855, %v3642, %v3647
      %v3649 = vrot.slane %v3546, 2
      %v3650 = vsel %vm855, %v3645, %v3649
      %v3651 = vrot.slane %v3547, 2
      %v3652 = vrot.slane %v3549, 2
      %v3653 = vsel %vm855, %v3651, %v3652
      %v3654 = vrot.slane %v3548, 2
      %v3655 = vrot.slane %v3550, 2
      %v3656 = vsel %vm855, %v3654, %v3655
      %v3657 = vrot.slane %v3551, 2
      %v3658 = vsel %vm855, %v3652, %v3657
      %v3659 = vrot.slane %v3552, 2
      %v3660 = vsel %vm855, %v3655, %v3659
      %v3661 = vrot.slane %v3553, 2
      %v3662 = vrot.slane %v3555, 2
      %v3663 = vsel %vm855, %v3661, %v3662
      %v3664 = vrot.slane %v3554, 2
      %v3665 = vrot.slane %v3556, 2
      %v3666 = vsel %vm855, %v3664, %v3665
      %v3667 = vrot.slane %v3557, 2
      %v3668 = vsel %vm855, %v3662, %v3667
      %v3669 = vrot.slane %v3558, 2
      %v3670 = vsel %vm855, %v3665, %v3669
      %v3671 = vrot.slane %v3559, 2
      %v3672 = vrot.slane %v3561, 2
      %v3673 = vsel %vm855, %v3671, %v3672
      %v3674 = vrot.slane %v3560, 2
      %v3675 = vrot.slane %v3562, 2
      %v3676 = vsel %vm855, %v3674, %v3675
      %v3677 = vrot.slane %v3563, 2
      %v3678 = vsel %vm855, %v3672, %v3677
      %v3679 = vrot.slane %v3564, 2
      %v3680 = vsel %vm855, %v3675, %v3679
      %v3681 = vrot.slane %v3565, 2
      %v3682 = vrot.slane %v3567, 2
      %v3683 = vsel %vm855, %v3681, %v3682
      %v3684 = vrot.slane %v3566, 2
      %v3685 = vrot.slane %v3568, 2
      %v3686 = vsel %vm855, %v3684, %v3685
      %v3687 = vrot.slane %v3569, 2
      %v3688 = vsel %vm855, %v3682, %v3687
      %v3689 = vrot.slane %v3570, 2
      %v3690 = vsel %vm855, %v3685, %v3689
      %v3691 = vrot.slane %v3571, 2
      %v3692 = vrot.slane %v3573, 2
      %v3693 = vsel %vm855, %v3691, %v3692
      %v3694 = vrot.slane %v3572, 2
      %v3695 = vrot.slane %v3574, 2
      %v3696 = vsel %vm855, %v3694, %v3695
      %v3697 = vrot.slane %v3575, 2
      %v3698 = vsel %vm855, %v3692, %v3697
      %v3699 = vrot.slane %v3576, 2
      %v3700 = vsel %vm855, %v3695, %v3699
      %v3701 = vrot.slane %v3577, 2
      %v3702 = vrot.slane %v3579, 2
      %v3703 = vsel %vm855, %v3701, %v3702
      %v3704 = vrot.slane %v3578, 2
      %v3705 = vrot.slane %v3580, 2
      %v3706 = vsel %vm855, %v3704, %v3705
      %v3707 = vrot.slane %v3581, 2
      %v3708 = vsel %vm855, %v3702, %v3707
      %v3709 = vrot.slane %v3582, 2
      %v3710 = vsel %vm855, %v3705, %v3709
      %v3743 = vadd.f32 %v3503, %v3633
      %v3744 = vadd.f32 %v3504, %v3636
      %v3745 = vadd.f32 %v3505, %v3638
      %v3746 = vadd.f32 %v3506, %v3640
      %v3747 = vadd.f32 %v3507, %v3643
      %v3748 = vadd.f32 %v3508, %v3646
      %v3749 = vadd.f32 %v3509, %v3648
      %v3750 = vadd.f32 %v3510, %v3650
      %v3751 = vadd.f32 %v3511, %v3653
      %v3752 = vadd.f32 %v3512, %v3656
      %v3753 = vadd.f32 %v3513, %v3658
      %v3754 = vadd.f32 %v3514, %v3660
      %v3755 = vadd.f32 %v3515, %v3663
      %v3756 = vadd.f32 %v3516, %v3666
      %v3757 = vadd.f32 %v3517, %v3668
      %v3758 = vadd.f32 %v3518, %v3670
      %v3759 = vadd.f32 %v3519, %v3673
      %v3760 = vadd.f32 %v3520, %v3676
      %v3761 = vadd.f32 %v3521, %v3678
      %v3762 = vadd.f32 %v3522, %v3680
      %v3763 = vadd.f32 %v3523, %v3683
      %v3764 = vadd.f32 %v3524, %v3686
      %v3765 = vadd.f32 %v3525, %v3688
      %v3766 = vadd.f32 %v3526, %v3690
      %v3767 = vadd.f32 %v3527, %v3693
      %v3768 = vadd.f32 %v3528, %v3696
      %v3769 = vadd.f32 %v3529, %v3698
      %v3770 = vadd.f32 %v3530, %v3700
      %v3771 = vadd.f32 %v3531, %v3703
      %v3772 = vadd.f32 %v3532, %v3706
      %v3773 = vadd.f32 %v3533, %v3708
      %v3774 = vadd.f32 %v3534, %v3710
      %v3775 = vunpack.c.l.bf16 %v2630
      %v3776 = vunpack.c.h.bf16 %v2630
      %v3777 = vunpack.c.l.bf16 %v2631
      %v3778 = vunpack.c.h.bf16 %v2631
      %v3779 = vmul.f32 %v2641, %v1581
      %v3780 = vmul.f32 %v2642, %v1585
      %v3781 = vmul.f32 %v2643, %v1581
      %v3782 = vmul.f32 %v2644, %v1585
      %v3783 = vmul.f32 %v2645, %v1581
      %v3784 = vmul.f32 %v2646, %v1585
      %v3785 = vmul.f32 %v2647, %v1581
      %v3786 = vmul.f32 %v2648, %v1585
      %v3787 = vmul.f32 %v2649, %v1581
      %v3788 = vmul.f32 %v2650, %v1585
      %v3789 = vmul.f32 %v2651, %v1581
      %v3790 = vmul.f32 %v2652, %v1585
      %v3791 = vmul.f32 %v2653, %v1581
      %v3792 = vmul.f32 %v2654, %v1585
      %v3793 = vmul.f32 %v2655, %v1581
      %v3794 = vmul.f32 %v2656, %v1585
      %v3795 = vmul.f32 %v2657, %v1581
      %v3796 = vmul.f32 %v2658, %v1585
      %v3797 = vmul.f32 %v2659, %v1581
      %v3798 = vmul.f32 %v2660, %v1585
      %v3799 = vmul.f32 %v2661, %v1581
      %v3800 = vmul.f32 %v2662, %v1585
      %v3801 = vmul.f32 %v2663, %v1581
      %v3802 = vmul.f32 %v2664, %v1585
      %v3803 = vmul.f32 %v3225, %v1581
      %v3804 = vmul.f32 %v3226, %v1585
      %v3805 = vmul.f32 %v3227, %v1581
      %v3806 = vmul.f32 %v3228, %v1585
      %v3807 = vmul.f32 %v3775, %v1581
      %v3808 = vmul.f32 %v3776, %v1585
      %v3809 = vmul.f32 %v3777, %v1581
      %v3810 = vmul.f32 %v3778, %v1585
      %v3811 = vadd.f32 %v3743, %v3779
      %v3812 = vadd.f32 %v3744, %v3780
      %v3813 = vadd.f32 %v3745, %v3781
      %v3814 = vadd.f32 %v3746, %v3782
      %v3815 = vadd.f32 %v3747, %v3783
      %v3816 = vadd.f32 %v3748, %v3784
      %v3817 = vadd.f32 %v3749, %v3785
      %v3818 = vadd.f32 %v3750, %v3786
      %v3819 = vadd.f32 %v3751, %v3787
      %v3820 = vadd.f32 %v3752, %v3788
      %v3821 = vadd.f32 %v3753, %v3789
      %v3822 = vadd.f32 %v3754, %v3790
      %v3823 = vadd.f32 %v3755, %v3791
      %v3824 = vadd.f32 %v3756, %v3792
      %v3825 = vadd.f32 %v3757, %v3793
      %v3826 = vadd.f32 %v3758, %v3794
      %v3827 = vadd.f32 %v3759, %v3795
      %v3828 = vadd.f32 %v3760, %v3796
      %v3829 = vadd.f32 %v3761, %v3797
      %v3830 = vadd.f32 %v3762, %v3798
      %v3831 = vadd.f32 %v3763, %v3799
      %v3832 = vadd.f32 %v3764, %v3800
      %v3833 = vadd.f32 %v3765, %v3801
      %v3834 = vadd.f32 %v3766, %v3802
      %v3835 = vadd.f32 %v3767, %v3803
      %v3836 = vadd.f32 %v3768, %v3804
      %v3837 = vadd.f32 %v3769, %v3805
      %v3838 = vadd.f32 %v3770, %v3806
      %v3839 = vadd.f32 %v3771, %v3807
      %v3840 = vadd.f32 %v3772, %v3808
      %v3841 = vadd.f32 %v3773, %v3809
      %v3842 = vadd.f32 %v3774, %v3810
      %v3843 = vunpack.c.l.bf16 %v2632
      %v3844 = vunpack.c.h.bf16 %v2632
      %v3845 = vmul.f32 %v2641, %v1655
      %v3846 = vmul.f32 %v2642, %v1659
      %v3847 = vmul.f32 %v2643, %v1655
      %v3848 = vmul.f32 %v2644, %v1659
      %v3849 = vmul.f32 %v2733, %v1655
      %v3850 = vmul.f32 %v2734, %v1659
      %v3851 = vmul.f32 %v2645, %v1655
      %v3852 = vmul.f32 %v2646, %v1659
      %v3853 = vmul.f32 %v2647, %v1655
      %v3854 = vmul.f32 %v2648, %v1659
      %v3855 = vmul.f32 %v2735, %v1655
      %v3856 = vmul.f32 %v2736, %v1659
      %v3857 = vmul.f32 %v2649, %v1655
      %v3858 = vmul.f32 %v2650, %v1659
      %v3859 = vmul.f32 %v2651, %v1655
      %v3860 = vmul.f32 %v2652, %v1659
      %v3861 = vmul.f32 %v2737, %v1655
      %v3862 = vmul.f32 %v2738, %v1659
      %v3863 = vmul.f32 %v2653, %v1655
      %v3864 = vmul.f32 %v2654, %v1659
      %v3865 = vmul.f32 %v2655, %v1655
      %v3866 = vmul.f32 %v2656, %v1659
      %v3867 = vmul.f32 %v2739, %v1655
      %v3868 = vmul.f32 %v2740, %v1659
      %v3869 = vmul.f32 %v2657, %v1655
      %v3870 = vmul.f32 %v2658, %v1659
      %v3871 = vmul.f32 %v2659, %v1655
      %v3872 = vmul.f32 %v2660, %v1659
      %v3873 = vmul.f32 %v2741, %v1655
      %v3874 = vmul.f32 %v2742, %v1659
      %v3875 = vmul.f32 %v2661, %v1655
      %v3876 = vmul.f32 %v2662, %v1659
      %v3877 = vmul.f32 %v2663, %v1655
      %v3878 = vmul.f32 %v2664, %v1659
      %v3879 = vmul.f32 %v2743, %v1655
      %v3880 = vmul.f32 %v2744, %v1659
      %v3881 = vmul.f32 %v3225, %v1655
      %v3882 = vmul.f32 %v3226, %v1659
      %v3883 = vmul.f32 %v3227, %v1655
      %v3884 = vmul.f32 %v3228, %v1659
      %v3885 = vmul.f32 %v3293, %v1655
      %v3886 = vmul.f32 %v3294, %v1659
      %v3887 = vmul.f32 %v3775, %v1655
      %v3888 = vmul.f32 %v3776, %v1659
      %v3889 = vmul.f32 %v3777, %v1655
      %v3890 = vmul.f32 %v3778, %v1659
      %v3891 = vmul.f32 %v3843, %v1655
      %v3892 = vmul.f32 %v3844, %v1659
      %v3941 = vrot.slane %v3845, 1
      %v3942 = vrot.slane %v3847, 1
      %v3943 = vsel %vm606, %v3941, %v3942
      %v3944 = vrot.slane %v3846, 1
      %v3945 = vrot.slane %v3848, 1
      %v3946 = vsel %vm606, %v3944, %v3945
      %v3947 = vrot.slane %v3849, 1
      %v3948 = vsel %vm606, %v3942, %v3947
      %v3949 = vrot.slane %v3850, 1
      %v3950 = vsel %vm606, %v3945, %v3949
      %v3951 = vrot.slane %v3851, 1
      %v3952 = vrot.slane %v3853, 1
      %v3953 = vsel %vm606, %v3951, %v3952
      %v3954 = vrot.slane %v3852, 1
      %v3955 = vrot.slane %v3854, 1
      %v3956 = vsel %vm606, %v3954, %v3955
      %v3957 = vrot.slane %v3855, 1
      %v3958 = vsel %vm606, %v3952, %v3957
      %v3959 = vrot.slane %v3856, 1
      %v3960 = vsel %vm606, %v3955, %v3959
      %v3961 = vrot.slane %v3857, 1
      %v3962 = vrot.slane %v3859, 1
      %v3963 = vsel %vm606, %v3961, %v3962
      %v3964 = vrot.slane %v3858, 1
      %v3965 = vrot.slane %v3860, 1
      %v3966 = vsel %vm606, %v3964, %v3965
      %v3967 = vrot.slane %v3861, 1
      %v3968 = vsel %vm606, %v3962, %v3967
      %v3969 = vrot.slane %v3862, 1
      %v3970 = vsel %vm606, %v3965, %v3969
      %v3971 = vrot.slane %v3863, 1
      %v3972 = vrot.slane %v3865, 1
      %v3973 = vsel %vm606, %v3971, %v3972
      %v3974 = vrot.slane %v3864, 1
      %v3975 = vrot.slane %v3866, 1
      %v3976 = vsel %vm606, %v3974, %v3975
      %v3977 = vrot.slane %v3867, 1
      %v3978 = vsel %vm606, %v3972, %v3977
      %v3979 = vrot.slane %v3868, 1
      %v3980 = vsel %vm606, %v3975, %v3979
      %v3981 = vrot.slane %v3869, 1
      %v3982 = vrot.slane %v3871, 1
      %v3983 = vsel %vm606, %v3981, %v3982
      %v3984 = vrot.slane %v3870, 1
      %v3985 = vrot.slane %v3872, 1
      %v3986 = vsel %vm606, %v3984, %v3985
      %v3987 = vrot.slane %v3873, 1
      %v3988 = vsel %vm606, %v3982, %v3987
      %v3989 = vrot.slane %v3874, 1
      %v3990 = vsel %vm606, %v3985, %v3989
      %v3991 = vrot.slane %v3875, 1
      %v3992 = vrot.slane %v3877, 1
      %v3993 = vsel %vm606, %v3991, %v3992
      %v3994 = vrot.slane %v3876, 1
      %v3995 = vrot.slane %v3878, 1
      %v3996 = vsel %vm606, %v3994, %v3995
      %v3997 = vrot.slane %v3879, 1
      %v3998 = vsel %vm606, %v3992, %v3997
      %v3999 = vrot.slane %v3880, 1
      %v4000 = vsel %vm606, %v3995, %v3999
      %v4001 = vrot.slane %v3881, 1
      %v4002 = vrot.slane %v3883, 1
      %v4003 = vsel %vm606, %v4001, %v4002
      %v4004 = vrot.slane %v3882, 1
      %v4005 = vrot.slane %v3884, 1
      %v4006 = vsel %vm606, %v4004, %v4005
      %v4007 = vrot.slane %v3885, 1
      %v4008 = vsel %vm606, %v4002, %v4007
      %v4009 = vrot.slane %v3886, 1
      %v4010 = vsel %vm606, %v4005, %v4009
      %v4011 = vrot.slane %v3887, 1
      %v4012 = vrot.slane %v3889, 1
      %v4013 = vsel %vm606, %v4011, %v4012
      %v4014 = vrot.slane %v3888, 1
      %v4015 = vrot.slane %v3890, 1
      %v4016 = vsel %vm606, %v4014, %v4015
      %v4017 = vrot.slane %v3891, 1
      %v4018 = vsel %vm606, %v4012, %v4017
      %v4019 = vrot.slane %v3892, 1
      %v4020 = vsel %vm606, %v4015, %v4019
      %v4053 = vadd.f32 %v3811, %v3943
      %v4054 = vadd.f32 %v3812, %v3946
      %v4055 = vadd.f32 %v3813, %v3948
      %v4056 = vadd.f32 %v3814, %v3950
      %v4057 = vadd.f32 %v3815, %v3953
      %v4058 = vadd.f32 %v3816, %v3956
      %v4059 = vadd.f32 %v3817, %v3958
      %v4060 = vadd.f32 %v3818, %v3960
      %v4061 = vadd.f32 %v3819, %v3963
      %v4062 = vadd.f32 %v3820, %v3966
      %v4063 = vadd.f32 %v3821, %v3968
      %v4064 = vadd.f32 %v3822, %v3970
      %v4065 = vadd.f32 %v3823, %v3973
      %v4066 = vadd.f32 %v3824, %v3976
      %v4067 = vadd.f32 %v3825, %v3978
      %v4068 = vadd.f32 %v3826, %v3980
      %v4069 = vadd.f32 %v3827, %v3983
      %v4070 = vadd.f32 %v3828, %v3986
      %v4071 = vadd.f32 %v3829, %v3988
      %v4072 = vadd.f32 %v3830, %v3990
      %v4073 = vadd.f32 %v3831, %v3993
      %v4074 = vadd.f32 %v3832, %v3996
      %v4075 = vadd.f32 %v3833, %v3998
      %v4076 = vadd.f32 %v3834, %v4000
      %v4077 = vadd.f32 %v3835, %v4003
      %v4078 = vadd.f32 %v3836, %v4006
      %v4079 = vadd.f32 %v3837, %v4008
      %v4080 = vadd.f32 %v3838, %v4010
      %v4081 = vadd.f32 %v3839, %v4013
      %v4082 = vadd.f32 %v3840, %v4016
      %v4083 = vadd.f32 %v3841, %v4018
      %v4084 = vadd.f32 %v3842, %v4020
      %v4085 = vmul.f32 %v2641, %v1903
      %v4086 = vmul.f32 %v2642, %v1907
      %v4087 = vmul.f32 %v2643, %v1903
      %v4088 = vmul.f32 %v2644, %v1907
      %v4089 = vmul.f32 %v2733, %v1903
      %v4090 = vmul.f32 %v2734, %v1907
      %v4091 = vmul.f32 %v2645, %v1903
      %v4092 = vmul.f32 %v2646, %v1907
      %v4093 = vmul.f32 %v2647, %v1903
      %v4094 = vmul.f32 %v2648, %v1907
      %v4095 = vmul.f32 %v2735, %v1903
      %v4096 = vmul.f32 %v2736, %v1907
      %v4097 = vmul.f32 %v2649, %v1903
      %v4098 = vmul.f32 %v2650, %v1907
      %v4099 = vmul.f32 %v2651, %v1903
      %v4100 = vmul.f32 %v2652, %v1907
      %v4101 = vmul.f32 %v2737, %v1903
      %v4102 = vmul.f32 %v2738, %v1907
      %v4103 = vmul.f32 %v2653, %v1903
      %v4104 = vmul.f32 %v2654, %v1907
      %v4105 = vmul.f32 %v2655, %v1903
      %v4106 = vmul.f32 %v2656, %v1907
      %v4107 = vmul.f32 %v2739, %v1903
      %v4108 = vmul.f32 %v2740, %v1907
      %v4109 = vmul.f32 %v2657, %v1903
      %v4110 = vmul.f32 %v2658, %v1907
      %v4111 = vmul.f32 %v2659, %v1903
      %v4112 = vmul.f32 %v2660, %v1907
      %v4113 = vmul.f32 %v2741, %v1903
      %v4114 = vmul.f32 %v2742, %v1907
      %v4115 = vmul.f32 %v2661, %v1903
      %v4116 = vmul.f32 %v2662, %v1907
      %v4117 = vmul.f32 %v2663, %v1903
      %v4118 = vmul.f32 %v2664, %v1907
      %v4119 = vmul.f32 %v2743, %v1903
      %v4120 = vmul.f32 %v2744, %v1907
      %v4121 = vmul.f32 %v3225, %v1903
      %v4122 = vmul.f32 %v3226, %v1907
      %v4123 = vmul.f32 %v3227, %v1903
      %v4124 = vmul.f32 %v3228, %v1907
      %v4125 = vmul.f32 %v3293, %v1903
      %v4126 = vmul.f32 %v3294, %v1907
      %v4127 = vmul.f32 %v3775, %v1903
      %v4128 = vmul.f32 %v3776, %v1907
      %v4129 = vmul.f32 %v3777, %v1903
      %v4130 = vmul.f32 %v3778, %v1907
      %v4131 = vmul.f32 %v3843, %v1903
      %v4132 = vmul.f32 %v3844, %v1907
      %v4181 = vrot.slane %v4085, 2
      %v4182 = vrot.slane %v4087, 2
      %v4183 = vsel %vm855, %v4181, %v4182
      %v4184 = vrot.slane %v4086, 2
      %v4185 = vrot.slane %v4088, 2
      %v4186 = vsel %vm855, %v4184, %v4185
      %v4187 = vrot.slane %v4089, 2
      %v4188 = vsel %vm855, %v4182, %v4187
      %v4189 = vrot.slane %v4090, 2
      %v4190 = vsel %vm855, %v4185, %v4189
      %v4191 = vrot.slane %v4091, 2
      %v4192 = vrot.slane %v4093, 2
      %v4193 = vsel %vm855, %v4191, %v4192
      %v4194 = vrot.slane %v4092, 2
      %v4195 = vrot.slane %v4094, 2
      %v4196 = vsel %vm855, %v4194, %v4195
      %v4197 = vrot.slane %v4095, 2
      %v4198 = vsel %vm855, %v4192, %v4197
      %v4199 = vrot.slane %v4096, 2
      %v4200 = vsel %vm855, %v4195, %v4199
      %v4201 = vrot.slane %v4097, 2
      %v4202 = vrot.slane %v4099, 2
      %v4203 = vsel %vm855, %v4201, %v4202
      %v4204 = vrot.slane %v4098, 2
      %v4205 = vrot.slane %v4100, 2
      %v4206 = vsel %vm855, %v4204, %v4205
      %v4207 = vrot.slane %v4101, 2
      %v4208 = vsel %vm855, %v4202, %v4207
      %v4209 = vrot.slane %v4102, 2
      %v4210 = vsel %vm855, %v4205, %v4209
      %v4211 = vrot.slane %v4103, 2
      %v4212 = vrot.slane %v4105, 2
      %v4213 = vsel %vm855, %v4211, %v4212
      %v4214 = vrot.slane %v4104, 2
      %v4215 = vrot.slane %v4106, 2
      %v4216 = vsel %vm855, %v4214, %v4215
      %v4217 = vrot.slane %v4107, 2
      %v4218 = vsel %vm855, %v4212, %v4217
      %v4219 = vrot.slane %v4108, 2
      %v4220 = vsel %vm855, %v4215, %v4219
      %v4221 = vrot.slane %v4109, 2
      %v4222 = vrot.slane %v4111, 2
      %v4223 = vsel %vm855, %v4221, %v4222
      %v4224 = vrot.slane %v4110, 2
      %v4225 = vrot.slane %v4112, 2
      %v4226 = vsel %vm855, %v4224, %v4225
      %v4227 = vrot.slane %v4113, 2
      %v4228 = vsel %vm855, %v4222, %v4227
      %v4229 = vrot.slane %v4114, 2
      %v4230 = vsel %vm855, %v4225, %v4229
      %v4231 = vrot.slane %v4115, 2
      %v4232 = vrot.slane %v4117, 2
      %v4233 = vsel %vm855, %v4231, %v4232
      %v4234 = vrot.slane %v4116, 2
      %v4235 = vrot.slane %v4118, 2
      %v4236 = vsel %vm855, %v4234, %v4235
      %v4237 = vrot.slane %v4119, 2
      %v4238 = vsel %vm855, %v4232, %v4237
      %v4239 = vrot.slane %v4120, 2
      %v4240 = vsel %vm855, %v4235, %v4239
      %v4241 = vrot.slane %v4121, 2
      %v4242 = vrot.slane %v4123, 2
      %v4243 = vsel %vm855, %v4241, %v4242
      %v4244 = vrot.slane %v4122, 2
      %v4245 = vrot.slane %v4124, 2
      %v4246 = vsel %vm855, %v4244, %v4245
      %v4247 = vrot.slane %v4125, 2
      %v4248 = vsel %vm855, %v4242, %v4247
      %v4249 = vrot.slane %v4126, 2
      %v4250 = vsel %vm855, %v4245, %v4249
      %v4251 = vrot.slane %v4127, 2
      %v4252 = vrot.slane %v4129, 2
      %v4253 = vsel %vm855, %v4251, %v4252
      %v4254 = vrot.slane %v4128, 2
      %v4255 = vrot.slane %v4130, 2
      %v4256 = vsel %vm855, %v4254, %v4255
      %v4257 = vrot.slane %v4131, 2
      %v4258 = vsel %vm855, %v4252, %v4257
      %v4259 = vrot.slane %v4132, 2
      %v4260 = vsel %vm855, %v4255, %v4259
      %v4293 = vadd.f32 %v4053, %v4183
      %v4294 = vadd.f32 %v4054, %v4186
      %v4295 = vadd.f32 %v4055, %v4188
      %v4296 = vadd.f32 %v4056, %v4190
      %v4297 = vadd.f32 %v4057, %v4193
      %v4298 = vadd.f32 %v4058, %v4196
      %v4299 = vadd.f32 %v4059, %v4198
      %v4300 = vadd.f32 %v4060, %v4200
      %v4301 = vadd.f32 %v4061, %v4203
      %v4302 = vadd.f32 %v4062, %v4206
      %v4303 = vadd.f32 %v4063, %v4208
      %v4304 = vadd.f32 %v4064, %v4210
      %v4305 = vadd.f32 %v4065, %v4213
      %v4306 = vadd.f32 %v4066, %v4216
      %v4307 = vadd.f32 %v4067, %v4218
      %v4308 = vadd.f32 %v4068, %v4220
      %v4309 = vadd.f32 %v4069, %v4223
      %v4310 = vadd.f32 %v4070, %v4226
      %v4311 = vadd.f32 %v4071, %v4228
      %v4312 = vadd.f32 %v4072, %v4230
      %v4313 = vadd.f32 %v4073, %v4233
      %v4314 = vadd.f32 %v4074, %v4236
      %v4315 = vadd.f32 %v4075, %v4238
      %v4316 = vadd.f32 %v4076, %v4240
      %v4317 = vadd.f32 %v4077, %v4243
      %v4318 = vadd.f32 %v4078, %v4246
      %v4319 = vadd.f32 %v4079, %v4248
      %v4320 = vadd.f32 %v4080, %v4250
      %v4321 = vadd.f32 %v4081, %v4253
      %v4322 = vadd.f32 %v4082, %v4256
      %v4323 = vadd.f32 %v4083, %v4258
      %v4324 = vadd.f32 %v4084, %v4260
      %v4325 = vmul.f32 %v4293, %v2152
      %v4326 = vmul.f32 %v4294, %v2156
      %v4327 = vmul.f32 %v4295, %v2152
      %v4328 = vmul.f32 %v4296, %v2156
      %v4329 = vmul.f32 %v4297, %v2152
      %v4330 = vmul.f32 %v4298, %v2156
      %v4331 = vmul.f32 %v4299, %v2152
      %v4332 = vmul.f32 %v4300, %v2156
      %v4333 = vmul.f32 %v4301, %v2152
      %v4334 = vmul.f32 %v4302, %v2156
      %v4335 = vmul.f32 %v4303, %v2152
      %v4336 = vmul.f32 %v4304, %v2156
      %v4337 = vmul.f32 %v4305, %v2152
      %v4338 = vmul.f32 %v4306, %v2156
      %v4339 = vmul.f32 %v4307, %v2152
      %v4340 = vmul.f32 %v4308, %v2156
      %v4341 = vmul.f32 %v4309, %v2152
      %v4342 = vmul.f32 %v4310, %v2156
      %v4343 = vmul.f32 %v4311, %v2152
      %v4344 = vmul.f32 %v4312, %v2156
      %v4345 = vmul.f32 %v4313, %v2152
      %v4346 = vmul.f32 %v4314, %v2156
      %v4347 = vmul.f32 %v4315, %v2152
      %v4348 = vmul.f32 %v4316, %v2156
      %v4349 = vmul.f32 %v4317, %v2152
      %v4350 = vmul.f32 %v4318, %v2156
      %v4351 = vmul.f32 %v4319, %v2152
      %v4352 = vmul.f32 %v4320, %v2156
      %v4353 = vmul.f32 %v4321, %v2152
      %v4354 = vmul.f32 %v4322, %v2156
      %v4355 = vmul.f32 %v4323, %v2152
      %v4356 = vmul.f32 %v4324, %v2156
      %v4357 = vadd.f32 %v4325, %v2195
      %v4358 = vadd.f32 %v4326, %v2199
      %v4359 = vadd.f32 %v4327, %v2195
      %v4360 = vadd.f32 %v4328, %v2199
      %v4361 = vadd.f32 %v4329, %v2195
      %v4362 = vadd.f32 %v4330, %v2199
      %v4363 = vadd.f32 %v4331, %v2195
      %v4364 = vadd.f32 %v4332, %v2199
      %v4365 = vadd.f32 %v4333, %v2195
      %v4366 = vadd.f32 %v4334, %v2199
      %v4367 = vadd.f32 %v4335, %v2195
      %v4368 = vadd.f32 %v4336, %v2199
      %v4369 = vadd.f32 %v4337, %v2195
      %v4370 = vadd.f32 %v4338, %v2199
      %v4371 = vadd.f32 %v4339, %v2195
      %v4372 = vadd.f32 %v4340, %v2199
      %v4373 = vadd.f32 %v4341, %v2195
      %v4374 = vadd.f32 %v4342, %v2199
      %v4375 = vadd.f32 %v4343, %v2195
      %v4376 = vadd.f32 %v4344, %v2199
      %v4377 = vadd.f32 %v4345, %v2195
      %v4378 = vadd.f32 %v4346, %v2199
      %v4379 = vadd.f32 %v4347, %v2195
      %v4380 = vadd.f32 %v4348, %v2199
      %v4381 = vadd.f32 %v4349, %v2195
      %v4382 = vadd.f32 %v4350, %v2199
      %v4383 = vadd.f32 %v4351, %v2195
      %v4384 = vadd.f32 %v4352, %v2199
      %v4385 = vadd.f32 %v4353, %v2195
      %v4386 = vadd.f32 %v4354, %v2199
      %v4387 = vadd.f32 %v4355, %v2195
      %v4388 = vadd.f32 %v4356, %v2199
      %v4389 = vsub.f32 0.0, %v4357
      %v4390 = vsub.f32 0.0, %v4358
      %v4391 = vsub.f32 0.0, %v4359
      %v4392 = vsub.f32 0.0, %v4360
      %v4393 = vsub.f32 0.0, %v4361
      %v4394 = vsub.f32 0.0, %v4362
      %v4395 = vsub.f32 0.0, %v4363
      %v4396 = vsub.f32 0.0, %v4364
      %v4397 = vsub.f32 0.0, %v4365
      %v4398 = vsub.f32 0.0, %v4366
      %v4399 = vsub.f32 0.0, %v4367
      %v4400 = vsub.f32 0.0, %v4368
      %v4401 = vsub.f32 0.0, %v4369
      %v4402 = vsub.f32 0.0, %v4370
      %v4403 = vsub.f32 0.0, %v4371
      %v4404 = vsub.f32 0.0, %v4372
      %v4405 = vsub.f32 0.0, %v4373
      %v4406 = vsub.f32 0.0, %v4374
      %v4407 = vsub.f32 0.0, %v4375
      %v4408 = vsub.f32 0.0, %v4376
      %v4409 = vsub.f32 0.0, %v4377
      %v4410 = vsub.f32 0.0, %v4378
      %v4411 = vsub.f32 0.0, %v4379
      %v4412 = vsub.f32 0.0, %v4380
      %v4413 = vsub.f32 0.0, %v4381
      %v4414 = vsub.f32 0.0, %v4382
      %v4415 = vsub.f32 0.0, %v4383
      %v4416 = vsub.f32 0.0, %v4384
      %v4417 = vsub.f32 0.0, %v4385
      %v4418 = vsub.f32 0.0, %v4386
      %v4419 = vsub.f32 0.0, %v4387
      %v4420 = vsub.f32 0.0, %v4388
      %v4421 = vmul.f32 %v4389, 1.442695
      %v4422 = vpow.pop %v4421
      %v4423 = vmul.f32 %v4390, 1.442695
      %v4424 = vpow.pop %v4423
      %v4425 = vmul.f32 %v4391, 1.442695
      %v4426 = vpow.pop %v4425
      %v4427 = vmul.f32 %v4392, 1.442695
      %v4428 = vpow.pop %v4427
      %v4429 = vmul.f32 %v4393, 1.442695
      %v4430 = vpow.pop %v4429
      %v4431 = vmul.f32 %v4394, 1.442695
      %v4432 = vpow.pop %v4431
      %v4433 = vmul.f32 %v4395, 1.442695
      %v4434 = vpow.pop %v4433
      %v4435 = vmul.f32 %v4396, 1.442695
      %v4436 = vpow.pop %v4435
      %v4437 = vmul.f32 %v4397, 1.442695
      %v4438 = vpow.pop %v4437
      %v4439 = vmul.f32 %v4398, 1.442695
      %v4440 = vpow.pop %v4439
      %v4441 = vmul.f32 %v4399, 1.442695
      %v4442 = vpow.pop %v4441
      %v4443 = vmul.f32 %v4400, 1.442695
      %v4444 = vpow.pop %v4443
      %v4445 = vmul.f32 %v4401, 1.442695
      %v4446 = vpow.pop %v4445
      %v4447 = vmul.f32 %v4402, 1.442695
      %v4448 = vpow.pop %v4447
      %v4449 = vmul.f32 %v4403, 1.442695
      %v4450 = vpow.pop %v4449
      %v4451 = vmul.f32 %v4404, 1.442695
      %v4452 = vpow.pop %v4451
      %v4453 = vmul.f32 %v4405, 1.442695
      %v4454 = vpow.pop %v4453
      %v4455 = vmul.f32 %v4406, 1.442695
      %v4456 = vpow.pop %v4455
      %v4457 = vmul.f32 %v4407, 1.442695
      %v4458 = vpow.pop %v4457
      %v4459 = vmul.f32 %v4408, 1.442695
      %v4460 = vpow.pop %v4459
      %v4461 = vmul.f32 %v4409, 1.442695
      %v4462 = vpow.pop %v4461
      %v4463 = vmul.f32 %v4410, 1.442695
      %v4464 = vpow.pop %v4463
      %v4465 = vmul.f32 %v4411, 1.442695
      %v4466 = vpow.pop %v4465
      %v4467 = vmul.f32 %v4412, 1.442695
      %v4468 = vpow.pop %v4467
      %v4469 = vmul.f32 %v4413, 1.442695
      %v4470 = vpow.pop %v4469
      %v4471 = vmul.f32 %v4414, 1.442695
      %v4472 = vpow.pop %v4471
      %v4473 = vmul.f32 %v4415, 1.442695
      %v4474 = vpow.pop %v4473
      %v4475 = vmul.f32 %v4416, 1.442695
      %v4476 = vpow.pop %v4475
      %v4477 = vmul.f32 %v4417, 1.442695
      %v4478 = vpow.pop %v4477
      %v4479 = vmul.f32 %v4418, 1.442695
      %v4480 = vpow.pop %v4479
      %v4481 = vmul.f32 %v4419, 1.442695
      %v4482 = vpow.pop %v4481
      %v4483 = vmul.f32 %v4420, 1.442695
      %v4484 = vpow.pop %v4483
      %v4485 = vadd.f32 %v4422, 1.0
      %v4486 = vadd.f32 %v4424, 1.0
      %v4487 = vadd.f32 %v4426, 1.0
      %v4488 = vadd.f32 %v4428, 1.0
      %v4489 = vadd.f32 %v4430, 1.0
      %v4490 = vadd.f32 %v4432, 1.0
      %v4491 = vadd.f32 %v4434, 1.0
      %v4492 = vadd.f32 %v4436, 1.0
      %v4493 = vadd.f32 %v4438, 1.0
      %v4494 = vadd.f32 %v4440, 1.0
      %v4495 = vadd.f32 %v4442, 1.0
      %v4496 = vadd.f32 %v4444, 1.0
      %v4497 = vadd.f32 %v4446, 1.0
      %v4498 = vadd.f32 %v4448, 1.0
      %v4499 = vadd.f32 %v4450, 1.0
      %v4500 = vadd.f32 %v4452, 1.0
      %v4501 = vadd.f32 %v4454, 1.0
      %v4502 = vadd.f32 %v4456, 1.0
      %v4503 = vadd.f32 %v4458, 1.0
      %v4504 = vadd.f32 %v4460, 1.0
      %v4505 = vadd.f32 %v4462, 1.0
      %v4506 = vadd.f32 %v4464, 1.0
      %v4507 = vadd.f32 %v4466, 1.0
      %v4508 = vadd.f32 %v4468, 1.0
      %v4509 = vadd.f32 %v4470, 1.0
      %v4510 = vadd.f32 %v4472, 1.0
      %v4511 = vadd.f32 %v4474, 1.0
      %v4512 = vadd.f32 %v4476, 1.0
      %v4513 = vadd.f32 %v4478, 1.0
      %v4514 = vadd.f32 %v4480, 1.0
      %v4515 = vadd.f32 %v4482, 1.0
      %v4516 = vadd.f32 %v4484, 1.0
      %v4517 = vrcp.pop %v4485
      %v4518 = vrcp.pop %v4486
      %v4519 = vrcp.pop %v4487
      %v4520 = vrcp.pop %v4488
      %v4521 = vrcp.pop %v4489
      %v4522 = vrcp.pop %v4490
      %v4523 = vrcp.pop %v4491
      %v4524 = vrcp.pop %v4492
      %v4525 = vrcp.pop %v4493
      %v4526 = vrcp.pop %v4494
      %v4527 = vrcp.pop %v4495
      %v4528 = vrcp.pop %v4496
      %v4529 = vrcp.pop %v4497
      %v4530 = vrcp.pop %v4498
      %v4531 = vrcp.pop %v4499
      %v4532 = vrcp.pop %v4500
      %v4533 = vrcp.pop %v4501
      %v4534 = vrcp.pop %v4502
      %v4535 = vrcp.pop %v4503
      %v4536 = vrcp.pop %v4504
      %v4537 = vrcp.pop %v4505
      %v4538 = vrcp.pop %v4506
      %v4539 = vrcp.pop %v4507
      %v4540 = vrcp.pop %v4508
      %v4541 = vrcp.pop %v4509
      %v4542 = vrcp.pop %v4510
      %v4543 = vrcp.pop %v4511
      %v4544 = vrcp.pop %v4512
      %v4545 = vrcp.pop %v4513
      %v4546 = vrcp.pop %v4514
      %v4547 = vrcp.pop %v4515
      %v4548 = vrcp.pop %v4516
      %v4549 = vmul.f32 %v4357, %v4517
      %v4550 = vmul.f32 %v4358, %v4518
      %v4551 = vmul.f32 %v4359, %v4519
      %v4552 = vmul.f32 %v4360, %v4520
      %v4553 = vmul.f32 %v4361, %v4521
      %v4554 = vmul.f32 %v4362, %v4522
      %v4555 = vmul.f32 %v4363, %v4523
      %v4556 = vmul.f32 %v4364, %v4524
      %v4557 = vmul.f32 %v4365, %v4525
      %v4558 = vmul.f32 %v4366, %v4526
      %v4559 = vmul.f32 %v4367, %v4527
      %v4560 = vmul.f32 %v4368, %v4528
      %v4561 = vmul.f32 %v4369, %v4529
      %v4562 = vmul.f32 %v4370, %v4530
      %v4563 = vmul.f32 %v4371, %v4531
      %v4564 = vmul.f32 %v4372, %v4532
      %v4565 = vmul.f32 %v4373, %v4533
      %v4566 = vmul.f32 %v4374, %v4534
      %v4567 = vmul.f32 %v4375, %v4535
      %v4568 = vmul.f32 %v4376, %v4536
      %v4569 = vmul.f32 %v4377, %v4537
      %v4570 = vmul.f32 %v4378, %v4538
      %v4571 = vmul.f32 %v4379, %v4539
      %v4572 = vmul.f32 %v4380, %v4540
      %v4573 = vmul.f32 %v4381, %v4541
      %v4574 = vmul.f32 %v4382, %v4542
      %v4575 = vmul.f32 %v4383, %v4543
      %v4576 = vmul.f32 %v4384, %v4544
      %v4577 = vmul.f32 %v4385, %v4545
      %v4578 = vmul.f32 %v4386, %v4546
      %v4579 = vmul.f32 %v4387, %v4547
      %v4580 = vmul.f32 %v4388, %v4548
      %v4581 = vpack.c.bf16 %v4551, %v4549
      %v4582 = vpack.c.bf16 %v4552, %v4550
      %v4583 = vpack.c.bf16 %v4555, %v4553
      %v4584 = vpack.c.bf16 %v4556, %v4554
      %v4585 = vpack.c.bf16 %v4559, %v4557
      %v4586 = vpack.c.bf16 %v4560, %v4558
      %v4587 = vpack.c.bf16 %v4563, %v4561
      %v4588 = vpack.c.bf16 %v4564, %v4562
      %v4589 = vpack.c.bf16 %v4567, %v4565
      %v4590 = vpack.c.bf16 %v4568, %v4566
      %v4591 = vpack.c.bf16 %v4571, %v4569
      %v4592 = vpack.c.bf16 %v4572, %v4570
      %v4593 = vpack.c.bf16 %v4575, %v4573
      %v4594 = vpack.c.bf16 %v4576, %v4574
      %v4595 = vpack.c.bf16 %v4579, %v4577
      %v4596 = vpack.c.bf16 %v4580, %v4578
      %v4613 = vunpack.c.l.b16 %v4581
      %v4614 = vunpack.c.l.b16 %v4582
      %v4615 = vunpack.c.h.b16 %v4581
      %v4616 = vunpack.c.h.b16 %v4582
      %v4617 = vunpack.c.l.b16 %v4583
      %v4618 = vunpack.c.l.b16 %v4584
      %v4619 = vunpack.c.h.b16 %v4583
      %v4620 = vunpack.c.h.b16 %v4584
      %v4621 = vunpack.c.l.b16 %v4585
      %v4622 = vunpack.c.l.b16 %v4586
      %v4623 = vunpack.c.h.b16 %v4585
      %v4624 = vunpack.c.h.b16 %v4586
      %v4625 = vunpack.c.l.b16 %v4587
      %v4626 = vunpack.c.l.b16 %v4588
      %v4627 = vunpack.c.h.b16 %v4587
      %v4628 = vunpack.c.h.b16 %v4588
      %v4629 = vunpack.c.l.b16 %v4589
      %v4630 = vunpack.c.l.b16 %v4590
      %v4631 = vunpack.c.h.b16 %v4589
      %v4632 = vunpack.c.h.b16 %v4590
      %v4633 = vunpack.c.l.b16 %v4591
      %v4634 = vunpack.c.l.b16 %v4592
      %v4635 = vunpack.c.h.b16 %v4591
      %v4636 = vunpack.c.h.b16 %v4592
      %v4637 = vunpack.c.l.b16 %v4593
      %v4638 = vunpack.c.l.b16 %v4594
      %v4639 = vunpack.c.h.b16 %v4593
      %v4640 = vunpack.c.h.b16 %v4594
      %v4641 = vunpack.c.l.b16 %v4595
      %v4642 = vunpack.c.l.b16 %v4596
      %v4643 = vunpack.c.h.b16 %v4595
      %v4644 = vunpack.c.h.b16 %v4596
      %v4645 = vpack.c.b16 %v4614, %v4613
      %v4646 = vpack.c.b16 %v4616, %v4615
      %v4647 = vpack.c.b16 %v4618, %v4617
      %v4648 = vpack.c.b16 %v4620, %v4619
      %v4649 = vpack.c.b16 %v4622, %v4621
      %v4650 = vpack.c.b16 %v4624, %v4623
      %v4651 = vpack.c.b16 %v4626, %v4625
      %v4652 = vpack.c.b16 %v4628, %v4627
      %v4653 = vpack.c.b16 %v4630, %v4629
      %v4654 = vpack.c.b16 %v4632, %v4631
      %v4655 = vpack.c.b16 %v4634, %v4633
      %v4656 = vpack.c.b16 %v4636, %v4635
      %v4657 = vpack.c.b16 %v4638, %v4637
      %v4658 = vpack.c.b16 %v4640, %v4639
      %v4659 = vpack.c.b16 %v4642, %v4641
      %v4660 = vpack.c.b16 %v4644, %v4643
      %s4677 = scalar_lea.vmem %s339, 128
      %4678 = vst.msk [vmem:[%s4677] sm:$0xff] %vm2524, %v4645
      %4679 = vst.msk [vmem:[%s4677 + $0x8] sm:$0xff] %vm2524, %v4646
      %4680 = vst.msk [vmem:[%s4677 + $0x10] sm:$0xff] %vm2524, %v4647
      %4681 = vst.msk [vmem:[%s4677 + $0x18] sm:$0xff] %vm2524, %v4648
      %4682 = vst.msk [vmem:[%s4677 + $0x20] sm:$0xff] %vm2524, %v4649
      %4683 = vst.msk [vmem:[%s4677 + $0x28] sm:$0xff] %vm2524, %v4650
      %4684 = vst.msk [vmem:[%s4677 + $0x30] sm:$0xff] %vm2524, %v4651
      %4685 = vst.msk [vmem:[%s4677 + $0x38] sm:$0xff] %vm2524, %v4652
      %4686 = vst.msk [vmem:[%s4677 + $0x40] sm:$0xff] %vm2524, %v4653
      %4687 = vst.msk [vmem:[%s4677 + $0x48] sm:$0xff] %vm2524, %v4654
      %4688 = vst.msk [vmem:[%s4677 + $0x50] sm:$0xff] %vm2524, %v4655
      %4689 = vst.msk [vmem:[%s4677 + $0x58] sm:$0xff] %vm2524, %v4656
      %4690 = vst.msk [vmem:[%s4677 + $0x60] sm:$0xff] %vm2524, %v4657
      %4691 = vst.msk [vmem:[%s4677 + $0x68] sm:$0xff] %vm2524, %v4658
      %4692 = vst.msk [vmem:[%s4677 + $0x70] sm:$0xff] %vm2524, %v4659
      %4693 = vst.msk [vmem:[%s4677 + $0x78] sm:$0xff] %vm2524, %v4660
      %v4694 = vadd.f32 %v4549, %v4551
      %v4695 = vadd.f32 %v4694, %v4553
      %v4696 = vadd.f32 %v4695, %v4555
      %v4697 = vadd.f32 %v4696, %v4557
      %v4698 = vadd.f32 %v4697, %v4559
      %v4699 = vadd.f32 %v4698, %v4561
      %v4700 = vadd.f32 %v4699, %v4563
      %v4701 = vadd.f32 %v4700, %v4565
      %v4702 = vadd.f32 %v4701, %v4567
      %v4703 = vadd.f32 %v4702, %v4569
      %v4704 = vadd.f32 %v4703, %v4571
      %v4705 = vadd.f32 %v4704, %v4573
      %v4706 = vadd.f32 %v4705, %v4575
      %v4707 = vadd.f32 %v4706, %v4577
      %v4708 = vadd.f32 %v4707, %v4579
      %v4709 = vrot.slane %v4708, 4
      %v4710 = vadd.f32 %v4708, %v4709
      %v4711 = vrot.slane %v4710, 2
      %v4712 = vadd.f32 %v4710, %v4711
      %v4713 = vrot.slane %v4712, 1
      %v4714 = vadd.f32 %v4712, %v4713
      %v4715 = vsel %vm2562, %v4550, 0.0
      %v4716 = vsel %vm2562, %v4552, 0.0
      %v4717 = vadd.f32 %v4715, %v4716
      %v4718 = vsel %vm2562, %v4554, 0.0
      %v4719 = vadd.f32 %v4717, %v4718
      %v4720 = vsel %vm2562, %v4556, 0.0
      %v4721 = vadd.f32 %v4719, %v4720
      %v4722 = vsel %vm2562, %v4558, 0.0
      %v4723 = vadd.f32 %v4721, %v4722
      %v4724 = vsel %vm2562, %v4560, 0.0
      %v4725 = vadd.f32 %v4723, %v4724
      %v4726 = vsel %vm2562, %v4562, 0.0
      %v4727 = vadd.f32 %v4725, %v4726
      %v4728 = vsel %vm2562, %v4564, 0.0
      %v4729 = vadd.f32 %v4727, %v4728
      %v4730 = vsel %vm2562, %v4566, 0.0
      %v4731 = vadd.f32 %v4729, %v4730
      %v4732 = vsel %vm2562, %v4568, 0.0
      %v4733 = vadd.f32 %v4731, %v4732
      %v4734 = vsel %vm2562, %v4570, 0.0
      %v4735 = vadd.f32 %v4733, %v4734
      %v4736 = vsel %vm2562, %v4572, 0.0
      %v4737 = vadd.f32 %v4735, %v4736
      %v4738 = vsel %vm2562, %v4574, 0.0
      %v4739 = vadd.f32 %v4737, %v4738
      %v4740 = vsel %vm2562, %v4576, 0.0
      %v4741 = vadd.f32 %v4739, %v4740
      %v4742 = vsel %vm2562, %v4578, 0.0
      %v4743 = vadd.f32 %v4741, %v4742
      %v4744 = vsel %vm2562, %v4580, 0.0
      %v4745 = vadd.f32 %v4743, %v4744
      %v4746 = vrot.slane %v4745, 4
      %v4747 = vadd.f32 %v4745, %v4746
      %v4748 = vrot.slane %v4747, 2
      %v4749 = vadd.f32 %v4747, %v4748
      %v4750 = vrot.slane %v4749, 1
      %v4751 = vadd.f32 %v4749, %v4750
      %v4752 = vadd.f32 %v2600, %v4714
      %v4753 = vadd.f32 %v2601, %v4751
      %v4754 = vmul.f32 %v4752, 0.00390625
      %v4755 = vmul.f32 %v4753, 0.00390625
      %v4756 = vld [vmem:[%s4] sm:$0xff]
      %v4757 = vld [vmem:[%s4 + $0x8] sm:$0xff]
      %v4758 = vld [vmem:[%s4 + $0x10] sm:$0xff]
      %v4759 = vld [vmem:[%s4 + $0x18] sm:$0xff]
      %v4760 = vld [vmem:[%s4 + $0x20] sm:$0xff]
      %v4761 = vld [vmem:[%s4 + $0x28] sm:$0xff]
      %v4762 = vld [vmem:[%s4 + $0x30] sm:$0xff]
      %v4763 = vld [vmem:[%s4 + $0x38] sm:$0xff]
      %v4764 = vld [vmem:[%s4 + $0x40] sm:$0xff]
      %v4765 = vld [vmem:[%s4 + $0x48] sm:$0xff]
      %v4766 = vld [vmem:[%s4 + $0x50] sm:$0xff]
      %v4767 = vld [vmem:[%s4 + $0x58] sm:$0xff]
      %v4768 = vld [vmem:[%s4 + $0x60] sm:$0xff]
      %v4769 = vld [vmem:[%s4 + $0x68] sm:$0xff]
      %v4770 = vld [vmem:[%s4 + $0x70] sm:$0xff]
      %v4771 = vld [vmem:[%s4 + $0x78] sm:$0xff]
      %v4772 = vld [vmem:[%s4 + $0x80] sm:$0xff]
      %v4773 = vld [vmem:[%s4 + $0x88] sm:$0xff]
      %v4774 = vld [vmem:[%s4 + $0x90] sm:$0xff]
      %v4775 = vld [vmem:[%s4 + $0x98] sm:$0xff]
      %v4776 = vld [vmem:[%s4 + $0xa0] sm:$0xff]
      %v4777 = vld [vmem:[%s4 + $0xa8] sm:$0xff]
      %v4778 = vld [vmem:[%s4 + $0xb0] sm:$0xff]
      %v4779 = vld [vmem:[%s4 + $0xb8] sm:$0xff]
      %v4780 = vld [vmem:[%s5] sm:$0x1]
      %v4782 = vsel %vm2562, %v4755, 0
      %4784 = vmatprep.subr.mxu0 0.0
      %4785 = vmatpush1.msra.mxu0 %v4756
      %4786 = vmatprep.subr.mxu0 0.0
      %4787 = vmatpush1.msra.mxu0 %v4757
      %4788 = vmatprep.subr.mxu0 0.0
      %4789 = vmatpush1.msra.mxu0 %v4758
      %4790 = vmatprep.subr.mxu0 0.0
      %4791 = vmatpush1.msra.mxu0 %v4759
      %4792 = vmatprep.subr.mxu0 0.0
      %4793 = vmatpush1.msra.mxu0 %v4760
      %4794 = vmatprep.subr.mxu0 0.0
      %4795 = vmatpush1.msra.mxu0 %v4761
      %4796 = vmatprep.subr.mxu0 0.0
      %4797 = vmatpush1.msra.mxu0 %v4762
      %4798 = vmatprep.subr.mxu0 0.0
      %4799 = vmatpush1.msra.mxu0 %v4763
      %4800 = vmatprep.subr.mxu0 0.0
      %4801 = vmatpush1.msra.mxu0 %v4764
      %4802 = vmatprep.subr.mxu0 0.0
      %4803 = vmatpush1.msra.mxu0 %v4765
      %4804 = vmatprep.subr.mxu0 0.0
      %4805 = vmatpush1.msra.mxu0 %v4766
      %4806 = vmatprep.subr.mxu0 0.0
      %4807 = vmatpush1.msra.mxu0 %v4767
      %4808 = vmatprep.subr.mxu0 0.0
      %4809 = vmatpush1.msra.mxu0 %v4768
      %4810 = vmatprep.subr.mxu0 0.0
      %4811 = vmatpush1.msra.mxu0 %v4769
      %4812 = vmatprep.subr.mxu0 0.0
      %4813 = vmatpush1.msra.mxu0 %v4770
      %4814 = vmatprep.subr.mxu0 0.0
      %4815 = vmatpush1.msra.mxu0 %v4771
      %4816 = vmatprep.subr.mxu0 0.0
      %4817 = vmatpush1.msra.mxu0 %v4772
      %4818 = vmatprep.subr.mxu0 0.0
      %4819 = vmatpush1.msra.mxu0 %v4773
      %4820 = vmatprep.subr.mxu0 0.0
      %4821 = vmatpush1.msra.mxu0 %v4774
      %4822 = vmatprep.subr.mxu0 0.0
      %4823 = vmatpush1.msra.mxu0 %v4775
      %4824 = vmatprep.subr.mxu0 0.0
      %4825 = vmatpush1.msra.mxu0 %v4776
      %4826 = vmatprep.subr.mxu0 0.0
      %4827 = vmatpush1.msra.mxu0 %v4777
      %4828 = vmatprep.subr.mxu0 0.0
      %4829 = vmatpush1.msra.mxu0 %v4778
      %4830 = vmatprep.subr.mxu0 0.0
      %4831 = vmatpush1.msra.mxu0 %v4779
      %4832 = vmatprep.subr.mxu0 0.0
      %4833 = vmatpush1.msra.mxu0 0.0
      %4834 = vmatprep.subr.mxu0 0.0
      %4835 = vmatpush1.msra.mxu0 0.0
      %4836 = vmatprep.subr.mxu0 0.0
      %4837 = vmatpush1.msra.mxu0 0.0
      %4838 = vmatprep.subr.mxu0 0.0
      %4839 = vmatpush1.msra.mxu0 0.0
      %4840 = vmatprep.subr.mxu0 0.0
      %4841 = vmatpush1.msra.mxu0 0.0
      %4842 = vmatprep.subr.mxu0 0.0
      %4843 = vmatpush1.msra.mxu0 0.0
      %4844 = vmatprep.subr.mxu0 0.0
      %4845 = vmatpush1.msra.mxu0 0.0
      %4846 = vmatprep.subr.mxu0 0.0
      %4847 = vmatpush1.msra.mxu0 0.0
      %4848 = vmatprep.mubr.f32.mxu0 %v4782
      %4849 = vmatmul.mubr.f32.gmra.mrb[0].mxu0 %v4754
      %v4850 = vpop.f32.mrb[0].mxu0
      %v4851 = vadd.f32 %v4780, %v4850
      %v4852 = vpop.f32.mrb[0].mxu0
      %4853 = vdwg.mxu0
      %v4854 = vsub.f32 0.0, %v4851
      %v4855 = vmul.f32 %v4854, 1.442695
      %v4856 = vpow.pop %v4855
      %v4857 = vadd.f32 %v4856, 1.0
      %v4858 = vrcp.pop %v4857
      %v4859 = vmul.f32 %v4851, %v4858
      %v4860 = vld [vmem:[%s6] sm:$0xff]
      %v4861 = vld [vmem:[%s6 + $0x8] sm:$0xff]
      %v4862 = vld [vmem:[%s7] sm:$0x3]
      %v4864 = vlaneseq
      %v4865 = vshrl.u32 %v4864, 7
      %v4866 = vsub.s32 0, %v4865
      %v4867 = vrot.slane %v4862, %v4866
      %v4868 = vlaneseq
      %v4869 = vshrl.u32 %v4868, 7
      %v4870 = vsub.s32 1, %v4869
      %v4871 = vrot.slane %v4862, %v4870
      %vm4874 = vcmask 64512
      %v4876 = vsel %vm4874, %v4859, 0
      %4878 = vmatprep.subr.mxu0 %v4861
      %4879 = vmatpush1.msra.mxu0 %v4860
      %4880 = vmatprep.subr.mxu0 0.0
      %4881 = vmatpush1.msra.mxu0 0.0
      %4882 = vmatprep.subr.mxu0 0.0
      %4883 = vmatpush1.msra.mxu0 0.0
      %4884 = vmatprep.subr.mxu0 0.0
      %4885 = vmatpush1.msra.mxu0 0.0
      %4886 = vmatprep.subr.mxu0 0.0
      %4887 = vmatpush1.msra.mxu0 0.0
      %4888 = vmatprep.subr.mxu0 0.0
      %4889 = vmatpush1.msra.mxu0 0.0
      %4890 = vmatprep.subr.mxu0 0.0
      %4891 = vmatpush1.msra.mxu0 0.0
      %4892 = vmatprep.subr.mxu0 0.0
      %4893 = vmatpush1.msra.mxu0 0.0
      %4894 = vmatprep.subr.mxu0 0.0
      %4895 = vmatpush1.msra.mxu0 0.0
      %4896 = vmatprep.subr.mxu0 0.0
      %4897 = vmatpush1.msra.mxu0 0.0
      %4898 = vmatprep.subr.mxu0 0.0
      %4899 = vmatpush1.msra.mxu0 0.0
      %4900 = vmatprep.subr.mxu0 0.0
      %4901 = vmatpush1.msra.mxu0 0.0
      %4902 = vmatprep.subr.mxu0 0.0
      %4903 = vmatpush1.msra.mxu0 0.0
      %4904 = vmatprep.subr.mxu0 0.0
      %4905 = vmatpush1.msra.mxu0 0.0
      %4906 = vmatprep.subr.mxu0 0.0
      %4907 = vmatpush1.msra.mxu0 0.0
      %4908 = vmatprep.subr.mxu0 0.0
      %4909 = vmatpush1.msra.mxu0 0.0
      %4910 = vmatprep.subr.mxu0 0.0
      %4911 = vmatpush1.msra.mxu0 0.0
      %4912 = vmatprep.subr.mxu0 0.0
      %4913 = vmatpush1.msra.mxu0 0.0
      %4914 = vmatprep.subr.mxu0 0.0
      %4915 = vmatpush1.msra.mxu0 0.0
      %4916 = vmatprep.subr.mxu0 0.0
      %4917 = vmatpush1.msra.mxu0 0.0
      %4918 = vmatprep.subr.mxu0 0.0
      %4919 = vmatpush1.msra.mxu0 0.0
      %4920 = vmatprep.subr.mxu0 0.0
      %4921 = vmatpush1.msra.mxu0 0.0
      %4922 = vmatprep.subr.mxu0 0.0
      %4923 = vmatpush1.msra.mxu0 0.0
      %4924 = vmatprep.subr.mxu0 0.0
      %4925 = vmatpush1.msra.mxu0 0.0
      %4926 = vmatprep.subr.mxu0 0.0
      %4927 = vmatpush1.msra.mxu0 0.0
      %4928 = vmatprep.subr.mxu0 0.0
      %4929 = vmatpush1.msra.mxu0 0.0
      %4930 = vmatprep.subr.mxu0 0.0
      %4931 = vmatpush1.msra.mxu0 0.0
      %4932 = vmatprep.subr.mxu0 0.0
      %4933 = vmatpush1.msra.mxu0 0.0
      %4934 = vmatprep.subr.mxu0 0.0
      %4935 = vmatpush1.msra.mxu0 0.0
      %4936 = vmatprep.subr.mxu0 0.0
      %4937 = vmatpush1.msra.mxu0 0.0
      %4938 = vmatprep.subr.mxu0 0.0
      %4939 = vmatpush1.msra.mxu0 0.0
      %4940 = vmatprep.subr.mxu0 0.0
      %4941 = vmatpush1.msra.mxu0 0.0
      %4942 = vmatprep.mubr.f32.mxu0 0.0
      %4943 = vmatmul.mubr.f32.gmra.mrb[0].mxu0 %v4876
      %v4944 = vpop.f32.mrb[0].mxu0
      %v4945 = vadd.f32 %v4867, %v4944
      %v4946 = vpop.f32.mrb[0].mxu0
      %v4947 = vadd.f32 %v4871, %v4946
      %4948 = vdwg.mxu0
      %v4949 = vsub.f32 0.0, %v4945
      %v4950 = vsub.f32 0.0, %v4947
      %v4951 = vmul.f32 %v4949, 1.442695
      %v4952 = vpow.pop %v4951
      %v4953 = vmul.f32 %v4950, 1.442695
      %v4954 = vpow.pop %v4953
      %v4955 = vadd.f32 %v4952, 1.0
      %v4956 = vadd.f32 %v4954, 1.0
      %v4957 = vrcp.pop %v4955
      %v4958 = vrcp.pop %v4956
      %v4959 = vpack.c.bf16 %v4957, %v4957
      %v4960 = vpack.c.bf16 %v4958, %v4958
      %v4963 = vcombine.low %v4959, %v4960
      %v4965 = vunpack.c.l.s4 1966171168
      %v4966 = vunpack.c.0.s8 %v4965
      %v4967 = vlaneseq
      %v4968 = vshrl.u32 %v4967, 7
      %v4969 = vsub.s32 %v4966, %v4968
      %v4970 = vrot.slane %v4963, %v4969
      %v4972 = vunpack.c.l.s4 1966171168
      %v4973 = vunpack.c.0.s8 %v4972
      %v4974 = vlaneseq
      %v4975 = vshrl.u32 %v4974, 7
      %v4976 = vsub.s32 %v4973, %v4975
      %v4977 = vrot.slane %v4970, %v4976
      %vm4979 = vcmask 1040384
      %vm4980 = vsmask.f32 256
      %vm4981 = vmand %vm4979, %vm4980
      %vm4982 = vcmask 517121
      %vm4983 = vsmask.f32 1280
      %vm4984 = vmand %vm4982, %vm4983
      %vm4985 = vmor %vm4984, %vm4981
      %v4986 = vld [vmem:[%s343] sm:$0x3]
      %v4987 = vsel %vm4985, %v4977, %v4986
      %4988 = vst [vmem:[%s343] sm:$0x3] %v4987
      %p4989 = scmp.lt.s32.totalorder %s21, 1
      %s4990 = scalar_select %p4989, %s21, 1
      %s4991 = smul.addr %s4990, 64
      %s4992 = smul.addr %s4991, 4
      %s4993 = scalar_lea.vmem %s8, %s4992
      %p4994 = scmp.lt.s32.totalorder %s21, 1
      %s4995 = scalar_select %p4994, %s21, 1
      %s4996 = smul.addr %s4995, 2
      %s4997 = scalar_lea.vmem %s9, %s4996
      // Predicated region
      $region53: #{_lambda_.4} parent=51 // pred_check
        %p4998 = pneg %p212
      $region54: #{_lambda_.4} parent=51 // pred_check_branch
        %5000 = sbr.rel (%p4998) target = $region56
      $region55: #{_lambda_.4} parent=51 // pred_region
        _
      $region56: #{_lambda_.4} parent=51 // pred_fallthru
        _
      // Predicated region
      $region57: #{_lambda_.4} parent=51 // pred_check
        %p5001 = pneg %p238
      $region58: #{_lambda_.4} parent=51 // pred_check_branch
        %5003 = sbr.rel (%p5001) target = $region60
      $region59: #{_lambda_.4} parent=51 // pred_region
        _
      $region60: #{_lambda_.4} parent=51 // pred_fallthru
        _
    $region52: #{_lambda_.4} parent=5 // pred_fallthru
      _
    %p5004 = scmp.le.s32.totalorder 2, %s16
    // Predicated region
    $region61: #{_lambda_.4} parent=5 // pred_check
      %p5005 = pneg %p5004
    $region62: #{_lambda_.4} parent=5 // pred_check_branch
      %5007 = sbr.rel (%p5005) target = $region64
    $region63: #{_lambda_.4} parent=5 // pred_region
      %s5008 = ssub.s32 %s16, 2
      // Predicated region
      $region65: #{_lambda_.4} parent=63 // pred_check
        %p5009 = pneg %p218
      $region66: #{_lambda_.4} parent=63 // pred_check_branch
        %5011 = sbr.rel (%p5009) target = $region68
      $region67: #{_lambda_.4} parent=63 // pred_region
        %p5012 = scmp.lt.s32.totalorder %s22, 1
        %s5013 = scalar_select %p5012, %s22, 1
        %s5014 = smul.addr %s5013, 64
        %s5015 = smul.addr %s5014, 4
        %s5016 = scalar_lea.vmem %s8, %s5015
      $region68: #{_lambda_.4} parent=63 // pred_fallthru
        _
      // Predicated region
      $region69: #{_lambda_.4} parent=63 // pred_check
        %p5017 = pneg %p244
      $region70: #{_lambda_.4} parent=63 // pred_check_branch
        %5019 = sbr.rel (%p5017) target = $region72
      $region71: #{_lambda_.4} parent=63 // pred_region
        %p5020 = scmp.lt.s32.totalorder %s22, 1
        %s5021 = scalar_select %p5020, %s22, 1
        %s5022 = smul.addr %s5021, 2
        %s5023 = scalar_lea.vmem %s9, %s5022
      $region72: #{_lambda_.4} parent=63 // pred_fallthru
        _
    $region64: #{_lambda_.4} parent=5 // pred_fallthru
      _
  $region6: #{_lambda_.4} parent=0 // loop_footer
    %s20 = sadd.s32 1, %s16
  $region7: #{_lambda_.4} parent=0 // loop_footer_branch
    %15 = sbr.rel target = $region3
  $region8: #{_lambda_.4} parent=0 // loop_exit
    _

</llo_original>
